<compile_context>
chip_gen: v5e
topology: v5e:2x2
jax: 0.10.0
libtpu: 0.0.40
codegen_flags: <defaults>
</compile_context>

<pallas_src>
import math

import jax
import jax.numpy as jnp
from jax.experimental import pallas as pl
from jax.experimental.pallas import tpu as pltpu


MATMUL_DTYPE = jnp.bfloat16   # MXU operand dtype (accumulation is always f32)
LN_EPS = 1e-5
MASK_NEG = -1e9


# --------------------------------------------------------------------------
# In-kernel helpers (operate on values already loaded from refs).
# --------------------------------------------------------------------------
def _layer_norm(y, g, b):
    mu = jnp.mean(y, axis=-1, keepdims=True)
    var = jnp.mean(jnp.square(y - mu), axis=-1, keepdims=True)
    return (y - mu) * jax.lax.rsqrt(var + LN_EPS) * g + b


def _encoder_block(x, mask, params, n_head, md, approx_recip):
    """One nn.TransformerEncoderLayer (batch_first, dropout=0, relu, post-norm)
    applied to a flat (M, D) activation; the sequence structure is encoded by
    the additive block mask of shape (M, M)."""
    wqkv, bqkv, wo, bo, g1, be1, g2, be2, wf1, bf1, wf2, bf2 = params
    M, D = x.shape
    hd = D // n_head

    # Batched QKV projection over all positions (single MXU GEMM).
    qkv = jnp.dot(x.astype(md), wqkv, preferred_element_type=jnp.float32) + bqkv
    q, k, v = qkv[:, :D], qkv[:, D:2 * D], qkv[:, 2 * D:]

    attn = jnp.zeros((M, D), jnp.float32)
    for h in range(n_head):                      # n_head is tiny & static
        sl = slice(h * hd, (h + 1) * hd)
        qh = q[:, sl].astype(md)                 # scale already folded into wqkv/bqkv
        kh = k[:, sl].astype(md)
        vh = v[:, sl].astype(md)
        # Q @ K^T for all sequences at once, contracting on the last axes
        # (no explicit transpose); disallowed pairs get -1e9 from `mask`.
        s = jax.lax.dot_general(qh, kh, (((1,), (1,)), ((), ())),
                                preferred_element_type=jnp.float32)
        s = s + mask
        s = s - jnp.max(s, axis=-1, keepdims=True)
        p = jnp.exp(s)
        denom = jnp.sum(p, axis=-1, keepdims=True)
        if approx_recip:
            p = p * pl.reciprocal(denom, approx=True)   # EUP slot, keeps VALU free
        else:
            p = p / denom
        oh = jnp.dot(p.astype(md), vh, preferred_element_type=jnp.float32)
        # Accumulate the output projection per head (avoids the head concat).
        attn = attn + jnp.dot(oh.astype(md), wo[sl, :],
                              preferred_element_type=jnp.float32)
    attn = attn + bo

    x1 = _layer_norm(x + attn, g1, be1)
    ff = jnp.dot(x1.astype(md), wf1, preferred_element_type=jnp.float32) + bf1
    ff = jnp.maximum(ff, 0.0)
    ff = jnp.dot(ff.astype(md), wf2, preferred_element_type=jnp.float32) + bf2
    return _layer_norm(x1 + ff, g2, be2)


# --------------------------------------------------------------------------
# Fused whole-network kernel (one grid step == B_BLK batch elements).
# --------------------------------------------------------------------------
def _make_net_kernel(n_layer, n_head, b_blk, np_per, md, approx_recip):
    M = b_blk * np_per

    def kernel(x_ref, mrow_ref, mcol_ref,
               wqkv_ref, bqkv_ref, wo_ref, bo_ref, ln_ref,
               wf1_ref, bf1_ref, wf2_ref, bf2_ref,
               fcw1_ref, fcb1_ref, w2m_ref, b2m_ref, w2l_ref, b2l_ref,
               o_ref):
        x = x_ref[...]                           # (M, d) f32, bidder-major
        mask_row = mrow_ref[...]
        mask_col = mcol_ref[...]

        def enc_params(i):                       # static slices of packed blobs
            ln = ln_ref[i]                       # (4, d): g1, b1, g2, b2
            return (wqkv_ref[i], bqkv_ref[i], wo_ref[i], bo_ref[i],
                    ln[0:1], ln[1:2], ln[2:3], ln[3:4],
                    wf1_ref[i], bf1_ref[i], wf2_ref[i], bf2_ref[i])

        for layer in range(n_layer):             # static unroll over layers
            # Row transformer: sequences over items (contiguous n_item blocks).
            row = _encoder_block(x, mask_row, enc_params(2 * layer),
                                 n_head, md, approx_recip)
            # Col transformer: same slab, mask re-indexed to same-item pairs
            # (permutation matmuls removed -- encoder is permutation-equivariant).
            col = _encoder_block(x, mask_col, enc_params(2 * layer + 1),
                                 n_head, md, approx_recip)

            w1r = fcw1_ref[layer, 0]
            w1c = fcw1_ref[layer, 1]
            w1g = fcw1_ref[layer, 2]
            b1 = fcb1_ref[layer]
            dh = w1r.shape[1]

            # Exact per-batch-element global mean (sublane reduce, no MXU);
            # project the (b_blk, d) means through w1g once, then broadcast.
            means = jnp.concatenate(
                [jnp.mean(x[b * np_per:(b + 1) * np_per, :], axis=0, keepdims=True)
                 for b in range(b_blk)], axis=0)                       # (b_blk, d)
            glo_h = jnp.dot(means.astype(md), w1g,
                            preferred_element_type=jnp.float32)        # (b_blk, dh)
            glo_rows = jnp.concatenate(
                [jnp.broadcast_to(glo_h[b:b + 1], (np_per, dh))
                 for b in range(b_blk)], axis=0)                       # (M, dh)

            # Fused concat([row, col, glo]) @ W1 + b1 -> relu -> @ W2 + b2.
            h = (jnp.dot(row.astype(md), w1r, preferred_element_type=jnp.float32)
                 + jnp.dot(col.astype(md), w1c, preferred_element_type=jnp.float32)
                 + glo_rows + b1)
            h = jnp.maximum(h, 0.0)

            if layer < n_layer - 1:
                x = (jnp.dot(h.astype(md), w2m_ref[layer],
                             preferred_element_type=jnp.float32) + b2m_ref[layer])
            else:
                # Last layer: lane-dense padded (dh, 128) weights -> (M, 128) slab.
                x = (jnp.dot(h.astype(md), w2l_ref[...],
                             preferred_element_type=jnp.float32) + b2l_ref[...])

        o_ref[...] = x                           # unmasked 128-lane store

    return kernel


# --------------------------------------------------------------------------
# Wrapper: constants, parameter packing, BlockSpecs, pallas_call.
# --------------------------------------------------------------------------
def _full_spec(a):
    zeros = (0,) * a.ndim
    return pl.BlockSpec(a.shape, lambda g, _z=zeros: _z)


def _choose_b_blk(bs, np_per, target_m=256):
    """Largest divisor of bs such that the GEMM M dim stays <= target_m."""
    b_blk = 1
    for cand in range(1, bs + 1):
        if bs % cand == 0 and cand * np_per <= target_m:
            b_blk = cand
    return b_blk


def transformer2d_forward(x, layers, n_head, matmul_dtype=MATMUL_DTYPE,
                          b_blk=None, approx_recip=True):
    bs, n_bidder, n_item, d_in = x.shape
    np_per = n_bidder * n_item
    n_layer = len(layers)
    d_hidden = layers[0]["fc"][0].shape[1]
    d_output = layers[-1]["fc"][4].shape[1]
    d_out_pad = ((d_output + 127) // 128) * 128      # lane-dense output width

    if b_blk is None:
        b_blk = _choose_b_blk(bs, np_per)
    assert bs % b_blk == 0
    M = b_blk * np_per
    n_steps = bs // b_blk

    # Additive masks encoding the 2-D sequence structure on the flat bidder-major
    # (M, d) slab covering b_blk batch elements (cross-batch entries masked).
    pos = jnp.arange(M)
    row_allow = (pos[:, None] // n_item) == (pos[None, :] // n_item)
    col_allow = (((pos[:, None] // np_per) == (pos[None, :] // np_per))
                 & ((pos[:, None] % n_item) == (pos[None, :] % n_item)))
    mask_row = jnp.where(row_allow, 0.0, MASK_NEG).astype(jnp.float32)
    mask_col = jnp.where(col_allow, 0.0, MASK_NEG).astype(jnp.float32)

    # ---- pack parameters into a few stacked blobs (weights pre-cast to bf16) ----
    wqkv_s, bqkv_s, wo_s, bo_s, ln_s = [], [], [], [], []
    wf1_s, bf1_s, wf2_s, bf2_s = [], [], [], []
    for layer in layers:
        for which in ("row", "col"):
            (wqkv, bqkv, wo, bo, g1, be1, g2, be2, wf1, bf1, wf2, bf2) = layer[which]
            wqkv_s.append(wqkv.astype(matmul_dtype))
            bqkv_s.append(bqkv)
            wo_s.append(wo.astype(matmul_dtype))
            bo_s.append(bo)
            ln_s.append(jnp.concatenate([g1, be1, g2, be2], axis=0))   # (4, d)
            wf1_s.append(wf1.astype(matmul_dtype))
            bf1_s.append(bf1)
            wf2_s.append(wf2.astype(matmul_dtype))
            bf2_s.append(bf2)
    wqkv_all = jnp.stack(wqkv_s)       # (2L, d, 3d) bf16
    bqkv_all = jnp.stack(bqkv_s)       # (2L, 1, 3d) f32
    wo_all = jnp.stack(wo_s)           # (2L, d, d)  bf16
    bo_all = jnp.stack(bo_s)           # (2L, 1, d)  f32
    ln_all = jnp.stack(ln_s)           # (2L, 4, d)  f32
    wf1_all = jnp.stack(wf1_s)         # (2L, d, dh) bf16
    bf1_all = jnp.stack(bf1_s)         # (2L, 1, dh) f32
    wf2_all = jnp.stack(wf2_s)         # (2L, dh, d) bf16
    bf2_all = jnp.stack(bf2_s)         # (2L, 1, d)  f32

    fcw1_s, fcb1_s, w2m_s, b2m_s = [], [], [], []
    w2_last = b2_last = None
    for i, layer in enumerate(layers):
        w1r, w1c, w1g, b1, w2, b2 = layer["fc"]
        fcw1_s.append(jnp.stack([w1r, w1c, w1g]).astype(matmul_dtype))  # (3, d, dh)
        fcb1_s.append(b1)
        if i < n_layer - 1:
            w2m_s.append(w2.astype(matmul_dtype))
            b2m_s.append(b2)
        else:
            w2_last = jnp.pad(w2.astype(matmul_dtype),
                              ((0, 0), (0, d_out_pad - d_output)))
            b2_last = jnp.pad(b2, ((0, 0), (0, d_out_pad - d_output)))
    fcw1_all = jnp.stack(fcw1_s)       # (L, 3, d, dh) bf16
    fcb1_all = jnp.stack(fcb1_s)       # (L, 1, dh)    f32
    if w2m_s:
        w2m_all = jnp.stack(w2m_s)     # (L-1, dh, dh) bf16
        b2m_all = jnp.stack(b2m_s)     # (L-1, 1, dh)  f32
    else:                              # never read when n_layer == 1
        w2m_all = jnp.zeros((1, d_hidden, d_hidden), matmul_dtype)
        b2m_all = jnp.zeros((1, 1, d_hidden), jnp.float32)

    const_inputs = [mask_row, mask_col,
                    wqkv_all, bqkv_all, wo_all, bo_all, ln_all,
                    wf1_all, bf1_all, wf2_all, bf2_all,
                    fcw1_all, fcb1_all, w2m_all, b2m_all, w2_last, b2_last]

    x_flat = x.reshape(bs * np_per, d_in)
    kernel = _make_net_kernel(n_layer, n_head, b_blk, np_per, matmul_dtype,
                              approx_recip)

    out_flat = pl.pallas_call(
        kernel,
        out_shape=jax.ShapeDtypeStruct((bs * np_per, d_out_pad), jnp.float32),
        grid=(n_steps,),
        in_specs=[pl.BlockSpec((M, d_in), lambda g: (g, 0))]
                 + [_full_spec(a) for a in const_inputs],
        out_specs=pl.BlockSpec((M, d_out_pad), lambda g: (g, 0)),
        compiler_params=pltpu.CompilerParams(
            dimension_semantics=("parallel",)),   # batch-block axis across TCs (v7x)
    )(x_flat, *const_inputs)

    out = out_flat.reshape(bs, n_bidder, n_item, d_out_pad)
    return out[..., :d_output]                    # drop lane padding outside kernel


# --------------------------------------------------------------------------
# Deterministic parameter construction (synthetic weights, (in, out) layout,
# attention scale folded into the Q columns of the in-projection).
# --------------------------------------------------------------------------
def _init_encoder_params(key, d_model, d_ff, n_head):
    ks = jax.random.split(key, 8)
    s = 0.08
    wqkv = s * jax.random.normal(ks[0], (d_model, 3 * d_model), jnp.float32)
    bqkv = s * jax.random.normal(ks[1], (1, 3 * d_model), jnp.float32)
    scale = 1.0 / math.sqrt(d_model // n_head)
    col_scale = jnp.concatenate(
        [jnp.full((d_model,), scale, jnp.float32),
         jnp.ones((2 * d_model,), jnp.float32)])[None, :]
    wqkv = wqkv * col_scale
    bqkv = bqkv * col_scale
    wo = s * jax.random.normal(ks[2], (d_model, d_model), jnp.float32)
    bo = s * jax.random.normal(ks[3], (1, d_model), jnp.float32)
    g1 = jnp.ones((1, d_model), jnp.float32)
    be1 = jnp.zeros((1, d_model), jnp.float32)
    g2 = jnp.ones((1, d_model), jnp.float32)
    be2 = jnp.zeros((1, d_model), jnp.float32)
    wf1 = s * jax.random.normal(ks[4], (d_model, d_ff), jnp.float32)
    bf1 = s * jax.random.normal(ks[5], (1, d_ff), jnp.float32)
    wf2 = s * jax.random.normal(ks[6], (d_ff, d_model), jnp.float32)
    bf2 = s * jax.random.normal(ks[7], (1, d_model), jnp.float32)
    return [wqkv, bqkv, wo, bo, g1, be1, g2, be2, wf1, bf1, wf2, bf2]


def init_params(key, d_input, d_output, n_layer, d_hidden, n_head):
    assert d_input == d_hidden, "module as written requires d_input == d_hidden"
    assert d_input % n_head == 0
    layers = []
    d_in = d_input
    for i in range(n_layer):
        d_out = d_hidden if i != n_layer - 1 else d_output
        key, kr, kc, k1, k2, k3, k4, k5, k6 = jax.random.split(key, 9)
        s = 0.08
        w1r = s * jax.random.normal(k1, (d_in, d_hidden), jnp.float32)
        w1c = s * jax.random.normal(k2, (d_in, d_hidden), jnp.float32)
        w1g = s * jax.random.normal(k3, (d_in, d_hidden), jnp.float32)
        b1 = 0.5 * s * jax.random.normal(k4, (1, d_hidden), jnp.float32)
        w2 = s * jax.random.normal(k5, (d_hidden, d_out), jnp.float32)
        b2 = 0.5 * s * jax.random.normal(k6, (1, d_out), jnp.float32)
        layers.append({
            "row": _init_encoder_params(kr, d_in, d_hidden, n_head),
            "col": _init_encoder_params(kc, d_in, d_hidden, n_head),
            "fc": [w1r, w1c, w1g, b1, w2, b2],
        })
        d_in = d_hidden
    return layers


# --------------------------------------------------------------------------
# Pure-JAX reference (PyTorch math, mirroring the bf16 matmul-operand casts).
# --------------------------------------------------------------------------
def _rnd(a):
    """Round-trip through the MXU operand dtype (mirrors the kernel's casts)."""
    return a.astype(MATMUL_DTYPE).astype(jnp.float32)


def _mm(a, b):
    return jnp.einsum("...ij,jk->...ik", _rnd(a), _rnd(b),
                      precision=jax.lax.Precision.HIGHEST)


def _ref_layer_norm(y, g, b):
    mu = jnp.mean(y, axis=-1, keepdims=True)
    var = jnp.mean(jnp.square(y - mu), axis=-1, keepdims=True)
    return (y - mu) * jax.lax.rsqrt(var + LN_EPS) * g + b


def _ref_encoder_layer(x, p, n_head):
    wqkv, bqkv, wo, bo, g1, be1, g2, be2, wf1, bf1, wf2, bf2 = p
    B, S, D = x.shape
    hd = D // n_head
    qkv = _mm(x, wqkv) + bqkv
    q, k, v = qkv[..., :D], qkv[..., D:2 * D], qkv[..., 2 * D:]
    # NOTE: attention scale is already folded into wqkv/bqkv.
    q = q.reshape(B, S, n_head, hd).transpose(0, 2, 1, 3)
    k = k.reshape(B, S, n_head, hd).transpose(0, 2, 1, 3)
    v = v.reshape(B, S, n_head, hd).transpose(0, 2, 1, 3)
    s = jnp.einsum("bhqd,bhkd->bhqk", _rnd(q), _rnd(k),
                   precision=jax.lax.Precision.HIGHEST)
    pa = jax.nn.softmax(s, axis=-1)
    a = jnp.einsum("bhqk,bhkd->bhqd", _rnd(pa), _rnd(v),
                   precision=jax.lax.Precision.HIGHEST)
    a = a.transpose(0, 2, 1, 3).reshape(B, S, D)
    a = _mm(a, wo) + bo
    x1 = _ref_layer_norm(x + a, g1, be1)
    f = jnp.maximum(_mm(x1, wf1) + bf1, 0.0)
    f = _mm(f, wf2) + bf2
    return _ref_layer_norm(x1 + f, g2, be2)


def ref_forward(x, layers, n_head):
    bs, n_bidder, n_item, _ = x.shape
    for layer in layers:
        d = x.shape[-1]
        row = _ref_encoder_layer(x.reshape(bs * n_bidder, n_item, d),
                                 layer["row"], n_head)
        row = row.reshape(bs, n_bidder, n_item, d)
        col = _ref_encoder_layer(
            jnp.transpose(x, (0, 2, 1, 3)).reshape(bs * n_item, n_bidder, d),
            layer["col"], n_head)
        col = jnp.transpose(col.reshape(bs, n_item, n_bidder, d), (0, 2, 1, 3))
        glo = jnp.mean(x.reshape(bs, n_bidder * n_item, d), axis=1, keepdims=True)
        glo = jnp.broadcast_to(glo[:, None, :, :], (bs, n_bidder, n_item, d))
        w1r, w1c, w1g, b1, w2, b2 = layer["fc"]
        w1 = jnp.concatenate([w1r, w1c, w1g], axis=0)
        cat = jnp.concatenate([row, col, glo], axis=-1)
        h = jnp.maximum(_mm(cat, w1) + b1, 0.0)
        x = _mm(h, w2) + b2
    return x


# --------------------------------------------------------------------------
if __name__ == "__main__":
    bs, n_bidder, n_item = 2, 4, 8
    d_input, d_hidden, d_output = 32, 32, 16
    n_layer, n_head = 2, 2

    key = jax.random.PRNGKey(0)
    kx, kp = jax.random.split(key)
    x = jax.random.normal(kx, (bs, n_bidder, n_item, d_input), jnp.float32)
    params = init_params(kp, d_input, d_output, n_layer, d_hidden, n_head)

    out = transformer2d_forward(x, params, n_head)
    out = jax.block_until_ready(out)
    assert out.shape == (bs, n_bidder, n_item, d_output), out.shape

    ref = ref_forward(x, params, n_head)
    max_err = float(jnp.max(jnp.abs(out - ref)))
    # bf16 MXU operands (mirrored in the reference) + approx softmax reciprocal
    # + accumulation-order differences -> allow a few e-2 of absolute slack.
    assert max_err < 5e-2, f"mismatch vs reference, max abs err = {max_err}"

    print("KERNEL_OK")
</pallas_src>

<mosaic_0001>
module attributes {stable_mosaic.version = 11 : i64} {
  func.func @kernel(%arg0: i32, %arg1: memref<64x32xf32, #tpu.memory_space<vmem>>, %arg2: memref<64x64xf32, #tpu.memory_space<vmem>>, %arg3: memref<64x64xf32, #tpu.memory_space<vmem>>, %arg4: memref<4x32x96xbf16, #tpu.memory_space<vmem>>, %arg5: memref<4x1x96xf32, #tpu.memory_space<vmem>>, %arg6: memref<4x32x32xbf16, #tpu.memory_space<vmem>>, %arg7: memref<4x1x32xf32, #tpu.memory_space<vmem>>, %arg8: memref<4x4x32xf32, #tpu.memory_space<vmem>>, %arg9: memref<4x32x32xbf16, #tpu.memory_space<vmem>>, %arg10: memref<4x1x32xf32, #tpu.memory_space<vmem>>, %arg11: memref<4x32x32xbf16, #tpu.memory_space<vmem>>, %arg12: memref<4x1x32xf32, #tpu.memory_space<vmem>>, %arg13: memref<2x3x32x32xbf16, #tpu.memory_space<vmem>>, %arg14: memref<2x1x32xf32, #tpu.memory_space<vmem>>, %arg15: memref<1x32x32xbf16, #tpu.memory_space<vmem>>, %arg16: memref<1x1x32xf32, #tpu.memory_space<vmem>>, %arg17: memref<32x128xbf16, #tpu.memory_space<vmem>>, %arg18: memref<1x128xf32, #tpu.memory_space<vmem>>, %arg19: memref<64x128xf32, #tpu.memory_space<vmem>>) attributes {dimension_semantics = [#tpu.dimension_semantics<parallel>], iteration_bounds = array<i64: 1>, scalar_prefetch = 0 : i64, scratch_operands = 0 : i64, tpu.core_type = #tpu.core_type<tc>, window_params = [{transform_indices = @transform_0, window_bounds = array<i64: 64, 32>}, {pipeline_mode = #tpu.pipeline_mode<synchronous>, transform_indices = @transform_1, window_bounds = array<i64: 64, 64>}, {pipeline_mode = #tpu.pipeline_mode<synchronous>, transform_indices = @transform_2, window_bounds = array<i64: 64, 64>}, {pipeline_mode = #tpu.pipeline_mode<synchronous>, transform_indices = @transform_3, window_bounds = array<i64: 4, 32, 96>}, {pipeline_mode = #tpu.pipeline_mode<synchronous>, transform_indices = @transform_4, window_bounds = array<i64: 4, 1, 96>}, {pipeline_mode = #tpu.pipeline_mode<synchronous>, transform_indices = @transform_5, window_bounds = array<i64: 4, 32, 32>}, {pipeline_mode = #tpu.pipeline_mode<synchronous>, transform_indices = @transform_6, window_bounds = array<i64: 4, 1, 32>}, {pipeline_mode = #tpu.pipeline_mode<synchronous>, transform_indices = @transform_7, window_bounds = array<i64: 4, 4, 32>}, {pipeline_mode = #tpu.pipeline_mode<synchronous>, transform_indices = @transform_8, window_bounds = array<i64: 4, 32, 32>}, {pipeline_mode = #tpu.pipeline_mode<synchronous>, transform_indices = @transform_9, window_bounds = array<i64: 4, 1, 32>}, {pipeline_mode = #tpu.pipeline_mode<synchronous>, transform_indices = @transform_10, window_bounds = array<i64: 4, 32, 32>}, {pipeline_mode = #tpu.pipeline_mode<synchronous>, transform_indices = @transform_11, window_bounds = array<i64: 4, 1, 32>}, {pipeline_mode = #tpu.pipeline_mode<synchronous>, transform_indices = @transform_12, window_bounds = array<i64: 2, 3, 32, 32>}, {pipeline_mode = #tpu.pipeline_mode<synchronous>, transform_indices = @transform_13, window_bounds = array<i64: 2, 1, 32>}, {pipeline_mode = #tpu.pipeline_mode<synchronous>, transform_indices = @transform_14, window_bounds = array<i64: 1, 32, 32>}, {pipeline_mode = #tpu.pipeline_mode<synchronous>, transform_indices = @transform_15, window_bounds = array<i64: 1, 1, 32>}, {pipeline_mode = #tpu.pipeline_mode<synchronous>, transform_indices = @transform_16, window_bounds = array<i64: 32, 128>}, {pipeline_mode = #tpu.pipeline_mode<synchronous>, transform_indices = @transform_17, window_bounds = array<i64: 1, 128>}, {transform_indices = @transform_18, window_bounds = array<i64: 64, 128>}]} {
    %c0 = arith.constant 0 : index
    %c0_0 = arith.constant 0 : index
    %0 = vector.load %arg1[%c0, %c0_0] : memref<64x32xf32, #tpu.memory_space<vmem>>, vector<64x32xf32>
    %c0_1 = arith.constant 0 : index
    %c0_2 = arith.constant 0 : index
    %1 = vector.load %arg2[%c0_1, %c0_2] : memref<64x64xf32, #tpu.memory_space<vmem>>, vector<64x64xf32>
    %c0_3 = arith.constant 0 : index
    %c0_4 = arith.constant 0 : index
    %2 = vector.load %arg3[%c0_3, %c0_4] : memref<64x64xf32, #tpu.memory_space<vmem>>, vector<64x64xf32>
    %c0_5 = arith.constant 0 : index
    %c0_6 = arith.constant 0 : index
    %c0_7 = arith.constant 0 : index
    %3 = vector.load %arg8[%c0_5, %c0_6, %c0_7] : memref<4x4x32xf32, #tpu.memory_space<vmem>>, vector<1x4x32xf32>
    %4 = vector.shape_cast %3 : vector<1x4x32xf32> to vector<4x32xf32>
    %c0_8 = arith.constant 0 : index
    %c0_9 = arith.constant 0 : index
    %c0_10 = arith.constant 0 : index
    %5 = vector.load %arg4[%c0_8, %c0_9, %c0_10] : memref<4x32x96xbf16, #tpu.memory_space<vmem>>, vector<1x32x96xbf16>
    %6 = vector.shape_cast %5 : vector<1x32x96xbf16> to vector<32x96xbf16>
    %c0_11 = arith.constant 0 : index
    %c0_12 = arith.constant 0 : index
    %c0_13 = arith.constant 0 : index
    %7 = vector.load %arg5[%c0_11, %c0_12, %c0_13] : memref<4x1x96xf32, #tpu.memory_space<vmem>>, vector<1x1x96xf32>
    %8 = vector.shape_cast %7 : vector<1x1x96xf32> to vector<1x96xf32>
    %c0_14 = arith.constant 0 : index
    %c0_15 = arith.constant 0 : index
    %c0_16 = arith.constant 0 : index
    %9 = vector.load %arg6[%c0_14, %c0_15, %c0_16] : memref<4x32x32xbf16, #tpu.memory_space<vmem>>, vector<1x32x32xbf16>
    %10 = vector.shape_cast %9 : vector<1x32x32xbf16> to vector<32x32xbf16>
    %c0_17 = arith.constant 0 : index
    %c0_18 = arith.constant 0 : index
    %c0_19 = arith.constant 0 : index
    %11 = vector.load %arg7[%c0_17, %c0_18, %c0_19] : memref<4x1x32xf32, #tpu.memory_space<vmem>>, vector<1x1x32xf32>
    %12 = vector.shape_cast %11 : vector<1x1x32xf32> to vector<1x32xf32>
    %13 = vector.extract_strided_slice %4 {offsets = [0, 0], sizes = [1, 32], strides = [1, 1]} : vector<4x32xf32> to vector<1x32xf32>
    %14 = vector.extract_strided_slice %4 {offsets = [1, 0], sizes = [1, 32], strides = [1, 1]} : vector<4x32xf32> to vector<1x32xf32>
    %15 = vector.extract_strided_slice %4 {offsets = [2, 0], sizes = [1, 32], strides = [1, 1]} : vector<4x32xf32> to vector<1x32xf32>
    %16 = vector.extract_strided_slice %4 {offsets = [3, 0], sizes = [1, 32], strides = [1, 1]} : vector<4x32xf32> to vector<1x32xf32>
    %c0_20 = arith.constant 0 : index
    %c0_21 = arith.constant 0 : index
    %c0_22 = arith.constant 0 : index
    %17 = vector.load %arg9[%c0_20, %c0_21, %c0_22] : memref<4x32x32xbf16, #tpu.memory_space<vmem>>, vector<1x32x32xbf16>
    %18 = vector.shape_cast %17 : vector<1x32x32xbf16> to vector<32x32xbf16>
    %c0_23 = arith.constant 0 : index
    %c0_24 = arith.constant 0 : index
    %c0_25 = arith.constant 0 : index
    %19 = vector.load %arg10[%c0_23, %c0_24, %c0_25] : memref<4x1x32xf32, #tpu.memory_space<vmem>>, vector<1x1x32xf32>
    %20 = vector.shape_cast %19 : vector<1x1x32xf32> to vector<1x32xf32>
    %c0_26 = arith.constant 0 : index
    %c0_27 = arith.constant 0 : index
    %c0_28 = arith.constant 0 : index
    %21 = vector.load %arg11[%c0_26, %c0_27, %c0_28] : memref<4x32x32xbf16, #tpu.memory_space<vmem>>, vector<1x32x32xbf16>
    %22 = vector.shape_cast %21 : vector<1x32x32xbf16> to vector<32x32xbf16>
    %c0_29 = arith.constant 0 : index
    %c0_30 = arith.constant 0 : index
    %c0_31 = arith.constant 0 : index
    %23 = vector.load %arg12[%c0_29, %c0_30, %c0_31] : memref<4x1x32xf32, #tpu.memory_space<vmem>>, vector<1x1x32xf32>
    %24 = vector.shape_cast %23 : vector<1x1x32xf32> to vector<1x32xf32>
    %25 = arith.truncf %0 : vector<64x32xf32> to vector<64x32xbf16>
    %cst = arith.constant dense<0.000000e+00> : vector<64x96xf32>
    %26 = tpu.matmul %25, %6, %cst {dimension_numbers = #tpu.dot_dimension_numbers<[1], [0], [0], [1], [0, 0, 1, 1], [], []>} : vector<64x32xbf16>, vector<32x96xbf16>, vector<64x96xf32> -> vector<64x96xf32>
    %27 = vector.broadcast %8 : vector<1x96xf32> to vector<64x96xf32>
    %28 = arith.addf %26, %27 : vector<64x96xf32>
    %29 = vector.extract_strided_slice %28 {offsets = [0, 0], sizes = [64, 32], strides = [1, 1]} : vector<64x96xf32> to vector<64x32xf32>
    %30 = vector.extract_strided_slice %28 {offsets = [0, 32], sizes = [64, 32], strides = [1, 1]} : vector<64x96xf32> to vector<64x32xf32>
    %31 = vector.extract_strided_slice %28 {offsets = [0, 64], sizes = [64, 32], strides = [1, 1]} : vector<64x96xf32> to vector<64x32xf32>
    %cst_32 = arith.constant 0.000000e+00 : f32
    %32 = vector.broadcast %cst_32 : f32 to vector<64x32xf32>
    %33 = vector.extract_strided_slice %29 {offsets = [0, 0], sizes = [64, 16], strides = [1, 1]} : vector<64x32xf32> to vector<64x16xf32>
    %34 = arith.truncf %33 : vector<64x16xf32> to vector<64x16xbf16>
    %35 = vector.extract_strided_slice %30 {offsets = [0, 0], sizes = [64, 16], strides = [1, 1]} : vector<64x32xf32> to vector<64x16xf32>
    %36 = arith.truncf %35 : vector<64x16xf32> to vector<64x16xbf16>
    %37 = vector.extract_strided_slice %31 {offsets = [0, 0], sizes = [64, 16], strides = [1, 1]} : vector<64x32xf32> to vector<64x16xf32>
    %38 = arith.truncf %37 : vector<64x16xf32> to vector<64x16xbf16>
    %cst_33 = arith.constant dense<0.000000e+00> : vector<64x64xf32>
    %39 = tpu.matmul %34, %36, %cst_33 {dimension_numbers = #tpu.dot_dimension_numbers<[1], [1], [0], [0], [0, 0, 1, 0], [], []>} : vector<64x16xbf16>, vector<64x16xbf16>, vector<64x64xf32> -> vector<64x64xf32>
    %40 = arith.addf %39, %1 : vector<64x64xf32>
    %cst_34 = arith.constant dense<0xFF800000> : vector<64xf32>
    %41 = vector.multi_reduction <maximumf>, %40, %cst_34 [1] : vector<64x64xf32> to vector<64xf32>
    %42 = vector.shape_cast %41 : vector<64xf32> to vector<64x1xf32>
    %43 = vector.broadcast %42 : vector<64x1xf32> to vector<64x64xf32>
    %44 = arith.subf %40, %43 : vector<64x64xf32>
    %45 = math.exp %44 : vector<64x64xf32>
    %cst_35 = arith.constant dense<0.000000e+00> : vector<64xf32>
    %46 = vector.multi_reduction <add>, %45, %cst_35 [1] : vector<64x64xf32> to vector<64xf32>
    %47 = vector.shape_cast %46 : vector<64xf32> to vector<64x1xf32>
    %48 = tpu.reciprocal %47 {approx = true} : vector<64x1xf32> -> vector<64x1xf32>
    %49 = vector.broadcast %48 : vector<64x1xf32> to vector<64x64xf32>
    %50 = arith.mulf %45, %49 : vector<64x64xf32>
    %51 = arith.truncf %50 : vector<64x64xf32> to vector<64x64xbf16>
    %cst_36 = arith.constant dense<0.000000e+00> : vector<64x16xf32>
    %52 = tpu.matmul %51, %38, %cst_36 {dimension_numbers = #tpu.dot_dimension_numbers<[1], [0], [0], [1], [0, 0, 1, 1], [], []>} : vector<64x64xbf16>, vector<64x16xbf16>, vector<64x16xf32> -> vector<64x16xf32>
    %53 = arith.truncf %52 : vector<64x16xf32> to vector<64x16xbf16>
    %54 = vector.extract_strided_slice %10 {offsets = [0, 0], sizes = [16, 32], strides = [1, 1]} : vector<32x32xbf16> to vector<16x32xbf16>
    %cst_37 = arith.constant dense<0.000000e+00> : vector<64x32xf32>
    %55 = tpu.matmul %53, %54, %cst_37 {dimension_numbers = #tpu.dot_dimension_numbers<[1], [0], [0], [1], [0, 0, 1, 1], [], []>} : vector<64x16xbf16>, vector<16x32xbf16>, vector<64x32xf32> -> vector<64x32xf32>
    %56 = arith.addf %32, %55 : vector<64x32xf32>
    %57 = vector.extract_strided_slice %29 {offsets = [0, 16], sizes = [64, 16], strides = [1, 1]} : vector<64x32xf32> to vector<64x16xf32>
    %58 = arith.truncf %57 : vector<64x16xf32> to vector<64x16xbf16>
    %59 = vector.extract_strided_slice %30 {offsets = [0, 16], sizes = [64, 16], strides = [1, 1]} : vector<64x32xf32> to vector<64x16xf32>
    %60 = arith.truncf %59 : vector<64x16xf32> to vector<64x16xbf16>
    %61 = vector.extract_strided_slice %31 {offsets = [0, 16], sizes = [64, 16], strides = [1, 1]} : vector<64x32xf32> to vector<64x16xf32>
    %62 = arith.truncf %61 : vector<64x16xf32> to vector<64x16xbf16>
    %cst_38 = arith.constant dense<0.000000e+00> : vector<64x64xf32>
    %63 = tpu.matmul %58, %60, %cst_38 {dimension_numbers = #tpu.dot_dimension_numbers<[1], [1], [0], [0], [0, 0, 1, 0], [], []>} : vector<64x16xbf16>, vector<64x16xbf16>, vector<64x64xf32> -> vector<64x64xf32>
    %64 = arith.addf %63, %1 : vector<64x64xf32>
    %cst_39 = arith.constant dense<0xFF800000> : vector<64xf32>
    %65 = vector.multi_reduction <maximumf>, %64, %cst_39 [1] : vector<64x64xf32> to vector<64xf32>
    %66 = vector.shape_cast %65 : vector<64xf32> to vector<64x1xf32>
    %67 = vector.broadcast %66 : vector<64x1xf32> to vector<64x64xf32>
    %68 = arith.subf %64, %67 : vector<64x64xf32>
    %69 = math.exp %68 : vector<64x64xf32>
    %cst_40 = arith.constant dense<0.000000e+00> : vector<64xf32>
    %70 = vector.multi_reduction <add>, %69, %cst_40 [1] : vector<64x64xf32> to vector<64xf32>
    %71 = vector.shape_cast %70 : vector<64xf32> to vector<64x1xf32>
    %72 = tpu.reciprocal %71 {approx = true} : vector<64x1xf32> -> vector<64x1xf32>
    %73 = vector.broadcast %72 : vector<64x1xf32> to vector<64x64xf32>
    %74 = arith.mulf %69, %73 : vector<64x64xf32>
    %75 = arith.truncf %74 : vector<64x64xf32> to vector<64x64xbf16>
    %cst_41 = arith.constant dense<0.000000e+00> : vector<64x16xf32>
    %76 = tpu.matmul %75, %62, %cst_41 {dimension_numbers = #tpu.dot_dimension_numbers<[1], [0], [0], [1], [0, 0, 1, 1], [], []>} : vector<64x64xbf16>, vector<64x16xbf16>, vector<64x16xf32> -> vector<64x16xf32>
    %77 = arith.truncf %76 : vector<64x16xf32> to vector<64x16xbf16>
    %78 = vector.extract_strided_slice %10 {offsets = [16, 0], sizes = [16, 32], strides = [1, 1]} : vector<32x32xbf16> to vector<16x32xbf16>
    %cst_42 = arith.constant dense<0.000000e+00> : vector<64x32xf32>
    %79 = tpu.matmul %77, %78, %cst_42 {dimension_numbers = #tpu.dot_dimension_numbers<[1], [0], [0], [1], [0, 0, 1, 1], [], []>} : vector<64x16xbf16>, vector<16x32xbf16>, vector<64x32xf32> -> vector<64x32xf32>
    %80 = arith.addf %56, %79 : vector<64x32xf32>
    %81 = vector.broadcast %12 : vector<1x32xf32> to vector<64x32xf32>
    %82 = arith.addf %80, %81 : vector<64x32xf32>
    %83 = arith.addf %0, %82 : vector<64x32xf32>
    %cst_43 = arith.constant dense<0.000000e+00> : vector<64xf32>
    %84 = vector.multi_reduction <add>, %83, %cst_43 [1] : vector<64x32xf32> to vector<64xf32>
    %85 = vector.shape_cast %84 : vector<64xf32> to vector<64x1xf32>
    %cst_44 = arith.constant 3.200000e+01 : f32
    %86 = vector.broadcast %cst_44 : f32 to vector<64x1xf32>
    %87 = arith.divf %85, %86 : vector<64x1xf32>
    %88 = vector.broadcast %87 : vector<64x1xf32> to vector<64x32xf32>
    %89 = arith.subf %83, %88 : vector<64x32xf32>
    %90 = arith.mulf %89, %89 : vector<64x32xf32>
    %cst_45 = arith.constant dense<0.000000e+00> : vector<64xf32>
    %91 = vector.multi_reduction <add>, %90, %cst_45 [1] : vector<64x32xf32> to vector<64xf32>
    %92 = vector.shape_cast %91 : vector<64xf32> to vector<64x1xf32>
    %cst_46 = arith.constant 3.200000e+01 : f32
    %93 = vector.broadcast %cst_46 : f32 to vector<64x1xf32>
    %94 = arith.divf %92, %93 : vector<64x1xf32>
    %95 = vector.broadcast %87 : vector<64x1xf32> to vector<64x32xf32>
    %96 = arith.subf %83, %95 : vector<64x32xf32>
    %cst_47 = arith.constant 9.99999974E-6 : f32
    %97 = vector.broadcast %cst_47 : f32 to vector<64x1xf32>
    %98 = arith.addf %94, %97 : vector<64x1xf32>
    %99 = math.rsqrt %98 : vector<64x1xf32>
    %100 = vector.broadcast %99 : vector<64x1xf32> to vector<64x32xf32>
    %101 = arith.mulf %96, %100 : vector<64x32xf32>
    %102 = vector.broadcast %13 : vector<1x32xf32> to vector<64x32xf32>
    %103 = arith.mulf %101, %102 : vector<64x32xf32>
    %104 = vector.broadcast %14 : vector<1x32xf32> to vector<64x32xf32>
    %105 = arith.addf %103, %104 : vector<64x32xf32>
    %106 = arith.truncf %105 : vector<64x32xf32> to vector<64x32xbf16>
    %cst_48 = arith.constant dense<0.000000e+00> : vector<64x32xf32>
    %107 = tpu.matmul %106, %18, %cst_48 {dimension_numbers = #tpu.dot_dimension_numbers<[1], [0], [0], [1], [0, 0, 1, 1], [], []>} : vector<64x32xbf16>, vector<32x32xbf16>, vector<64x32xf32> -> vector<64x32xf32>
    %108 = vector.broadcast %20 : vector<1x32xf32> to vector<64x32xf32>
    %109 = arith.addf %107, %108 : vector<64x32xf32>
    %cst_49 = arith.constant 0.000000e+00 : f32
    %110 = vector.broadcast %cst_49 : f32 to vector<64x32xf32>
    %111 = arith.maximumf %109, %110 : vector<64x32xf32>
    %112 = arith.truncf %111 : vector<64x32xf32> to vector<64x32xbf16>
    %cst_50 = arith.constant dense<0.000000e+00> : vector<64x32xf32>
    %113 = tpu.matmul %112, %22, %cst_50 {dimension_numbers = #tpu.dot_dimension_numbers<[1], [0], [0], [1], [0, 0, 1, 1], [], []>} : vector<64x32xbf16>, vector<32x32xbf16>, vector<64x32xf32> -> vector<64x32xf32>
    %114 = vector.broadcast %24 : vector<1x32xf32> to vector<64x32xf32>
    %115 = arith.addf %113, %114 : vector<64x32xf32>
    %116 = arith.addf %105, %115 : vector<64x32xf32>
    %cst_51 = arith.constant dense<0.000000e+00> : vector<64xf32>
    %117 = vector.multi_reduction <add>, %116, %cst_51 [1] : vector<64x32xf32> to vector<64xf32>
    %118 = vector.shape_cast %117 : vector<64xf32> to vector<64x1xf32>
    %cst_52 = arith.constant 3.200000e+01 : f32
    %119 = vector.broadcast %cst_52 : f32 to vector<64x1xf32>
    %120 = arith.divf %118, %119 : vector<64x1xf32>
    %121 = vector.broadcast %120 : vector<64x1xf32> to vector<64x32xf32>
    %122 = arith.subf %116, %121 : vector<64x32xf32>
    %123 = arith.mulf %122, %122 : vector<64x32xf32>
    %cst_53 = arith.constant dense<0.000000e+00> : vector<64xf32>
    %124 = vector.multi_reduction <add>, %123, %cst_53 [1] : vector<64x32xf32> to vector<64xf32>
    %125 = vector.shape_cast %124 : vector<64xf32> to vector<64x1xf32>
    %cst_54 = arith.constant 3.200000e+01 : f32
    %126 = vector.broadcast %cst_54 : f32 to vector<64x1xf32>
    %127 = arith.divf %125, %126 : vector<64x1xf32>
    %128 = vector.broadcast %120 : vector<64x1xf32> to vector<64x32xf32>
    %129 = arith.subf %116, %128 : vector<64x32xf32>
    %cst_55 = arith.constant 9.99999974E-6 : f32
    %130 = vector.broadcast %cst_55 : f32 to vector<64x1xf32>
    %131 = arith.addf %127, %130 : vector<64x1xf32>
    %132 = math.rsqrt %131 : vector<64x1xf32>
    %133 = vector.broadcast %132 : vector<64x1xf32> to vector<64x32xf32>
    %134 = arith.mulf %129, %133 : vector<64x32xf32>
    %135 = vector.broadcast %15 : vector<1x32xf32> to vector<64x32xf32>
    %136 = arith.mulf %134, %135 : vector<64x32xf32>
    %137 = vector.broadcast %16 : vector<1x32xf32> to vector<64x32xf32>
    %138 = arith.addf %136, %137 : vector<64x32xf32>
    %c1 = arith.constant 1 : index
    %c0_56 = arith.constant 0 : index
    %c0_57 = arith.constant 0 : index
    %139 = vector.load %arg8[%c1, %c0_56, %c0_57] : memref<4x4x32xf32, #tpu.memory_space<vmem>>, vector<1x4x32xf32>
    %140 = vector.shape_cast %139 : vector<1x4x32xf32> to vector<4x32xf32>
    %c1_58 = arith.constant 1 : index
    %c0_59 = arith.constant 0 : index
    %c0_60 = arith.constant 0 : index
    %141 = vector.load %arg4[%c1_58, %c0_59, %c0_60] : memref<4x32x96xbf16, #tpu.memory_space<vmem>>, vector<1x32x96xbf16>
    %142 = vector.shape_cast %141 : vector<1x32x96xbf16> to vector<32x96xbf16>
    %c1_61 = arith.constant 1 : index
    %c0_62 = arith.constant 0 : index
    %c0_63 = arith.constant 0 : index
    %143 = vector.load %arg5[%c1_61, %c0_62, %c0_63] : memref<4x1x96xf32, #tpu.memory_space<vmem>>, vector<1x1x96xf32>
    %144 = vector.shape_cast %143 : vector<1x1x96xf32> to vector<1x96xf32>
    %c1_64 = arith.constant 1 : index
    %c0_65 = arith.constant 0 : index
    %c0_66 = arith.constant 0 : index
    %145 = vector.load %arg6[%c1_64, %c0_65, %c0_66] : memref<4x32x32xbf16, #tpu.memory_space<vmem>>, vector<1x32x32xbf16>
    %146 = vector.shape_cast %145 : vector<1x32x32xbf16> to vector<32x32xbf16>
    %c1_67 = arith.constant 1 : index
    %c0_68 = arith.constant 0 : index
    %c0_69 = arith.constant 0 : index
    %147 = vector.load %arg7[%c1_67, %c0_68, %c0_69] : memref<4x1x32xf32, #tpu.memory_space<vmem>>, vector<1x1x32xf32>
    %148 = vector.shape_cast %147 : vector<1x1x32xf32> to vector<1x32xf32>
    %149 = vector.extract_strided_slice %140 {offsets = [0, 0], sizes = [1, 32], strides = [1, 1]} : vector<4x32xf32> to vector<1x32xf32>
    %150 = vector.extract_strided_slice %140 {offsets = [1, 0], sizes = [1, 32], strides = [1, 1]} : vector<4x32xf32> to vector<1x32xf32>
    %151 = vector.extract_strided_slice %140 {offsets = [2, 0], sizes = [1, 32], strides = [1, 1]} : vector<4x32xf32> to vector<1x32xf32>
    %152 = vector.extract_strided_slice %140 {offsets = [3, 0], sizes = [1, 32], strides = [1, 1]} : vector<4x32xf32> to vector<1x32xf32>
    %c1_70 = arith.constant 1 : index
    %c0_71 = arith.constant 0 : index
    %c0_72 = arith.constant 0 : index
    %153 = vector.load %arg9[%c1_70, %c0_71, %c0_72] : memref<4x32x32xbf16, #tpu.memory_space<vmem>>, vector<1x32x32xbf16>
    %154 = vector.shape_cast %153 : vector<1x32x32xbf16> to vector<32x32xbf16>
    %c1_73 = arith.constant 1 : index
    %c0_74 = arith.constant 0 : index
    %c0_75 = arith.constant 0 : index
    %155 = vector.load %arg10[%c1_73, %c0_74, %c0_75] : memref<4x1x32xf32, #tpu.memory_space<vmem>>, vector<1x1x32xf32>
    %156 = vector.shape_cast %155 : vector<1x1x32xf32> to vector<1x32xf32>
    %c1_76 = arith.constant 1 : index
    %c0_77 = arith.constant 0 : index
    %c0_78 = arith.constant 0 : index
    %157 = vector.load %arg11[%c1_76, %c0_77, %c0_78] : memref<4x32x32xbf16, #tpu.memory_space<vmem>>, vector<1x32x32xbf16>
    %158 = vector.shape_cast %157 : vector<1x32x32xbf16> to vector<32x32xbf16>
    %c1_79 = arith.constant 1 : index
    %c0_80 = arith.constant 0 : index
    %c0_81 = arith.constant 0 : index
    %159 = vector.load %arg12[%c1_79, %c0_80, %c0_81] : memref<4x1x32xf32, #tpu.memory_space<vmem>>, vector<1x1x32xf32>
    %160 = vector.shape_cast %159 : vector<1x1x32xf32> to vector<1x32xf32>
    %161 = arith.truncf %0 : vector<64x32xf32> to vector<64x32xbf16>
    %cst_82 = arith.constant dense<0.000000e+00> : vector<64x96xf32>
    %162 = tpu.matmul %161, %142, %cst_82 {dimension_numbers = #tpu.dot_dimension_numbers<[1], [0], [0], [1], [0, 0, 1, 1], [], []>} : vector<64x32xbf16>, vector<32x96xbf16>, vector<64x96xf32> -> vector<64x96xf32>
    %163 = vector.broadcast %144 : vector<1x96xf32> to vector<64x96xf32>
    %164 = arith.addf %162, %163 : vector<64x96xf32>
    %165 = vector.extract_strided_slice %164 {offsets = [0, 0], sizes = [64, 32], strides = [1, 1]} : vector<64x96xf32> to vector<64x32xf32>
    %166 = vector.extract_strided_slice %164 {offsets = [0, 32], sizes = [64, 32], strides = [1, 1]} : vector<64x96xf32> to vector<64x32xf32>
    %167 = vector.extract_strided_slice %164 {offsets = [0, 64], sizes = [64, 32], strides = [1, 1]} : vector<64x96xf32> to vector<64x32xf32>
    %cst_83 = arith.constant 0.000000e+00 : f32
    %168 = vector.broadcast %cst_83 : f32 to vector<64x32xf32>
    %169 = vector.extract_strided_slice %165 {offsets = [0, 0], sizes = [64, 16], strides = [1, 1]} : vector<64x32xf32> to vector<64x16xf32>
    %170 = arith.truncf %169 : vector<64x16xf32> to vector<64x16xbf16>
    %171 = vector.extract_strided_slice %166 {offsets = [0, 0], sizes = [64, 16], strides = [1, 1]} : vector<64x32xf32> to vector<64x16xf32>
    %172 = arith.truncf %171 : vector<64x16xf32> to vector<64x16xbf16>
    %173 = vector.extract_strided_slice %167 {offsets = [0, 0], sizes = [64, 16], strides = [1, 1]} : vector<64x32xf32> to vector<64x16xf32>
    %174 = arith.truncf %173 : vector<64x16xf32> to vector<64x16xbf16>
    %cst_84 = arith.constant dense<0.000000e+00> : vector<64x64xf32>
    %175 = tpu.matmul %170, %172, %cst_84 {dimension_numbers = #tpu.dot_dimension_numbers<[1], [1], [0], [0], [0, 0, 1, 0], [], []>} : vector<64x16xbf16>, vector<64x16xbf16>, vector<64x64xf32> -> vector<64x64xf32>
    %176 = arith.addf %175, %2 : vector<64x64xf32>
    %cst_85 = arith.constant dense<0xFF800000> : vector<64xf32>
    %177 = vector.multi_reduction <maximumf>, %176, %cst_85 [1] : vector<64x64xf32> to vector<64xf32>
    %178 = vector.shape_cast %177 : vector<64xf32> to vector<64x1xf32>
    %179 = vector.broadcast %178 : vector<64x1xf32> to vector<64x64xf32>
    %180 = arith.subf %176, %179 : vector<64x64xf32>
    %181 = math.exp %180 : vector<64x64xf32>
    %cst_86 = arith.constant dense<0.000000e+00> : vector<64xf32>
    %182 = vector.multi_reduction <add>, %181, %cst_86 [1] : vector<64x64xf32> to vector<64xf32>
    %183 = vector.shape_cast %182 : vector<64xf32> to vector<64x1xf32>
    %184 = tpu.reciprocal %183 {approx = true} : vector<64x1xf32> -> vector<64x1xf32>
    %185 = vector.broadcast %184 : vector<64x1xf32> to vector<64x64xf32>
    %186 = arith.mulf %181, %185 : vector<64x64xf32>
    %187 = arith.truncf %186 : vector<64x64xf32> to vector<64x64xbf16>
    %cst_87 = arith.constant dense<0.000000e+00> : vector<64x16xf32>
    %188 = tpu.matmul %187, %174, %cst_87 {dimension_numbers = #tpu.dot_dimension_numbers<[1], [0], [0], [1], [0, 0, 1, 1], [], []>} : vector<64x64xbf16>, vector<64x16xbf16>, vector<64x16xf32> -> vector<64x16xf32>
    %189 = arith.truncf %188 : vector<64x16xf32> to vector<64x16xbf16>
    %190 = vector.extract_strided_slice %146 {offsets = [0, 0], sizes = [16, 32], strides = [1, 1]} : vector<32x32xbf16> to vector<16x32xbf16>
    %cst_88 = arith.constant dense<0.000000e+00> : vector<64x32xf32>
    %191 = tpu.matmul %189, %190, %cst_88 {dimension_numbers = #tpu.dot_dimension_numbers<[1], [0], [0], [1], [0, 0, 1, 1], [], []>} : vector<64x16xbf16>, vector<16x32xbf16>, vector<64x32xf32> -> vector<64x32xf32>
    %192 = arith.addf %168, %191 : vector<64x32xf32>
    %193 = vector.extract_strided_slice %165 {offsets = [0, 16], sizes = [64, 16], strides = [1, 1]} : vector<64x32xf32> to vector<64x16xf32>
    %194 = arith.truncf %193 : vector<64x16xf32> to vector<64x16xbf16>
    %195 = vector.extract_strided_slice %166 {offsets = [0, 16], sizes = [64, 16], strides = [1, 1]} : vector<64x32xf32> to vector<64x16xf32>
    %196 = arith.truncf %195 : vector<64x16xf32> to vector<64x16xbf16>
    %197 = vector.extract_strided_slice %167 {offsets = [0, 16], sizes = [64, 16], strides = [1, 1]} : vector<64x32xf32> to vector<64x16xf32>
    %198 = arith.truncf %197 : vector<64x16xf32> to vector<64x16xbf16>
    %cst_89 = arith.constant dense<0.000000e+00> : vector<64x64xf32>
    %199 = tpu.matmul %194, %196, %cst_89 {dimension_numbers = #tpu.dot_dimension_numbers<[1], [1], [0], [0], [0, 0, 1, 0], [], []>} : vector<64x16xbf16>, vector<64x16xbf16>, vector<64x64xf32> -> vector<64x64xf32>
    %200 = arith.addf %199, %2 : vector<64x64xf32>
    %cst_90 = arith.constant dense<0xFF800000> : vector<64xf32>
    %201 = vector.multi_reduction <maximumf>, %200, %cst_90 [1] : vector<64x64xf32> to vector<64xf32>
    %202 = vector.shape_cast %201 : vector<64xf32> to vector<64x1xf32>
    %203 = vector.broadcast %202 : vector<64x1xf32> to vector<64x64xf32>
    %204 = arith.subf %200, %203 : vector<64x64xf32>
    %205 = math.exp %204 : vector<64x64xf32>
    %cst_91 = arith.constant dense<0.000000e+00> : vector<64xf32>
    %206 = vector.multi_reduction <add>, %205, %cst_91 [1] : vector<64x64xf32> to vector<64xf32>
    %207 = vector.shape_cast %206 : vector<64xf32> to vector<64x1xf32>
    %208 = tpu.reciprocal %207 {approx = true} : vector<64x1xf32> -> vector<64x1xf32>
    %209 = vector.broadcast %208 : vector<64x1xf32> to vector<64x64xf32>
    %210 = arith.mulf %205, %209 : vector<64x64xf32>
    %211 = arith.truncf %210 : vector<64x64xf32> to vector<64x64xbf16>
    %cst_92 = arith.constant dense<0.000000e+00> : vector<64x16xf32>
    %212 = tpu.matmul %211, %198, %cst_92 {dimension_numbers = #tpu.dot_dimension_numbers<[1], [0], [0], [1], [0, 0, 1, 1], [], []>} : vector<64x64xbf16>, vector<64x16xbf16>, vector<64x16xf32> -> vector<64x16xf32>
    %213 = arith.truncf %212 : vector<64x16xf32> to vector<64x16xbf16>
    %214 = vector.extract_strided_slice %146 {offsets = [16, 0], sizes = [16, 32], strides = [1, 1]} : vector<32x32xbf16> to vector<16x32xbf16>
    %cst_93 = arith.constant dense<0.000000e+00> : vector<64x32xf32>
    %215 = tpu.matmul %213, %214, %cst_93 {dimension_numbers = #tpu.dot_dimension_numbers<[1], [0], [0], [1], [0, 0, 1, 1], [], []>} : vector<64x16xbf16>, vector<16x32xbf16>, vector<64x32xf32> -> vector<64x32xf32>
    %216 = arith.addf %192, %215 : vector<64x32xf32>
    %217 = vector.broadcast %148 : vector<1x32xf32> to vector<64x32xf32>
    %218 = arith.addf %216, %217 : vector<64x32xf32>
    %219 = arith.addf %0, %218 : vector<64x32xf32>
    %cst_94 = arith.constant dense<0.000000e+00> : vector<64xf32>
    %220 = vector.multi_reduction <add>, %219, %cst_94 [1] : vector<64x32xf32> to vector<64xf32>
    %221 = vector.shape_cast %220 : vector<64xf32> to vector<64x1xf32>
    %cst_95 = arith.constant 3.200000e+01 : f32
    %222 = vector.broadcast %cst_95 : f32 to vector<64x1xf32>
    %223 = arith.divf %221, %222 : vector<64x1xf32>
    %224 = vector.broadcast %223 : vector<64x1xf32> to vector<64x32xf32>
    %225 = arith.subf %219, %224 : vector<64x32xf32>
    %226 = arith.mulf %225, %225 : vector<64x32xf32>
    %cst_96 = arith.constant dense<0.000000e+00> : vector<64xf32>
    %227 = vector.multi_reduction <add>, %226, %cst_96 [1] : vector<64x32xf32> to vector<64xf32>
    %228 = vector.shape_cast %227 : vector<64xf32> to vector<64x1xf32>
    %cst_97 = arith.constant 3.200000e+01 : f32
    %229 = vector.broadcast %cst_97 : f32 to vector<64x1xf32>
    %230 = arith.divf %228, %229 : vector<64x1xf32>
    %231 = vector.broadcast %223 : vector<64x1xf32> to vector<64x32xf32>
    %232 = arith.subf %219, %231 : vector<64x32xf32>
    %cst_98 = arith.constant 9.99999974E-6 : f32
    %233 = vector.broadcast %cst_98 : f32 to vector<64x1xf32>
    %234 = arith.addf %230, %233 : vector<64x1xf32>
    %235 = math.rsqrt %234 : vector<64x1xf32>
    %236 = vector.broadcast %235 : vector<64x1xf32> to vector<64x32xf32>
    %237 = arith.mulf %232, %236 : vector<64x32xf32>
    %238 = vector.broadcast %149 : vector<1x32xf32> to vector<64x32xf32>
    %239 = arith.mulf %237, %238 : vector<64x32xf32>
    %240 = vector.broadcast %150 : vector<1x32xf32> to vector<64x32xf32>
    %241 = arith.addf %239, %240 : vector<64x32xf32>
    %242 = arith.truncf %241 : vector<64x32xf32> to vector<64x32xbf16>
    %cst_99 = arith.constant dense<0.000000e+00> : vector<64x32xf32>
    %243 = tpu.matmul %242, %154, %cst_99 {dimension_numbers = #tpu.dot_dimension_numbers<[1], [0], [0], [1], [0, 0, 1, 1], [], []>} : vector<64x32xbf16>, vector<32x32xbf16>, vector<64x32xf32> -> vector<64x32xf32>
    %244 = vector.broadcast %156 : vector<1x32xf32> to vector<64x32xf32>
    %245 = arith.addf %243, %244 : vector<64x32xf32>
    %cst_100 = arith.constant 0.000000e+00 : f32
    %246 = vector.broadcast %cst_100 : f32 to vector<64x32xf32>
    %247 = arith.maximumf %245, %246 : vector<64x32xf32>
    %248 = arith.truncf %247 : vector<64x32xf32> to vector<64x32xbf16>
    %cst_101 = arith.constant dense<0.000000e+00> : vector<64x32xf32>
    %249 = tpu.matmul %248, %158, %cst_101 {dimension_numbers = #tpu.dot_dimension_numbers<[1], [0], [0], [1], [0, 0, 1, 1], [], []>} : vector<64x32xbf16>, vector<32x32xbf16>, vector<64x32xf32> -> vector<64x32xf32>
    %250 = vector.broadcast %160 : vector<1x32xf32> to vector<64x32xf32>
    %251 = arith.addf %249, %250 : vector<64x32xf32>
    %252 = arith.addf %241, %251 : vector<64x32xf32>
    %cst_102 = arith.constant dense<0.000000e+00> : vector<64xf32>
    %253 = vector.multi_reduction <add>, %252, %cst_102 [1] : vector<64x32xf32> to vector<64xf32>
    %254 = vector.shape_cast %253 : vector<64xf32> to vector<64x1xf32>
    %cst_103 = arith.constant 3.200000e+01 : f32
    %255 = vector.broadcast %cst_103 : f32 to vector<64x1xf32>
    %256 = arith.divf %254, %255 : vector<64x1xf32>
    %257 = vector.broadcast %256 : vector<64x1xf32> to vector<64x32xf32>
    %258 = arith.subf %252, %257 : vector<64x32xf32>
    %259 = arith.mulf %258, %258 : vector<64x32xf32>
    %cst_104 = arith.constant dense<0.000000e+00> : vector<64xf32>
    %260 = vector.multi_reduction <add>, %259, %cst_104 [1] : vector<64x32xf32> to vector<64xf32>
    %261 = vector.shape_cast %260 : vector<64xf32> to vector<64x1xf32>
    %cst_105 = arith.constant 3.200000e+01 : f32
    %262 = vector.broadcast %cst_105 : f32 to vector<64x1xf32>
    %263 = arith.divf %261, %262 : vector<64x1xf32>
    %264 = vector.broadcast %256 : vector<64x1xf32> to vector<64x32xf32>
    %265 = arith.subf %252, %264 : vector<64x32xf32>
    %cst_106 = arith.constant 9.99999974E-6 : f32
    %266 = vector.broadcast %cst_106 : f32 to vector<64x1xf32>
    %267 = arith.addf %263, %266 : vector<64x1xf32>
    %268 = math.rsqrt %267 : vector<64x1xf32>
    %269 = vector.broadcast %268 : vector<64x1xf32> to vector<64x32xf32>
    %270 = arith.mulf %265, %269 : vector<64x32xf32>
    %271 = vector.broadcast %151 : vector<1x32xf32> to vector<64x32xf32>
    %272 = arith.mulf %270, %271 : vector<64x32xf32>
    %273 = vector.broadcast %152 : vector<1x32xf32> to vector<64x32xf32>
    %274 = arith.addf %272, %273 : vector<64x32xf32>
    %c0_107 = arith.constant 0 : index
    %c0_108 = arith.constant 0 : index
    %c0_109 = arith.constant 0 : index
    %c0_110 = arith.constant 0 : index
    %275 = vector.load %arg13[%c0_107, %c0_108, %c0_109, %c0_110] : memref<2x3x32x32xbf16, #tpu.memory_space<vmem>>, vector<1x1x32x32xbf16>
    %276 = vector.shape_cast %275 : vector<1x1x32x32xbf16> to vector<32x32xbf16>
    %c0_111 = arith.constant 0 : index
    %c1_112 = arith.constant 1 : index
    %c0_113 = arith.constant 0 : index
    %c0_114 = arith.constant 0 : index
    %277 = vector.load %arg13[%c0_111, %c1_112, %c0_113, %c0_114] : memref<2x3x32x32xbf16, #tpu.memory_space<vmem>>, vector<1x1x32x32xbf16>
    %278 = vector.shape_cast %277 : vector<1x1x32x32xbf16> to vector<32x32xbf16>
    %c0_115 = arith.constant 0 : index
    %c2 = arith.constant 2 : index
    %c0_116 = arith.constant 0 : index
    %c0_117 = arith.constant 0 : index
    %279 = vector.load %arg13[%c0_115, %c2, %c0_116, %c0_117] : memref<2x3x32x32xbf16, #tpu.memory_space<vmem>>, vector<1x1x32x32xbf16>
    %280 = vector.shape_cast %279 : vector<1x1x32x32xbf16> to vector<32x32xbf16>
    %c0_118 = arith.constant 0 : index
    %c0_119 = arith.constant 0 : index
    %c0_120 = arith.constant 0 : index
    %281 = vector.load %arg14[%c0_118, %c0_119, %c0_120] : memref<2x1x32xf32, #tpu.memory_space<vmem>>, vector<1x1x32xf32>
    %282 = vector.shape_cast %281 : vector<1x1x32xf32> to vector<1x32xf32>
    %283 = vector.extract_strided_slice %0 {offsets = [0, 0], sizes = [32, 32], strides = [1, 1]} : vector<64x32xf32> to vector<32x32xf32>
    %cst_121 = arith.constant dense<0.000000e+00> : vector<32xf32>
    %284 = vector.multi_reduction <add>, %283, %cst_121 [0] : vector<32x32xf32> to vector<32xf32>
    %285 = vector.shape_cast %284 : vector<32xf32> to vector<1x32xf32>
    %cst_122 = arith.constant 3.200000e+01 : f32
    %286 = vector.broadcast %cst_122 : f32 to vector<1x32xf32>
    %287 = arith.divf %285, %286 : vector<1x32xf32>
    %288 = vector.extract_strided_slice %0 {offsets = [32, 0], sizes = [32, 32], strides = [1, 1]} : vector<64x32xf32> to vector<32x32xf32>
    %cst_123 = arith.constant dense<0.000000e+00> : vector<32xf32>
    %289 = vector.multi_reduction <add>, %288, %cst_123 [0] : vector<32x32xf32> to vector<32xf32>
    %290 = vector.shape_cast %289 : vector<32xf32> to vector<1x32xf32>
    %cst_124 = arith.constant 3.200000e+01 : f32
    %291 = vector.broadcast %cst_124 : f32 to vector<1x32xf32>
    %292 = arith.divf %290, %291 : vector<1x32xf32>
    %293 = tpu.concatenate %287, %292 in 0 : vector<1x32xf32>, vector<1x32xf32> -> vector<2x32xf32>
    %294 = arith.truncf %293 : vector<2x32xf32> to vector<2x32xbf16>
    %cst_125 = arith.constant dense<0.000000e+00> : vector<2x32xf32>
    %295 = tpu.matmul %294, %280, %cst_125 {dimension_numbers = #tpu.dot_dimension_numbers<[1], [0], [0], [1], [0, 0, 1, 1], [], []>} : vector<2x32xbf16>, vector<32x32xbf16>, vector<2x32xf32> -> vector<2x32xf32>
    %296 = vector.extract_strided_slice %295 {offsets = [0, 0], sizes = [1, 32], strides = [1, 1]} : vector<2x32xf32> to vector<1x32xf32>
    %297 = vector.shape_cast %296 : vector<1x32xf32> to vector<1x32xf32>
    %298 = vector.broadcast %297 : vector<1x32xf32> to vector<32x32xf32>
    %299 = vector.extract_strided_slice %295 {offsets = [1, 0], sizes = [1, 32], strides = [1, 1]} : vector<2x32xf32> to vector<1x32xf32>
    %300 = vector.shape_cast %299 : vector<1x32xf32> to vector<1x32xf32>
    %301 = vector.broadcast %300 : vector<1x32xf32> to vector<32x32xf32>
    %302 = tpu.concatenate %298, %301 in 0 : vector<32x32xf32>, vector<32x32xf32> -> vector<64x32xf32>
    %303 = arith.truncf %138 : vector<64x32xf32> to vector<64x32xbf16>
    %cst_126 = arith.constant dense<0.000000e+00> : vector<64x32xf32>
    %304 = tpu.matmul %303, %276, %cst_126 {dimension_numbers = #tpu.dot_dimension_numbers<[1], [0], [0], [1], [0, 0, 1, 1], [], []>} : vector<64x32xbf16>, vector<32x32xbf16>, vector<64x32xf32> -> vector<64x32xf32>
    %305 = arith.truncf %274 : vector<64x32xf32> to vector<64x32xbf16>
    %cst_127 = arith.constant dense<0.000000e+00> : vector<64x32xf32>
    %306 = tpu.matmul %305, %278, %cst_127 {dimension_numbers = #tpu.dot_dimension_numbers<[1], [0], [0], [1], [0, 0, 1, 1], [], []>} : vector<64x32xbf16>, vector<32x32xbf16>, vector<64x32xf32> -> vector<64x32xf32>
    %307 = arith.addf %304, %306 : vector<64x32xf32>
    %308 = arith.addf %307, %302 : vector<64x32xf32>
    %309 = vector.broadcast %282 : vector<1x32xf32> to vector<64x32xf32>
    %310 = arith.addf %308, %309 : vector<64x32xf32>
    %cst_128 = arith.constant 0.000000e+00 : f32
    %311 = vector.broadcast %cst_128 : f32 to vector<64x32xf32>
    %312 = arith.maximumf %310, %311 : vector<64x32xf32>
    %313 = arith.truncf %312 : vector<64x32xf32> to vector<64x32xbf16>
    %c0_129 = arith.constant 0 : index
    %c0_130 = arith.constant 0 : index
    %c0_131 = arith.constant 0 : index
    %314 = vector.load %arg15[%c0_129, %c0_130, %c0_131] : memref<1x32x32xbf16, #tpu.memory_space<vmem>>, vector<1x32x32xbf16>
    %315 = vector.shape_cast %314 : vector<1x32x32xbf16> to vector<32x32xbf16>
    %cst_132 = arith.constant dense<0.000000e+00> : vector<64x32xf32>
    %316 = tpu.matmul %313, %315, %cst_132 {dimension_numbers = #tpu.dot_dimension_numbers<[1], [0], [0], [1], [0, 0, 1, 1], [], []>} : vector<64x32xbf16>, vector<32x32xbf16>, vector<64x32xf32> -> vector<64x32xf32>
    %c0_133 = arith.constant 0 : index
    %c0_134 = arith.constant 0 : index
    %c0_135 = arith.constant 0 : index
    %317 = vector.load %arg16[%c0_133, %c0_134, %c0_135] : memref<1x1x32xf32, #tpu.memory_space<vmem>>, vector<1x1x32xf32>
    %318 = vector.shape_cast %317 : vector<1x1x32xf32> to vector<1x32xf32>
    %319 = vector.broadcast %318 : vector<1x32xf32> to vector<64x32xf32>
    %320 = arith.addf %316, %319 : vector<64x32xf32>
    %c2_136 = arith.constant 2 : index
    %c0_137 = arith.constant 0 : index
    %c0_138 = arith.constant 0 : index
    %321 = vector.load %arg8[%c2_136, %c0_137, %c0_138] : memref<4x4x32xf32, #tpu.memory_space<vmem>>, vector<1x4x32xf32>
    %322 = vector.shape_cast %321 : vector<1x4x32xf32> to vector<4x32xf32>
    %c2_139 = arith.constant 2 : index
    %c0_140 = arith.constant 0 : index
    %c0_141 = arith.constant 0 : index
    %323 = vector.load %arg4[%c2_139, %c0_140, %c0_141] : memref<4x32x96xbf16, #tpu.memory_space<vmem>>, vector<1x32x96xbf16>
    %324 = vector.shape_cast %323 : vector<1x32x96xbf16> to vector<32x96xbf16>
    %c2_142 = arith.constant 2 : index
    %c0_143 = arith.constant 0 : index
    %c0_144 = arith.constant 0 : index
    %325 = vector.load %arg5[%c2_142, %c0_143, %c0_144] : memref<4x1x96xf32, #tpu.memory_space<vmem>>, vector<1x1x96xf32>
    %326 = vector.shape_cast %325 : vector<1x1x96xf32> to vector<1x96xf32>
    %c2_145 = arith.constant 2 : index
    %c0_146 = arith.constant 0 : index
    %c0_147 = arith.constant 0 : index
    %327 = vector.load %arg6[%c2_145, %c0_146, %c0_147] : memref<4x32x32xbf16, #tpu.memory_space<vmem>>, vector<1x32x32xbf16>
    %328 = vector.shape_cast %327 : vector<1x32x32xbf16> to vector<32x32xbf16>
    %c2_148 = arith.constant 2 : index
    %c0_149 = arith.constant 0 : index
    %c0_150 = arith.constant 0 : index
    %329 = vector.load %arg7[%c2_148, %c0_149, %c0_150] : memref<4x1x32xf32, #tpu.memory_space<vmem>>, vector<1x1x32xf32>
    %330 = vector.shape_cast %329 : vector<1x1x32xf32> to vector<1x32xf32>
    %331 = vector.extract_strided_slice %322 {offsets = [0, 0], sizes = [1, 32], strides = [1, 1]} : vector<4x32xf32> to vector<1x32xf32>
    %332 = vector.extract_strided_slice %322 {offsets = [1, 0], sizes = [1, 32], strides = [1, 1]} : vector<4x32xf32> to vector<1x32xf32>
    %333 = vector.extract_strided_slice %322 {offsets = [2, 0], sizes = [1, 32], strides = [1, 1]} : vector<4x32xf32> to vector<1x32xf32>
    %334 = vector.extract_strided_slice %322 {offsets = [3, 0], sizes = [1, 32], strides = [1, 1]} : vector<4x32xf32> to vector<1x32xf32>
    %c2_151 = arith.constant 2 : index
    %c0_152 = arith.constant 0 : index
    %c0_153 = arith.constant 0 : index
    %335 = vector.load %arg9[%c2_151, %c0_152, %c0_153] : memref<4x32x32xbf16, #tpu.memory_space<vmem>>, vector<1x32x32xbf16>
    %336 = vector.shape_cast %335 : vector<1x32x32xbf16> to vector<32x32xbf16>
    %c2_154 = arith.constant 2 : index
    %c0_155 = arith.constant 0 : index
    %c0_156 = arith.constant 0 : index
    %337 = vector.load %arg10[%c2_154, %c0_155, %c0_156] : memref<4x1x32xf32, #tpu.memory_space<vmem>>, vector<1x1x32xf32>
    %338 = vector.shape_cast %337 : vector<1x1x32xf32> to vector<1x32xf32>
    %c2_157 = arith.constant 2 : index
    %c0_158 = arith.constant 0 : index
    %c0_159 = arith.constant 0 : index
    %339 = vector.load %arg11[%c2_157, %c0_158, %c0_159] : memref<4x32x32xbf16, #tpu.memory_space<vmem>>, vector<1x32x32xbf16>
    %340 = vector.shape_cast %339 : vector<1x32x32xbf16> to vector<32x32xbf16>
    %c2_160 = arith.constant 2 : index
    %c0_161 = arith.constant 0 : index
    %c0_162 = arith.constant 0 : index
    %341 = vector.load %arg12[%c2_160, %c0_161, %c0_162] : memref<4x1x32xf32, #tpu.memory_space<vmem>>, vector<1x1x32xf32>
    %342 = vector.shape_cast %341 : vector<1x1x32xf32> to vector<1x32xf32>
    %343 = arith.truncf %320 : vector<64x32xf32> to vector<64x32xbf16>
    %cst_163 = arith.constant dense<0.000000e+00> : vector<64x96xf32>
    %344 = tpu.matmul %343, %324, %cst_163 {dimension_numbers = #tpu.dot_dimension_numbers<[1], [0], [0], [1], [0, 0, 1, 1], [], []>} : vector<64x32xbf16>, vector<32x96xbf16>, vector<64x96xf32> -> vector<64x96xf32>
    %345 = vector.broadcast %326 : vector<1x96xf32> to vector<64x96xf32>
    %346 = arith.addf %344, %345 : vector<64x96xf32>
    %347 = vector.extract_strided_slice %346 {offsets = [0, 0], sizes = [64, 32], strides = [1, 1]} : vector<64x96xf32> to vector<64x32xf32>
    %348 = vector.extract_strided_slice %346 {offsets = [0, 32], sizes = [64, 32], strides = [1, 1]} : vector<64x96xf32> to vector<64x32xf32>
    %349 = vector.extract_strided_slice %346 {offsets = [0, 64], sizes = [64, 32], strides = [1, 1]} : vector<64x96xf32> to vector<64x32xf32>
    %cst_164 = arith.constant 0.000000e+00 : f32
    %350 = vector.broadcast %cst_164 : f32 to vector<64x32xf32>
    %351 = vector.extract_strided_slice %347 {offsets = [0, 0], sizes = [64, 16], strides = [1, 1]} : vector<64x32xf32> to vector<64x16xf32>
    %352 = arith.truncf %351 : vector<64x16xf32> to vector<64x16xbf16>
    %353 = vector.extract_strided_slice %348 {offsets = [0, 0], sizes = [64, 16], strides = [1, 1]} : vector<64x32xf32> to vector<64x16xf32>
    %354 = arith.truncf %353 : vector<64x16xf32> to vector<64x16xbf16>
    %355 = vector.extract_strided_slice %349 {offsets = [0, 0], sizes = [64, 16], strides = [1, 1]} : vector<64x32xf32> to vector<64x16xf32>
    %356 = arith.truncf %355 : vector<64x16xf32> to vector<64x16xbf16>
    %cst_165 = arith.constant dense<0.000000e+00> : vector<64x64xf32>
    %357 = tpu.matmul %352, %354, %cst_165 {dimension_numbers = #tpu.dot_dimension_numbers<[1], [1], [0], [0], [0, 0, 1, 0], [], []>} : vector<64x16xbf16>, vector<64x16xbf16>, vector<64x64xf32> -> vector<64x64xf32>
    %358 = arith.addf %357, %1 : vector<64x64xf32>
    %cst_166 = arith.constant dense<0xFF800000> : vector<64xf32>
    %359 = vector.multi_reduction <maximumf>, %358, %cst_166 [1] : vector<64x64xf32> to vector<64xf32>
    %360 = vector.shape_cast %359 : vector<64xf32> to vector<64x1xf32>
    %361 = vector.broadcast %360 : vector<64x1xf32> to vector<64x64xf32>
    %362 = arith.subf %358, %361 : vector<64x64xf32>
    %363 = math.exp %362 : vector<64x64xf32>
    %cst_167 = arith.constant dense<0.000000e+00> : vector<64xf32>
    %364 = vector.multi_reduction <add>, %363, %cst_167 [1] : vector<64x64xf32> to vector<64xf32>
    %365 = vector.shape_cast %364 : vector<64xf32> to vector<64x1xf32>
    %366 = tpu.reciprocal %365 {approx = true} : vector<64x1xf32> -> vector<64x1xf32>
    %367 = vector.broadcast %366 : vector<64x1xf32> to vector<64x64xf32>
    %368 = arith.mulf %363, %367 : vector<64x64xf32>
    %369 = arith.truncf %368 : vector<64x64xf32> to vector<64x64xbf16>
    %cst_168 = arith.constant dense<0.000000e+00> : vector<64x16xf32>
    %370 = tpu.matmul %369, %356, %cst_168 {dimension_numbers = #tpu.dot_dimension_numbers<[1], [0], [0], [1], [0, 0, 1, 1], [], []>} : vector<64x64xbf16>, vector<64x16xbf16>, vector<64x16xf32> -> vector<64x16xf32>
    %371 = arith.truncf %370 : vector<64x16xf32> to vector<64x16xbf16>
    %372 = vector.extract_strided_slice %328 {offsets = [0, 0], sizes = [16, 32], strides = [1, 1]} : vector<32x32xbf16> to vector<16x32xbf16>
    %cst_169 = arith.constant dense<0.000000e+00> : vector<64x32xf32>
    %373 = tpu.matmul %371, %372, %cst_169 {dimension_numbers = #tpu.dot_dimension_numbers<[1], [0], [0], [1], [0, 0, 1, 1], [], []>} : vector<64x16xbf16>, vector<16x32xbf16>, vector<64x32xf32> -> vector<64x32xf32>
    %374 = arith.addf %350, %373 : vector<64x32xf32>
    %375 = vector.extract_strided_slice %347 {offsets = [0, 16], sizes = [64, 16], strides = [1, 1]} : vector<64x32xf32> to vector<64x16xf32>
    %376 = arith.truncf %375 : vector<64x16xf32> to vector<64x16xbf16>
    %377 = vector.extract_strided_slice %348 {offsets = [0, 16], sizes = [64, 16], strides = [1, 1]} : vector<64x32xf32> to vector<64x16xf32>
    %378 = arith.truncf %377 : vector<64x16xf32> to vector<64x16xbf16>
    %379 = vector.extract_strided_slice %349 {offsets = [0, 16], sizes = [64, 16], strides = [1, 1]} : vector<64x32xf32> to vector<64x16xf32>
    %380 = arith.truncf %379 : vector<64x16xf32> to vector<64x16xbf16>
    %cst_170 = arith.constant dense<0.000000e+00> : vector<64x64xf32>
    %381 = tpu.matmul %376, %378, %cst_170 {dimension_numbers = #tpu.dot_dimension_numbers<[1], [1], [0], [0], [0, 0, 1, 0], [], []>} : vector<64x16xbf16>, vector<64x16xbf16>, vector<64x64xf32> -> vector<64x64xf32>
    %382 = arith.addf %381, %1 : vector<64x64xf32>
    %cst_171 = arith.constant dense<0xFF800000> : vector<64xf32>
    %383 = vector.multi_reduction <maximumf>, %382, %cst_171 [1] : vector<64x64xf32> to vector<64xf32>
    %384 = vector.shape_cast %383 : vector<64xf32> to vector<64x1xf32>
    %385 = vector.broadcast %384 : vector<64x1xf32> to vector<64x64xf32>
    %386 = arith.subf %382, %385 : vector<64x64xf32>
    %387 = math.exp %386 : vector<64x64xf32>
    %cst_172 = arith.constant dense<0.000000e+00> : vector<64xf32>
    %388 = vector.multi_reduction <add>, %387, %cst_172 [1] : vector<64x64xf32> to vector<64xf32>
    %389 = vector.shape_cast %388 : vector<64xf32> to vector<64x1xf32>
    %390 = tpu.reciprocal %389 {approx = true} : vector<64x1xf32> -> vector<64x1xf32>
    %391 = vector.broadcast %390 : vector<64x1xf32> to vector<64x64xf32>
    %392 = arith.mulf %387, %391 : vector<64x64xf32>
    %393 = arith.truncf %392 : vector<64x64xf32> to vector<64x64xbf16>
    %cst_173 = arith.constant dense<0.000000e+00> : vector<64x16xf32>
    %394 = tpu.matmul %393, %380, %cst_173 {dimension_numbers = #tpu.dot_dimension_numbers<[1], [0], [0], [1], [0, 0, 1, 1], [], []>} : vector<64x64xbf16>, vector<64x16xbf16>, vector<64x16xf32> -> vector<64x16xf32>
    %395 = arith.truncf %394 : vector<64x16xf32> to vector<64x16xbf16>
    %396 = vector.extract_strided_slice %328 {offsets = [16, 0], sizes = [16, 32], strides = [1, 1]} : vector<32x32xbf16> to vector<16x32xbf16>
    %cst_174 = arith.constant dense<0.000000e+00> : vector<64x32xf32>
    %397 = tpu.matmul %395, %396, %cst_174 {dimension_numbers = #tpu.dot_dimension_numbers<[1], [0], [0], [1], [0, 0, 1, 1], [], []>} : vector<64x16xbf16>, vector<16x32xbf16>, vector<64x32xf32> -> vector<64x32xf32>
    %398 = arith.addf %374, %397 : vector<64x32xf32>
    %399 = vector.broadcast %330 : vector<1x32xf32> to vector<64x32xf32>
    %400 = arith.addf %398, %399 : vector<64x32xf32>
    %401 = arith.addf %320, %400 : vector<64x32xf32>
    %cst_175 = arith.constant dense<0.000000e+00> : vector<64xf32>
    %402 = vector.multi_reduction <add>, %401, %cst_175 [1] : vector<64x32xf32> to vector<64xf32>
    %403 = vector.shape_cast %402 : vector<64xf32> to vector<64x1xf32>
    %cst_176 = arith.constant 3.200000e+01 : f32
    %404 = vector.broadcast %cst_176 : f32 to vector<64x1xf32>
    %405 = arith.divf %403, %404 : vector<64x1xf32>
    %406 = vector.broadcast %405 : vector<64x1xf32> to vector<64x32xf32>
    %407 = arith.subf %401, %406 : vector<64x32xf32>
    %408 = arith.mulf %407, %407 : vector<64x32xf32>
    %cst_177 = arith.constant dense<0.000000e+00> : vector<64xf32>
    %409 = vector.multi_reduction <add>, %408, %cst_177 [1] : vector<64x32xf32> to vector<64xf32>
    %410 = vector.shape_cast %409 : vector<64xf32> to vector<64x1xf32>
    %cst_178 = arith.constant 3.200000e+01 : f32
    %411 = vector.broadcast %cst_178 : f32 to vector<64x1xf32>
    %412 = arith.divf %410, %411 : vector<64x1xf32>
    %413 = vector.broadcast %405 : vector<64x1xf32> to vector<64x32xf32>
    %414 = arith.subf %401, %413 : vector<64x32xf32>
    %cst_179 = arith.constant 9.99999974E-6 : f32
    %415 = vector.broadcast %cst_179 : f32 to vector<64x1xf32>
    %416 = arith.addf %412, %415 : vector<64x1xf32>
    %417 = math.rsqrt %416 : vector<64x1xf32>
    %418 = vector.broadcast %417 : vector<64x1xf32> to vector<64x32xf32>
    %419 = arith.mulf %414, %418 : vector<64x32xf32>
    %420 = vector.broadcast %331 : vector<1x32xf32> to vector<64x32xf32>
    %421 = arith.mulf %419, %420 : vector<64x32xf32>
    %422 = vector.broadcast %332 : vector<1x32xf32> to vector<64x32xf32>
    %423 = arith.addf %421, %422 : vector<64x32xf32>
    %424 = arith.truncf %423 : vector<64x32xf32> to vector<64x32xbf16>
    %cst_180 = arith.constant dense<0.000000e+00> : vector<64x32xf32>
    %425 = tpu.matmul %424, %336, %cst_180 {dimension_numbers = #tpu.dot_dimension_numbers<[1], [0], [0], [1], [0, 0, 1, 1], [], []>} : vector<64x32xbf16>, vector<32x32xbf16>, vector<64x32xf32> -> vector<64x32xf32>
    %426 = vector.broadcast %338 : vector<1x32xf32> to vector<64x32xf32>
    %427 = arith.addf %425, %426 : vector<64x32xf32>
    %cst_181 = arith.constant 0.000000e+00 : f32
    %428 = vector.broadcast %cst_181 : f32 to vector<64x32xf32>
    %429 = arith.maximumf %427, %428 : vector<64x32xf32>
    %430 = arith.truncf %429 : vector<64x32xf32> to vector<64x32xbf16>
    %cst_182 = arith.constant dense<0.000000e+00> : vector<64x32xf32>
    %431 = tpu.matmul %430, %340, %cst_182 {dimension_numbers = #tpu.dot_dimension_numbers<[1], [0], [0], [1], [0, 0, 1, 1], [], []>} : vector<64x32xbf16>, vector<32x32xbf16>, vector<64x32xf32> -> vector<64x32xf32>
    %432 = vector.broadcast %342 : vector<1x32xf32> to vector<64x32xf32>
    %433 = arith.addf %431, %432 : vector<64x32xf32>
    %434 = arith.addf %423, %433 : vector<64x32xf32>
    %cst_183 = arith.constant dense<0.000000e+00> : vector<64xf32>
    %435 = vector.multi_reduction <add>, %434, %cst_183 [1] : vector<64x32xf32> to vector<64xf32>
    %436 = vector.shape_cast %435 : vector<64xf32> to vector<64x1xf32>
    %cst_184 = arith.constant 3.200000e+01 : f32
    %437 = vector.broadcast %cst_184 : f32 to vector<64x1xf32>
    %438 = arith.divf %436, %437 : vector<64x1xf32>
    %439 = vector.broadcast %438 : vector<64x1xf32> to vector<64x32xf32>
    %440 = arith.subf %434, %439 : vector<64x32xf32>
    %441 = arith.mulf %440, %440 : vector<64x32xf32>
    %cst_185 = arith.constant dense<0.000000e+00> : vector<64xf32>
    %442 = vector.multi_reduction <add>, %441, %cst_185 [1] : vector<64x32xf32> to vector<64xf32>
    %443 = vector.shape_cast %442 : vector<64xf32> to vector<64x1xf32>
    %cst_186 = arith.constant 3.200000e+01 : f32
    %444 = vector.broadcast %cst_186 : f32 to vector<64x1xf32>
    %445 = arith.divf %443, %444 : vector<64x1xf32>
    %446 = vector.broadcast %438 : vector<64x1xf32> to vector<64x32xf32>
    %447 = arith.subf %434, %446 : vector<64x32xf32>
    %cst_187 = arith.constant 9.99999974E-6 : f32
    %448 = vector.broadcast %cst_187 : f32 to vector<64x1xf32>
    %449 = arith.addf %445, %448 : vector<64x1xf32>
    %450 = math.rsqrt %449 : vector<64x1xf32>
    %451 = vector.broadcast %450 : vector<64x1xf32> to vector<64x32xf32>
    %452 = arith.mulf %447, %451 : vector<64x32xf32>
    %453 = vector.broadcast %333 : vector<1x32xf32> to vector<64x32xf32>
    %454 = arith.mulf %452, %453 : vector<64x32xf32>
    %455 = vector.broadcast %334 : vector<1x32xf32> to vector<64x32xf32>
    %456 = arith.addf %454, %455 : vector<64x32xf32>
    %c3 = arith.constant 3 : index
    %c0_188 = arith.constant 0 : index
    %c0_189 = arith.constant 0 : index
    %457 = vector.load %arg8[%c3, %c0_188, %c0_189] : memref<4x4x32xf32, #tpu.memory_space<vmem>>, vector<1x4x32xf32>
    %458 = vector.shape_cast %457 : vector<1x4x32xf32> to vector<4x32xf32>
    %c3_190 = arith.constant 3 : index
    %c0_191 = arith.constant 0 : index
    %c0_192 = arith.constant 0 : index
    %459 = vector.load %arg4[%c3_190, %c0_191, %c0_192] : memref<4x32x96xbf16, #tpu.memory_space<vmem>>, vector<1x32x96xbf16>
    %460 = vector.shape_cast %459 : vector<1x32x96xbf16> to vector<32x96xbf16>
    %c3_193 = arith.constant 3 : index
    %c0_194 = arith.constant 0 : index
    %c0_195 = arith.constant 0 : index
    %461 = vector.load %arg5[%c3_193, %c0_194, %c0_195] : memref<4x1x96xf32, #tpu.memory_space<vmem>>, vector<1x1x96xf32>
    %462 = vector.shape_cast %461 : vector<1x1x96xf32> to vector<1x96xf32>
    %c3_196 = arith.constant 3 : index
    %c0_197 = arith.constant 0 : index
    %c0_198 = arith.constant 0 : index
    %463 = vector.load %arg6[%c3_196, %c0_197, %c0_198] : memref<4x32x32xbf16, #tpu.memory_space<vmem>>, vector<1x32x32xbf16>
    %464 = vector.shape_cast %463 : vector<1x32x32xbf16> to vector<32x32xbf16>
    %c3_199 = arith.constant 3 : index
    %c0_200 = arith.constant 0 : index
    %c0_201 = arith.constant 0 : index
    %465 = vector.load %arg7[%c3_199, %c0_200, %c0_201] : memref<4x1x32xf32, #tpu.memory_space<vmem>>, vector<1x1x32xf32>
    %466 = vector.shape_cast %465 : vector<1x1x32xf32> to vector<1x32xf32>
    %467 = vector.extract_strided_slice %458 {offsets = [0, 0], sizes = [1, 32], strides = [1, 1]} : vector<4x32xf32> to vector<1x32xf32>
    %468 = vector.extract_strided_slice %458 {offsets = [1, 0], sizes = [1, 32], strides = [1, 1]} : vector<4x32xf32> to vector<1x32xf32>
    %469 = vector.extract_strided_slice %458 {offsets = [2, 0], sizes = [1, 32], strides = [1, 1]} : vector<4x32xf32> to vector<1x32xf32>
    %470 = vector.extract_strided_slice %458 {offsets = [3, 0], sizes = [1, 32], strides = [1, 1]} : vector<4x32xf32> to vector<1x32xf32>
    %c3_202 = arith.constant 3 : index
    %c0_203 = arith.constant 0 : index
    %c0_204 = arith.constant 0 : index
    %471 = vector.load %arg9[%c3_202, %c0_203, %c0_204] : memref<4x32x32xbf16, #tpu.memory_space<vmem>>, vector<1x32x32xbf16>
    %472 = vector.shape_cast %471 : vector<1x32x32xbf16> to vector<32x32xbf16>
    %c3_205 = arith.constant 3 : index
    %c0_206 = arith.constant 0 : index
    %c0_207 = arith.constant 0 : index
    %473 = vector.load %arg10[%c3_205, %c0_206, %c0_207] : memref<4x1x32xf32, #tpu.memory_space<vmem>>, vector<1x1x32xf32>
    %474 = vector.shape_cast %473 : vector<1x1x32xf32> to vector<1x32xf32>
    %c3_208 = arith.constant 3 : index
    %c0_209 = arith.constant 0 : index
    %c0_210 = arith.constant 0 : index
    %475 = vector.load %arg11[%c3_208, %c0_209, %c0_210] : memref<4x32x32xbf16, #tpu.memory_space<vmem>>, vector<1x32x32xbf16>
    %476 = vector.shape_cast %475 : vector<1x32x32xbf16> to vector<32x32xbf16>
    %c3_211 = arith.constant 3 : index
    %c0_212 = arith.constant 0 : index
    %c0_213 = arith.constant 0 : index
    %477 = vector.load %arg12[%c3_211, %c0_212, %c0_213] : memref<4x1x32xf32, #tpu.memory_space<vmem>>, vector<1x1x32xf32>
    %478 = vector.shape_cast %477 : vector<1x1x32xf32> to vector<1x32xf32>
    %479 = arith.truncf %320 : vector<64x32xf32> to vector<64x32xbf16>
    %cst_214 = arith.constant dense<0.000000e+00> : vector<64x96xf32>
    %480 = tpu.matmul %479, %460, %cst_214 {dimension_numbers = #tpu.dot_dimension_numbers<[1], [0], [0], [1], [0, 0, 1, 1], [], []>} : vector<64x32xbf16>, vector<32x96xbf16>, vector<64x96xf32> -> vector<64x96xf32>
    %481 = vector.broadcast %462 : vector<1x96xf32> to vector<64x96xf32>
    %482 = arith.addf %480, %481 : vector<64x96xf32>
    %483 = vector.extract_strided_slice %482 {offsets = [0, 0], sizes = [64, 32], strides = [1, 1]} : vector<64x96xf32> to vector<64x32xf32>
    %484 = vector.extract_strided_slice %482 {offsets = [0, 32], sizes = [64, 32], strides = [1, 1]} : vector<64x96xf32> to vector<64x32xf32>
    %485 = vector.extract_strided_slice %482 {offsets = [0, 64], sizes = [64, 32], strides = [1, 1]} : vector<64x96xf32> to vector<64x32xf32>
    %cst_215 = arith.constant 0.000000e+00 : f32
    %486 = vector.broadcast %cst_215 : f32 to vector<64x32xf32>
    %487 = vector.extract_strided_slice %483 {offsets = [0, 0], sizes = [64, 16], strides = [1, 1]} : vector<64x32xf32> to vector<64x16xf32>
    %488 = arith.truncf %487 : vector<64x16xf32> to vector<64x16xbf16>
    %489 = vector.extract_strided_slice %484 {offsets = [0, 0], sizes = [64, 16], strides = [1, 1]} : vector<64x32xf32> to vector<64x16xf32>
    %490 = arith.truncf %489 : vector<64x16xf32> to vector<64x16xbf16>
    %491 = vector.extract_strided_slice %485 {offsets = [0, 0], sizes = [64, 16], strides = [1, 1]} : vector<64x32xf32> to vector<64x16xf32>
    %492 = arith.truncf %491 : vector<64x16xf32> to vector<64x16xbf16>
    %cst_216 = arith.constant dense<0.000000e+00> : vector<64x64xf32>
    %493 = tpu.matmul %488, %490, %cst_216 {dimension_numbers = #tpu.dot_dimension_numbers<[1], [1], [0], [0], [0, 0, 1, 0], [], []>} : vector<64x16xbf16>, vector<64x16xbf16>, vector<64x64xf32> -> vector<64x64xf32>
    %494 = arith.addf %493, %2 : vector<64x64xf32>
    %cst_217 = arith.constant dense<0xFF800000> : vector<64xf32>
    %495 = vector.multi_reduction <maximumf>, %494, %cst_217 [1] : vector<64x64xf32> to vector<64xf32>
    %496 = vector.shape_cast %495 : vector<64xf32> to vector<64x1xf32>
    %497 = vector.broadcast %496 : vector<64x1xf32> to vector<64x64xf32>
    %498 = arith.subf %494, %497 : vector<64x64xf32>
    %499 = math.exp %498 : vector<64x64xf32>
    %cst_218 = arith.constant dense<0.000000e+00> : vector<64xf32>
    %500 = vector.multi_reduction <add>, %499, %cst_218 [1] : vector<64x64xf32> to vector<64xf32>
    %501 = vector.shape_cast %500 : vector<64xf32> to vector<64x1xf32>
    %502 = tpu.reciprocal %501 {approx = true} : vector<64x1xf32> -> vector<64x1xf32>
    %503 = vector.broadcast %502 : vector<64x1xf32> to vector<64x64xf32>
    %504 = arith.mulf %499, %503 : vector<64x64xf32>
    %505 = arith.truncf %504 : vector<64x64xf32> to vector<64x64xbf16>
    %cst_219 = arith.constant dense<0.000000e+00> : vector<64x16xf32>
    %506 = tpu.matmul %505, %492, %cst_219 {dimension_numbers = #tpu.dot_dimension_numbers<[1], [0], [0], [1], [0, 0, 1, 1], [], []>} : vector<64x64xbf16>, vector<64x16xbf16>, vector<64x16xf32> -> vector<64x16xf32>
    %507 = arith.truncf %506 : vector<64x16xf32> to vector<64x16xbf16>
    %508 = vector.extract_strided_slice %464 {offsets = [0, 0], sizes = [16, 32], strides = [1, 1]} : vector<32x32xbf16> to vector<16x32xbf16>
    %cst_220 = arith.constant dense<0.000000e+00> : vector<64x32xf32>
    %509 = tpu.matmul %507, %508, %cst_220 {dimension_numbers = #tpu.dot_dimension_numbers<[1], [0], [0], [1], [0, 0, 1, 1], [], []>} : vector<64x16xbf16>, vector<16x32xbf16>, vector<64x32xf32> -> vector<64x32xf32>
    %510 = arith.addf %486, %509 : vector<64x32xf32>
    %511 = vector.extract_strided_slice %483 {offsets = [0, 16], sizes = [64, 16], strides = [1, 1]} : vector<64x32xf32> to vector<64x16xf32>
    %512 = arith.truncf %511 : vector<64x16xf32> to vector<64x16xbf16>
    %513 = vector.extract_strided_slice %484 {offsets = [0, 16], sizes = [64, 16], strides = [1, 1]} : vector<64x32xf32> to vector<64x16xf32>
    %514 = arith.truncf %513 : vector<64x16xf32> to vector<64x16xbf16>
    %515 = vector.extract_strided_slice %485 {offsets = [0, 16], sizes = [64, 16], strides = [1, 1]} : vector<64x32xf32> to vector<64x16xf32>
    %516 = arith.truncf %515 : vector<64x16xf32> to vector<64x16xbf16>
    %cst_221 = arith.constant dense<0.000000e+00> : vector<64x64xf32>
    %517 = tpu.matmul %512, %514, %cst_221 {dimension_numbers = #tpu.dot_dimension_numbers<[1], [1], [0], [0], [0, 0, 1, 0], [], []>} : vector<64x16xbf16>, vector<64x16xbf16>, vector<64x64xf32> -> vector<64x64xf32>
    %518 = arith.addf %517, %2 : vector<64x64xf32>
    %cst_222 = arith.constant dense<0xFF800000> : vector<64xf32>
    %519 = vector.multi_reduction <maximumf>, %518, %cst_222 [1] : vector<64x64xf32> to vector<64xf32>
    %520 = vector.shape_cast %519 : vector<64xf32> to vector<64x1xf32>
    %521 = vector.broadcast %520 : vector<64x1xf32> to vector<64x64xf32>
    %522 = arith.subf %518, %521 : vector<64x64xf32>
    %523 = math.exp %522 : vector<64x64xf32>
    %cst_223 = arith.constant dense<0.000000e+00> : vector<64xf32>
    %524 = vector.multi_reduction <add>, %523, %cst_223 [1] : vector<64x64xf32> to vector<64xf32>
    %525 = vector.shape_cast %524 : vector<64xf32> to vector<64x1xf32>
    %526 = tpu.reciprocal %525 {approx = true} : vector<64x1xf32> -> vector<64x1xf32>
    %527 = vector.broadcast %526 : vector<64x1xf32> to vector<64x64xf32>
    %528 = arith.mulf %523, %527 : vector<64x64xf32>
    %529 = arith.truncf %528 : vector<64x64xf32> to vector<64x64xbf16>
    %cst_224 = arith.constant dense<0.000000e+00> : vector<64x16xf32>
    %530 = tpu.matmul %529, %516, %cst_224 {dimension_numbers = #tpu.dot_dimension_numbers<[1], [0], [0], [1], [0, 0, 1, 1], [], []>} : vector<64x64xbf16>, vector<64x16xbf16>, vector<64x16xf32> -> vector<64x16xf32>
    %531 = arith.truncf %530 : vector<64x16xf32> to vector<64x16xbf16>
    %532 = vector.extract_strided_slice %464 {offsets = [16, 0], sizes = [16, 32], strides = [1, 1]} : vector<32x32xbf16> to vector<16x32xbf16>
    %cst_225 = arith.constant dense<0.000000e+00> : vector<64x32xf32>
    %533 = tpu.matmul %531, %532, %cst_225 {dimension_numbers = #tpu.dot_dimension_numbers<[1], [0], [0], [1], [0, 0, 1, 1], [], []>} : vector<64x16xbf16>, vector<16x32xbf16>, vector<64x32xf32> -> vector<64x32xf32>
    %534 = arith.addf %510, %533 : vector<64x32xf32>
    %535 = vector.broadcast %466 : vector<1x32xf32> to vector<64x32xf32>
    %536 = arith.addf %534, %535 : vector<64x32xf32>
    %537 = arith.addf %320, %536 : vector<64x32xf32>
    %cst_226 = arith.constant dense<0.000000e+00> : vector<64xf32>
    %538 = vector.multi_reduction <add>, %537, %cst_226 [1] : vector<64x32xf32> to vector<64xf32>
    %539 = vector.shape_cast %538 : vector<64xf32> to vector<64x1xf32>
    %cst_227 = arith.constant 3.200000e+01 : f32
    %540 = vector.broadcast %cst_227 : f32 to vector<64x1xf32>
    %541 = arith.divf %539, %540 : vector<64x1xf32>
    %542 = vector.broadcast %541 : vector<64x1xf32> to vector<64x32xf32>
    %543 = arith.subf %537, %542 : vector<64x32xf32>
    %544 = arith.mulf %543, %543 : vector<64x32xf32>
    %cst_228 = arith.constant dense<0.000000e+00> : vector<64xf32>
    %545 = vector.multi_reduction <add>, %544, %cst_228 [1] : vector<64x32xf32> to vector<64xf32>
    %546 = vector.shape_cast %545 : vector<64xf32> to vector<64x1xf32>
    %cst_229 = arith.constant 3.200000e+01 : f32
    %547 = vector.broadcast %cst_229 : f32 to vector<64x1xf32>
    %548 = arith.divf %546, %547 : vector<64x1xf32>
    %549 = vector.broadcast %541 : vector<64x1xf32> to vector<64x32xf32>
    %550 = arith.subf %537, %549 : vector<64x32xf32>
    %cst_230 = arith.constant 9.99999974E-6 : f32
    %551 = vector.broadcast %cst_230 : f32 to vector<64x1xf32>
    %552 = arith.addf %548, %551 : vector<64x1xf32>
    %553 = math.rsqrt %552 : vector<64x1xf32>
    %554 = vector.broadcast %553 : vector<64x1xf32> to vector<64x32xf32>
    %555 = arith.mulf %550, %554 : vector<64x32xf32>
    %556 = vector.broadcast %467 : vector<1x32xf32> to vector<64x32xf32>
    %557 = arith.mulf %555, %556 : vector<64x32xf32>
    %558 = vector.broadcast %468 : vector<1x32xf32> to vector<64x32xf32>
    %559 = arith.addf %557, %558 : vector<64x32xf32>
    %560 = arith.truncf %559 : vector<64x32xf32> to vector<64x32xbf16>
    %cst_231 = arith.constant dense<0.000000e+00> : vector<64x32xf32>
    %561 = tpu.matmul %560, %472, %cst_231 {dimension_numbers = #tpu.dot_dimension_numbers<[1], [0], [0], [1], [0, 0, 1, 1], [], []>} : vector<64x32xbf16>, vector<32x32xbf16>, vector<64x32xf32> -> vector<64x32xf32>
    %562 = vector.broadcast %474 : vector<1x32xf32> to vector<64x32xf32>
    %563 = arith.addf %561, %562 : vector<64x32xf32>
    %cst_232 = arith.constant 0.000000e+00 : f32
    %564 = vector.broadcast %cst_232 : f32 to vector<64x32xf32>
    %565 = arith.maximumf %563, %564 : vector<64x32xf32>
    %566 = arith.truncf %565 : vector<64x32xf32> to vector<64x32xbf16>
    %cst_233 = arith.constant dense<0.000000e+00> : vector<64x32xf32>
    %567 = tpu.matmul %566, %476, %cst_233 {dimension_numbers = #tpu.dot_dimension_numbers<[1], [0], [0], [1], [0, 0, 1, 1], [], []>} : vector<64x32xbf16>, vector<32x32xbf16>, vector<64x32xf32> -> vector<64x32xf32>
    %568 = vector.broadcast %478 : vector<1x32xf32> to vector<64x32xf32>
    %569 = arith.addf %567, %568 : vector<64x32xf32>
    %570 = arith.addf %559, %569 : vector<64x32xf32>
    %cst_234 = arith.constant dense<0.000000e+00> : vector<64xf32>
    %571 = vector.multi_reduction <add>, %570, %cst_234 [1] : vector<64x32xf32> to vector<64xf32>
    %572 = vector.shape_cast %571 : vector<64xf32> to vector<64x1xf32>
    %cst_235 = arith.constant 3.200000e+01 : f32
    %573 = vector.broadcast %cst_235 : f32 to vector<64x1xf32>
    %574 = arith.divf %572, %573 : vector<64x1xf32>
    %575 = vector.broadcast %574 : vector<64x1xf32> to vector<64x32xf32>
    %576 = arith.subf %570, %575 : vector<64x32xf32>
    %577 = arith.mulf %576, %576 : vector<64x32xf32>
    %cst_236 = arith.constant dense<0.000000e+00> : vector<64xf32>
    %578 = vector.multi_reduction <add>, %577, %cst_236 [1] : vector<64x32xf32> to vector<64xf32>
    %579 = vector.shape_cast %578 : vector<64xf32> to vector<64x1xf32>
    %cst_237 = arith.constant 3.200000e+01 : f32
    %580 = vector.broadcast %cst_237 : f32 to vector<64x1xf32>
    %581 = arith.divf %579, %580 : vector<64x1xf32>
    %582 = vector.broadcast %574 : vector<64x1xf32> to vector<64x32xf32>
    %583 = arith.subf %570, %582 : vector<64x32xf32>
    %cst_238 = arith.constant 9.99999974E-6 : f32
    %584 = vector.broadcast %cst_238 : f32 to vector<64x1xf32>
    %585 = arith.addf %581, %584 : vector<64x1xf32>
    %586 = math.rsqrt %585 : vector<64x1xf32>
    %587 = vector.broadcast %586 : vector<64x1xf32> to vector<64x32xf32>
    %588 = arith.mulf %583, %587 : vector<64x32xf32>
    %589 = vector.broadcast %469 : vector<1x32xf32> to vector<64x32xf32>
    %590 = arith.mulf %588, %589 : vector<64x32xf32>
    %591 = vector.broadcast %470 : vector<1x32xf32> to vector<64x32xf32>
    %592 = arith.addf %590, %591 : vector<64x32xf32>
    %c1_239 = arith.constant 1 : index
    %c0_240 = arith.constant 0 : index
    %c0_241 = arith.constant 0 : index
    %c0_242 = arith.constant 0 : index
    %593 = vector.load %arg13[%c1_239, %c0_240, %c0_241, %c0_242] : memref<2x3x32x32xbf16, #tpu.memory_space<vmem>>, vector<1x1x32x32xbf16>
    %594 = vector.shape_cast %593 : vector<1x1x32x32xbf16> to vector<32x32xbf16>
    %c1_243 = arith.constant 1 : index
    %c1_244 = arith.constant 1 : index
    %c0_245 = arith.constant 0 : index
    %c0_246 = arith.constant 0 : index
    %595 = vector.load %arg13[%c1_243, %c1_244, %c0_245, %c0_246] : memref<2x3x32x32xbf16, #tpu.memory_space<vmem>>, vector<1x1x32x32xbf16>
    %596 = vector.shape_cast %595 : vector<1x1x32x32xbf16> to vector<32x32xbf16>
    %c1_247 = arith.constant 1 : index
    %c2_248 = arith.constant 2 : index
    %c0_249 = arith.constant 0 : index
    %c0_250 = arith.constant 0 : index
    %597 = vector.load %arg13[%c1_247, %c2_248, %c0_249, %c0_250] : memref<2x3x32x32xbf16, #tpu.memory_space<vmem>>, vector<1x1x32x32xbf16>
    %598 = vector.shape_cast %597 : vector<1x1x32x32xbf16> to vector<32x32xbf16>
    %c1_251 = arith.constant 1 : index
    %c0_252 = arith.constant 0 : index
    %c0_253 = arith.constant 0 : index
    %599 = vector.load %arg14[%c1_251, %c0_252, %c0_253] : memref<2x1x32xf32, #tpu.memory_space<vmem>>, vector<1x1x32xf32>
    %600 = vector.shape_cast %599 : vector<1x1x32xf32> to vector<1x32xf32>
    %601 = vector.extract_strided_slice %320 {offsets = [0, 0], sizes = [32, 32], strides = [1, 1]} : vector<64x32xf32> to vector<32x32xf32>
    %cst_254 = arith.constant dense<0.000000e+00> : vector<32xf32>
    %602 = vector.multi_reduction <add>, %601, %cst_254 [0] : vector<32x32xf32> to vector<32xf32>
    %603 = vector.shape_cast %602 : vector<32xf32> to vector<1x32xf32>
    %cst_255 = arith.constant 3.200000e+01 : f32
    %604 = vector.broadcast %cst_255 : f32 to vector<1x32xf32>
    %605 = arith.divf %603, %604 : vector<1x32xf32>
    %606 = vector.extract_strided_slice %320 {offsets = [32, 0], sizes = [32, 32], strides = [1, 1]} : vector<64x32xf32> to vector<32x32xf32>
    %cst_256 = arith.constant dense<0.000000e+00> : vector<32xf32>
    %607 = vector.multi_reduction <add>, %606, %cst_256 [0] : vector<32x32xf32> to vector<32xf32>
    %608 = vector.shape_cast %607 : vector<32xf32> to vector<1x32xf32>
    %cst_257 = arith.constant 3.200000e+01 : f32
    %609 = vector.broadcast %cst_257 : f32 to vector<1x32xf32>
    %610 = arith.divf %608, %609 : vector<1x32xf32>
    %611 = tpu.concatenate %605, %610 in 0 : vector<1x32xf32>, vector<1x32xf32> -> vector<2x32xf32>
    %612 = arith.truncf %611 : vector<2x32xf32> to vector<2x32xbf16>
    %cst_258 = arith.constant dense<0.000000e+00> : vector<2x32xf32>
    %613 = tpu.matmul %612, %598, %cst_258 {dimension_numbers = #tpu.dot_dimension_numbers<[1], [0], [0], [1], [0, 0, 1, 1], [], []>} : vector<2x32xbf16>, vector<32x32xbf16>, vector<2x32xf32> -> vector<2x32xf32>
    %614 = vector.extract_strided_slice %613 {offsets = [0, 0], sizes = [1, 32], strides = [1, 1]} : vector<2x32xf32> to vector<1x32xf32>
    %615 = vector.shape_cast %614 : vector<1x32xf32> to vector<1x32xf32>
    %616 = vector.broadcast %615 : vector<1x32xf32> to vector<32x32xf32>
    %617 = vector.extract_strided_slice %613 {offsets = [1, 0], sizes = [1, 32], strides = [1, 1]} : vector<2x32xf32> to vector<1x32xf32>
    %618 = vector.shape_cast %617 : vector<1x32xf32> to vector<1x32xf32>
    %619 = vector.broadcast %618 : vector<1x32xf32> to vector<32x32xf32>
    %620 = tpu.concatenate %616, %619 in 0 : vector<32x32xf32>, vector<32x32xf32> -> vector<64x32xf32>
    %621 = arith.truncf %456 : vector<64x32xf32> to vector<64x32xbf16>
    %cst_259 = arith.constant dense<0.000000e+00> : vector<64x32xf32>
    %622 = tpu.matmul %621, %594, %cst_259 {dimension_numbers = #tpu.dot_dimension_numbers<[1], [0], [0], [1], [0, 0, 1, 1], [], []>} : vector<64x32xbf16>, vector<32x32xbf16>, vector<64x32xf32> -> vector<64x32xf32>
    %623 = arith.truncf %592 : vector<64x32xf32> to vector<64x32xbf16>
    %cst_260 = arith.constant dense<0.000000e+00> : vector<64x32xf32>
    %624 = tpu.matmul %623, %596, %cst_260 {dimension_numbers = #tpu.dot_dimension_numbers<[1], [0], [0], [1], [0, 0, 1, 1], [], []>} : vector<64x32xbf16>, vector<32x32xbf16>, vector<64x32xf32> -> vector<64x32xf32>
    %625 = arith.addf %622, %624 : vector<64x32xf32>
    %626 = arith.addf %625, %620 : vector<64x32xf32>
    %627 = vector.broadcast %600 : vector<1x32xf32> to vector<64x32xf32>
    %628 = arith.addf %626, %627 : vector<64x32xf32>
    %cst_261 = arith.constant 0.000000e+00 : f32
    %629 = vector.broadcast %cst_261 : f32 to vector<64x32xf32>
    %630 = arith.maximumf %628, %629 : vector<64x32xf32>
    %631 = arith.truncf %630 : vector<64x32xf32> to vector<64x32xbf16>
    %c0_262 = arith.constant 0 : index
    %c0_263 = arith.constant 0 : index
    %632 = vector.load %arg17[%c0_262, %c0_263] : memref<32x128xbf16, #tpu.memory_space<vmem>>, vector<32x128xbf16>
    %cst_264 = arith.constant dense<0.000000e+00> : vector<64x128xf32>
    %633 = tpu.matmul %631, %632, %cst_264 {dimension_numbers = #tpu.dot_dimension_numbers<[1], [0], [0], [1], [0, 0, 1, 1], [], []>} : vector<64x32xbf16>, vector<32x128xbf16>, vector<64x128xf32> -> vector<64x128xf32>
    %c0_265 = arith.constant 0 : index
    %c0_266 = arith.constant 0 : index
    %634 = vector.load %arg18[%c0_265, %c0_266] : memref<1x128xf32, #tpu.memory_space<vmem>>, vector<1x128xf32>
    %635 = vector.broadcast %634 : vector<1x128xf32> to vector<64x128xf32>
    %636 = arith.addf %633, %635 : vector<64x128xf32>
    %c0_267 = arith.constant 0 : index
    %c0_268 = arith.constant 0 : index
    %637 = vector.load %arg19[%c0_267, %c0_268] : memref<64x128xf32, #tpu.memory_space<vmem>>, vector<64x128xf32>
    tpu.vector_store %arg19[%c0_267, %c0_268], %636 {strides = array<i32>} : memref<64x128xf32, #tpu.memory_space<vmem>>, vector<64x128xf32>,
    return
  }
  func.func @transform_0(%arg0: i32) -> (i32, i32) {
    %c0_i32 = arith.constant 0 : i32
    %c0_i32_0 = arith.constant 0 : i32
    return %arg0, %c0_i32 : i32, i32
  }
  func.func @transform_1(%arg0: i32) -> (i32, i32) {
    %c0_i32 = arith.constant 0 : i32
    %c0_i32_0 = arith.constant 0 : i32
    %c0_i32_1 = arith.constant 0 : i32
    return %c0_i32, %c0_i32_0 : i32, i32
  }
  func.func @transform_2(%arg0: i32) -> (i32, i32) {
    %c0_i32 = arith.constant 0 : i32
    %c0_i32_0 = arith.constant 0 : i32
    %c0_i32_1 = arith.constant 0 : i32
    return %c0_i32, %c0_i32_0 : i32, i32
  }
  func.func @transform_3(%arg0: i32) -> (i32, i32, i32) {
    %c0_i32 = arith.constant 0 : i32
    %c0_i32_0 = arith.constant 0 : i32
    %c0_i32_1 = arith.constant 0 : i32
    %c0_i32_2 = arith.constant 0 : i32
    return %c0_i32, %c0_i32_0, %c0_i32_1 : i32, i32, i32
  }
  func.func @transform_4(%arg0: i32) -> (i32, i32, i32) {
    %c0_i32 = arith.constant 0 : i32
    %c0_i32_0 = arith.constant 0 : i32
    %c0_i32_1 = arith.constant 0 : i32
    %c0_i32_2 = arith.constant 0 : i32
    return %c0_i32, %c0_i32_0, %c0_i32_1 : i32, i32, i32
  }
  func.func @transform_5(%arg0: i32) -> (i32, i32, i32) {
    %c0_i32 = arith.constant 0 : i32
    %c0_i32_0 = arith.constant 0 : i32
    %c0_i32_1 = arith.constant 0 : i32
    %c0_i32_2 = arith.constant 0 : i32
    return %c0_i32, %c0_i32_0, %c0_i32_1 : i32, i32, i32
  }
  func.func @transform_6(%arg0: i32) -> (i32, i32, i32) {
    %c0_i32 = arith.constant 0 : i32
    %c0_i32_0 = arith.constant 0 : i32
    %c0_i32_1 = arith.constant 0 : i32
    %c0_i32_2 = arith.constant 0 : i32
    return %c0_i32, %c0_i32_0, %c0_i32_1 : i32, i32, i32
  }
  func.func @transform_7(%arg0: i32) -> (i32, i32, i32) {
    %c0_i32 = arith.constant 0 : i32
    %c0_i32_0 = arith.constant 0 : i32
    %c0_i32_1 = arith.constant 0 : i32
    %c0_i32_2 = arith.constant 0 : i32
    return %c0_i32, %c0_i32_0, %c0_i32_1 : i32, i32, i32
  }
  func.func @transform_8(%arg0: i32) -> (i32, i32, i32) {
    %c0_i32 = arith.constant 0 : i32
    %c0_i32_0 = arith.constant 0 : i32
    %c0_i32_1 = arith.constant 0 : i32
    %c0_i32_2 = arith.constant 0 : i32
    return %c0_i32, %c0_i32_0, %c0_i32_1 : i32, i32, i32
  }
  func.func @transform_9(%arg0: i32) -> (i32, i32, i32) {
    %c0_i32 = arith.constant 0 : i32
    %c0_i32_0 = arith.constant 0 : i32
    %c0_i32_1 = arith.constant 0 : i32
    %c0_i32_2 = arith.constant 0 : i32
    return %c0_i32, %c0_i32_0, %c0_i32_1 : i32, i32, i32
  }
  func.func @transform_10(%arg0: i32) -> (i32, i32, i32) {
    %c0_i32 = arith.constant 0 : i32
    %c0_i32_0 = arith.constant 0 : i32
    %c0_i32_1 = arith.constant 0 : i32
    %c0_i32_2 = arith.constant 0 : i32
    return %c0_i32, %c0_i32_0, %c0_i32_1 : i32, i32, i32
  }
  func.func @transform_11(%arg0: i32) -> (i32, i32, i32) {
    %c0_i32 = arith.constant 0 : i32
    %c0_i32_0 = arith.constant 0 : i32
    %c0_i32_1 = arith.constant 0 : i32
    %c0_i32_2 = arith.constant 0 : i32
    return %c0_i32, %c0_i32_0, %c0_i32_1 : i32, i32, i32
  }
  func.func @transform_12(%arg0: i32) -> (i32, i32, i32, i32) {
    %c0_i32 = arith.constant 0 : i32
    %c0_i32_0 = arith.constant 0 : i32
    %c0_i32_1 = arith.constant 0 : i32
    %c0_i32_2 = arith.constant 0 : i32
    %c0_i32_3 = arith.constant 0 : i32
    return %c0_i32, %c0_i32_0, %c0_i32_1, %c0_i32_2 : i32, i32, i32, i32
  }
  func.func @transform_13(%arg0: i32) -> (i32, i32, i32) {
    %c0_i32 = arith.constant 0 : i32
    %c0_i32_0 = arith.constant 0 : i32
    %c0_i32_1 = arith.constant 0 : i32
    %c0_i32_2 = arith.constant 0 : i32
    return %c0_i32, %c0_i32_0, %c0_i32_1 : i32, i32, i32
  }
  func.func @transform_14(%arg0: i32) -> (i32, i32, i32) {
    %c0_i32 = arith.constant 0 : i32
    %c0_i32_0 = arith.constant 0 : i32
    %c0_i32_1 = arith.constant 0 : i32
    %c0_i32_2 = arith.constant 0 : i32
    return %c0_i32, %c0_i32_0, %c0_i32_1 : i32, i32, i32
  }
  func.func @transform_15(%arg0: i32) -> (i32, i32, i32) {
    %c0_i32 = arith.constant 0 : i32
    %c0_i32_0 = arith.constant 0 : i32
    %c0_i32_1 = arith.constant 0 : i32
    %c0_i32_2 = arith.constant 0 : i32
    return %c0_i32, %c0_i32_0, %c0_i32_1 : i32, i32, i32
  }
  func.func @transform_16(%arg0: i32) -> (i32, i32) {
    %c0_i32 = arith.constant 0 : i32
    %c0_i32_0 = arith.constant 0 : i32
    %c0_i32_1 = arith.constant 0 : i32
    return %c0_i32, %c0_i32_0 : i32, i32
  }
  func.func @transform_17(%arg0: i32) -> (i32, i32) {
    %c0_i32 = arith.constant 0 : i32
    %c0_i32_0 = arith.constant 0 : i32
    %c0_i32_1 = arith.constant 0 : i32
    return %c0_i32, %c0_i32_0 : i32, i32
  }
  func.func @transform_18(%arg0: i32) -> (i32, i32) {
    %c0_i32 = arith.constant 0 : i32
    %c0_i32_0 = arith.constant 0 : i32
    return %arg0, %c0_i32 : i32, i32
  }
}

</mosaic_0001>

<llo_original>
// kernel: tpu_custom_call.1
$region0: #{tpu_custom_call.1}
  #allocation0 [shape = 'u32[]', space=smem, size = 0x4, offset = 0x4, fixed_abs, tag = 'smem constant byte address 0x4 - core index']
  #allocation1 [shape = 'u32[72,128]{1,0:T(1,128)}', space=vmem, size = 0x9000, scoped, tag = 'internal scratch']
  %s0 = inlined_call_operand.vmem [shape: f32[64,32], index: 0, kind: input, shape index: {}]
  %s1 = inlined_call_operand.hbm [shape: f32[64,64], index: 1, kind: input, shape index: {}]
  %s2 = inlined_call_operand.hbm [shape: f32[64,64], index: 2, kind: input, shape index: {}]
  %s3 = inlined_call_operand.hbm [shape: bf16[4,32,96], index: 3, kind: input, shape index: {}]
  %s4 = inlined_call_operand.vmem [shape: f32[4,1,96], index: 4, kind: input, shape index: {}]
  %s5 = inlined_call_operand.hbm [shape: bf16[4,32,32], index: 5, kind: input, shape index: {}]
  %s6 = inlined_call_operand.vmem [shape: f32[4,1,32], index: 6, kind: input, shape index: {}]
  %s7 = inlined_call_operand.hbm [shape: f32[4,4,32], index: 7, kind: input, shape index: {}]
  %s8 = inlined_call_operand.hbm [shape: bf16[4,32,32], index: 8, kind: input, shape index: {}]
  %s9 = inlined_call_operand.hbm [shape: f32[4,1,32], index: 9, kind: input, shape index: {}]
  %s10 = inlined_call_operand.hbm [shape: bf16[4,32,32], index: 10, kind: input, shape index: {}]
  %s11 = inlined_call_operand.hbm [shape: f32[4,1,32], index: 11, kind: input, shape index: {}]
  %s12 = inlined_call_operand.vmem [shape: bf16[2,3,32,32], index: 12, kind: input, shape index: {}]
  %s13 = inlined_call_operand.vmem [shape: f32[2,1,32], index: 13, kind: input, shape index: {}]
  %s14 = inlined_call_operand.hbm [shape: bf16[1,32,32], index: 14, kind: input, shape index: {}]
  %s15 = inlined_call_operand.vmem [shape: f32[1,1,32], index: 15, kind: input, shape index: {}]
  %s16 = inlined_call_operand.hbm [shape: bf16[32,128], index: 16, kind: input, shape index: {}]
  %s17 = inlined_call_operand.vmem [shape: f32[1,128], index: 17, kind: input, shape index: {}]
  %s18 = inlined_call_operand.hbm [shape: f32[64,128], index: 18, kind: output, shape index: {}]
  %s19 = sld [smem:[#allocation0]]
  $region126: #{tpu_custom_call.1} parent=0
    _
  %s21 = ssub.s32 1, %s19
  %s22 = scalar_select 0, %s21, %s19
  $region1: #{tpu_custom_call.1} parent=0
    #allocation2 [shape = 'u8[32768]{0}', space=vmem, size = 0x8000, scoped, tag = 'input window, operand 1, single buffered']
    #allocation3 [shape = 's32[1]{0}', space=sflag, size = 0x4, scoped, tag = 'scoped memory for tpu_custom_call.1']
    #allocation4 [shape = 's32[1]{0}', space=sflag, size = 0x4, scoped, tag = 'scoped memory for tpu_custom_call.1']
    #allocation5 [shape = 'u8[32768]{0}', space=vmem, size = 0x8000, scoped, tag = 'input window, operand 2, single buffered']
    #allocation6 [shape = 's32[1]{0}', space=sflag, size = 0x4, scoped, tag = 'scoped memory for tpu_custom_call.1']
    #allocation7 [shape = 'u8[32768]{0}', space=vmem, size = 0x8000, scoped, tag = 'input window, operand 3, single buffered']
    #allocation8 [shape = 'u8[32768]{0}', space=vmem, size = 0x8000, scoped, tag = 'input window, operand 5, single buffered']
    #allocation9 [shape = 's32[1]{0}', space=sflag, size = 0x4, scoped, tag = 'scoped memory for tpu_custom_call.1']
    #allocation10 [shape = 'u8[8192]{0}', space=vmem, size = 0x2000, scoped, tag = 'input window, operand 7, single buffered']
    #allocation11 [shape = 'u8[32768]{0}', space=vmem, size = 0x8000, scoped, tag = 'input window, operand 8, single buffered']
    #allocation12 [shape = 's32[1]{0}', space=sflag, size = 0x4, scoped, tag = 'scoped memory for tpu_custom_call.1']
    #allocation13 [shape = 'u8[2048]{0}', space=vmem, size = 0x800, scoped, tag = 'input window, operand 9, single buffered']
    #allocation14 [shape = 'u8[32768]{0}', space=vmem, size = 0x8000, scoped, tag = 'input window, operand 10, single buffered']
    #allocation15 [shape = 's32[1]{0}', space=sflag, size = 0x4, scoped, tag = 'scoped memory for tpu_custom_call.1']
    #allocation16 [shape = 'u8[2048]{0}', space=vmem, size = 0x800, scoped, tag = 'input window, operand 11, single buffered']
    #allocation17 [shape = 'u8[8192]{0}', space=vmem, size = 0x2000, scoped, tag = 'input window, operand 14, single buffered']
    #allocation18 [shape = 's32[1]{0}', space=sflag, size = 0x4, scoped, tag = 'scoped memory for tpu_custom_call.1']
    #allocation19 [shape = 'u8[8192]{0}', space=vmem, size = 0x2000, scoped, tag = 'input window, operand 16, single buffered']
    #allocation20 [shape = 'u8[32768]{0}', space=vmem, size = 0x8000, scoped, tag = 'output window, operand 0, single buffered']
    %23 = vsyncpa [#allocation3], 0
    %24 = vsyncpa [#allocation6], 0
    %25 = vsyncpa [#allocation9], 0
    %26 = vsyncpa [#allocation12], 0
    %27 = vsyncpa [#allocation15], 0
    %28 = vsyncpa [#allocation18], 0
    %29 = vsyncpa [#allocation4], 0
    // Predicated region
    $region2: #{tpu_custom_call.1} parent=1 // pred_check
      _
    $region3: #{tpu_custom_call.1} parent=1 // pred_check_branch
      %31 = sbr.rel (0) target = $region5
    $region4: #{tpu_custom_call.1} parent=1 // pred_region
      _
    $region5: #{tpu_custom_call.1} parent=1 // pred_fallthru
      _
    // Predicated region
    $region6: #{tpu_custom_call.1} parent=1 // pred_check
      _
    $region7: #{tpu_custom_call.1} parent=1 // pred_check_branch
      %33 = sbr.rel (0) target = $region9
    $region8: #{tpu_custom_call.1} parent=1 // pred_region
      %35 = vsyncadd [#allocation3], 0
      %s36 = sshll.u32 %s1, 4
      %s37 = int_to_ptr.hbm [resolvable:$true] %s36
      %s38 = sshll.u32 [#allocation2], 4
      %s39 = int_to_ptr.vmem [resolvable:$true] %s38
      %44 = dma.hbm_to_vmem [thread:$0]  %s37, 1024, %s39, [#allocation3], 128, 128, 8
    $region9: #{tpu_custom_call.1} parent=1 // pred_fallthru
      _
    // Predicated region
    $region10: #{tpu_custom_call.1} parent=1 // pred_check
      _
    $region11: #{tpu_custom_call.1} parent=1 // pred_check_branch
      %46 = sbr.rel (0) target = $region13
    $region12: #{tpu_custom_call.1} parent=1 // pred_region
      %48 = vsyncadd [#allocation6], 0
      %s49 = sshll.u32 %s2, 4
      %s50 = int_to_ptr.hbm [resolvable:$true] %s49
      %s51 = sshll.u32 [#allocation5], 4
      %s52 = int_to_ptr.vmem [resolvable:$true] %s51
      %57 = dma.hbm_to_vmem [thread:$0]  %s50, 1024, %s52, [#allocation6], 128, 128, 8
    $region13: #{tpu_custom_call.1} parent=1 // pred_fallthru
      _
    // Predicated region
    $region14: #{tpu_custom_call.1} parent=1 // pred_check
      _
    $region15: #{tpu_custom_call.1} parent=1 // pred_check_branch
      %59 = sbr.rel (0) target = $region17
    $region16: #{tpu_custom_call.1} parent=1 // pred_region
      %61 = vsyncadd [#allocation6], 0
      %s62 = sshll.u32 %s3, 4
      %s63 = int_to_ptr.hbm [resolvable:$true] %s62
      %s64 = sshll.u32 [#allocation7], 4
      %s65 = int_to_ptr.vmem [resolvable:$true] %s64
      %70 = dma.hbm_to_vmem [thread:$0]  %s63, 1024, %s65, [#allocation6], 64, 64, 4
    $region17: #{tpu_custom_call.1} parent=1 // pred_fallthru
      _
    // Predicated region
    $region18: #{tpu_custom_call.1} parent=1 // pred_check
      _
    $region19: #{tpu_custom_call.1} parent=1 // pred_check_branch
      %72 = sbr.rel (0) target = $region21
    $region20: #{tpu_custom_call.1} parent=1 // pred_region
      _
    $region21: #{tpu_custom_call.1} parent=1 // pred_fallthru
      _
    // Predicated region
    $region22: #{tpu_custom_call.1} parent=1 // pred_check
      _
    $region23: #{tpu_custom_call.1} parent=1 // pred_check_branch
      %74 = sbr.rel (0) target = $region25
    $region24: #{tpu_custom_call.1} parent=1 // pred_region
      %76 = vsyncadd [#allocation9], 0
      %s77 = sshll.u32 %s5, 4
      %s78 = int_to_ptr.hbm [resolvable:$true] %s77
      %s79 = sshll.u32 [#allocation8], 4
      %s80 = int_to_ptr.vmem [resolvable:$true] %s79
      %85 = dma.hbm_to_vmem [thread:$0]  %s78, 1024, %s80, [#allocation9], 64, 64, 4
    $region25: #{tpu_custom_call.1} parent=1 // pred_fallthru
      _
    // Predicated region
    $region26: #{tpu_custom_call.1} parent=1 // pred_check
      _
    $region27: #{tpu_custom_call.1} parent=1 // pred_check_branch
      %87 = sbr.rel (0) target = $region29
    $region28: #{tpu_custom_call.1} parent=1 // pred_region
      _
    $region29: #{tpu_custom_call.1} parent=1 // pred_fallthru
      _
    // Predicated region
    $region30: #{tpu_custom_call.1} parent=1 // pred_check
      _
    $region31: #{tpu_custom_call.1} parent=1 // pred_check_branch
      %89 = sbr.rel (0) target = $region33
    $region32: #{tpu_custom_call.1} parent=1 // pred_region
      %91 = vsyncadd [#allocation9], 0
      %s92 = sshll.u32 %s7, 4
      %s93 = int_to_ptr.hbm [resolvable:$true] %s92
      %s94 = sshll.u32 [#allocation10], 4
      %s95 = int_to_ptr.vmem [resolvable:$true] %s94
      %100 = dma.hbm_to_vmem [thread:$0]  %s93, 256, %s95, [#allocation9], 64, 64, 4
    $region33: #{tpu_custom_call.1} parent=1 // pred_fallthru
      _
    // Predicated region
    $region34: #{tpu_custom_call.1} parent=1 // pred_check
      _
    $region35: #{tpu_custom_call.1} parent=1 // pred_check_branch
      %102 = sbr.rel (0) target = $region37
    $region36: #{tpu_custom_call.1} parent=1 // pred_region
      %104 = vsyncadd [#allocation12], 0
      %s105 = sshll.u32 %s8, 4
      %s106 = int_to_ptr.hbm [resolvable:$true] %s105
      %s107 = sshll.u32 [#allocation11], 4
      %s108 = int_to_ptr.vmem [resolvable:$true] %s107
      %113 = dma.hbm_to_vmem [thread:$0]  %s106, 1024, %s108, [#allocation12], 64, 64, 4
    $region37: #{tpu_custom_call.1} parent=1 // pred_fallthru
      _
    // Predicated region
    $region38: #{tpu_custom_call.1} parent=1 // pred_check
      _
    $region39: #{tpu_custom_call.1} parent=1 // pred_check_branch
      %115 = sbr.rel (0) target = $region41
    $region40: #{tpu_custom_call.1} parent=1 // pred_region
      %117 = vsyncadd [#allocation12], 0
      %s118 = sshll.u32 %s9, 4
      %s119 = int_to_ptr.hbm [resolvable:$true] %s118
      %s120 = sshll.u32 [#allocation13], 4
      %s121 = int_to_ptr.vmem [resolvable:$true] %s120
      %126 = dma.hbm_to_vmem [thread:$0]  %s119, 64, %s121, [#allocation12], 16, 16, 1
    $region41: #{tpu_custom_call.1} parent=1 // pred_fallthru
      _
    // Predicated region
    $region42: #{tpu_custom_call.1} parent=1 // pred_check
      _
    $region43: #{tpu_custom_call.1} parent=1 // pred_check_branch
      %128 = sbr.rel (0) target = $region45
    $region44: #{tpu_custom_call.1} parent=1 // pred_region
      %130 = vsyncadd [#allocation15], 0
      %s131 = sshll.u32 %s10, 4
      %s132 = int_to_ptr.hbm [resolvable:$true] %s131
      %s133 = sshll.u32 [#allocation14], 4
      %s134 = int_to_ptr.vmem [resolvable:$true] %s133
      %139 = dma.hbm_to_vmem [thread:$0]  %s132, 1024, %s134, [#allocation15], 64, 64, 4
    $region45: #{tpu_custom_call.1} parent=1 // pred_fallthru
      _
    // Predicated region
    $region46: #{tpu_custom_call.1} parent=1 // pred_check
      _
    $region47: #{tpu_custom_call.1} parent=1 // pred_check_branch
      %141 = sbr.rel (0) target = $region49
    $region48: #{tpu_custom_call.1} parent=1 // pred_region
      %143 = vsyncadd [#allocation15], 0
      %s144 = sshll.u32 %s11, 4
      %s145 = int_to_ptr.hbm [resolvable:$true] %s144
      %s146 = sshll.u32 [#allocation16], 4
      %s147 = int_to_ptr.vmem [resolvable:$true] %s146
      %152 = dma.hbm_to_vmem [thread:$0]  %s145, 64, %s147, [#allocation15], 16, 16, 1
    $region49: #{tpu_custom_call.1} parent=1 // pred_fallthru
      _
    // Predicated region
    $region50: #{tpu_custom_call.1} parent=1 // pred_check
      _
    $region51: #{tpu_custom_call.1} parent=1 // pred_check_branch
      %154 = sbr.rel (0) target = $region53
    $region52: #{tpu_custom_call.1} parent=1 // pred_region
      _
    $region53: #{tpu_custom_call.1} parent=1 // pred_fallthru
      _
    // Predicated region
    $region54: #{tpu_custom_call.1} parent=1 // pred_check
      _
    $region55: #{tpu_custom_call.1} parent=1 // pred_check_branch
      %156 = sbr.rel (0) target = $region57
    $region56: #{tpu_custom_call.1} parent=1 // pred_region
      _
    $region57: #{tpu_custom_call.1} parent=1 // pred_fallthru
      _
    // Predicated region
    $region58: #{tpu_custom_call.1} parent=1 // pred_check
      _
    $region59: #{tpu_custom_call.1} parent=1 // pred_check_branch
      %158 = sbr.rel (0) target = $region61
    $region60: #{tpu_custom_call.1} parent=1 // pred_region
      %160 = vsyncadd [#allocation18], 0
      %s161 = sshll.u32 %s14, 4
      %s162 = int_to_ptr.hbm [resolvable:$true] %s161
      %s163 = sshll.u32 [#allocation17], 4
      %s164 = int_to_ptr.vmem [resolvable:$true] %s163
      %169 = dma.hbm_to_vmem [thread:$0]  %s162, 256, %s164, [#allocation18], 64, 64, 4
    $region61: #{tpu_custom_call.1} parent=1 // pred_fallthru
      _
    // Predicated region
    $region62: #{tpu_custom_call.1} parent=1 // pred_check
      _
    $region63: #{tpu_custom_call.1} parent=1 // pred_check_branch
      %171 = sbr.rel (0) target = $region65
    $region64: #{tpu_custom_call.1} parent=1 // pred_region
      _
    $region65: #{tpu_custom_call.1} parent=1 // pred_fallthru
      _
    // Predicated region
    $region66: #{tpu_custom_call.1} parent=1 // pred_check
      _
    $region67: #{tpu_custom_call.1} parent=1 // pred_check_branch
      %173 = sbr.rel (0) target = $region69
    $region68: #{tpu_custom_call.1} parent=1 // pred_region
      %175 = vsyncadd [#allocation18], 0
      %s176 = sshll.u32 %s16, 4
      %s177 = int_to_ptr.hbm [resolvable:$true] %s176
      %s178 = sshll.u32 [#allocation19], 4
      %s179 = int_to_ptr.vmem [resolvable:$true] %s178
      %184 = dma.hbm_to_vmem [thread:$0]  %s177, 256, %s179, [#allocation18], 64, 64, 4
    $region69: #{tpu_custom_call.1} parent=1 // pred_fallthru
      _
    // Predicated region
    $region70: #{tpu_custom_call.1} parent=1 // pred_check
      _
    $region71: #{tpu_custom_call.1} parent=1 // pred_check_branch
      %186 = sbr.rel (0) target = $region73
    $region72: #{tpu_custom_call.1} parent=1 // pred_region
      _
    $region73: #{tpu_custom_call.1} parent=1 // pred_fallthru
      _
    // Predicated region
    $region74: #{tpu_custom_call.1} parent=1 // pred_check
      _
    $region75: #{tpu_custom_call.1} parent=1 // pred_check_branch
      %188 = sbr.rel (0) target = $region77
    $region76: #{tpu_custom_call.1} parent=1 // pred_region
      %190 = dma.done [#allocation3], 1024
    $region77: #{tpu_custom_call.1} parent=1 // pred_fallthru
      _
    // Predicated region
    $region78: #{tpu_custom_call.1} parent=1 // pred_check
      _
    $region79: #{tpu_custom_call.1} parent=1 // pred_check_branch
      %192 = sbr.rel (0) target = $region81
    $region80: #{tpu_custom_call.1} parent=1 // pred_region
      %194 = dma.done [#allocation6], 1024
    $region81: #{tpu_custom_call.1} parent=1 // pred_fallthru
      _
    // Predicated region
    $region82: #{tpu_custom_call.1} parent=1 // pred_check
      _
    $region83: #{tpu_custom_call.1} parent=1 // pred_check_branch
      %196 = sbr.rel (0) target = $region85
    $region84: #{tpu_custom_call.1} parent=1 // pred_region
      %198 = dma.done [#allocation6], 1024
    $region85: #{tpu_custom_call.1} parent=1 // pred_fallthru
      _
    // Predicated region
    $region86: #{tpu_custom_call.1} parent=1 // pred_check
      _
    $region87: #{tpu_custom_call.1} parent=1 // pred_check_branch
      %200 = sbr.rel (0) target = $region89
    $region88: #{tpu_custom_call.1} parent=1 // pred_region
      %202 = dma.done [#allocation9], 1024
    $region89: #{tpu_custom_call.1} parent=1 // pred_fallthru
      _
    // Predicated region
    $region90: #{tpu_custom_call.1} parent=1 // pred_check
      _
    $region91: #{tpu_custom_call.1} parent=1 // pred_check_branch
      %204 = sbr.rel (0) target = $region93
    $region92: #{tpu_custom_call.1} parent=1 // pred_region
      %206 = dma.done [#allocation9], 256
    $region93: #{tpu_custom_call.1} parent=1 // pred_fallthru
      _
    // Predicated region
    $region94: #{tpu_custom_call.1} parent=1 // pred_check
      _
    $region95: #{tpu_custom_call.1} parent=1 // pred_check_branch
      %208 = sbr.rel (0) target = $region97
    $region96: #{tpu_custom_call.1} parent=1 // pred_region
      %210 = dma.done [#allocation12], 1024
    $region97: #{tpu_custom_call.1} parent=1 // pred_fallthru
      _
    // Predicated region
    $region98: #{tpu_custom_call.1} parent=1 // pred_check
      _
    $region99: #{tpu_custom_call.1} parent=1 // pred_check_branch
      %212 = sbr.rel (0) target = $region101
    $region100: #{tpu_custom_call.1} parent=1 // pred_region
      %214 = dma.done [#allocation12], 64
    $region101: #{tpu_custom_call.1} parent=1 // pred_fallthru
      _
    // Predicated region
    $region102: #{tpu_custom_call.1} parent=1 // pred_check
      _
    $region103: #{tpu_custom_call.1} parent=1 // pred_check_branch
      %216 = sbr.rel (0) target = $region105
    $region104: #{tpu_custom_call.1} parent=1 // pred_region
      %218 = dma.done [#allocation15], 1024
    $region105: #{tpu_custom_call.1} parent=1 // pred_fallthru
      _
    // Predicated region
    $region106: #{tpu_custom_call.1} parent=1 // pred_check
      _
    $region107: #{tpu_custom_call.1} parent=1 // pred_check_branch
      %220 = sbr.rel (0) target = $region109
    $region108: #{tpu_custom_call.1} parent=1 // pred_region
      %222 = dma.done [#allocation15], 64
    $region109: #{tpu_custom_call.1} parent=1 // pred_fallthru
      _
    // Predicated region
    $region110: #{tpu_custom_call.1} parent=1 // pred_check
      _
    $region111: #{tpu_custom_call.1} parent=1 // pred_check_branch
      %224 = sbr.rel (0) target = $region113
    $region112: #{tpu_custom_call.1} parent=1 // pred_region
      %226 = dma.done [#allocation18], 256
    $region113: #{tpu_custom_call.1} parent=1 // pred_fallthru
      _
    // Predicated region
    $region114: #{tpu_custom_call.1} parent=1 // pred_check
      _
    $region115: #{tpu_custom_call.1} parent=1 // pred_check_branch
      %228 = sbr.rel (0) target = $region117
    $region116: #{tpu_custom_call.1} parent=1 // pred_region
      %230 = dma.done [#allocation18], 256
    $region117: #{tpu_custom_call.1} parent=1 // pred_fallthru
      _
    %v232 = vld [vmem:[%s0] sm:$0xff]
    %v233 = vld [vmem:[%s0 + $0x8] sm:$0xff]
    %v234 = vld [vmem:[%s0 + $0x10] sm:$0xff]
    %v235 = vld [vmem:[%s0 + $0x18] sm:$0xff]
    %v236 = vld [vmem:[%s0 + $0x20] sm:$0xff]
    %v237 = vld [vmem:[%s0 + $0x28] sm:$0xff]
    %v238 = vld [vmem:[%s0 + $0x30] sm:$0xff]
    %v239 = vld [vmem:[%s0 + $0x38] sm:$0xff]
    %v240 = vld [vmem:[#allocation2] sm:$0xff]
    %v241 = vld [vmem:[#allocation2 + $0x8] sm:$0xff]
    %v242 = vld [vmem:[#allocation2 + $0x10] sm:$0xff]
    %v243 = vld [vmem:[#allocation2 + $0x18] sm:$0xff]
    %v244 = vld [vmem:[#allocation2 + $0x20] sm:$0xff]
    %v245 = vld [vmem:[#allocation2 + $0x28] sm:$0xff]
    %v246 = vld [vmem:[#allocation2 + $0x30] sm:$0xff]
    %v247 = vld [vmem:[#allocation2 + $0x38] sm:$0xff]
    %v248 = vld [vmem:[#allocation5] sm:$0xff]
    %v249 = vld [vmem:[#allocation5 + $0x8] sm:$0xff]
    %v250 = vld [vmem:[#allocation5 + $0x10] sm:$0xff]
    %v251 = vld [vmem:[#allocation5 + $0x18] sm:$0xff]
    %v252 = vld [vmem:[#allocation5 + $0x20] sm:$0xff]
    %v253 = vld [vmem:[#allocation5 + $0x28] sm:$0xff]
    %v254 = vld [vmem:[#allocation5 + $0x30] sm:$0xff]
    %v255 = vld [vmem:[#allocation5 + $0x38] sm:$0xff]
    %v256 = vld [vmem:[#allocation10] sm:$0xf]
    %v257 = vld [vmem:[#allocation7] sm:$0xf]
    %v258 = vld [vmem:[#allocation7 + $0x4] sm:$0xf]
    %v259 = vld [vmem:[#allocation7 + $0x8] sm:$0xf]
    %v260 = vld [vmem:[#allocation7 + $0xc] sm:$0xf]
    %v261 = vld [vmem:[%s4] sm:$0x1]
    %v262 = vld [vmem:[#allocation8] sm:$0xf]
    %v263 = vld [vmem:[#allocation8 + $0x4] sm:$0xf]
    %v264 = vld [vmem:[#allocation8 + $0x8] sm:$0xf]
    %v265 = vld [vmem:[#allocation8 + $0xc] sm:$0xf]
    %v266 = vld [vmem:[%s6] sm:$0x1]
    %v267 = vld [vmem:[#allocation11] sm:$0xf]
    %v268 = vld [vmem:[#allocation11 + $0x4] sm:$0xf]
    %v269 = vld [vmem:[#allocation11 + $0x8] sm:$0xf]
    %v270 = vld [vmem:[#allocation11 + $0xc] sm:$0xf]
    %v271 = vld [vmem:[#allocation13] sm:$0x1]
    %v272 = vld [vmem:[#allocation14] sm:$0xf]
    %v273 = vld [vmem:[#allocation14 + $0x4] sm:$0xf]
    %v274 = vld [vmem:[#allocation14 + $0x8] sm:$0xf]
    %v275 = vld [vmem:[#allocation14 + $0xc] sm:$0xf]
    %v276 = vld [vmem:[#allocation16] sm:$0x1]
    %v277 = vpack.c.bf16 %v233, %v232
    %v278 = vpack.c.bf16 %v235, %v234
    %v279 = vpack.c.bf16 %v237, %v236
    %v280 = vpack.c.bf16 %v239, %v238
    %v282 = vperm.slane %v261, 0
    %v288 = vunpack.c.l.b16 %v257
    %v289 = vunpack.c.l.b16 %v258
    %v290 = vunpack.c.l.b16 %v259
    %v291 = vunpack.c.l.b16 %v260
    %v292 = vpack.c.b16 %v289, %v288
    %v293 = vpack.c.b16 %v291, %v290
    %vm296 = vcmask 261120
    %v298 = vsel %vm296, %v277, 0
    %v301 = vsel %vm296, %v278, 0
    %v304 = vsel %vm296, %v279, 0
    %v307 = vsel %vm296, %v280, 0
    %309 = vmatpush.bf16.msra.mxu0 0
    %310 = vmatpush.bf16.msra.mxu0 0
    %311 = vmatpush.bf16.msra.mxu0 0
    %312 = vmatpush.bf16.msra.mxu0 0
    %313 = vmatpush.bf16.msra.mxu0 0
    %314 = vmatpush.bf16.msra.mxu0 0
    %315 = vmatpush.bf16.msra.mxu0 %v293
    %316 = vmatpush.bf16.msra.mxu0 %v292
    %317 = vmatmul.bf16.gmra.mxu0 %v298
    %v318 = vpop.f32.mrf.mxu0
    %v319 = vadd.f32 %v282, %v318
    %v320 = vpop.f32.mrf.mxu0
    %v321 = vadd.f32 %v282, %v320
    %322 = vmatmul.bf16.gmra.mxu0 %v301
    %v323 = vpop.f32.mrf.mxu0
    %v324 = vadd.f32 %v282, %v323
    %v325 = vpop.f32.mrf.mxu0
    %v326 = vadd.f32 %v282, %v325
    %327 = vmatmul.bf16.gmra.mxu0 %v304
    %v328 = vpop.f32.mrf.mxu0
    %v329 = vadd.f32 %v282, %v328
    %v330 = vpop.f32.mrf.mxu0
    %v331 = vadd.f32 %v282, %v330
    %332 = vmatmul.bf16.gmra.mxu0 %v307
    %v333 = vpop.f32.mrf.mxu0
    %v334 = vadd.f32 %v282, %v333
    %v335 = vpop.f32.mrf.mxu0
    %v336 = vadd.f32 %v282, %v335
    %337 = vdwg.mxu0
    %v338 = vpack.c.bf16 %v321, %v319
    %v339 = vpack.c.bf16 %v326, %v324
    %v340 = vpack.c.bf16 %v331, %v329
    %v341 = vpack.c.bf16 %v336, %v334
    %346 = vrot.lane.b32.xlu0 %v338, 96
    %v347 = vpop.permute.xlu0 %346
    %348 = vrot.lane.b32.xlu0 %v339, 96
    %v349 = vpop.permute.xlu0 %348
    %350 = vrot.lane.b32.xlu0 %v340, 96
    %v351 = vpop.permute.xlu0 %350
    %352 = vrot.lane.b32.xlu0 %v341, 96
    %v353 = vpop.permute.xlu0 %352
    %vm354 = vcmask 130048
    %v356 = vsel %vm354, %v338, 0
    %v359 = vsel %vm354, %v339, 0
    %v362 = vsel %vm354, %v340, 0
    %v365 = vsel %vm354, %v341, 0
    %v368 = vsel %vm354, %v347, 0
    %v371 = vsel %vm354, %v349, 0
    %v374 = vsel %vm354, %v351, 0
    %v377 = vsel %vm354, %v353, 0
    %379 = vmatpush.bf16.xpose.msra.mxu0 0
    %380 = vmatpush.bf16.xpose.msra.mxu0 0
    %381 = vmatpush.bf16.xpose.msra.mxu0 0
    %382 = vmatpush.bf16.xpose.msra.mxu0 0
    %383 = vmatpush.bf16.xpose.msra.mxu0 %v377
    %384 = vmatpush.bf16.xpose.msra.mxu0 %v374
    %385 = vmatpush.bf16.xpose.msra.mxu0 %v371
    %386 = vmatpush.bf16.xpose.msra.mxu0 %v368
    %387 = vmatmul.bf16.gmra.mxu0 %v356
    %v388 = vpop.f32.mrf.mxu0
    %v389 = vadd.f32 %v240, %v388
    %v390 = vpop.f32.mrf.mxu0
    %v391 = vadd.f32 %v241, %v390
    %392 = vmatmul.bf16.gmra.mxu0 %v359
    %v393 = vpop.f32.mrf.mxu0
    %v394 = vadd.f32 %v242, %v393
    %v395 = vpop.f32.mrf.mxu0
    %v396 = vadd.f32 %v243, %v395
    %397 = vmatmul.bf16.gmra.mxu0 %v362
    %v398 = vpop.f32.mrf.mxu0
    %v399 = vadd.f32 %v244, %v398
    %v400 = vpop.f32.mrf.mxu0
    %v401 = vadd.f32 %v245, %v400
    %402 = vmatmul.bf16.gmra.mxu0 %v365
    %v403 = vpop.f32.mrf.mxu0
    %v404 = vadd.f32 %v246, %v403
    %v405 = vpop.f32.mrf.mxu0
    %v406 = vadd.f32 %v247, %v405
    %407 = vdwg.mxu0
    %vm408 = vcmask 523264
    %v409 = vsel %vm408, %v389, -inf
    %410 = vmax.xlane.f32.xlu0 %v409
    %v411 = vpop.xlane.xlu0 %410
    %v412 = vsel %vm408, %v391, -inf
    %413 = vmax.xlane.f32.xlu0 %v412
    %v414 = vpop.xlane.xlu0 %413
    %v415 = vsel %vm408, %v394, -inf
    %416 = vmax.xlane.f32.xlu0 %v415
    %v417 = vpop.xlane.xlu0 %416
    %v418 = vsel %vm408, %v396, -inf
    %419 = vmax.xlane.f32.xlu0 %v418
    %v420 = vpop.xlane.xlu0 %419
    %v421 = vsel %vm408, %v399, -inf
    %422 = vmax.xlane.f32.xlu0 %v421
    %v423 = vpop.xlane.xlu0 %422
    %v424 = vsel %vm408, %v401, -inf
    %425 = vmax.xlane.f32.xlu0 %v424
    %v426 = vpop.xlane.xlu0 %425
    %v427 = vsel %vm408, %v404, -inf
    %428 = vmax.xlane.f32.xlu0 %v427
    %v429 = vpop.xlane.xlu0 %428
    %v430 = vsel %vm408, %v406, -inf
    %431 = vmax.xlane.f32.xlu0 %v430
    %v432 = vpop.xlane.xlu0 %431
    %v433 = vsub.f32 %v389, %v411
    %v434 = vsub.f32 %v391, %v414
    %v435 = vsub.f32 %v394, %v417
    %v436 = vsub.f32 %v396, %v420
    %v437 = vsub.f32 %v399, %v423
    %v438 = vsub.f32 %v401, %v426
    %v439 = vsub.f32 %v404, %v429
    %v440 = vsub.f32 %v406, %v432
    %v441 = vmul.f32 %v433, 1.442695
    %v442 = vpow.pop %v441
    %v443 = vmul.f32 %v434, 1.442695
    %v444 = vpow.pop %v443
    %v445 = vmul.f32 %v435, 1.442695
    %v446 = vpow.pop %v445
    %v447 = vmul.f32 %v436, 1.442695
    %v448 = vpow.pop %v447
    %v449 = vmul.f32 %v437, 1.442695
    %v450 = vpow.pop %v449
    %v451 = vmul.f32 %v438, 1.442695
    %v452 = vpow.pop %v451
    %v453 = vmul.f32 %v439, 1.442695
    %v454 = vpow.pop %v453
    %v455 = vmul.f32 %v440, 1.442695
    %v456 = vpow.pop %v455
    %v457 = vsel %vm408, %v442, 0.0
    %458 = vadd.xlane.f32.xlu0 %v457
    %v459 = vpop.xlane.xlu0 %458
    %v460 = vsel %vm408, %v444, 0.0
    %461 = vadd.xlane.f32.xlu0 %v460
    %v462 = vpop.xlane.xlu0 %461
    %v463 = vsel %vm408, %v446, 0.0
    %464 = vadd.xlane.f32.xlu0 %v463
    %v465 = vpop.xlane.xlu0 %464
    %v466 = vsel %vm408, %v448, 0.0
    %467 = vadd.xlane.f32.xlu0 %v466
    %v468 = vpop.xlane.xlu0 %467
    %v469 = vsel %vm408, %v450, 0.0
    %470 = vadd.xlane.f32.xlu0 %v469
    %v471 = vpop.xlane.xlu0 %470
    %v472 = vsel %vm408, %v452, 0.0
    %473 = vadd.xlane.f32.xlu0 %v472
    %v474 = vpop.xlane.xlu0 %473
    %v475 = vsel %vm408, %v454, 0.0
    %476 = vadd.xlane.f32.xlu0 %v475
    %v477 = vpop.xlane.xlu0 %476
    %v478 = vsel %vm408, %v456, 0.0
    %479 = vadd.xlane.f32.xlu0 %v478
    %v480 = vpop.xlane.xlu0 %479
    %v481 = vrcp.pop %v459
    %v482 = vrcp.pop %v462
    %v483 = vrcp.pop %v465
    %v484 = vrcp.pop %v468
    %v485 = vrcp.pop %v471
    %v486 = vrcp.pop %v474
    %v487 = vrcp.pop %v477
    %v488 = vrcp.pop %v480
    %v489 = vmul.f32 %v442, %v481
    %v490 = vmul.f32 %v444, %v482
    %v491 = vmul.f32 %v446, %v483
    %v492 = vmul.f32 %v448, %v484
    %v493 = vmul.f32 %v450, %v485
    %v494 = vmul.f32 %v452, %v486
    %v495 = vmul.f32 %v454, %v487
    %v496 = vmul.f32 %v456, %v488
    %v497 = vpack.c.bf16 %v490, %v489
    %v498 = vpack.c.bf16 %v492, %v491
    %v499 = vpack.c.bf16 %v494, %v493
    %v500 = vpack.c.bf16 %v496, %v495
    %501 = vrot.lane.b32.xlu0 %v338, 64
    %v502 = vpop.permute.xlu0 %501
    %503 = vrot.lane.b32.xlu0 %v339, 64
    %v504 = vpop.permute.xlu0 %503
    %505 = vrot.lane.b32.xlu0 %v340, 64
    %v506 = vpop.permute.xlu0 %505
    %507 = vrot.lane.b32.xlu0 %v341, 64
    %v508 = vpop.permute.xlu0 %507
    %v514 = vsel %vm408, %v497, 0
    %v517 = vsel %vm408, %v498, 0
    %v520 = vsel %vm408, %v499, 0
    %v523 = vsel %vm408, %v500, 0
    %525 = vmatpush.bf16.msra.mxu0 0
    %526 = vmatpush.bf16.msra.mxu0 0
    %527 = vmatpush.bf16.msra.mxu0 0
    %528 = vmatpush.bf16.msra.mxu0 0
    %529 = vmatpush.bf16.msra.mxu0 %v508
    %530 = vmatpush.bf16.msra.mxu0 %v506
    %531 = vmatpush.bf16.msra.mxu0 %v504
    %532 = vmatpush.bf16.msra.mxu0 %v502
    %533 = vmatmul.bf16.gmra.mxu0 %v514
    %v534 = vpop.f32.mrf.mxu0
    %v535 = vadd.f32 0.0, %v534
    %v536 = vpop.f32.mrf.mxu0
    %v537 = vadd.f32 0.0, %v536
    %538 = vmatmul.bf16.gmra.mxu0 %v517
    %v539 = vpop.f32.mrf.mxu0
    %v540 = vadd.f32 0.0, %v539
    %v541 = vpop.f32.mrf.mxu0
    %v542 = vadd.f32 0.0, %v541
    %543 = vmatmul.bf16.gmra.mxu0 %v520
    %v544 = vpop.f32.mrf.mxu0
    %v545 = vadd.f32 0.0, %v544
    %v546 = vpop.f32.mrf.mxu0
    %v547 = vadd.f32 0.0, %v546
    %548 = vmatmul.bf16.gmra.mxu0 %v523
    %v549 = vpop.f32.mrf.mxu0
    %v550 = vadd.f32 0.0, %v549
    %v551 = vpop.f32.mrf.mxu0
    %v552 = vadd.f32 0.0, %v551
    %553 = vdwg.mxu0
    %v554 = vpack.c.bf16 %v537, %v535
    %v555 = vpack.c.bf16 %v542, %v540
    %v556 = vpack.c.bf16 %v547, %v545
    %v557 = vpack.c.bf16 %v552, %v550
    %558 = vrot.lane.b32.xlu0 %v338, 112
    %v559 = vpop.permute.xlu0 %558
    %560 = vrot.lane.b32.xlu0 %v339, 112
    %v561 = vpop.permute.xlu0 %560
    %562 = vrot.lane.b32.xlu0 %v340, 112
    %v563 = vpop.permute.xlu0 %562
    %564 = vrot.lane.b32.xlu0 %v341, 112
    %v565 = vpop.permute.xlu0 %564
    %566 = vrot.lane.b32.xlu0 %v338, 80
    %v567 = vpop.permute.xlu0 %566
    %568 = vrot.lane.b32.xlu0 %v339, 80
    %v569 = vpop.permute.xlu0 %568
    %570 = vrot.lane.b32.xlu0 %v340, 80
    %v571 = vpop.permute.xlu0 %570
    %572 = vrot.lane.b32.xlu0 %v341, 80
    %v573 = vpop.permute.xlu0 %572
    %v575 = vsel %vm354, %v559, 0
    %v578 = vsel %vm354, %v561, 0
    %v581 = vsel %vm354, %v563, 0
    %v584 = vsel %vm354, %v565, 0
    %v587 = vsel %vm354, %v567, 0
    %v590 = vsel %vm354, %v569, 0
    %v593 = vsel %vm354, %v571, 0
    %v596 = vsel %vm354, %v573, 0
    %598 = vmatpush.bf16.xpose.msra.mxu0 0
    %599 = vmatpush.bf16.xpose.msra.mxu0 0
    %600 = vmatpush.bf16.xpose.msra.mxu0 0
    %601 = vmatpush.bf16.xpose.msra.mxu0 0
    %602 = vmatpush.bf16.xpose.msra.mxu0 %v596
    %603 = vmatpush.bf16.xpose.msra.mxu0 %v593
    %604 = vmatpush.bf16.xpose.msra.mxu0 %v590
    %605 = vmatpush.bf16.xpose.msra.mxu0 %v587
    %606 = vmatmul.bf16.gmra.mxu0 %v575
    %v607 = vpop.f32.mrf.mxu0
    %v608 = vadd.f32 %v240, %v607
    %v609 = vpop.f32.mrf.mxu0
    %v610 = vadd.f32 %v241, %v609
    %611 = vmatmul.bf16.gmra.mxu0 %v578
    %v612 = vpop.f32.mrf.mxu0
    %v613 = vadd.f32 %v242, %v612
    %v614 = vpop.f32.mrf.mxu0
    %v615 = vadd.f32 %v243, %v614
    %616 = vmatmul.bf16.gmra.mxu0 %v581
    %v617 = vpop.f32.mrf.mxu0
    %v618 = vadd.f32 %v244, %v617
    %v619 = vpop.f32.mrf.mxu0
    %v620 = vadd.f32 %v245, %v619
    %621 = vmatmul.bf16.gmra.mxu0 %v584
    %v622 = vpop.f32.mrf.mxu0
    %v623 = vadd.f32 %v246, %v622
    %v624 = vpop.f32.mrf.mxu0
    %v625 = vadd.f32 %v247, %v624
    %626 = vdwg.mxu0
    %v627 = vsel %vm408, %v608, -inf
    %628 = vmax.xlane.f32.xlu0 %v627
    %v629 = vpop.xlane.xlu0 %628
    %v630 = vsel %vm408, %v610, -inf
    %631 = vmax.xlane.f32.xlu0 %v630
    %v632 = vpop.xlane.xlu0 %631
    %v633 = vsel %vm408, %v613, -inf
    %634 = vmax.xlane.f32.xlu0 %v633
    %v635 = vpop.xlane.xlu0 %634
    %v636 = vsel %vm408, %v615, -inf
    %637 = vmax.xlane.f32.xlu0 %v636
    %v638 = vpop.xlane.xlu0 %637
    %v639 = vsel %vm408, %v618, -inf
    %640 = vmax.xlane.f32.xlu0 %v639
    %v641 = vpop.xlane.xlu0 %640
    %v642 = vsel %vm408, %v620, -inf
    %643 = vmax.xlane.f32.xlu0 %v642
    %v644 = vpop.xlane.xlu0 %643
    %v645 = vsel %vm408, %v623, -inf
    %646 = vmax.xlane.f32.xlu0 %v645
    %v647 = vpop.xlane.xlu0 %646
    %v648 = vsel %vm408, %v625, -inf
    %649 = vmax.xlane.f32.xlu0 %v648
    %v650 = vpop.xlane.xlu0 %649
    %v651 = vsub.f32 %v608, %v629
    %v652 = vsub.f32 %v610, %v632
    %v653 = vsub.f32 %v613, %v635
    %v654 = vsub.f32 %v615, %v638
    %v655 = vsub.f32 %v618, %v641
    %v656 = vsub.f32 %v620, %v644
    %v657 = vsub.f32 %v623, %v647
    %v658 = vsub.f32 %v625, %v650
    %v659 = vmul.f32 %v651, 1.442695
    %v660 = vpow.pop %v659
    %v661 = vmul.f32 %v652, 1.442695
    %v662 = vpow.pop %v661
    %v663 = vmul.f32 %v653, 1.442695
    %v664 = vpow.pop %v663
    %v665 = vmul.f32 %v654, 1.442695
    %v666 = vpow.pop %v665
    %v667 = vmul.f32 %v655, 1.442695
    %v668 = vpow.pop %v667
    %v669 = vmul.f32 %v656, 1.442695
    %v670 = vpow.pop %v669
    %v671 = vmul.f32 %v657, 1.442695
    %v672 = vpow.pop %v671
    %v673 = vmul.f32 %v658, 1.442695
    %v674 = vpow.pop %v673
    %v675 = vsel %vm408, %v660, 0.0
    %676 = vadd.xlane.f32.xlu0 %v675
    %v677 = vpop.xlane.xlu0 %676
    %v678 = vsel %vm408, %v662, 0.0
    %679 = vadd.xlane.f32.xlu0 %v678
    %v680 = vpop.xlane.xlu0 %679
    %v681 = vsel %vm408, %v664, 0.0
    %682 = vadd.xlane.f32.xlu0 %v681
    %v683 = vpop.xlane.xlu0 %682
    %v684 = vsel %vm408, %v666, 0.0
    %685 = vadd.xlane.f32.xlu0 %v684
    %v686 = vpop.xlane.xlu0 %685
    %v687 = vsel %vm408, %v668, 0.0
    %688 = vadd.xlane.f32.xlu0 %v687
    %v689 = vpop.xlane.xlu0 %688
    %v690 = vsel %vm408, %v670, 0.0
    %691 = vadd.xlane.f32.xlu0 %v690
    %v692 = vpop.xlane.xlu0 %691
    %v693 = vsel %vm408, %v672, 0.0
    %694 = vadd.xlane.f32.xlu0 %v693
    %v695 = vpop.xlane.xlu0 %694
    %v696 = vsel %vm408, %v674, 0.0
    %697 = vadd.xlane.f32.xlu0 %v696
    %v698 = vpop.xlane.xlu0 %697
    %v699 = vrcp.pop %v677
    %v700 = vrcp.pop %v680
    %v701 = vrcp.pop %v683
    %v702 = vrcp.pop %v686
    %v703 = vrcp.pop %v689
    %v704 = vrcp.pop %v692
    %v705 = vrcp.pop %v695
    %v706 = vrcp.pop %v698
    %v707 = vmul.f32 %v660, %v699
    %v708 = vmul.f32 %v662, %v700
    %v709 = vmul.f32 %v664, %v701
    %v710 = vmul.f32 %v666, %v702
    %v711 = vmul.f32 %v668, %v703
    %v712 = vmul.f32 %v670, %v704
    %v713 = vmul.f32 %v672, %v705
    %v714 = vmul.f32 %v674, %v706
    %v715 = vpack.c.bf16 %v708, %v707
    %v716 = vpack.c.bf16 %v710, %v709
    %v717 = vpack.c.bf16 %v712, %v711
    %v718 = vpack.c.bf16 %v714, %v713
    %719 = vrot.lane.b32.xlu0 %v338, 48
    %v720 = vpop.permute.xlu0 %719
    %721 = vrot.lane.b32.xlu0 %v339, 48
    %v722 = vpop.permute.xlu0 %721
    %723 = vrot.lane.b32.xlu0 %v340, 48
    %v724 = vpop.permute.xlu0 %723
    %725 = vrot.lane.b32.xlu0 %v341, 48
    %v726 = vpop.permute.xlu0 %725
    %v732 = vsel %vm408, %v715, 0
    %v735 = vsel %vm408, %v716, 0
    %v738 = vsel %vm408, %v717, 0
    %v741 = vsel %vm408, %v718, 0
    %743 = vmatpush.bf16.msra.mxu0 0
    %744 = vmatpush.bf16.msra.mxu0 0
    %745 = vmatpush.bf16.msra.mxu0 0
    %746 = vmatpush.bf16.msra.mxu0 0
    %747 = vmatpush.bf16.msra.mxu0 %v726
    %748 = vmatpush.bf16.msra.mxu0 %v724
    %749 = vmatpush.bf16.msra.mxu0 %v722
    %750 = vmatpush.bf16.msra.mxu0 %v720
    %751 = vmatmul.bf16.gmra.mxu0 %v732
    %v752 = vpop.f32.mrf.mxu0
    %v753 = vadd.f32 0.0, %v752
    %v754 = vpop.f32.mrf.mxu0
    %v755 = vadd.f32 0.0, %v754
    %756 = vmatmul.bf16.gmra.mxu0 %v735
    %v757 = vpop.f32.mrf.mxu0
    %v758 = vadd.f32 0.0, %v757
    %v759 = vpop.f32.mrf.mxu0
    %v760 = vadd.f32 0.0, %v759
    %761 = vmatmul.bf16.gmra.mxu0 %v738
    %v762 = vpop.f32.mrf.mxu0
    %v763 = vadd.f32 0.0, %v762
    %v764 = vpop.f32.mrf.mxu0
    %v765 = vadd.f32 0.0, %v764
    %766 = vmatmul.bf16.gmra.mxu0 %v741
    %v767 = vpop.f32.mrf.mxu0
    %v768 = vadd.f32 0.0, %v767
    %v769 = vpop.f32.mrf.mxu0
    %v770 = vadd.f32 0.0, %v769
    %771 = vdwg.mxu0
    %v772 = vpack.c.bf16 %v755, %v753
    %v773 = vpack.c.bf16 %v760, %v758
    %v774 = vpack.c.bf16 %v765, %v763
    %v775 = vpack.c.bf16 %v770, %v768
    %v778 = vunpack.c.l.b16 %v264
    %v779 = vunpack.c.l.b16 %v265
    %v780 = vpack.c.b16 %v779, %v778
    %v783 = vsel %vm354, %v772, 0
    %v786 = vsel %vm354, %v773, 0
    %v789 = vsel %vm354, %v774, 0
    %v792 = vsel %vm354, %v775, 0
    %794 = vmatpush.bf16.msra.mxu0 0
    %795 = vmatpush.bf16.msra.mxu0 0
    %796 = vmatpush.bf16.msra.mxu0 0
    %797 = vmatpush.bf16.msra.mxu0 0
    %798 = vmatpush.bf16.msra.mxu0 0
    %799 = vmatpush.bf16.msra.mxu0 0
    %800 = vmatpush.bf16.msra.mxu0 0
    %801 = vmatpush.bf16.msra.mxu0 %v780
    %802 = vmatmul.bf16.gmra.mxu0 %v783
    %v803 = vpop.f32.mrf.mxu0
    %v804 = vadd.f32 0.0, %v803
    %v805 = vpop.f32.mrf.mxu0
    %v806 = vadd.f32 0.0, %v805
    %807 = vmatmul.bf16.gmra.mxu0 %v786
    %v808 = vpop.f32.mrf.mxu0
    %v809 = vadd.f32 0.0, %v808
    %v810 = vpop.f32.mrf.mxu0
    %v811 = vadd.f32 0.0, %v810
    %812 = vmatmul.bf16.gmra.mxu0 %v789
    %v813 = vpop.f32.mrf.mxu0
    %v814 = vadd.f32 0.0, %v813
    %v815 = vpop.f32.mrf.mxu0
    %v816 = vadd.f32 0.0, %v815
    %817 = vmatmul.bf16.gmra.mxu0 %v792
    %v818 = vpop.f32.mrf.mxu0
    %v819 = vadd.f32 0.0, %v818
    %v820 = vpop.f32.mrf.mxu0
    %v821 = vadd.f32 0.0, %v820
    %822 = vdwg.mxu0
    %v825 = vunpack.c.l.b16 %v262
    %v826 = vunpack.c.l.b16 %v263
    %v827 = vpack.c.b16 %v826, %v825
    %v830 = vsel %vm354, %v554, 0
    %v833 = vsel %vm354, %v555, 0
    %v836 = vsel %vm354, %v556, 0
    %v839 = vsel %vm354, %v557, 0
    %841 = vmatpush.bf16.msra.mxu0 0
    %842 = vmatpush.bf16.msra.mxu0 0
    %843 = vmatpush.bf16.msra.mxu0 0
    %844 = vmatpush.bf16.msra.mxu0 0
    %845 = vmatpush.bf16.msra.mxu0 0
    %846 = vmatpush.bf16.msra.mxu0 0
    %847 = vmatpush.bf16.msra.mxu0 0
    %848 = vmatpush.bf16.msra.mxu0 %v827
    %849 = vmatmul.bf16.gmra.mxu0 %v830
    %v850 = vpop.f32.mrf.mxu0
    %v851 = vadd.f32 %v804, %v850
    %v852 = vpop.f32.mrf.mxu0
    %v853 = vadd.f32 %v806, %v852
    %854 = vmatmul.bf16.gmra.mxu0 %v833
    %v855 = vpop.f32.mrf.mxu0
    %v856 = vadd.f32 %v809, %v855
    %v857 = vpop.f32.mrf.mxu0
    %v858 = vadd.f32 %v811, %v857
    %859 = vmatmul.bf16.gmra.mxu0 %v836
    %v860 = vpop.f32.mrf.mxu0
    %v861 = vadd.f32 %v814, %v860
    %v862 = vpop.f32.mrf.mxu0
    %v863 = vadd.f32 %v816, %v862
    %864 = vmatmul.bf16.gmra.mxu0 %v839
    %v865 = vpop.f32.mrf.mxu0
    %v866 = vadd.f32 %v819, %v865
    %v867 = vpop.f32.mrf.mxu0
    %v868 = vadd.f32 %v821, %v867
    %869 = vdwg.mxu0
    %v871 = vperm.slane %v266, 0
    %v873 = vadd.f32 %v851, %v871
    %v874 = vadd.f32 %v853, %v871
    %v875 = vadd.f32 %v856, %v871
    %v876 = vadd.f32 %v858, %v871
    %v877 = vadd.f32 %v861, %v871
    %v878 = vadd.f32 %v863, %v871
    %v879 = vadd.f32 %v866, %v871
    %v880 = vadd.f32 %v868, %v871
    %v881 = vadd.f32 %v232, %v873
    %v882 = vadd.f32 %v233, %v874
    %v883 = vadd.f32 %v234, %v875
    %v884 = vadd.f32 %v235, %v876
    %v885 = vadd.f32 %v236, %v877
    %v886 = vadd.f32 %v237, %v878
    %v887 = vadd.f32 %v238, %v879
    %v888 = vadd.f32 %v239, %v880
    %v889 = vsel %vm296, %v881, 0.0
    %890 = vadd.xlane.f32.xlu0 %v889
    %v891 = vpop.xlane.xlu0 %890
    %v892 = vsel %vm296, %v882, 0.0
    %893 = vadd.xlane.f32.xlu0 %v892
    %v894 = vpop.xlane.xlu0 %893
    %v895 = vsel %vm296, %v883, 0.0
    %896 = vadd.xlane.f32.xlu0 %v895
    %v897 = vpop.xlane.xlu0 %896
    %v898 = vsel %vm296, %v884, 0.0
    %899 = vadd.xlane.f32.xlu0 %v898
    %v900 = vpop.xlane.xlu0 %899
    %v901 = vsel %vm296, %v885, 0.0
    %902 = vadd.xlane.f32.xlu0 %v901
    %v903 = vpop.xlane.xlu0 %902
    %v904 = vsel %vm296, %v886, 0.0
    %905 = vadd.xlane.f32.xlu0 %v904
    %v906 = vpop.xlane.xlu0 %905
    %v907 = vsel %vm296, %v887, 0.0
    %908 = vadd.xlane.f32.xlu0 %v907
    %v909 = vpop.xlane.xlu0 %908
    %v910 = vsel %vm296, %v888, 0.0
    %911 = vadd.xlane.f32.xlu0 %v910
    %v912 = vpop.xlane.xlu0 %911
    %v913 = vrcp.pop 32.0
    %v914 = vmul.f32 32.0, %v913
    %v915 = vsub.f32 1.0, %v914
    %v916 = vmul.f32 %v913, %v915
    %v917 = vadd.f32 %v913, %v916
    %vm918 = vweird.f32 %v913
    %v919 = vsel %vm918, %v913, %v917
    %v920 = vmul.f32 %v891, %v919
    %v921 = vmul.f32 %v894, %v919
    %v922 = vmul.f32 %v897, %v919
    %v923 = vmul.f32 %v900, %v919
    %v924 = vmul.f32 %v903, %v919
    %v925 = vmul.f32 %v906, %v919
    %v926 = vmul.f32 %v909, %v919
    %v927 = vmul.f32 %v912, %v919
    %v928 = vsub.f32 %v881, %v920
    %v929 = vsub.f32 %v882, %v921
    %v930 = vsub.f32 %v883, %v922
    %v931 = vsub.f32 %v884, %v923
    %v932 = vsub.f32 %v885, %v924
    %v933 = vsub.f32 %v886, %v925
    %v934 = vsub.f32 %v887, %v926
    %v935 = vsub.f32 %v888, %v927
    %v936 = vmul.f32 %v928, %v928
    %v937 = vmul.f32 %v929, %v929
    %v938 = vmul.f32 %v930, %v930
    %v939 = vmul.f32 %v931, %v931
    %v940 = vmul.f32 %v932, %v932
    %v941 = vmul.f32 %v933, %v933
    %v942 = vmul.f32 %v934, %v934
    %v943 = vmul.f32 %v935, %v935
    %v944 = vsel %vm296, %v936, 0.0
    %945 = vadd.xlane.f32.xlu0 %v944
    %v946 = vpop.xlane.xlu0 %945
    %v947 = vsel %vm296, %v937, 0.0
    %948 = vadd.xlane.f32.xlu0 %v947
    %v949 = vpop.xlane.xlu0 %948
    %v950 = vsel %vm296, %v938, 0.0
    %951 = vadd.xlane.f32.xlu0 %v950
    %v952 = vpop.xlane.xlu0 %951
    %v953 = vsel %vm296, %v939, 0.0
    %954 = vadd.xlane.f32.xlu0 %v953
    %v955 = vpop.xlane.xlu0 %954
    %v956 = vsel %vm296, %v940, 0.0
    %957 = vadd.xlane.f32.xlu0 %v956
    %v958 = vpop.xlane.xlu0 %957
    %v959 = vsel %vm296, %v941, 0.0
    %960 = vadd.xlane.f32.xlu0 %v959
    %v961 = vpop.xlane.xlu0 %960
    %v962 = vsel %vm296, %v942, 0.0
    %963 = vadd.xlane.f32.xlu0 %v962
    %v964 = vpop.xlane.xlu0 %963
    %v965 = vsel %vm296, %v943, 0.0
    %966 = vadd.xlane.f32.xlu0 %v965
    %v967 = vpop.xlane.xlu0 %966
    %v968 = vmul.f32 %v946, %v919
    %v969 = vmul.f32 %v949, %v919
    %v970 = vmul.f32 %v952, %v919
    %v971 = vmul.f32 %v955, %v919
    %v972 = vmul.f32 %v958, %v919
    %v973 = vmul.f32 %v961, %v919
    %v974 = vmul.f32 %v964, %v919
    %v975 = vmul.f32 %v967, %v919
    %v976 = vadd.f32 %v968, 1e-05
    %v977 = vadd.f32 %v969, 1e-05
    %v978 = vadd.f32 %v970, 1e-05
    %v979 = vadd.f32 %v971, 1e-05
    %v980 = vadd.f32 %v972, 1e-05
    %v981 = vadd.f32 %v973, 1e-05
    %v982 = vadd.f32 %v974, 1e-05
    %v983 = vadd.f32 %v975, 1e-05
    %v984 = vrsqrt.pop %v976
    %v985 = vmul.f32 %v984, %v976
    %v986 = vmul.f32 %v985, %v984
    %v987 = vmul.f32 0.5, %v986
    %v988 = vsub.f32 1.5, %v987
    %v989 = vmul.f32 %v984, %v988
    %vm990 = vweird.f32 %v976
    %vm991 = vweird.f32 %v984
    %vm992 = vmor %vm990, %vm991
    %v993 = vsel %vm992, %v984, %v989
    %v994 = vrsqrt.pop %v977
    %v995 = vmul.f32 %v994, %v977
    %v996 = vmul.f32 %v995, %v994
    %v997 = vmul.f32 0.5, %v996
    %v998 = vsub.f32 1.5, %v997
    %v999 = vmul.f32 %v994, %v998
    %vm1000 = vweird.f32 %v977
    %vm1001 = vweird.f32 %v994
    %vm1002 = vmor %vm1000, %vm1001
    %v1003 = vsel %vm1002, %v994, %v999
    %v1004 = vrsqrt.pop %v978
    %v1005 = vmul.f32 %v1004, %v978
    %v1006 = vmul.f32 %v1005, %v1004
    %v1007 = vmul.f32 0.5, %v1006
    %v1008 = vsub.f32 1.5, %v1007
    %v1009 = vmul.f32 %v1004, %v1008
    %vm1010 = vweird.f32 %v978
    %vm1011 = vweird.f32 %v1004
    %vm1012 = vmor %vm1010, %vm1011
    %v1013 = vsel %vm1012, %v1004, %v1009
    %v1014 = vrsqrt.pop %v979
    %v1015 = vmul.f32 %v1014, %v979
    %v1016 = vmul.f32 %v1015, %v1014
    %v1017 = vmul.f32 0.5, %v1016
    %v1018 = vsub.f32 1.5, %v1017
    %v1019 = vmul.f32 %v1014, %v1018
    %vm1020 = vweird.f32 %v979
    %vm1021 = vweird.f32 %v1014
    %vm1022 = vmor %vm1020, %vm1021
    %v1023 = vsel %vm1022, %v1014, %v1019
    %v1024 = vrsqrt.pop %v980
    %v1025 = vmul.f32 %v1024, %v980
    %v1026 = vmul.f32 %v1025, %v1024
    %v1027 = vmul.f32 0.5, %v1026
    %v1028 = vsub.f32 1.5, %v1027
    %v1029 = vmul.f32 %v1024, %v1028
    %vm1030 = vweird.f32 %v980
    %vm1031 = vweird.f32 %v1024
    %vm1032 = vmor %vm1030, %vm1031
    %v1033 = vsel %vm1032, %v1024, %v1029
    %v1034 = vrsqrt.pop %v981
    %v1035 = vmul.f32 %v1034, %v981
    %v1036 = vmul.f32 %v1035, %v1034
    %v1037 = vmul.f32 0.5, %v1036
    %v1038 = vsub.f32 1.5, %v1037
    %v1039 = vmul.f32 %v1034, %v1038
    %vm1040 = vweird.f32 %v981
    %vm1041 = vweird.f32 %v1034
    %vm1042 = vmor %vm1040, %vm1041
    %v1043 = vsel %vm1042, %v1034, %v1039
    %v1044 = vrsqrt.pop %v982
    %v1045 = vmul.f32 %v1044, %v982
    %v1046 = vmul.f32 %v1045, %v1044
    %v1047 = vmul.f32 0.5, %v1046
    %v1048 = vsub.f32 1.5, %v1047
    %v1049 = vmul.f32 %v1044, %v1048
    %vm1050 = vweird.f32 %v982
    %vm1051 = vweird.f32 %v1044
    %vm1052 = vmor %vm1050, %vm1051
    %v1053 = vsel %vm1052, %v1044, %v1049
    %v1054 = vrsqrt.pop %v983
    %v1055 = vmul.f32 %v1054, %v983
    %v1056 = vmul.f32 %v1055, %v1054
    %v1057 = vmul.f32 0.5, %v1056
    %v1058 = vsub.f32 1.5, %v1057
    %v1059 = vmul.f32 %v1054, %v1058
    %vm1060 = vweird.f32 %v983
    %vm1061 = vweird.f32 %v1054
    %vm1062 = vmor %vm1060, %vm1061
    %v1063 = vsel %vm1062, %v1054, %v1059
    %v1064 = vmul.f32 %v928, %v993
    %v1065 = vmul.f32 %v929, %v1003
    %v1066 = vmul.f32 %v930, %v1013
    %v1067 = vmul.f32 %v931, %v1023
    %v1068 = vmul.f32 %v932, %v1033
    %v1069 = vmul.f32 %v933, %v1043
    %v1070 = vmul.f32 %v934, %v1053
    %v1071 = vmul.f32 %v935, %v1063
    %v1072 = vperm.slane %v256, 0
    %v1073 = vmul.f32 %v1064, %v1072
    %v1074 = vmul.f32 %v1065, %v1072
    %v1075 = vmul.f32 %v1066, %v1072
    %v1076 = vmul.f32 %v1067, %v1072
    %v1077 = vmul.f32 %v1068, %v1072
    %v1078 = vmul.f32 %v1069, %v1072
    %v1079 = vmul.f32 %v1070, %v1072
    %v1080 = vmul.f32 %v1071, %v1072
    %v1081 = vperm.slane %v256, 1
    %v1082 = vadd.f32 %v1073, %v1081
    %v1083 = vadd.f32 %v1074, %v1081
    %v1084 = vadd.f32 %v1075, %v1081
    %v1085 = vadd.f32 %v1076, %v1081
    %v1086 = vadd.f32 %v1077, %v1081
    %v1087 = vadd.f32 %v1078, %v1081
    %v1088 = vadd.f32 %v1079, %v1081
    %v1089 = vadd.f32 %v1080, %v1081
    %v1090 = vpack.c.bf16 %v1083, %v1082
    %v1091 = vpack.c.bf16 %v1085, %v1084
    %v1092 = vpack.c.bf16 %v1087, %v1086
    %v1093 = vpack.c.bf16 %v1089, %v1088
    %v1095 = vperm.slane %v271, 0
    %v1101 = vunpack.c.l.b16 %v267
    %v1102 = vunpack.c.l.b16 %v268
    %v1103 = vunpack.c.l.b16 %v269
    %v1104 = vunpack.c.l.b16 %v270
    %v1105 = vpack.c.b16 %v1102, %v1101
    %v1106 = vpack.c.b16 %v1104, %v1103
    %v1110 = vsel %vm296, %v1090, 0
    %v1113 = vsel %vm296, %v1091, 0
    %v1116 = vsel %vm296, %v1092, 0
    %v1119 = vsel %vm296, %v1093, 0
    %1121 = vmatpush.bf16.msra.mxu0 0
    %1122 = vmatpush.bf16.msra.mxu0 0
    %1123 = vmatpush.bf16.msra.mxu0 0
    %1124 = vmatpush.bf16.msra.mxu0 0
    %1125 = vmatpush.bf16.msra.mxu0 0
    %1126 = vmatpush.bf16.msra.mxu0 0
    %1127 = vmatpush.bf16.msra.mxu0 %v1106
    %1128 = vmatpush.bf16.msra.mxu0 %v1105
    %1129 = vmatmul.bf16.gmra.mxu0 %v1110
    %v1130 = vpop.f32.mrf.mxu0
    %v1131 = vadd.f32 %v1095, %v1130
    %v1132 = vpop.f32.mrf.mxu0
    %v1133 = vadd.f32 %v1095, %v1132
    %1134 = vmatmul.bf16.gmra.mxu0 %v1113
    %v1135 = vpop.f32.mrf.mxu0
    %v1136 = vadd.f32 %v1095, %v1135
    %v1137 = vpop.f32.mrf.mxu0
    %v1138 = vadd.f32 %v1095, %v1137
    %1139 = vmatmul.bf16.gmra.mxu0 %v1116
    %v1140 = vpop.f32.mrf.mxu0
    %v1141 = vadd.f32 %v1095, %v1140
    %v1142 = vpop.f32.mrf.mxu0
    %v1143 = vadd.f32 %v1095, %v1142
    %1144 = vmatmul.bf16.gmra.mxu0 %v1119
    %v1145 = vpop.f32.mrf.mxu0
    %v1146 = vadd.f32 %v1095, %v1145
    %v1147 = vpop.f32.mrf.mxu0
    %v1148 = vadd.f32 %v1095, %v1147
    %1149 = vdwg.mxu0
    %v1150 = vmax.f32 %v1131, 0.0
    %v1151 = vmax.f32 %v1133, 0.0
    %v1152 = vmax.f32 %v1136, 0.0
    %v1153 = vmax.f32 %v1138, 0.0
    %v1154 = vmax.f32 %v1141, 0.0
    %v1155 = vmax.f32 %v1143, 0.0
    %v1156 = vmax.f32 %v1146, 0.0
    %v1157 = vmax.f32 %v1148, 0.0
    %v1158 = vpack.c.bf16 %v1151, %v1150
    %v1159 = vpack.c.bf16 %v1153, %v1152
    %v1160 = vpack.c.bf16 %v1155, %v1154
    %v1161 = vpack.c.bf16 %v1157, %v1156
    %v1163 = vperm.slane %v276, 0
    %v1169 = vunpack.c.l.b16 %v272
    %v1170 = vunpack.c.l.b16 %v273
    %v1171 = vunpack.c.l.b16 %v274
    %v1172 = vunpack.c.l.b16 %v275
    %v1173 = vpack.c.b16 %v1170, %v1169
    %v1174 = vpack.c.b16 %v1172, %v1171
    %v1178 = vsel %vm296, %v1158, 0
    %v1181 = vsel %vm296, %v1159, 0
    %v1184 = vsel %vm296, %v1160, 0
    %v1187 = vsel %vm296, %v1161, 0
    %1189 = vmatpush.bf16.msra.mxu0 0
    %1190 = vmatpush.bf16.msra.mxu0 0
    %1191 = vmatpush.bf16.msra.mxu0 0
    %1192 = vmatpush.bf16.msra.mxu0 0
    %1193 = vmatpush.bf16.msra.mxu0 0
    %1194 = vmatpush.bf16.msra.mxu0 0
    %1195 = vmatpush.bf16.msra.mxu0 %v1174
    %1196 = vmatpush.bf16.msra.mxu0 %v1173
    %1197 = vmatmul.bf16.gmra.mxu0 %v1178
    %v1198 = vpop.f32.mrf.mxu0
    %v1199 = vadd.f32 %v1163, %v1198
    %v1200 = vpop.f32.mrf.mxu0
    %v1201 = vadd.f32 %v1163, %v1200
    %1202 = vmatmul.bf16.gmra.mxu0 %v1181
    %v1203 = vpop.f32.mrf.mxu0
    %v1204 = vadd.f32 %v1163, %v1203
    %v1205 = vpop.f32.mrf.mxu0
    %v1206 = vadd.f32 %v1163, %v1205
    %1207 = vmatmul.bf16.gmra.mxu0 %v1184
    %v1208 = vpop.f32.mrf.mxu0
    %v1209 = vadd.f32 %v1163, %v1208
    %v1210 = vpop.f32.mrf.mxu0
    %v1211 = vadd.f32 %v1163, %v1210
    %1212 = vmatmul.bf16.gmra.mxu0 %v1187
    %v1213 = vpop.f32.mrf.mxu0
    %v1214 = vadd.f32 %v1163, %v1213
    %v1215 = vpop.f32.mrf.mxu0
    %v1216 = vadd.f32 %v1163, %v1215
    %1217 = vdwg.mxu0
    %v1218 = vadd.f32 %v1082, %v1199
    %v1219 = vadd.f32 %v1083, %v1201
    %v1220 = vadd.f32 %v1084, %v1204
    %v1221 = vadd.f32 %v1085, %v1206
    %v1222 = vadd.f32 %v1086, %v1209
    %v1223 = vadd.f32 %v1087, %v1211
    %v1224 = vadd.f32 %v1088, %v1214
    %v1225 = vadd.f32 %v1089, %v1216
    %v1226 = vsel %vm296, %v1218, 0.0
    %1227 = vadd.xlane.f32.xlu0 %v1226
    %v1228 = vpop.xlane.xlu0 %1227
    %v1229 = vsel %vm296, %v1219, 0.0
    %1230 = vadd.xlane.f32.xlu0 %v1229
    %v1231 = vpop.xlane.xlu0 %1230
    %v1232 = vsel %vm296, %v1220, 0.0
    %1233 = vadd.xlane.f32.xlu0 %v1232
    %v1234 = vpop.xlane.xlu0 %1233
    %v1235 = vsel %vm296, %v1221, 0.0
    %1236 = vadd.xlane.f32.xlu0 %v1235
    %v1237 = vpop.xlane.xlu0 %1236
    %v1238 = vsel %vm296, %v1222, 0.0
    %1239 = vadd.xlane.f32.xlu0 %v1238
    %v1240 = vpop.xlane.xlu0 %1239
    %v1241 = vsel %vm296, %v1223, 0.0
    %1242 = vadd.xlane.f32.xlu0 %v1241
    %v1243 = vpop.xlane.xlu0 %1242
    %v1244 = vsel %vm296, %v1224, 0.0
    %1245 = vadd.xlane.f32.xlu0 %v1244
    %v1246 = vpop.xlane.xlu0 %1245
    %v1247 = vsel %vm296, %v1225, 0.0
    %1248 = vadd.xlane.f32.xlu0 %v1247
    %v1249 = vpop.xlane.xlu0 %1248
    %v1250 = vmul.f32 %v1228, %v919
    %v1251 = vmul.f32 %v1231, %v919
    %v1252 = vmul.f32 %v1234, %v919
    %v1253 = vmul.f32 %v1237, %v919
    %v1254 = vmul.f32 %v1240, %v919
    %v1255 = vmul.f32 %v1243, %v919
    %v1256 = vmul.f32 %v1246, %v919
    %v1257 = vmul.f32 %v1249, %v919
    %v1258 = vsub.f32 %v1218, %v1250
    %v1259 = vsub.f32 %v1219, %v1251
    %v1260 = vsub.f32 %v1220, %v1252
    %v1261 = vsub.f32 %v1221, %v1253
    %v1262 = vsub.f32 %v1222, %v1254
    %v1263 = vsub.f32 %v1223, %v1255
    %v1264 = vsub.f32 %v1224, %v1256
    %v1265 = vsub.f32 %v1225, %v1257
    %v1266 = vmul.f32 %v1258, %v1258
    %v1267 = vmul.f32 %v1259, %v1259
    %v1268 = vmul.f32 %v1260, %v1260
    %v1269 = vmul.f32 %v1261, %v1261
    %v1270 = vmul.f32 %v1262, %v1262
    %v1271 = vmul.f32 %v1263, %v1263
    %v1272 = vmul.f32 %v1264, %v1264
    %v1273 = vmul.f32 %v1265, %v1265
    %v1274 = vsel %vm296, %v1266, 0.0
    %1275 = vadd.xlane.f32.xlu0 %v1274
    %v1276 = vpop.xlane.xlu0 %1275
    %v1277 = vsel %vm296, %v1267, 0.0
    %1278 = vadd.xlane.f32.xlu0 %v1277
    %v1279 = vpop.xlane.xlu0 %1278
    %v1280 = vsel %vm296, %v1268, 0.0
    %1281 = vadd.xlane.f32.xlu0 %v1280
    %v1282 = vpop.xlane.xlu0 %1281
    %v1283 = vsel %vm296, %v1269, 0.0
    %1284 = vadd.xlane.f32.xlu0 %v1283
    %v1285 = vpop.xlane.xlu0 %1284
    %v1286 = vsel %vm296, %v1270, 0.0
    %1287 = vadd.xlane.f32.xlu0 %v1286
    %v1288 = vpop.xlane.xlu0 %1287
    %v1289 = vsel %vm296, %v1271, 0.0
    %1290 = vadd.xlane.f32.xlu0 %v1289
    %v1291 = vpop.xlane.xlu0 %1290
    %v1292 = vsel %vm296, %v1272, 0.0
    %1293 = vadd.xlane.f32.xlu0 %v1292
    %v1294 = vpop.xlane.xlu0 %1293
    %v1295 = vsel %vm296, %v1273, 0.0
    %1296 = vadd.xlane.f32.xlu0 %v1295
    %v1297 = vpop.xlane.xlu0 %1296
    %v1298 = vmul.f32 %v1276, %v919
    %v1299 = vmul.f32 %v1279, %v919
    %v1300 = vmul.f32 %v1282, %v919
    %v1301 = vmul.f32 %v1285, %v919
    %v1302 = vmul.f32 %v1288, %v919
    %v1303 = vmul.f32 %v1291, %v919
    %v1304 = vmul.f32 %v1294, %v919
    %v1305 = vmul.f32 %v1297, %v919
    %v1306 = vadd.f32 %v1298, 1e-05
    %v1307 = vadd.f32 %v1299, 1e-05
    %v1308 = vadd.f32 %v1300, 1e-05
    %v1309 = vadd.f32 %v1301, 1e-05
    %v1310 = vadd.f32 %v1302, 1e-05
    %v1311 = vadd.f32 %v1303, 1e-05
    %v1312 = vadd.f32 %v1304, 1e-05
    %v1313 = vadd.f32 %v1305, 1e-05
    %v1314 = vrsqrt.pop %v1306
    %v1315 = vmul.f32 %v1314, %v1306
    %v1316 = vmul.f32 %v1315, %v1314
    %v1317 = vmul.f32 0.5, %v1316
    %v1318 = vsub.f32 1.5, %v1317
    %v1319 = vmul.f32 %v1314, %v1318
    %vm1320 = vweird.f32 %v1306
    %vm1321 = vweird.f32 %v1314
    %vm1322 = vmor %vm1320, %vm1321
    %v1323 = vsel %vm1322, %v1314, %v1319
    %v1324 = vrsqrt.pop %v1307
    %v1325 = vmul.f32 %v1324, %v1307
    %v1326 = vmul.f32 %v1325, %v1324
    %v1327 = vmul.f32 0.5, %v1326
    %v1328 = vsub.f32 1.5, %v1327
    %v1329 = vmul.f32 %v1324, %v1328
    %vm1330 = vweird.f32 %v1307
    %vm1331 = vweird.f32 %v1324
    %vm1332 = vmor %vm1330, %vm1331
    %v1333 = vsel %vm1332, %v1324, %v1329
    %v1334 = vrsqrt.pop %v1308
    %v1335 = vmul.f32 %v1334, %v1308
    %v1336 = vmul.f32 %v1335, %v1334
    %v1337 = vmul.f32 0.5, %v1336
    %v1338 = vsub.f32 1.5, %v1337
    %v1339 = vmul.f32 %v1334, %v1338
    %vm1340 = vweird.f32 %v1308
    %vm1341 = vweird.f32 %v1334
    %vm1342 = vmor %vm1340, %vm1341
    %v1343 = vsel %vm1342, %v1334, %v1339
    %v1344 = vrsqrt.pop %v1309
    %v1345 = vmul.f32 %v1344, %v1309
    %v1346 = vmul.f32 %v1345, %v1344
    %v1347 = vmul.f32 0.5, %v1346
    %v1348 = vsub.f32 1.5, %v1347
    %v1349 = vmul.f32 %v1344, %v1348
    %vm1350 = vweird.f32 %v1309
    %vm1351 = vweird.f32 %v1344
    %vm1352 = vmor %vm1350, %vm1351
    %v1353 = vsel %vm1352, %v1344, %v1349
    %v1354 = vrsqrt.pop %v1310
    %v1355 = vmul.f32 %v1354, %v1310
    %v1356 = vmul.f32 %v1355, %v1354
    %v1357 = vmul.f32 0.5, %v1356
    %v1358 = vsub.f32 1.5, %v1357
    %v1359 = vmul.f32 %v1354, %v1358
    %vm1360 = vweird.f32 %v1310
    %vm1361 = vweird.f32 %v1354
    %vm1362 = vmor %vm1360, %vm1361
    %v1363 = vsel %vm1362, %v1354, %v1359
    %v1364 = vrsqrt.pop %v1311
    %v1365 = vmul.f32 %v1364, %v1311
    %v1366 = vmul.f32 %v1365, %v1364
    %v1367 = vmul.f32 0.5, %v1366
    %v1368 = vsub.f32 1.5, %v1367
    %v1369 = vmul.f32 %v1364, %v1368
    %vm1370 = vweird.f32 %v1311
    %vm1371 = vweird.f32 %v1364
    %vm1372 = vmor %vm1370, %vm1371
    %v1373 = vsel %vm1372, %v1364, %v1369
    %v1374 = vrsqrt.pop %v1312
    %v1375 = vmul.f32 %v1374, %v1312
    %v1376 = vmul.f32 %v1375, %v1374
    %v1377 = vmul.f32 0.5, %v1376
    %v1378 = vsub.f32 1.5, %v1377
    %v1379 = vmul.f32 %v1374, %v1378
    %vm1380 = vweird.f32 %v1312
    %vm1381 = vweird.f32 %v1374
    %vm1382 = vmor %vm1380, %vm1381
    %v1383 = vsel %vm1382, %v1374, %v1379
    %v1384 = vrsqrt.pop %v1313
    %v1385 = vmul.f32 %v1384, %v1313
    %v1386 = vmul.f32 %v1385, %v1384
    %v1387 = vmul.f32 0.5, %v1386
    %v1388 = vsub.f32 1.5, %v1387
    %v1389 = vmul.f32 %v1384, %v1388
    %vm1390 = vweird.f32 %v1313
    %vm1391 = vweird.f32 %v1384
    %vm1392 = vmor %vm1390, %vm1391
    %v1393 = vsel %vm1392, %v1384, %v1389
    %v1394 = vmul.f32 %v1258, %v1323
    %v1395 = vmul.f32 %v1259, %v1333
    %v1396 = vmul.f32 %v1260, %v1343
    %v1397 = vmul.f32 %v1261, %v1353
    %v1398 = vmul.f32 %v1262, %v1363
    %v1399 = vmul.f32 %v1263, %v1373
    %v1400 = vmul.f32 %v1264, %v1383
    %v1401 = vmul.f32 %v1265, %v1393
    %v1402 = vperm.slane %v256, 2
    %v1403 = vmul.f32 %v1394, %v1402
    %v1404 = vmul.f32 %v1395, %v1402
    %v1405 = vmul.f32 %v1396, %v1402
    %v1406 = vmul.f32 %v1397, %v1402
    %v1407 = vmul.f32 %v1398, %v1402
    %v1408 = vmul.f32 %v1399, %v1402
    %v1409 = vmul.f32 %v1400, %v1402
    %v1410 = vmul.f32 %v1401, %v1402
    %v1411 = vperm.slane %v256, 3
    %v1412 = vadd.f32 %v1403, %v1411
    %v1413 = vadd.f32 %v1404, %v1411
    %v1414 = vadd.f32 %v1405, %v1411
    %v1415 = vadd.f32 %v1406, %v1411
    %v1416 = vadd.f32 %v1407, %v1411
    %v1417 = vadd.f32 %v1408, %v1411
    %v1418 = vadd.f32 %v1409, %v1411
    %v1419 = vadd.f32 %v1410, %v1411
    %s1420 = scalar_lea.vmem [#allocation10], 4
    %v1421 = vld [vmem:[%s1420] sm:$0xf]
    %s1422 = scalar_lea.vmem [#allocation7], 16
    %v1423 = vld [vmem:[%s1422] sm:$0xf]
    %v1424 = vld [vmem:[%s1422 + $0x4] sm:$0xf]
    %v1425 = vld [vmem:[%s1422 + $0x8] sm:$0xf]
    %v1426 = vld [vmem:[%s1422 + $0xc] sm:$0xf]
    %s1427 = scalar_lea.vmem %s4, 1
    %v1428 = vld [vmem:[%s1427] sm:$0x1]
    %s1429 = scalar_lea.vmem [#allocation8], 16
    %v1430 = vld [vmem:[%s1429] sm:$0xf]
    %v1431 = vld [vmem:[%s1429 + $0x4] sm:$0xf]
    %v1432 = vld [vmem:[%s1429 + $0x8] sm:$0xf]
    %v1433 = vld [vmem:[%s1429 + $0xc] sm:$0xf]
    %s1434 = scalar_lea.vmem %s6, 1
    %v1435 = vld [vmem:[%s1434] sm:$0x1]
    %s1436 = scalar_lea.vmem [#allocation11], 16
    %v1437 = vld [vmem:[%s1436] sm:$0xf]
    %v1438 = vld [vmem:[%s1436 + $0x4] sm:$0xf]
    %v1439 = vld [vmem:[%s1436 + $0x8] sm:$0xf]
    %v1440 = vld [vmem:[%s1436 + $0xc] sm:$0xf]
    %s1441 = scalar_lea.vmem [#allocation13], 1
    %v1442 = vld [vmem:[%s1441] sm:$0x1]
    %s1443 = scalar_lea.vmem [#allocation14], 16
    %v1444 = vld [vmem:[%s1443] sm:$0xf]
    %v1445 = vld [vmem:[%s1443 + $0x4] sm:$0xf]
    %v1446 = vld [vmem:[%s1443 + $0x8] sm:$0xf]
    %v1447 = vld [vmem:[%s1443 + $0xc] sm:$0xf]
    %s1448 = scalar_lea.vmem [#allocation16], 1
    %v1449 = vld [vmem:[%s1448] sm:$0x1]
    %v1451 = vperm.slane %v1428, 0
    %v1457 = vunpack.c.l.b16 %v1423
    %v1458 = vunpack.c.l.b16 %v1424
    %v1459 = vunpack.c.l.b16 %v1425
    %v1460 = vunpack.c.l.b16 %v1426
    %v1461 = vpack.c.b16 %v1458, %v1457
    %v1462 = vpack.c.b16 %v1460, %v1459
    %1465 = vmatpush.bf16.msra.mxu0 0
    %1466 = vmatpush.bf16.msra.mxu0 0
    %1467 = vmatpush.bf16.msra.mxu0 0
    %1468 = vmatpush.bf16.msra.mxu0 0
    %1469 = vmatpush.bf16.msra.mxu0 0
    %1470 = vmatpush.bf16.msra.mxu0 0
    %1471 = vmatpush.bf16.msra.mxu0 %v1462
    %1472 = vmatpush.bf16.msra.mxu0 %v1461
    %1473 = vmatmul.bf16.gmra.mxu0 %v298
    %v1474 = vpop.f32.mrf.mxu0
    %v1475 = vadd.f32 %v1451, %v1474
    %v1476 = vpop.f32.mrf.mxu0
    %v1477 = vadd.f32 %v1451, %v1476
    %1478 = vmatmul.bf16.gmra.mxu0 %v301
    %v1479 = vpop.f32.mrf.mxu0
    %v1480 = vadd.f32 %v1451, %v1479
    %v1481 = vpop.f32.mrf.mxu0
    %v1482 = vadd.f32 %v1451, %v1481
    %1483 = vmatmul.bf16.gmra.mxu0 %v304
    %v1484 = vpop.f32.mrf.mxu0
    %v1485 = vadd.f32 %v1451, %v1484
    %v1486 = vpop.f32.mrf.mxu0
    %v1487 = vadd.f32 %v1451, %v1486
    %1488 = vmatmul.bf16.gmra.mxu0 %v307
    %v1489 = vpop.f32.mrf.mxu0
    %v1490 = vadd.f32 %v1451, %v1489
    %v1491 = vpop.f32.mrf.mxu0
    %v1492 = vadd.f32 %v1451, %v1491
    %1493 = vdwg.mxu0
    %v1494 = vpack.c.bf16 %v1477, %v1475
    %v1495 = vpack.c.bf16 %v1482, %v1480
    %v1496 = vpack.c.bf16 %v1487, %v1485
    %v1497 = vpack.c.bf16 %v1492, %v1490
    %1502 = vrot.lane.b32.xlu0 %v1494, 96
    %v1503 = vpop.permute.xlu0 %1502
    %1504 = vrot.lane.b32.xlu0 %v1495, 96
    %v1505 = vpop.permute.xlu0 %1504
    %1506 = vrot.lane.b32.xlu0 %v1496, 96
    %v1507 = vpop.permute.xlu0 %1506
    %1508 = vrot.lane.b32.xlu0 %v1497, 96
    %v1509 = vpop.permute.xlu0 %1508
    %v1511 = vsel %vm354, %v1494, 0
    %v1514 = vsel %vm354, %v1495, 0
    %v1517 = vsel %vm354, %v1496, 0
    %v1520 = vsel %vm354, %v1497, 0
    %v1523 = vsel %vm354, %v1503, 0
    %v1526 = vsel %vm354, %v1505, 0
    %v1529 = vsel %vm354, %v1507, 0
    %v1532 = vsel %vm354, %v1509, 0
    %1534 = vmatpush.bf16.xpose.msra.mxu0 0
    %1535 = vmatpush.bf16.xpose.msra.mxu0 0
    %1536 = vmatpush.bf16.xpose.msra.mxu0 0
    %1537 = vmatpush.bf16.xpose.msra.mxu0 0
    %1538 = vmatpush.bf16.xpose.msra.mxu0 %v1532
    %1539 = vmatpush.bf16.xpose.msra.mxu0 %v1529
    %1540 = vmatpush.bf16.xpose.msra.mxu0 %v1526
    %1541 = vmatpush.bf16.xpose.msra.mxu0 %v1523
    %1542 = vmatmul.bf16.gmra.mxu0 %v1511
    %v1543 = vpop.f32.mrf.mxu0
    %v1544 = vadd.f32 %v248, %v1543
    %v1545 = vpop.f32.mrf.mxu0
    %v1546 = vadd.f32 %v249, %v1545
    %1547 = vmatmul.bf16.gmra.mxu0 %v1514
    %v1548 = vpop.f32.mrf.mxu0
    %v1549 = vadd.f32 %v250, %v1548
    %v1550 = vpop.f32.mrf.mxu0
    %v1551 = vadd.f32 %v251, %v1550
    %1552 = vmatmul.bf16.gmra.mxu0 %v1517
    %v1553 = vpop.f32.mrf.mxu0
    %v1554 = vadd.f32 %v252, %v1553
    %v1555 = vpop.f32.mrf.mxu0
    %v1556 = vadd.f32 %v253, %v1555
    %1557 = vmatmul.bf16.gmra.mxu0 %v1520
    %v1558 = vpop.f32.mrf.mxu0
    %v1559 = vadd.f32 %v254, %v1558
    %v1560 = vpop.f32.mrf.mxu0
    %v1561 = vadd.f32 %v255, %v1560
    %1562 = vdwg.mxu0
    %v1563 = vsel %vm408, %v1544, -inf
    %1564 = vmax.xlane.f32.xlu0 %v1563
    %v1565 = vpop.xlane.xlu0 %1564
    %v1566 = vsel %vm408, %v1546, -inf
    %1567 = vmax.xlane.f32.xlu0 %v1566
    %v1568 = vpop.xlane.xlu0 %1567
    %v1569 = vsel %vm408, %v1549, -inf
    %1570 = vmax.xlane.f32.xlu0 %v1569
    %v1571 = vpop.xlane.xlu0 %1570
    %v1572 = vsel %vm408, %v1551, -inf
    %1573 = vmax.xlane.f32.xlu0 %v1572
    %v1574 = vpop.xlane.xlu0 %1573
    %v1575 = vsel %vm408, %v1554, -inf
    %1576 = vmax.xlane.f32.xlu0 %v1575
    %v1577 = vpop.xlane.xlu0 %1576
    %v1578 = vsel %vm408, %v1556, -inf
    %1579 = vmax.xlane.f32.xlu0 %v1578
    %v1580 = vpop.xlane.xlu0 %1579
    %v1581 = vsel %vm408, %v1559, -inf
    %1582 = vmax.xlane.f32.xlu0 %v1581
    %v1583 = vpop.xlane.xlu0 %1582
    %v1584 = vsel %vm408, %v1561, -inf
    %1585 = vmax.xlane.f32.xlu0 %v1584
    %v1586 = vpop.xlane.xlu0 %1585
    %v1587 = vsub.f32 %v1544, %v1565
    %v1588 = vsub.f32 %v1546, %v1568
    %v1589 = vsub.f32 %v1549, %v1571
    %v1590 = vsub.f32 %v1551, %v1574
    %v1591 = vsub.f32 %v1554, %v1577
    %v1592 = vsub.f32 %v1556, %v1580
    %v1593 = vsub.f32 %v1559, %v1583
    %v1594 = vsub.f32 %v1561, %v1586
    %v1595 = vmul.f32 %v1587, 1.442695
    %v1596 = vpow.pop %v1595
    %v1597 = vmul.f32 %v1588, 1.442695
    %v1598 = vpow.pop %v1597
    %v1599 = vmul.f32 %v1589, 1.442695
    %v1600 = vpow.pop %v1599
    %v1601 = vmul.f32 %v1590, 1.442695
    %v1602 = vpow.pop %v1601
    %v1603 = vmul.f32 %v1591, 1.442695
    %v1604 = vpow.pop %v1603
    %v1605 = vmul.f32 %v1592, 1.442695
    %v1606 = vpow.pop %v1605
    %v1607 = vmul.f32 %v1593, 1.442695
    %v1608 = vpow.pop %v1607
    %v1609 = vmul.f32 %v1594, 1.442695
    %v1610 = vpow.pop %v1609
    %v1611 = vsel %vm408, %v1596, 0.0
    %1612 = vadd.xlane.f32.xlu0 %v1611
    %v1613 = vpop.xlane.xlu0 %1612
    %v1614 = vsel %vm408, %v1598, 0.0
    %1615 = vadd.xlane.f32.xlu0 %v1614
    %v1616 = vpop.xlane.xlu0 %1615
    %v1617 = vsel %vm408, %v1600, 0.0
    %1618 = vadd.xlane.f32.xlu0 %v1617
    %v1619 = vpop.xlane.xlu0 %1618
    %v1620 = vsel %vm408, %v1602, 0.0
    %1621 = vadd.xlane.f32.xlu0 %v1620
    %v1622 = vpop.xlane.xlu0 %1621
    %v1623 = vsel %vm408, %v1604, 0.0
    %1624 = vadd.xlane.f32.xlu0 %v1623
    %v1625 = vpop.xlane.xlu0 %1624
    %v1626 = vsel %vm408, %v1606, 0.0
    %1627 = vadd.xlane.f32.xlu0 %v1626
    %v1628 = vpop.xlane.xlu0 %1627
    %v1629 = vsel %vm408, %v1608, 0.0
    %1630 = vadd.xlane.f32.xlu0 %v1629
    %v1631 = vpop.xlane.xlu0 %1630
    %v1632 = vsel %vm408, %v1610, 0.0
    %1633 = vadd.xlane.f32.xlu0 %v1632
    %v1634 = vpop.xlane.xlu0 %1633
    %v1635 = vrcp.pop %v1613
    %v1636 = vrcp.pop %v1616
    %v1637 = vrcp.pop %v1619
    %v1638 = vrcp.pop %v1622
    %v1639 = vrcp.pop %v1625
    %v1640 = vrcp.pop %v1628
    %v1641 = vrcp.pop %v1631
    %v1642 = vrcp.pop %v1634
    %v1643 = vmul.f32 %v1596, %v1635
    %v1644 = vmul.f32 %v1598, %v1636
    %v1645 = vmul.f32 %v1600, %v1637
    %v1646 = vmul.f32 %v1602, %v1638
    %v1647 = vmul.f32 %v1604, %v1639
    %v1648 = vmul.f32 %v1606, %v1640
    %v1649 = vmul.f32 %v1608, %v1641
    %v1650 = vmul.f32 %v1610, %v1642
    %v1651 = vpack.c.bf16 %v1644, %v1643
    %v1652 = vpack.c.bf16 %v1646, %v1645
    %v1653 = vpack.c.bf16 %v1648, %v1647
    %v1654 = vpack.c.bf16 %v1650, %v1649
    %1655 = vrot.lane.b32.xlu0 %v1494, 64
    %v1656 = vpop.permute.xlu0 %1655
    %1657 = vrot.lane.b32.xlu0 %v1495, 64
    %v1658 = vpop.permute.xlu0 %1657
    %1659 = vrot.lane.b32.xlu0 %v1496, 64
    %v1660 = vpop.permute.xlu0 %1659
    %1661 = vrot.lane.b32.xlu0 %v1497, 64
    %v1662 = vpop.permute.xlu0 %1661
    %v1668 = vsel %vm408, %v1651, 0
    %v1671 = vsel %vm408, %v1652, 0
    %v1674 = vsel %vm408, %v1653, 0
    %v1677 = vsel %vm408, %v1654, 0
    %1679 = vmatpush.bf16.msra.mxu0 0
    %1680 = vmatpush.bf16.msra.mxu0 0
    %1681 = vmatpush.bf16.msra.mxu0 0
    %1682 = vmatpush.bf16.msra.mxu0 0
    %1683 = vmatpush.bf16.msra.mxu0 %v1662
    %1684 = vmatpush.bf16.msra.mxu0 %v1660
    %1685 = vmatpush.bf16.msra.mxu0 %v1658
    %1686 = vmatpush.bf16.msra.mxu0 %v1656
    %1687 = vmatmul.bf16.gmra.mxu0 %v1668
    %v1688 = vpop.f32.mrf.mxu0
    %v1689 = vadd.f32 0.0, %v1688
    %v1690 = vpop.f32.mrf.mxu0
    %v1691 = vadd.f32 0.0, %v1690
    %1692 = vmatmul.bf16.gmra.mxu0 %v1671
    %v1693 = vpop.f32.mrf.mxu0
    %v1694 = vadd.f32 0.0, %v1693
    %v1695 = vpop.f32.mrf.mxu0
    %v1696 = vadd.f32 0.0, %v1695
    %1697 = vmatmul.bf16.gmra.mxu0 %v1674
    %v1698 = vpop.f32.mrf.mxu0
    %v1699 = vadd.f32 0.0, %v1698
    %v1700 = vpop.f32.mrf.mxu0
    %v1701 = vadd.f32 0.0, %v1700
    %1702 = vmatmul.bf16.gmra.mxu0 %v1677
    %v1703 = vpop.f32.mrf.mxu0
    %v1704 = vadd.f32 0.0, %v1703
    %v1705 = vpop.f32.mrf.mxu0
    %v1706 = vadd.f32 0.0, %v1705
    %1707 = vdwg.mxu0
    %v1708 = vpack.c.bf16 %v1691, %v1689
    %v1709 = vpack.c.bf16 %v1696, %v1694
    %v1710 = vpack.c.bf16 %v1701, %v1699
    %v1711 = vpack.c.bf16 %v1706, %v1704
    %1712 = vrot.lane.b32.xlu0 %v1494, 112
    %v1713 = vpop.permute.xlu0 %1712
    %1714 = vrot.lane.b32.xlu0 %v1495, 112
    %v1715 = vpop.permute.xlu0 %1714
    %1716 = vrot.lane.b32.xlu0 %v1496, 112
    %v1717 = vpop.permute.xlu0 %1716
    %1718 = vrot.lane.b32.xlu0 %v1497, 112
    %v1719 = vpop.permute.xlu0 %1718
    %1720 = vrot.lane.b32.xlu0 %v1494, 80
    %v1721 = vpop.permute.xlu0 %1720
    %1722 = vrot.lane.b32.xlu0 %v1495, 80
    %v1723 = vpop.permute.xlu0 %1722
    %1724 = vrot.lane.b32.xlu0 %v1496, 80
    %v1725 = vpop.permute.xlu0 %1724
    %1726 = vrot.lane.b32.xlu0 %v1497, 80
    %v1727 = vpop.permute.xlu0 %1726
    %v1729 = vsel %vm354, %v1713, 0
    %v1732 = vsel %vm354, %v1715, 0
    %v1735 = vsel %vm354, %v1717, 0
    %v1738 = vsel %vm354, %v1719, 0
    %v1741 = vsel %vm354, %v1721, 0
    %v1744 = vsel %vm354, %v1723, 0
    %v1747 = vsel %vm354, %v1725, 0
    %v1750 = vsel %vm354, %v1727, 0
    %1752 = vmatpush.bf16.xpose.msra.mxu0 0
    %1753 = vmatpush.bf16.xpose.msra.mxu0 0
    %1754 = vmatpush.bf16.xpose.msra.mxu0 0
    %1755 = vmatpush.bf16.xpose.msra.mxu0 0
    %1756 = vmatpush.bf16.xpose.msra.mxu0 %v1750
    %1757 = vmatpush.bf16.xpose.msra.mxu0 %v1747
    %1758 = vmatpush.bf16.xpose.msra.mxu0 %v1744
    %1759 = vmatpush.bf16.xpose.msra.mxu0 %v1741
    %1760 = vmatmul.bf16.gmra.mxu0 %v1729
    %v1761 = vpop.f32.mrf.mxu0
    %v1762 = vadd.f32 %v248, %v1761
    %v1763 = vpop.f32.mrf.mxu0
    %v1764 = vadd.f32 %v249, %v1763
    %1765 = vmatmul.bf16.gmra.mxu0 %v1732
    %v1766 = vpop.f32.mrf.mxu0
    %v1767 = vadd.f32 %v250, %v1766
    %v1768 = vpop.f32.mrf.mxu0
    %v1769 = vadd.f32 %v251, %v1768
    %1770 = vmatmul.bf16.gmra.mxu0 %v1735
    %v1771 = vpop.f32.mrf.mxu0
    %v1772 = vadd.f32 %v252, %v1771
    %v1773 = vpop.f32.mrf.mxu0
    %v1774 = vadd.f32 %v253, %v1773
    %1775 = vmatmul.bf16.gmra.mxu0 %v1738
    %v1776 = vpop.f32.mrf.mxu0
    %v1777 = vadd.f32 %v254, %v1776
    %v1778 = vpop.f32.mrf.mxu0
    %v1779 = vadd.f32 %v255, %v1778
    %1780 = vdwg.mxu0
    %v1781 = vsel %vm408, %v1762, -inf
    %1782 = vmax.xlane.f32.xlu0 %v1781
    %v1783 = vpop.xlane.xlu0 %1782
    %v1784 = vsel %vm408, %v1764, -inf
    %1785 = vmax.xlane.f32.xlu0 %v1784
    %v1786 = vpop.xlane.xlu0 %1785
    %v1787 = vsel %vm408, %v1767, -inf
    %1788 = vmax.xlane.f32.xlu0 %v1787
    %v1789 = vpop.xlane.xlu0 %1788
    %v1790 = vsel %vm408, %v1769, -inf
    %1791 = vmax.xlane.f32.xlu0 %v1790
    %v1792 = vpop.xlane.xlu0 %1791
    %v1793 = vsel %vm408, %v1772, -inf
    %1794 = vmax.xlane.f32.xlu0 %v1793
    %v1795 = vpop.xlane.xlu0 %1794
    %v1796 = vsel %vm408, %v1774, -inf
    %1797 = vmax.xlane.f32.xlu0 %v1796
    %v1798 = vpop.xlane.xlu0 %1797
    %v1799 = vsel %vm408, %v1777, -inf
    %1800 = vmax.xlane.f32.xlu0 %v1799
    %v1801 = vpop.xlane.xlu0 %1800
    %v1802 = vsel %vm408, %v1779, -inf
    %1803 = vmax.xlane.f32.xlu0 %v1802
    %v1804 = vpop.xlane.xlu0 %1803
    %v1805 = vsub.f32 %v1762, %v1783
    %v1806 = vsub.f32 %v1764, %v1786
    %v1807 = vsub.f32 %v1767, %v1789
    %v1808 = vsub.f32 %v1769, %v1792
    %v1809 = vsub.f32 %v1772, %v1795
    %v1810 = vsub.f32 %v1774, %v1798
    %v1811 = vsub.f32 %v1777, %v1801
    %v1812 = vsub.f32 %v1779, %v1804
    %v1813 = vmul.f32 %v1805, 1.442695
    %v1814 = vpow.pop %v1813
    %v1815 = vmul.f32 %v1806, 1.442695
    %v1816 = vpow.pop %v1815
    %v1817 = vmul.f32 %v1807, 1.442695
    %v1818 = vpow.pop %v1817
    %v1819 = vmul.f32 %v1808, 1.442695
    %v1820 = vpow.pop %v1819
    %v1821 = vmul.f32 %v1809, 1.442695
    %v1822 = vpow.pop %v1821
    %v1823 = vmul.f32 %v1810, 1.442695
    %v1824 = vpow.pop %v1823
    %v1825 = vmul.f32 %v1811, 1.442695
    %v1826 = vpow.pop %v1825
    %v1827 = vmul.f32 %v1812, 1.442695
    %v1828 = vpow.pop %v1827
    %v1829 = vsel %vm408, %v1814, 0.0
    %1830 = vadd.xlane.f32.xlu0 %v1829
    %v1831 = vpop.xlane.xlu0 %1830
    %v1832 = vsel %vm408, %v1816, 0.0
    %1833 = vadd.xlane.f32.xlu0 %v1832
    %v1834 = vpop.xlane.xlu0 %1833
    %v1835 = vsel %vm408, %v1818, 0.0
    %1836 = vadd.xlane.f32.xlu0 %v1835
    %v1837 = vpop.xlane.xlu0 %1836
    %v1838 = vsel %vm408, %v1820, 0.0
    %1839 = vadd.xlane.f32.xlu0 %v1838
    %v1840 = vpop.xlane.xlu0 %1839
    %v1841 = vsel %vm408, %v1822, 0.0
    %1842 = vadd.xlane.f32.xlu0 %v1841
    %v1843 = vpop.xlane.xlu0 %1842
    %v1844 = vsel %vm408, %v1824, 0.0
    %1845 = vadd.xlane.f32.xlu0 %v1844
    %v1846 = vpop.xlane.xlu0 %1845
    %v1847 = vsel %vm408, %v1826, 0.0
    %1848 = vadd.xlane.f32.xlu0 %v1847
    %v1849 = vpop.xlane.xlu0 %1848
    %v1850 = vsel %vm408, %v1828, 0.0
    %1851 = vadd.xlane.f32.xlu0 %v1850
    %v1852 = vpop.xlane.xlu0 %1851
    %v1853 = vrcp.pop %v1831
    %v1854 = vrcp.pop %v1834
    %v1855 = vrcp.pop %v1837
    %v1856 = vrcp.pop %v1840
    %v1857 = vrcp.pop %v1843
    %v1858 = vrcp.pop %v1846
    %v1859 = vrcp.pop %v1849
    %v1860 = vrcp.pop %v1852
    %v1861 = vmul.f32 %v1814, %v1853
    %v1862 = vmul.f32 %v1816, %v1854
    %v1863 = vmul.f32 %v1818, %v1855
    %v1864 = vmul.f32 %v1820, %v1856
    %v1865 = vmul.f32 %v1822, %v1857
    %v1866 = vmul.f32 %v1824, %v1858
    %v1867 = vmul.f32 %v1826, %v1859
    %v1868 = vmul.f32 %v1828, %v1860
    %v1869 = vpack.c.bf16 %v1862, %v1861
    %v1870 = vpack.c.bf16 %v1864, %v1863
    %v1871 = vpack.c.bf16 %v1866, %v1865
    %v1872 = vpack.c.bf16 %v1868, %v1867
    %1873 = vrot.lane.b32.xlu0 %v1494, 48
    %v1874 = vpop.permute.xlu0 %1873
    %1875 = vrot.lane.b32.xlu0 %v1495, 48
    %v1876 = vpop.permute.xlu0 %1875
    %1877 = vrot.lane.b32.xlu0 %v1496, 48
    %v1878 = vpop.permute.xlu0 %1877
    %1879 = vrot.lane.b32.xlu0 %v1497, 48
    %v1880 = vpop.permute.xlu0 %1879
    %v1886 = vsel %vm408, %v1869, 0
    %v1889 = vsel %vm408, %v1870, 0
    %v1892 = vsel %vm408, %v1871, 0
    %v1895 = vsel %vm408, %v1872, 0
    %1897 = vmatpush.bf16.msra.mxu0 0
    %1898 = vmatpush.bf16.msra.mxu0 0
    %1899 = vmatpush.bf16.msra.mxu0 0
    %1900 = vmatpush.bf16.msra.mxu0 0
    %1901 = vmatpush.bf16.msra.mxu0 %v1880
    %1902 = vmatpush.bf16.msra.mxu0 %v1878
    %1903 = vmatpush.bf16.msra.mxu0 %v1876
    %1904 = vmatpush.bf16.msra.mxu0 %v1874
    %1905 = vmatmul.bf16.gmra.mxu0 %v1886
    %v1906 = vpop.f32.mrf.mxu0
    %v1907 = vadd.f32 0.0, %v1906
    %v1908 = vpop.f32.mrf.mxu0
    %v1909 = vadd.f32 0.0, %v1908
    %1910 = vmatmul.bf16.gmra.mxu0 %v1889
    %v1911 = vpop.f32.mrf.mxu0
    %v1912 = vadd.f32 0.0, %v1911
    %v1913 = vpop.f32.mrf.mxu0
    %v1914 = vadd.f32 0.0, %v1913
    %1915 = vmatmul.bf16.gmra.mxu0 %v1892
    %v1916 = vpop.f32.mrf.mxu0
    %v1917 = vadd.f32 0.0, %v1916
    %v1918 = vpop.f32.mrf.mxu0
    %v1919 = vadd.f32 0.0, %v1918
    %1920 = vmatmul.bf16.gmra.mxu0 %v1895
    %v1921 = vpop.f32.mrf.mxu0
    %v1922 = vadd.f32 0.0, %v1921
    %v1923 = vpop.f32.mrf.mxu0
    %v1924 = vadd.f32 0.0, %v1923
    %1925 = vdwg.mxu0
    %v1926 = vpack.c.bf16 %v1909, %v1907
    %v1927 = vpack.c.bf16 %v1914, %v1912
    %v1928 = vpack.c.bf16 %v1919, %v1917
    %v1929 = vpack.c.bf16 %v1924, %v1922
    %v1932 = vunpack.c.l.b16 %v1432
    %v1933 = vunpack.c.l.b16 %v1433
    %v1934 = vpack.c.b16 %v1933, %v1932
    %v1937 = vsel %vm354, %v1926, 0
    %v1940 = vsel %vm354, %v1927, 0
    %v1943 = vsel %vm354, %v1928, 0
    %v1946 = vsel %vm354, %v1929, 0
    %1948 = vmatpush.bf16.msra.mxu0 0
    %1949 = vmatpush.bf16.msra.mxu0 0
    %1950 = vmatpush.bf16.msra.mxu0 0
    %1951 = vmatpush.bf16.msra.mxu0 0
    %1952 = vmatpush.bf16.msra.mxu0 0
    %1953 = vmatpush.bf16.msra.mxu0 0
    %1954 = vmatpush.bf16.msra.mxu0 0
    %1955 = vmatpush.bf16.msra.mxu0 %v1934
    %1956 = vmatmul.bf16.gmra.mxu0 %v1937
    %v1957 = vpop.f32.mrf.mxu0
    %v1958 = vadd.f32 0.0, %v1957
    %v1959 = vpop.f32.mrf.mxu0
    %v1960 = vadd.f32 0.0, %v1959
    %1961 = vmatmul.bf16.gmra.mxu0 %v1940
    %v1962 = vpop.f32.mrf.mxu0
    %v1963 = vadd.f32 0.0, %v1962
    %v1964 = vpop.f32.mrf.mxu0
    %v1965 = vadd.f32 0.0, %v1964
    %1966 = vmatmul.bf16.gmra.mxu0 %v1943
    %v1967 = vpop.f32.mrf.mxu0
    %v1968 = vadd.f32 0.0, %v1967
    %v1969 = vpop.f32.mrf.mxu0
    %v1970 = vadd.f32 0.0, %v1969
    %1971 = vmatmul.bf16.gmra.mxu0 %v1946
    %v1972 = vpop.f32.mrf.mxu0
    %v1973 = vadd.f32 0.0, %v1972
    %v1974 = vpop.f32.mrf.mxu0
    %v1975 = vadd.f32 0.0, %v1974
    %1976 = vdwg.mxu0
    %v1979 = vunpack.c.l.b16 %v1430
    %v1980 = vunpack.c.l.b16 %v1431
    %v1981 = vpack.c.b16 %v1980, %v1979
    %v1984 = vsel %vm354, %v1708, 0
    %v1987 = vsel %vm354, %v1709, 0
    %v1990 = vsel %vm354, %v1710, 0
    %v1993 = vsel %vm354, %v1711, 0
    %1995 = vmatpush.bf16.msra.mxu0 0
    %1996 = vmatpush.bf16.msra.mxu0 0
    %1997 = vmatpush.bf16.msra.mxu0 0
    %1998 = vmatpush.bf16.msra.mxu0 0
    %1999 = vmatpush.bf16.msra.mxu0 0
    %2000 = vmatpush.bf16.msra.mxu0 0
    %2001 = vmatpush.bf16.msra.mxu0 0
    %2002 = vmatpush.bf16.msra.mxu0 %v1981
    %2003 = vmatmul.bf16.gmra.mxu0 %v1984
    %v2004 = vpop.f32.mrf.mxu0
    %v2005 = vadd.f32 %v1958, %v2004
    %v2006 = vpop.f32.mrf.mxu0
    %v2007 = vadd.f32 %v1960, %v2006
    %2008 = vmatmul.bf16.gmra.mxu0 %v1987
    %v2009 = vpop.f32.mrf.mxu0
    %v2010 = vadd.f32 %v1963, %v2009
    %v2011 = vpop.f32.mrf.mxu0
    %v2012 = vadd.f32 %v1965, %v2011
    %2013 = vmatmul.bf16.gmra.mxu0 %v1990
    %v2014 = vpop.f32.mrf.mxu0
    %v2015 = vadd.f32 %v1968, %v2014
    %v2016 = vpop.f32.mrf.mxu0
    %v2017 = vadd.f32 %v1970, %v2016
    %2018 = vmatmul.bf16.gmra.mxu0 %v1993
    %v2019 = vpop.f32.mrf.mxu0
    %v2020 = vadd.f32 %v1973, %v2019
    %v2021 = vpop.f32.mrf.mxu0
    %v2022 = vadd.f32 %v1975, %v2021
    %2023 = vdwg.mxu0
    %v2025 = vperm.slane %v1435, 0
    %v2027 = vadd.f32 %v2005, %v2025
    %v2028 = vadd.f32 %v2007, %v2025
    %v2029 = vadd.f32 %v2010, %v2025
    %v2030 = vadd.f32 %v2012, %v2025
    %v2031 = vadd.f32 %v2015, %v2025
    %v2032 = vadd.f32 %v2017, %v2025
    %v2033 = vadd.f32 %v2020, %v2025
    %v2034 = vadd.f32 %v2022, %v2025
    %v2035 = vadd.f32 %v232, %v2027
    %v2036 = vadd.f32 %v233, %v2028
    %v2037 = vadd.f32 %v234, %v2029
    %v2038 = vadd.f32 %v235, %v2030
    %v2039 = vadd.f32 %v236, %v2031
    %v2040 = vadd.f32 %v237, %v2032
    %v2041 = vadd.f32 %v238, %v2033
    %v2042 = vadd.f32 %v239, %v2034
    %v2043 = vsel %vm296, %v2035, 0.0
    %2044 = vadd.xlane.f32.xlu0 %v2043
    %v2045 = vpop.xlane.xlu0 %2044
    %v2046 = vsel %vm296, %v2036, 0.0
    %2047 = vadd.xlane.f32.xlu0 %v2046
    %v2048 = vpop.xlane.xlu0 %2047
    %v2049 = vsel %vm296, %v2037, 0.0
    %2050 = vadd.xlane.f32.xlu0 %v2049
    %v2051 = vpop.xlane.xlu0 %2050
    %v2052 = vsel %vm296, %v2038, 0.0
    %2053 = vadd.xlane.f32.xlu0 %v2052
    %v2054 = vpop.xlane.xlu0 %2053
    %v2055 = vsel %vm296, %v2039, 0.0
    %2056 = vadd.xlane.f32.xlu0 %v2055
    %v2057 = vpop.xlane.xlu0 %2056
    %v2058 = vsel %vm296, %v2040, 0.0
    %2059 = vadd.xlane.f32.xlu0 %v2058
    %v2060 = vpop.xlane.xlu0 %2059
    %v2061 = vsel %vm296, %v2041, 0.0
    %2062 = vadd.xlane.f32.xlu0 %v2061
    %v2063 = vpop.xlane.xlu0 %2062
    %v2064 = vsel %vm296, %v2042, 0.0
    %2065 = vadd.xlane.f32.xlu0 %v2064
    %v2066 = vpop.xlane.xlu0 %2065
    %v2067 = vmul.f32 %v2045, %v919
    %v2068 = vmul.f32 %v2048, %v919
    %v2069 = vmul.f32 %v2051, %v919
    %v2070 = vmul.f32 %v2054, %v919
    %v2071 = vmul.f32 %v2057, %v919
    %v2072 = vmul.f32 %v2060, %v919
    %v2073 = vmul.f32 %v2063, %v919
    %v2074 = vmul.f32 %v2066, %v919
    %v2075 = vsub.f32 %v2035, %v2067
    %v2076 = vsub.f32 %v2036, %v2068
    %v2077 = vsub.f32 %v2037, %v2069
    %v2078 = vsub.f32 %v2038, %v2070
    %v2079 = vsub.f32 %v2039, %v2071
    %v2080 = vsub.f32 %v2040, %v2072
    %v2081 = vsub.f32 %v2041, %v2073
    %v2082 = vsub.f32 %v2042, %v2074
    %v2083 = vmul.f32 %v2075, %v2075
    %v2084 = vmul.f32 %v2076, %v2076
    %v2085 = vmul.f32 %v2077, %v2077
    %v2086 = vmul.f32 %v2078, %v2078
    %v2087 = vmul.f32 %v2079, %v2079
    %v2088 = vmul.f32 %v2080, %v2080
    %v2089 = vmul.f32 %v2081, %v2081
    %v2090 = vmul.f32 %v2082, %v2082
    %v2091 = vsel %vm296, %v2083, 0.0
    %2092 = vadd.xlane.f32.xlu0 %v2091
    %v2093 = vpop.xlane.xlu0 %2092
    %v2094 = vsel %vm296, %v2084, 0.0
    %2095 = vadd.xlane.f32.xlu0 %v2094
    %v2096 = vpop.xlane.xlu0 %2095
    %v2097 = vsel %vm296, %v2085, 0.0
    %2098 = vadd.xlane.f32.xlu0 %v2097
    %v2099 = vpop.xlane.xlu0 %2098
    %v2100 = vsel %vm296, %v2086, 0.0
    %2101 = vadd.xlane.f32.xlu0 %v2100
    %v2102 = vpop.xlane.xlu0 %2101
    %v2103 = vsel %vm296, %v2087, 0.0
    %2104 = vadd.xlane.f32.xlu0 %v2103
    %v2105 = vpop.xlane.xlu0 %2104
    %v2106 = vsel %vm296, %v2088, 0.0
    %2107 = vadd.xlane.f32.xlu0 %v2106
    %v2108 = vpop.xlane.xlu0 %2107
    %v2109 = vsel %vm296, %v2089, 0.0
    %2110 = vadd.xlane.f32.xlu0 %v2109
    %v2111 = vpop.xlane.xlu0 %2110
    %v2112 = vsel %vm296, %v2090, 0.0
    %2113 = vadd.xlane.f32.xlu0 %v2112
    %v2114 = vpop.xlane.xlu0 %2113
    %v2115 = vmul.f32 %v2093, %v919
    %v2116 = vmul.f32 %v2096, %v919
    %v2117 = vmul.f32 %v2099, %v919
    %v2118 = vmul.f32 %v2102, %v919
    %v2119 = vmul.f32 %v2105, %v919
    %v2120 = vmul.f32 %v2108, %v919
    %v2121 = vmul.f32 %v2111, %v919
    %v2122 = vmul.f32 %v2114, %v919
    %v2123 = vadd.f32 %v2115, 1e-05
    %v2124 = vadd.f32 %v2116, 1e-05
    %v2125 = vadd.f32 %v2117, 1e-05
    %v2126 = vadd.f32 %v2118, 1e-05
    %v2127 = vadd.f32 %v2119, 1e-05
    %v2128 = vadd.f32 %v2120, 1e-05
    %v2129 = vadd.f32 %v2121, 1e-05
    %v2130 = vadd.f32 %v2122, 1e-05
    %v2131 = vrsqrt.pop %v2123
    %v2132 = vmul.f32 %v2131, %v2123
    %v2133 = vmul.f32 %v2132, %v2131
    %v2134 = vmul.f32 0.5, %v2133
    %v2135 = vsub.f32 1.5, %v2134
    %v2136 = vmul.f32 %v2131, %v2135
    %vm2137 = vweird.f32 %v2123
    %vm2138 = vweird.f32 %v2131
    %vm2139 = vmor %vm2137, %vm2138
    %v2140 = vsel %vm2139, %v2131, %v2136
    %v2141 = vrsqrt.pop %v2124
    %v2142 = vmul.f32 %v2141, %v2124
    %v2143 = vmul.f32 %v2142, %v2141
    %v2144 = vmul.f32 0.5, %v2143
    %v2145 = vsub.f32 1.5, %v2144
    %v2146 = vmul.f32 %v2141, %v2145
    %vm2147 = vweird.f32 %v2124
    %vm2148 = vweird.f32 %v2141
    %vm2149 = vmor %vm2147, %vm2148
    %v2150 = vsel %vm2149, %v2141, %v2146
    %v2151 = vrsqrt.pop %v2125
    %v2152 = vmul.f32 %v2151, %v2125
    %v2153 = vmul.f32 %v2152, %v2151
    %v2154 = vmul.f32 0.5, %v2153
    %v2155 = vsub.f32 1.5, %v2154
    %v2156 = vmul.f32 %v2151, %v2155
    %vm2157 = vweird.f32 %v2125
    %vm2158 = vweird.f32 %v2151
    %vm2159 = vmor %vm2157, %vm2158
    %v2160 = vsel %vm2159, %v2151, %v2156
    %v2161 = vrsqrt.pop %v2126
    %v2162 = vmul.f32 %v2161, %v2126
    %v2163 = vmul.f32 %v2162, %v2161
    %v2164 = vmul.f32 0.5, %v2163
    %v2165 = vsub.f32 1.5, %v2164
    %v2166 = vmul.f32 %v2161, %v2165
    %vm2167 = vweird.f32 %v2126
    %vm2168 = vweird.f32 %v2161
    %vm2169 = vmor %vm2167, %vm2168
    %v2170 = vsel %vm2169, %v2161, %v2166
    %v2171 = vrsqrt.pop %v2127
    %v2172 = vmul.f32 %v2171, %v2127
    %v2173 = vmul.f32 %v2172, %v2171
    %v2174 = vmul.f32 0.5, %v2173
    %v2175 = vsub.f32 1.5, %v2174
    %v2176 = vmul.f32 %v2171, %v2175
    %vm2177 = vweird.f32 %v2127
    %vm2178 = vweird.f32 %v2171
    %vm2179 = vmor %vm2177, %vm2178
    %v2180 = vsel %vm2179, %v2171, %v2176
    %v2181 = vrsqrt.pop %v2128
    %v2182 = vmul.f32 %v2181, %v2128
    %v2183 = vmul.f32 %v2182, %v2181
    %v2184 = vmul.f32 0.5, %v2183
    %v2185 = vsub.f32 1.5, %v2184
    %v2186 = vmul.f32 %v2181, %v2185
    %vm2187 = vweird.f32 %v2128
    %vm2188 = vweird.f32 %v2181
    %vm2189 = vmor %vm2187, %vm2188
    %v2190 = vsel %vm2189, %v2181, %v2186
    %v2191 = vrsqrt.pop %v2129
    %v2192 = vmul.f32 %v2191, %v2129
    %v2193 = vmul.f32 %v2192, %v2191
    %v2194 = vmul.f32 0.5, %v2193
    %v2195 = vsub.f32 1.5, %v2194
    %v2196 = vmul.f32 %v2191, %v2195
    %vm2197 = vweird.f32 %v2129
    %vm2198 = vweird.f32 %v2191
    %vm2199 = vmor %vm2197, %vm2198
    %v2200 = vsel %vm2199, %v2191, %v2196
    %v2201 = vrsqrt.pop %v2130
    %v2202 = vmul.f32 %v2201, %v2130
    %v2203 = vmul.f32 %v2202, %v2201
    %v2204 = vmul.f32 0.5, %v2203
    %v2205 = vsub.f32 1.5, %v2204
    %v2206 = vmul.f32 %v2201, %v2205
    %vm2207 = vweird.f32 %v2130
    %vm2208 = vweird.f32 %v2201
    %vm2209 = vmor %vm2207, %vm2208
    %v2210 = vsel %vm2209, %v2201, %v2206
    %v2211 = vmul.f32 %v2075, %v2140
    %v2212 = vmul.f32 %v2076, %v2150
    %v2213 = vmul.f32 %v2077, %v2160
    %v2214 = vmul.f32 %v2078, %v2170
    %v2215 = vmul.f32 %v2079, %v2180
    %v2216 = vmul.f32 %v2080, %v2190
    %v2217 = vmul.f32 %v2081, %v2200
    %v2218 = vmul.f32 %v2082, %v2210
    %v2219 = vperm.slane %v1421, 0
    %v2220 = vmul.f32 %v2211, %v2219
    %v2221 = vmul.f32 %v2212, %v2219
    %v2222 = vmul.f32 %v2213, %v2219
    %v2223 = vmul.f32 %v2214, %v2219
    %v2224 = vmul.f32 %v2215, %v2219
    %v2225 = vmul.f32 %v2216, %v2219
    %v2226 = vmul.f32 %v2217, %v2219
    %v2227 = vmul.f32 %v2218, %v2219
    %v2228 = vperm.slane %v1421, 1
    %v2229 = vadd.f32 %v2220, %v2228
    %v2230 = vadd.f32 %v2221, %v2228
    %v2231 = vadd.f32 %v2222, %v2228
    %v2232 = vadd.f32 %v2223, %v2228
    %v2233 = vadd.f32 %v2224, %v2228
    %v2234 = vadd.f32 %v2225, %v2228
    %v2235 = vadd.f32 %v2226, %v2228
    %v2236 = vadd.f32 %v2227, %v2228
    %v2237 = vpack.c.bf16 %v2230, %v2229
    %v2238 = vpack.c.bf16 %v2232, %v2231
    %v2239 = vpack.c.bf16 %v2234, %v2233
    %v2240 = vpack.c.bf16 %v2236, %v2235
    %v2242 = vperm.slane %v1442, 0
    %v2248 = vunpack.c.l.b16 %v1437
    %v2249 = vunpack.c.l.b16 %v1438
    %v2250 = vunpack.c.l.b16 %v1439
    %v2251 = vunpack.c.l.b16 %v1440
    %v2252 = vpack.c.b16 %v2249, %v2248
    %v2253 = vpack.c.b16 %v2251, %v2250
    %v2257 = vsel %vm296, %v2237, 0
    %v2260 = vsel %vm296, %v2238, 0
    %v2263 = vsel %vm296, %v2239, 0
    %v2266 = vsel %vm296, %v2240, 0
    %2268 = vmatpush.bf16.msra.mxu0 0
    %2269 = vmatpush.bf16.msra.mxu0 0
    %2270 = vmatpush.bf16.msra.mxu0 0
    %2271 = vmatpush.bf16.msra.mxu0 0
    %2272 = vmatpush.bf16.msra.mxu0 0
    %2273 = vmatpush.bf16.msra.mxu0 0
    %2274 = vmatpush.bf16.msra.mxu0 %v2253
    %2275 = vmatpush.bf16.msra.mxu0 %v2252
    %2276 = vmatmul.bf16.gmra.mxu0 %v2257
    %v2277 = vpop.f32.mrf.mxu0
    %v2278 = vadd.f32 %v2242, %v2277
    %v2279 = vpop.f32.mrf.mxu0
    %v2280 = vadd.f32 %v2242, %v2279
    %2281 = vmatmul.bf16.gmra.mxu0 %v2260
    %v2282 = vpop.f32.mrf.mxu0
    %v2283 = vadd.f32 %v2242, %v2282
    %v2284 = vpop.f32.mrf.mxu0
    %v2285 = vadd.f32 %v2242, %v2284
    %2286 = vmatmul.bf16.gmra.mxu0 %v2263
    %v2287 = vpop.f32.mrf.mxu0
    %v2288 = vadd.f32 %v2242, %v2287
    %v2289 = vpop.f32.mrf.mxu0
    %v2290 = vadd.f32 %v2242, %v2289
    %2291 = vmatmul.bf16.gmra.mxu0 %v2266
    %v2292 = vpop.f32.mrf.mxu0
    %v2293 = vadd.f32 %v2242, %v2292
    %v2294 = vpop.f32.mrf.mxu0
    %v2295 = vadd.f32 %v2242, %v2294
    %2296 = vdwg.mxu0
    %v2297 = vmax.f32 %v2278, 0.0
    %v2298 = vmax.f32 %v2280, 0.0
    %v2299 = vmax.f32 %v2283, 0.0
    %v2300 = vmax.f32 %v2285, 0.0
    %v2301 = vmax.f32 %v2288, 0.0
    %v2302 = vmax.f32 %v2290, 0.0
    %v2303 = vmax.f32 %v2293, 0.0
    %v2304 = vmax.f32 %v2295, 0.0
    %v2305 = vpack.c.bf16 %v2298, %v2297
    %v2306 = vpack.c.bf16 %v2300, %v2299
    %v2307 = vpack.c.bf16 %v2302, %v2301
    %v2308 = vpack.c.bf16 %v2304, %v2303
    %v2310 = vperm.slane %v1449, 0
    %v2316 = vunpack.c.l.b16 %v1444
    %v2317 = vunpack.c.l.b16 %v1445
    %v2318 = vunpack.c.l.b16 %v1446
    %v2319 = vunpack.c.l.b16 %v1447
    %v2320 = vpack.c.b16 %v2317, %v2316
    %v2321 = vpack.c.b16 %v2319, %v2318
    %v2325 = vsel %vm296, %v2305, 0
    %v2328 = vsel %vm296, %v2306, 0
    %v2331 = vsel %vm296, %v2307, 0
    %v2334 = vsel %vm296, %v2308, 0
    %2336 = vmatpush.bf16.msra.mxu0 0
    %2337 = vmatpush.bf16.msra.mxu0 0
    %2338 = vmatpush.bf16.msra.mxu0 0
    %2339 = vmatpush.bf16.msra.mxu0 0
    %2340 = vmatpush.bf16.msra.mxu0 0
    %2341 = vmatpush.bf16.msra.mxu0 0
    %2342 = vmatpush.bf16.msra.mxu0 %v2321
    %2343 = vmatpush.bf16.msra.mxu0 %v2320
    %2344 = vmatmul.bf16.gmra.mxu0 %v2325
    %v2345 = vpop.f32.mrf.mxu0
    %v2346 = vadd.f32 %v2310, %v2345
    %v2347 = vpop.f32.mrf.mxu0
    %v2348 = vadd.f32 %v2310, %v2347
    %2349 = vmatmul.bf16.gmra.mxu0 %v2328
    %v2350 = vpop.f32.mrf.mxu0
    %v2351 = vadd.f32 %v2310, %v2350
    %v2352 = vpop.f32.mrf.mxu0
    %v2353 = vadd.f32 %v2310, %v2352
    %2354 = vmatmul.bf16.gmra.mxu0 %v2331
    %v2355 = vpop.f32.mrf.mxu0
    %v2356 = vadd.f32 %v2310, %v2355
    %v2357 = vpop.f32.mrf.mxu0
    %v2358 = vadd.f32 %v2310, %v2357
    %2359 = vmatmul.bf16.gmra.mxu0 %v2334
    %v2360 = vpop.f32.mrf.mxu0
    %v2361 = vadd.f32 %v2310, %v2360
    %v2362 = vpop.f32.mrf.mxu0
    %v2363 = vadd.f32 %v2310, %v2362
    %2364 = vdwg.mxu0
    %v2365 = vadd.f32 %v2229, %v2346
    %v2366 = vadd.f32 %v2230, %v2348
    %v2367 = vadd.f32 %v2231, %v2351
    %v2368 = vadd.f32 %v2232, %v2353
    %v2369 = vadd.f32 %v2233, %v2356
    %v2370 = vadd.f32 %v2234, %v2358
    %v2371 = vadd.f32 %v2235, %v2361
    %v2372 = vadd.f32 %v2236, %v2363
    %v2373 = vsel %vm296, %v2365, 0.0
    %2374 = vadd.xlane.f32.xlu0 %v2373
    %v2375 = vpop.xlane.xlu0 %2374
    %v2376 = vsel %vm296, %v2366, 0.0
    %2377 = vadd.xlane.f32.xlu0 %v2376
    %v2378 = vpop.xlane.xlu0 %2377
    %v2379 = vsel %vm296, %v2367, 0.0
    %2380 = vadd.xlane.f32.xlu0 %v2379
    %v2381 = vpop.xlane.xlu0 %2380
    %v2382 = vsel %vm296, %v2368, 0.0
    %2383 = vadd.xlane.f32.xlu0 %v2382
    %v2384 = vpop.xlane.xlu0 %2383
    %v2385 = vsel %vm296, %v2369, 0.0
    %2386 = vadd.xlane.f32.xlu0 %v2385
    %v2387 = vpop.xlane.xlu0 %2386
    %v2388 = vsel %vm296, %v2370, 0.0
    %2389 = vadd.xlane.f32.xlu0 %v2388
    %v2390 = vpop.xlane.xlu0 %2389
    %v2391 = vsel %vm296, %v2371, 0.0
    %2392 = vadd.xlane.f32.xlu0 %v2391
    %v2393 = vpop.xlane.xlu0 %2392
    %v2394 = vsel %vm296, %v2372, 0.0
    %2395 = vadd.xlane.f32.xlu0 %v2394
    %v2396 = vpop.xlane.xlu0 %2395
    %v2397 = vmul.f32 %v2375, %v919
    %v2398 = vmul.f32 %v2378, %v919
    %v2399 = vmul.f32 %v2381, %v919
    %v2400 = vmul.f32 %v2384, %v919
    %v2401 = vmul.f32 %v2387, %v919
    %v2402 = vmul.f32 %v2390, %v919
    %v2403 = vmul.f32 %v2393, %v919
    %v2404 = vmul.f32 %v2396, %v919
    %v2405 = vsub.f32 %v2365, %v2397
    %v2406 = vsub.f32 %v2366, %v2398
    %v2407 = vsub.f32 %v2367, %v2399
    %v2408 = vsub.f32 %v2368, %v2400
    %v2409 = vsub.f32 %v2369, %v2401
    %v2410 = vsub.f32 %v2370, %v2402
    %v2411 = vsub.f32 %v2371, %v2403
    %v2412 = vsub.f32 %v2372, %v2404
    %v2413 = vmul.f32 %v2405, %v2405
    %v2414 = vmul.f32 %v2406, %v2406
    %v2415 = vmul.f32 %v2407, %v2407
    %v2416 = vmul.f32 %v2408, %v2408
    %v2417 = vmul.f32 %v2409, %v2409
    %v2418 = vmul.f32 %v2410, %v2410
    %v2419 = vmul.f32 %v2411, %v2411
    %v2420 = vmul.f32 %v2412, %v2412
    %v2421 = vsel %vm296, %v2413, 0.0
    %2422 = vadd.xlane.f32.xlu0 %v2421
    %v2423 = vpop.xlane.xlu0 %2422
    %v2424 = vsel %vm296, %v2414, 0.0
    %2425 = vadd.xlane.f32.xlu0 %v2424
    %v2426 = vpop.xlane.xlu0 %2425
    %v2427 = vsel %vm296, %v2415, 0.0
    %2428 = vadd.xlane.f32.xlu0 %v2427
    %v2429 = vpop.xlane.xlu0 %2428
    %v2430 = vsel %vm296, %v2416, 0.0
    %2431 = vadd.xlane.f32.xlu0 %v2430
    %v2432 = vpop.xlane.xlu0 %2431
    %v2433 = vsel %vm296, %v2417, 0.0
    %2434 = vadd.xlane.f32.xlu0 %v2433
    %v2435 = vpop.xlane.xlu0 %2434
    %v2436 = vsel %vm296, %v2418, 0.0
    %2437 = vadd.xlane.f32.xlu0 %v2436
    %v2438 = vpop.xlane.xlu0 %2437
    %v2439 = vsel %vm296, %v2419, 0.0
    %2440 = vadd.xlane.f32.xlu0 %v2439
    %v2441 = vpop.xlane.xlu0 %2440
    %v2442 = vsel %vm296, %v2420, 0.0
    %2443 = vadd.xlane.f32.xlu0 %v2442
    %v2444 = vpop.xlane.xlu0 %2443
    %v2445 = vmul.f32 %v2423, %v919
    %v2446 = vmul.f32 %v2426, %v919
    %v2447 = vmul.f32 %v2429, %v919
    %v2448 = vmul.f32 %v2432, %v919
    %v2449 = vmul.f32 %v2435, %v919
    %v2450 = vmul.f32 %v2438, %v919
    %v2451 = vmul.f32 %v2441, %v919
    %v2452 = vmul.f32 %v2444, %v919
    %v2453 = vadd.f32 %v2445, 1e-05
    %v2454 = vadd.f32 %v2446, 1e-05
    %v2455 = vadd.f32 %v2447, 1e-05
    %v2456 = vadd.f32 %v2448, 1e-05
    %v2457 = vadd.f32 %v2449, 1e-05
    %v2458 = vadd.f32 %v2450, 1e-05
    %v2459 = vadd.f32 %v2451, 1e-05
    %v2460 = vadd.f32 %v2452, 1e-05
    %v2461 = vrsqrt.pop %v2453
    %v2462 = vmul.f32 %v2461, %v2453
    %v2463 = vmul.f32 %v2462, %v2461
    %v2464 = vmul.f32 0.5, %v2463
    %v2465 = vsub.f32 1.5, %v2464
    %v2466 = vmul.f32 %v2461, %v2465
    %vm2467 = vweird.f32 %v2453
    %vm2468 = vweird.f32 %v2461
    %vm2469 = vmor %vm2467, %vm2468
    %v2470 = vsel %vm2469, %v2461, %v2466
    %v2471 = vrsqrt.pop %v2454
    %v2472 = vmul.f32 %v2471, %v2454
    %v2473 = vmul.f32 %v2472, %v2471
    %v2474 = vmul.f32 0.5, %v2473
    %v2475 = vsub.f32 1.5, %v2474
    %v2476 = vmul.f32 %v2471, %v2475
    %vm2477 = vweird.f32 %v2454
    %vm2478 = vweird.f32 %v2471
    %vm2479 = vmor %vm2477, %vm2478
    %v2480 = vsel %vm2479, %v2471, %v2476
    %v2481 = vrsqrt.pop %v2455
    %v2482 = vmul.f32 %v2481, %v2455
    %v2483 = vmul.f32 %v2482, %v2481
    %v2484 = vmul.f32 0.5, %v2483
    %v2485 = vsub.f32 1.5, %v2484
    %v2486 = vmul.f32 %v2481, %v2485
    %vm2487 = vweird.f32 %v2455
    %vm2488 = vweird.f32 %v2481
    %vm2489 = vmor %vm2487, %vm2488
    %v2490 = vsel %vm2489, %v2481, %v2486
    %v2491 = vrsqrt.pop %v2456
    %v2492 = vmul.f32 %v2491, %v2456
    %v2493 = vmul.f32 %v2492, %v2491
    %v2494 = vmul.f32 0.5, %v2493
    %v2495 = vsub.f32 1.5, %v2494
    %v2496 = vmul.f32 %v2491, %v2495
    %vm2497 = vweird.f32 %v2456
    %vm2498 = vweird.f32 %v2491
    %vm2499 = vmor %vm2497, %vm2498
    %v2500 = vsel %vm2499, %v2491, %v2496
    %v2501 = vrsqrt.pop %v2457
    %v2502 = vmul.f32 %v2501, %v2457
    %v2503 = vmul.f32 %v2502, %v2501
    %v2504 = vmul.f32 0.5, %v2503
    %v2505 = vsub.f32 1.5, %v2504
    %v2506 = vmul.f32 %v2501, %v2505
    %vm2507 = vweird.f32 %v2457
    %vm2508 = vweird.f32 %v2501
    %vm2509 = vmor %vm2507, %vm2508
    %v2510 = vsel %vm2509, %v2501, %v2506
    %v2511 = vrsqrt.pop %v2458
    %v2512 = vmul.f32 %v2511, %v2458
    %v2513 = vmul.f32 %v2512, %v2511
    %v2514 = vmul.f32 0.5, %v2513
    %v2515 = vsub.f32 1.5, %v2514
    %v2516 = vmul.f32 %v2511, %v2515
    %vm2517 = vweird.f32 %v2458
    %vm2518 = vweird.f32 %v2511
    %vm2519 = vmor %vm2517, %vm2518
    %v2520 = vsel %vm2519, %v2511, %v2516
    %v2521 = vrsqrt.pop %v2459
    %v2522 = vmul.f32 %v2521, %v2459
    %v2523 = vmul.f32 %v2522, %v2521
    %v2524 = vmul.f32 0.5, %v2523
    %v2525 = vsub.f32 1.5, %v2524
    %v2526 = vmul.f32 %v2521, %v2525
    %vm2527 = vweird.f32 %v2459
    %vm2528 = vweird.f32 %v2521
    %vm2529 = vmor %vm2527, %vm2528
    %v2530 = vsel %vm2529, %v2521, %v2526
    %v2531 = vrsqrt.pop %v2460
    %v2532 = vmul.f32 %v2531, %v2460
    %v2533 = vmul.f32 %v2532, %v2531
    %v2534 = vmul.f32 0.5, %v2533
    %v2535 = vsub.f32 1.5, %v2534
    %v2536 = vmul.f32 %v2531, %v2535
    %vm2537 = vweird.f32 %v2460
    %vm2538 = vweird.f32 %v2531
    %vm2539 = vmor %vm2537, %vm2538
    %v2540 = vsel %vm2539, %v2531, %v2536
    %v2541 = vmul.f32 %v2405, %v2470
    %v2542 = vmul.f32 %v2406, %v2480
    %v2543 = vmul.f32 %v2407, %v2490
    %v2544 = vmul.f32 %v2408, %v2500
    %v2545 = vmul.f32 %v2409, %v2510
    %v2546 = vmul.f32 %v2410, %v2520
    %v2547 = vmul.f32 %v2411, %v2530
    %v2548 = vmul.f32 %v2412, %v2540
    %v2549 = vperm.slane %v1421, 2
    %v2550 = vmul.f32 %v2541, %v2549
    %v2551 = vmul.f32 %v2542, %v2549
    %v2552 = vmul.f32 %v2543, %v2549
    %v2553 = vmul.f32 %v2544, %v2549
    %v2554 = vmul.f32 %v2545, %v2549
    %v2555 = vmul.f32 %v2546, %v2549
    %v2556 = vmul.f32 %v2547, %v2549
    %v2557 = vmul.f32 %v2548, %v2549
    %v2558 = vperm.slane %v1421, 3
    %v2559 = vadd.f32 %v2550, %v2558
    %v2560 = vadd.f32 %v2551, %v2558
    %v2561 = vadd.f32 %v2552, %v2558
    %v2562 = vadd.f32 %v2553, %v2558
    %v2563 = vadd.f32 %v2554, %v2558
    %v2564 = vadd.f32 %v2555, %v2558
    %v2565 = vadd.f32 %v2556, %v2558
    %v2566 = vadd.f32 %v2557, %v2558
    %v2567 = vld [vmem:[%s12] sm:$0xf]
    %v2568 = vld [vmem:[%s12 + $0x4] sm:$0xf]
    %v2569 = vld [vmem:[%s12 + $0x8] sm:$0xf]
    %v2570 = vld [vmem:[%s12 + $0xc] sm:$0xf]
    %s2571 = scalar_lea.vmem %s12, 16
    %v2572 = vld [vmem:[%s2571] sm:$0xf]
    %v2573 = vld [vmem:[%s2571 + $0x4] sm:$0xf]
    %v2574 = vld [vmem:[%s2571 + $0x8] sm:$0xf]
    %v2575 = vld [vmem:[%s2571 + $0xc] sm:$0xf]
    %s2576 = scalar_lea.vmem %s12, 32
    %v2577 = vld [vmem:[%s2576] sm:$0xf]
    %v2578 = vld [vmem:[%s2576 + $0x4] sm:$0xf]
    %v2579 = vld [vmem:[%s2576 + $0x8] sm:$0xf]
    %v2580 = vld [vmem:[%s2576 + $0xc] sm:$0xf]
    %v2581 = vld [vmem:[%s13] sm:$0x1]
    %v2582 = vsel %vm296, %v232, 0.0
    %v2583 = vsel %vm296, %v233, 0.0
    %v2584 = vadd.f32 %v2582, %v2583
    %v2585 = vsel %vm296, %v234, 0.0
    %v2586 = vadd.f32 %v2584, %v2585
    %v2587 = vsel %vm296, %v235, 0.0
    %v2588 = vadd.f32 %v2586, %v2587
    %v2589 = vrot.slane %v2588, 4
    %v2590 = vadd.f32 %v2588, %v2589
    %v2591 = vrot.slane %v2590, 2
    %v2592 = vadd.f32 %v2590, %v2591
    %v2593 = vrot.slane %v2592, 1
    %v2594 = vadd.f32 %v2592, %v2593
    %v2595 = vmul.f32 %v2594, %v919
    %v2596 = vsel %vm296, %v236, 0.0
    %v2597 = vsel %vm296, %v237, 0.0
    %v2598 = vadd.f32 %v2596, %v2597
    %v2599 = vsel %vm296, %v238, 0.0
    %v2600 = vadd.f32 %v2598, %v2599
    %v2601 = vsel %vm296, %v239, 0.0
    %v2602 = vadd.f32 %v2600, %v2601
    %v2603 = vrot.slane %v2602, 4
    %v2604 = vadd.f32 %v2602, %v2603
    %v2605 = vrot.slane %v2604, 2
    %v2606 = vadd.f32 %v2604, %v2605
    %v2607 = vrot.slane %v2606, 1
    %v2608 = vadd.f32 %v2606, %v2607
    %v2609 = vmul.f32 %v2608, %v919
    %vm2610 = vcmask 1040384
    %v2611 = vsel %vm2610, %v2595, %v2609
    %v2612 = vpack.c.bf16 %v2611, %v2611
    %v2617 = vunpack.c.l.b16 %v2577
    %v2618 = vunpack.c.l.b16 %v2578
    %v2619 = vunpack.c.l.b16 %v2579
    %v2620 = vunpack.c.l.b16 %v2580
    %v2621 = vpack.c.b16 %v2618, %v2617
    %v2622 = vpack.c.b16 %v2620, %v2619
    %v2626 = vsel %vm296, %v2612, 0
    %2628 = vmatpush.bf16.msra.mxu0 0
    %2629 = vmatpush.bf16.msra.mxu0 0
    %2630 = vmatpush.bf16.msra.mxu0 0
    %2631 = vmatpush.bf16.msra.mxu0 0
    %2632 = vmatpush.bf16.msra.mxu0 0
    %2633 = vmatpush.bf16.msra.mxu0 0
    %2634 = vmatpush.bf16.msra.mxu0 %v2622
    %2635 = vmatpush.bf16.msra.mxu0 %v2621
    %2636 = vmatmul.bf16.gmra.mxu0 %v2626
    %v2637 = vpop.f32.mrf.mxu0
    %v2638 = vadd.f32 0.0, %v2637
    %v2639 = vpop.f32.mrf.mxu0
    %2640 = vdwg.mxu0
    %v2641 = vperm.slane %v2638, 0
    %v2642 = vperm.slane %v2638, 1
    %v2643 = vpack.c.bf16 %v1413, %v1412
    %v2644 = vpack.c.bf16 %v1415, %v1414
    %v2645 = vpack.c.bf16 %v1417, %v1416
    %v2646 = vpack.c.bf16 %v1419, %v1418
    %v2647 = vpack.c.bf16 %v2560, %v2559
    %v2648 = vpack.c.bf16 %v2562, %v2561
    %v2649 = vpack.c.bf16 %v2564, %v2563
    %v2650 = vpack.c.bf16 %v2566, %v2565
    %v2655 = vunpack.c.l.b16 %v2572
    %v2656 = vunpack.c.l.b16 %v2573
    %v2657 = vunpack.c.l.b16 %v2574
    %v2658 = vunpack.c.l.b16 %v2575
    %v2659 = vpack.c.b16 %v2656, %v2655
    %v2660 = vpack.c.b16 %v2658, %v2657
    %v2664 = vsel %vm296, %v2647, 0
    %v2667 = vsel %vm296, %v2648, 0
    %v2670 = vsel %vm296, %v2649, 0
    %v2673 = vsel %vm296, %v2650, 0
    %2675 = vmatpush.bf16.msra.mxu0 0
    %2676 = vmatpush.bf16.msra.mxu0 0
    %2677 = vmatpush.bf16.msra.mxu0 0
    %2678 = vmatpush.bf16.msra.mxu0 0
    %2679 = vmatpush.bf16.msra.mxu0 0
    %2680 = vmatpush.bf16.msra.mxu0 0
    %2681 = vmatpush.bf16.msra.mxu0 %v2660
    %2682 = vmatpush.bf16.msra.mxu0 %v2659
    %2683 = vmatmul.bf16.gmra.mxu0 %v2664
    %v2684 = vpop.f32.mrf.mxu0
    %v2685 = vadd.f32 0.0, %v2684
    %v2686 = vpop.f32.mrf.mxu0
    %v2687 = vadd.f32 0.0, %v2686
    %2688 = vmatmul.bf16.gmra.mxu0 %v2667
    %v2689 = vpop.f32.mrf.mxu0
    %v2690 = vadd.f32 0.0, %v2689
    %v2691 = vpop.f32.mrf.mxu0
    %v2692 = vadd.f32 0.0, %v2691
    %2693 = vmatmul.bf16.gmra.mxu0 %v2670
    %v2694 = vpop.f32.mrf.mxu0
    %v2695 = vadd.f32 0.0, %v2694
    %v2696 = vpop.f32.mrf.mxu0
    %v2697 = vadd.f32 0.0, %v2696
    %2698 = vmatmul.bf16.gmra.mxu0 %v2673
    %v2699 = vpop.f32.mrf.mxu0
    %v2700 = vadd.f32 0.0, %v2699
    %v2701 = vpop.f32.mrf.mxu0
    %v2702 = vadd.f32 0.0, %v2701
    %2703 = vdwg.mxu0
    %v2708 = vunpack.c.l.b16 %v2567
    %v2709 = vunpack.c.l.b16 %v2568
    %v2710 = vunpack.c.l.b16 %v2569
    %v2711 = vunpack.c.l.b16 %v2570
    %v2712 = vpack.c.b16 %v2709, %v2708
    %v2713 = vpack.c.b16 %v2711, %v2710
    %v2717 = vsel %vm296, %v2643, 0
    %v2720 = vsel %vm296, %v2644, 0
    %v2723 = vsel %vm296, %v2645, 0
    %v2726 = vsel %vm296, %v2646, 0
    %2728 = vmatpush.bf16.msra.mxu0 0
    %2729 = vmatpush.bf16.msra.mxu0 0
    %2730 = vmatpush.bf16.msra.mxu0 0
    %2731 = vmatpush.bf16.msra.mxu0 0
    %2732 = vmatpush.bf16.msra.mxu0 0
    %2733 = vmatpush.bf16.msra.mxu0 0
    %2734 = vmatpush.bf16.msra.mxu0 %v2713
    %2735 = vmatpush.bf16.msra.mxu0 %v2712
    %2736 = vmatmul.bf16.gmra.mxu0 %v2717
    %v2737 = vpop.f32.mrf.mxu0
    %v2738 = vadd.f32 %v2685, %v2737
    %v2739 = vpop.f32.mrf.mxu0
    %v2740 = vadd.f32 %v2687, %v2739
    %2741 = vmatmul.bf16.gmra.mxu0 %v2720
    %v2742 = vpop.f32.mrf.mxu0
    %v2743 = vadd.f32 %v2690, %v2742
    %v2744 = vpop.f32.mrf.mxu0
    %v2745 = vadd.f32 %v2692, %v2744
    %2746 = vmatmul.bf16.gmra.mxu0 %v2723
    %v2747 = vpop.f32.mrf.mxu0
    %v2748 = vadd.f32 %v2695, %v2747
    %v2749 = vpop.f32.mrf.mxu0
    %v2750 = vadd.f32 %v2697, %v2749
    %2751 = vmatmul.bf16.gmra.mxu0 %v2726
    %v2752 = vpop.f32.mrf.mxu0
    %v2753 = vadd.f32 %v2700, %v2752
    %v2754 = vpop.f32.mrf.mxu0
    %v2755 = vadd.f32 %v2702, %v2754
    %2756 = vdwg.mxu0
    %v2757 = vadd.f32 %v2738, %v2641
    %v2758 = vadd.f32 %v2740, %v2641
    %v2759 = vadd.f32 %v2743, %v2641
    %v2760 = vadd.f32 %v2745, %v2641
    %v2761 = vadd.f32 %v2748, %v2642
    %v2762 = vadd.f32 %v2750, %v2642
    %v2763 = vadd.f32 %v2753, %v2642
    %v2764 = vadd.f32 %v2755, %v2642
    %v2766 = vperm.slane %v2581, 0
    %v2768 = vadd.f32 %v2757, %v2766
    %v2769 = vadd.f32 %v2758, %v2766
    %v2770 = vadd.f32 %v2759, %v2766
    %v2771 = vadd.f32 %v2760, %v2766
    %v2772 = vadd.f32 %v2761, %v2766
    %v2773 = vadd.f32 %v2762, %v2766
    %v2774 = vadd.f32 %v2763, %v2766
    %v2775 = vadd.f32 %v2764, %v2766
    %v2776 = vmax.f32 %v2768, 0.0
    %v2777 = vmax.f32 %v2769, 0.0
    %v2778 = vmax.f32 %v2770, 0.0
    %v2779 = vmax.f32 %v2771, 0.0
    %v2780 = vmax.f32 %v2772, 0.0
    %v2781 = vmax.f32 %v2773, 0.0
    %v2782 = vmax.f32 %v2774, 0.0
    %v2783 = vmax.f32 %v2775, 0.0
    %v2784 = vpack.c.bf16 %v2777, %v2776
    %v2785 = vpack.c.bf16 %v2779, %v2778
    %v2786 = vpack.c.bf16 %v2781, %v2780
    %v2787 = vpack.c.bf16 %v2783, %v2782
    %v2788 = vld [vmem:[#allocation17] sm:$0xf]
    %v2789 = vld [vmem:[#allocation17 + $0x4] sm:$0xf]
    %v2790 = vld [vmem:[#allocation17 + $0x8] sm:$0xf]
    %v2791 = vld [vmem:[#allocation17 + $0xc] sm:$0xf]
    %v2792 = vld [vmem:[%s15] sm:$0x1]
    %v2794 = vperm.slane %v2792, 0
    %v2800 = vunpack.c.l.b16 %v2788
    %v2801 = vunpack.c.l.b16 %v2789
    %v2802 = vunpack.c.l.b16 %v2790
    %v2803 = vunpack.c.l.b16 %v2791
    %v2804 = vpack.c.b16 %v2801, %v2800
    %v2805 = vpack.c.b16 %v2803, %v2802
    %v2809 = vsel %vm296, %v2784, 0
    %v2812 = vsel %vm296, %v2785, 0
    %v2815 = vsel %vm296, %v2786, 0
    %v2818 = vsel %vm296, %v2787, 0
    %2820 = vmatpush.bf16.msra.mxu0 0
    %2821 = vmatpush.bf16.msra.mxu0 0
    %2822 = vmatpush.bf16.msra.mxu0 0
    %2823 = vmatpush.bf16.msra.mxu0 0
    %2824 = vmatpush.bf16.msra.mxu0 0
    %2825 = vmatpush.bf16.msra.mxu0 0
    %2826 = vmatpush.bf16.msra.mxu0 %v2805
    %2827 = vmatpush.bf16.msra.mxu0 %v2804
    %2828 = vmatmul.bf16.gmra.mxu0 %v2809
    %v2829 = vpop.f32.mrf.mxu0
    %v2830 = vadd.f32 %v2794, %v2829
    %v2831 = vpop.f32.mrf.mxu0
    %v2832 = vadd.f32 %v2794, %v2831
    %2833 = vmatmul.bf16.gmra.mxu0 %v2812
    %v2834 = vpop.f32.mrf.mxu0
    %v2835 = vadd.f32 %v2794, %v2834
    %v2836 = vpop.f32.mrf.mxu0
    %v2837 = vadd.f32 %v2794, %v2836
    %2838 = vmatmul.bf16.gmra.mxu0 %v2815
    %v2839 = vpop.f32.mrf.mxu0
    %v2840 = vadd.f32 %v2794, %v2839
    %v2841 = vpop.f32.mrf.mxu0
    %v2842 = vadd.f32 %v2794, %v2841
    %2843 = vmatmul.bf16.gmra.mxu0 %v2818
    %v2844 = vpop.f32.mrf.mxu0
    %v2845 = vadd.f32 %v2794, %v2844
    %v2846 = vpop.f32.mrf.mxu0
    %v2847 = vadd.f32 %v2794, %v2846
    %2848 = vdwg.mxu0
    %s2849 = scalar_lea.vmem [#allocation10], 8
    %v2850 = vld [vmem:[%s2849] sm:$0xf]
    %s2851 = scalar_lea.vmem [#allocation7], 32
    %v2852 = vld [vmem:[%s2851] sm:$0xf]
    %v2853 = vld [vmem:[%s2851 + $0x4] sm:$0xf]
    %v2854 = vld [vmem:[%s2851 + $0x8] sm:$0xf]
    %v2855 = vld [vmem:[%s2851 + $0xc] sm:$0xf]
    %s2856 = scalar_lea.vmem %s4, 2
    %v2857 = vld [vmem:[%s2856] sm:$0x1]
    %s2858 = scalar_lea.vmem [#allocation8], 32
    %v2859 = vld [vmem:[%s2858] sm:$0xf]
    %v2860 = vld [vmem:[%s2858 + $0x4] sm:$0xf]
    %v2861 = vld [vmem:[%s2858 + $0x8] sm:$0xf]
    %v2862 = vld [vmem:[%s2858 + $0xc] sm:$0xf]
    %s2863 = scalar_lea.vmem %s6, 2
    %v2864 = vld [vmem:[%s2863] sm:$0x1]
    %s2865 = scalar_lea.vmem [#allocation11], 32
    %v2866 = vld [vmem:[%s2865] sm:$0xf]
    %v2867 = vld [vmem:[%s2865 + $0x4] sm:$0xf]
    %v2868 = vld [vmem:[%s2865 + $0x8] sm:$0xf]
    %v2869 = vld [vmem:[%s2865 + $0xc] sm:$0xf]
    %s2870 = scalar_lea.vmem [#allocation13], 2
    %v2871 = vld [vmem:[%s2870] sm:$0x1]
    %s2872 = scalar_lea.vmem [#allocation14], 32
    %v2873 = vld [vmem:[%s2872] sm:$0xf]
    %v2874 = vld [vmem:[%s2872 + $0x4] sm:$0xf]
    %v2875 = vld [vmem:[%s2872 + $0x8] sm:$0xf]
    %v2876 = vld [vmem:[%s2872 + $0xc] sm:$0xf]
    %s2877 = scalar_lea.vmem [#allocation16], 2
    %v2878 = vld [vmem:[%s2877] sm:$0x1]
    %v2879 = vpack.c.bf16 %v2832, %v2830
    %v2880 = vpack.c.bf16 %v2837, %v2835
    %v2881 = vpack.c.bf16 %v2842, %v2840
    %v2882 = vpack.c.bf16 %v2847, %v2845
    %v2884 = vperm.slane %v2857, 0
    %v2890 = vunpack.c.l.b16 %v2852
    %v2891 = vunpack.c.l.b16 %v2853
    %v2892 = vunpack.c.l.b16 %v2854
    %v2893 = vunpack.c.l.b16 %v2855
    %v2894 = vpack.c.b16 %v2891, %v2890
    %v2895 = vpack.c.b16 %v2893, %v2892
    %v2899 = vsel %vm296, %v2879, 0
    %v2902 = vsel %vm296, %v2880, 0
    %v2905 = vsel %vm296, %v2881, 0
    %v2908 = vsel %vm296, %v2882, 0
    %2910 = vmatpush.bf16.msra.mxu0 0
    %2911 = vmatpush.bf16.msra.mxu0 0
    %2912 = vmatpush.bf16.msra.mxu0 0
    %2913 = vmatpush.bf16.msra.mxu0 0
    %2914 = vmatpush.bf16.msra.mxu0 0
    %2915 = vmatpush.bf16.msra.mxu0 0
    %2916 = vmatpush.bf16.msra.mxu0 %v2895
    %2917 = vmatpush.bf16.msra.mxu0 %v2894
    %2918 = vmatmul.bf16.gmra.mxu0 %v2899
    %v2919 = vpop.f32.mrf.mxu0
    %v2920 = vadd.f32 %v2884, %v2919
    %v2921 = vpop.f32.mrf.mxu0
    %v2922 = vadd.f32 %v2884, %v2921
    %2923 = vmatmul.bf16.gmra.mxu0 %v2902
    %v2924 = vpop.f32.mrf.mxu0
    %v2925 = vadd.f32 %v2884, %v2924
    %v2926 = vpop.f32.mrf.mxu0
    %v2927 = vadd.f32 %v2884, %v2926
    %2928 = vmatmul.bf16.gmra.mxu0 %v2905
    %v2929 = vpop.f32.mrf.mxu0
    %v2930 = vadd.f32 %v2884, %v2929
    %v2931 = vpop.f32.mrf.mxu0
    %v2932 = vadd.f32 %v2884, %v2931
    %2933 = vmatmul.bf16.gmra.mxu0 %v2908
    %v2934 = vpop.f32.mrf.mxu0
    %v2935 = vadd.f32 %v2884, %v2934
    %v2936 = vpop.f32.mrf.mxu0
    %v2937 = vadd.f32 %v2884, %v2936
    %2938 = vdwg.mxu0
    %v2939 = vpack.c.bf16 %v2922, %v2920
    %v2940 = vpack.c.bf16 %v2927, %v2925
    %v2941 = vpack.c.bf16 %v2932, %v2930
    %v2942 = vpack.c.bf16 %v2937, %v2935
    %2947 = vrot.lane.b32.xlu0 %v2939, 96
    %v2948 = vpop.permute.xlu0 %2947
    %2949 = vrot.lane.b32.xlu0 %v2940, 96
    %v2950 = vpop.permute.xlu0 %2949
    %2951 = vrot.lane.b32.xlu0 %v2941, 96
    %v2952 = vpop.permute.xlu0 %2951
    %2953 = vrot.lane.b32.xlu0 %v2942, 96
    %v2954 = vpop.permute.xlu0 %2953
    %v2956 = vsel %vm354, %v2939, 0
    %v2959 = vsel %vm354, %v2940, 0
    %v2962 = vsel %vm354, %v2941, 0
    %v2965 = vsel %vm354, %v2942, 0
    %v2968 = vsel %vm354, %v2948, 0
    %v2971 = vsel %vm354, %v2950, 0
    %v2974 = vsel %vm354, %v2952, 0
    %v2977 = vsel %vm354, %v2954, 0
    %2979 = vmatpush.bf16.xpose.msra.mxu0 0
    %2980 = vmatpush.bf16.xpose.msra.mxu0 0
    %2981 = vmatpush.bf16.xpose.msra.mxu0 0
    %2982 = vmatpush.bf16.xpose.msra.mxu0 0
    %2983 = vmatpush.bf16.xpose.msra.mxu0 %v2977
    %2984 = vmatpush.bf16.xpose.msra.mxu0 %v2974
    %2985 = vmatpush.bf16.xpose.msra.mxu0 %v2971
    %2986 = vmatpush.bf16.xpose.msra.mxu0 %v2968
    %2987 = vmatmul.bf16.gmra.mxu0 %v2956
    %v2988 = vpop.f32.mrf.mxu0
    %v2989 = vadd.f32 %v240, %v2988
    %v2990 = vpop.f32.mrf.mxu0
    %v2991 = vadd.f32 %v241, %v2990
    %2992 = vmatmul.bf16.gmra.mxu0 %v2959
    %v2993 = vpop.f32.mrf.mxu0
    %v2994 = vadd.f32 %v242, %v2993
    %v2995 = vpop.f32.mrf.mxu0
    %v2996 = vadd.f32 %v243, %v2995
    %2997 = vmatmul.bf16.gmra.mxu0 %v2962
    %v2998 = vpop.f32.mrf.mxu0
    %v2999 = vadd.f32 %v244, %v2998
    %v3000 = vpop.f32.mrf.mxu0
    %v3001 = vadd.f32 %v245, %v3000
    %3002 = vmatmul.bf16.gmra.mxu0 %v2965
    %v3003 = vpop.f32.mrf.mxu0
    %v3004 = vadd.f32 %v246, %v3003
    %v3005 = vpop.f32.mrf.mxu0
    %v3006 = vadd.f32 %v247, %v3005
    %3007 = vdwg.mxu0
    %v3008 = vsel %vm408, %v2989, -inf
    %3009 = vmax.xlane.f32.xlu0 %v3008
    %v3010 = vpop.xlane.xlu0 %3009
    %v3011 = vsel %vm408, %v2991, -inf
    %3012 = vmax.xlane.f32.xlu0 %v3011
    %v3013 = vpop.xlane.xlu0 %3012
    %v3014 = vsel %vm408, %v2994, -inf
    %3015 = vmax.xlane.f32.xlu0 %v3014
    %v3016 = vpop.xlane.xlu0 %3015
    %v3017 = vsel %vm408, %v2996, -inf
    %3018 = vmax.xlane.f32.xlu0 %v3017
    %v3019 = vpop.xlane.xlu0 %3018
    %v3020 = vsel %vm408, %v2999, -inf
    %3021 = vmax.xlane.f32.xlu0 %v3020
    %v3022 = vpop.xlane.xlu0 %3021
    %v3023 = vsel %vm408, %v3001, -inf
    %3024 = vmax.xlane.f32.xlu0 %v3023
    %v3025 = vpop.xlane.xlu0 %3024
    %v3026 = vsel %vm408, %v3004, -inf
    %3027 = vmax.xlane.f32.xlu0 %v3026
    %v3028 = vpop.xlane.xlu0 %3027
    %v3029 = vsel %vm408, %v3006, -inf
    %3030 = vmax.xlane.f32.xlu0 %v3029
    %v3031 = vpop.xlane.xlu0 %3030
    %v3032 = vsub.f32 %v2989, %v3010
    %v3033 = vsub.f32 %v2991, %v3013
    %v3034 = vsub.f32 %v2994, %v3016
    %v3035 = vsub.f32 %v2996, %v3019
    %v3036 = vsub.f32 %v2999, %v3022
    %v3037 = vsub.f32 %v3001, %v3025
    %v3038 = vsub.f32 %v3004, %v3028
    %v3039 = vsub.f32 %v3006, %v3031
    %v3040 = vmul.f32 %v3032, 1.442695
    %v3041 = vpow.pop %v3040
    %v3042 = vmul.f32 %v3033, 1.442695
    %v3043 = vpow.pop %v3042
    %v3044 = vmul.f32 %v3034, 1.442695
    %v3045 = vpow.pop %v3044
    %v3046 = vmul.f32 %v3035, 1.442695
    %v3047 = vpow.pop %v3046
    %v3048 = vmul.f32 %v3036, 1.442695
    %v3049 = vpow.pop %v3048
    %v3050 = vmul.f32 %v3037, 1.442695
    %v3051 = vpow.pop %v3050
    %v3052 = vmul.f32 %v3038, 1.442695
    %v3053 = vpow.pop %v3052
    %v3054 = vmul.f32 %v3039, 1.442695
    %v3055 = vpow.pop %v3054
    %v3056 = vsel %vm408, %v3041, 0.0
    %3057 = vadd.xlane.f32.xlu0 %v3056
    %v3058 = vpop.xlane.xlu0 %3057
    %v3059 = vsel %vm408, %v3043, 0.0
    %3060 = vadd.xlane.f32.xlu0 %v3059
    %v3061 = vpop.xlane.xlu0 %3060
    %v3062 = vsel %vm408, %v3045, 0.0
    %3063 = vadd.xlane.f32.xlu0 %v3062
    %v3064 = vpop.xlane.xlu0 %3063
    %v3065 = vsel %vm408, %v3047, 0.0
    %3066 = vadd.xlane.f32.xlu0 %v3065
    %v3067 = vpop.xlane.xlu0 %3066
    %v3068 = vsel %vm408, %v3049, 0.0
    %3069 = vadd.xlane.f32.xlu0 %v3068
    %v3070 = vpop.xlane.xlu0 %3069
    %v3071 = vsel %vm408, %v3051, 0.0
    %3072 = vadd.xlane.f32.xlu0 %v3071
    %v3073 = vpop.xlane.xlu0 %3072
    %v3074 = vsel %vm408, %v3053, 0.0
    %3075 = vadd.xlane.f32.xlu0 %v3074
    %v3076 = vpop.xlane.xlu0 %3075
    %v3077 = vsel %vm408, %v3055, 0.0
    %3078 = vadd.xlane.f32.xlu0 %v3077
    %v3079 = vpop.xlane.xlu0 %3078
    %v3080 = vrcp.pop %v3058
    %v3081 = vrcp.pop %v3061
    %v3082 = vrcp.pop %v3064
    %v3083 = vrcp.pop %v3067
    %v3084 = vrcp.pop %v3070
    %v3085 = vrcp.pop %v3073
    %v3086 = vrcp.pop %v3076
    %v3087 = vrcp.pop %v3079
    %v3088 = vmul.f32 %v3041, %v3080
    %v3089 = vmul.f32 %v3043, %v3081
    %v3090 = vmul.f32 %v3045, %v3082
    %v3091 = vmul.f32 %v3047, %v3083
    %v3092 = vmul.f32 %v3049, %v3084
    %v3093 = vmul.f32 %v3051, %v3085
    %v3094 = vmul.f32 %v3053, %v3086
    %v3095 = vmul.f32 %v3055, %v3087
    %v3096 = vpack.c.bf16 %v3089, %v3088
    %v3097 = vpack.c.bf16 %v3091, %v3090
    %v3098 = vpack.c.bf16 %v3093, %v3092
    %v3099 = vpack.c.bf16 %v3095, %v3094
    %3100 = vrot.lane.b32.xlu0 %v2939, 64
    %v3101 = vpop.permute.xlu0 %3100
    %3102 = vrot.lane.b32.xlu0 %v2940, 64
    %v3103 = vpop.permute.xlu0 %3102
    %3104 = vrot.lane.b32.xlu0 %v2941, 64
    %v3105 = vpop.permute.xlu0 %3104
    %3106 = vrot.lane.b32.xlu0 %v2942, 64
    %v3107 = vpop.permute.xlu0 %3106
    %v3113 = vsel %vm408, %v3096, 0
    %v3116 = vsel %vm408, %v3097, 0
    %v3119 = vsel %vm408, %v3098, 0
    %v3122 = vsel %vm408, %v3099, 0
    %3124 = vmatpush.bf16.msra.mxu0 0
    %3125 = vmatpush.bf16.msra.mxu0 0
    %3126 = vmatpush.bf16.msra.mxu0 0
    %3127 = vmatpush.bf16.msra.mxu0 0
    %3128 = vmatpush.bf16.msra.mxu0 %v3107
    %3129 = vmatpush.bf16.msra.mxu0 %v3105
    %3130 = vmatpush.bf16.msra.mxu0 %v3103
    %3131 = vmatpush.bf16.msra.mxu0 %v3101
    %3132 = vmatmul.bf16.gmra.mxu0 %v3113
    %v3133 = vpop.f32.mrf.mxu0
    %v3134 = vadd.f32 0.0, %v3133
    %v3135 = vpop.f32.mrf.mxu0
    %v3136 = vadd.f32 0.0, %v3135
    %3137 = vmatmul.bf16.gmra.mxu0 %v3116
    %v3138 = vpop.f32.mrf.mxu0
    %v3139 = vadd.f32 0.0, %v3138
    %v3140 = vpop.f32.mrf.mxu0
    %v3141 = vadd.f32 0.0, %v3140
    %3142 = vmatmul.bf16.gmra.mxu0 %v3119
    %v3143 = vpop.f32.mrf.mxu0
    %v3144 = vadd.f32 0.0, %v3143
    %v3145 = vpop.f32.mrf.mxu0
    %v3146 = vadd.f32 0.0, %v3145
    %3147 = vmatmul.bf16.gmra.mxu0 %v3122
    %v3148 = vpop.f32.mrf.mxu0
    %v3149 = vadd.f32 0.0, %v3148
    %v3150 = vpop.f32.mrf.mxu0
    %v3151 = vadd.f32 0.0, %v3150
    %3152 = vdwg.mxu0
    %v3153 = vpack.c.bf16 %v3136, %v3134
    %v3154 = vpack.c.bf16 %v3141, %v3139
    %v3155 = vpack.c.bf16 %v3146, %v3144
    %v3156 = vpack.c.bf16 %v3151, %v3149
    %3157 = vrot.lane.b32.xlu0 %v2939, 112
    %v3158 = vpop.permute.xlu0 %3157
    %3159 = vrot.lane.b32.xlu0 %v2940, 112
    %v3160 = vpop.permute.xlu0 %3159
    %3161 = vrot.lane.b32.xlu0 %v2941, 112
    %v3162 = vpop.permute.xlu0 %3161
    %3163 = vrot.lane.b32.xlu0 %v2942, 112
    %v3164 = vpop.permute.xlu0 %3163
    %3165 = vrot.lane.b32.xlu0 %v2939, 80
    %v3166 = vpop.permute.xlu0 %3165
    %3167 = vrot.lane.b32.xlu0 %v2940, 80
    %v3168 = vpop.permute.xlu0 %3167
    %3169 = vrot.lane.b32.xlu0 %v2941, 80
    %v3170 = vpop.permute.xlu0 %3169
    %3171 = vrot.lane.b32.xlu0 %v2942, 80
    %v3172 = vpop.permute.xlu0 %3171
    %v3174 = vsel %vm354, %v3158, 0
    %v3177 = vsel %vm354, %v3160, 0
    %v3180 = vsel %vm354, %v3162, 0
    %v3183 = vsel %vm354, %v3164, 0
    %v3186 = vsel %vm354, %v3166, 0
    %v3189 = vsel %vm354, %v3168, 0
    %v3192 = vsel %vm354, %v3170, 0
    %v3195 = vsel %vm354, %v3172, 0
    %3197 = vmatpush.bf16.xpose.msra.mxu0 0
    %3198 = vmatpush.bf16.xpose.msra.mxu0 0
    %3199 = vmatpush.bf16.xpose.msra.mxu0 0
    %3200 = vmatpush.bf16.xpose.msra.mxu0 0
    %3201 = vmatpush.bf16.xpose.msra.mxu0 %v3195
    %3202 = vmatpush.bf16.xpose.msra.mxu0 %v3192
    %3203 = vmatpush.bf16.xpose.msra.mxu0 %v3189
    %3204 = vmatpush.bf16.xpose.msra.mxu0 %v3186
    %3205 = vmatmul.bf16.gmra.mxu0 %v3174
    %v3206 = vpop.f32.mrf.mxu0
    %v3207 = vadd.f32 %v240, %v3206
    %v3208 = vpop.f32.mrf.mxu0
    %v3209 = vadd.f32 %v241, %v3208
    %3210 = vmatmul.bf16.gmra.mxu0 %v3177
    %v3211 = vpop.f32.mrf.mxu0
    %v3212 = vadd.f32 %v242, %v3211
    %v3213 = vpop.f32.mrf.mxu0
    %v3214 = vadd.f32 %v243, %v3213
    %3215 = vmatmul.bf16.gmra.mxu0 %v3180
    %v3216 = vpop.f32.mrf.mxu0
    %v3217 = vadd.f32 %v244, %v3216
    %v3218 = vpop.f32.mrf.mxu0
    %v3219 = vadd.f32 %v245, %v3218
    %3220 = vmatmul.bf16.gmra.mxu0 %v3183
    %v3221 = vpop.f32.mrf.mxu0
    %v3222 = vadd.f32 %v246, %v3221
    %v3223 = vpop.f32.mrf.mxu0
    %v3224 = vadd.f32 %v247, %v3223
    %3225 = vdwg.mxu0
    %v3226 = vsel %vm408, %v3207, -inf
    %3227 = vmax.xlane.f32.xlu0 %v3226
    %v3228 = vpop.xlane.xlu0 %3227
    %v3229 = vsel %vm408, %v3209, -inf
    %3230 = vmax.xlane.f32.xlu0 %v3229
    %v3231 = vpop.xlane.xlu0 %3230
    %v3232 = vsel %vm408, %v3212, -inf
    %3233 = vmax.xlane.f32.xlu0 %v3232
    %v3234 = vpop.xlane.xlu0 %3233
    %v3235 = vsel %vm408, %v3214, -inf
    %3236 = vmax.xlane.f32.xlu0 %v3235
    %v3237 = vpop.xlane.xlu0 %3236
    %v3238 = vsel %vm408, %v3217, -inf
    %3239 = vmax.xlane.f32.xlu0 %v3238
    %v3240 = vpop.xlane.xlu0 %3239
    %v3241 = vsel %vm408, %v3219, -inf
    %3242 = vmax.xlane.f32.xlu0 %v3241
    %v3243 = vpop.xlane.xlu0 %3242
    %v3244 = vsel %vm408, %v3222, -inf
    %3245 = vmax.xlane.f32.xlu0 %v3244
    %v3246 = vpop.xlane.xlu0 %3245
    %v3247 = vsel %vm408, %v3224, -inf
    %3248 = vmax.xlane.f32.xlu0 %v3247
    %v3249 = vpop.xlane.xlu0 %3248
    %v3250 = vsub.f32 %v3207, %v3228
    %v3251 = vsub.f32 %v3209, %v3231
    %v3252 = vsub.f32 %v3212, %v3234
    %v3253 = vsub.f32 %v3214, %v3237
    %v3254 = vsub.f32 %v3217, %v3240
    %v3255 = vsub.f32 %v3219, %v3243
    %v3256 = vsub.f32 %v3222, %v3246
    %v3257 = vsub.f32 %v3224, %v3249
    %v3258 = vmul.f32 %v3250, 1.442695
    %v3259 = vpow.pop %v3258
    %v3260 = vmul.f32 %v3251, 1.442695
    %v3261 = vpow.pop %v3260
    %v3262 = vmul.f32 %v3252, 1.442695
    %v3263 = vpow.pop %v3262
    %v3264 = vmul.f32 %v3253, 1.442695
    %v3265 = vpow.pop %v3264
    %v3266 = vmul.f32 %v3254, 1.442695
    %v3267 = vpow.pop %v3266
    %v3268 = vmul.f32 %v3255, 1.442695
    %v3269 = vpow.pop %v3268
    %v3270 = vmul.f32 %v3256, 1.442695
    %v3271 = vpow.pop %v3270
    %v3272 = vmul.f32 %v3257, 1.442695
    %v3273 = vpow.pop %v3272
    %v3274 = vsel %vm408, %v3259, 0.0
    %3275 = vadd.xlane.f32.xlu0 %v3274
    %v3276 = vpop.xlane.xlu0 %3275
    %v3277 = vsel %vm408, %v3261, 0.0
    %3278 = vadd.xlane.f32.xlu0 %v3277
    %v3279 = vpop.xlane.xlu0 %3278
    %v3280 = vsel %vm408, %v3263, 0.0
    %3281 = vadd.xlane.f32.xlu0 %v3280
    %v3282 = vpop.xlane.xlu0 %3281
    %v3283 = vsel %vm408, %v3265, 0.0
    %3284 = vadd.xlane.f32.xlu0 %v3283
    %v3285 = vpop.xlane.xlu0 %3284
    %v3286 = vsel %vm408, %v3267, 0.0
    %3287 = vadd.xlane.f32.xlu0 %v3286
    %v3288 = vpop.xlane.xlu0 %3287
    %v3289 = vsel %vm408, %v3269, 0.0
    %3290 = vadd.xlane.f32.xlu0 %v3289
    %v3291 = vpop.xlane.xlu0 %3290
    %v3292 = vsel %vm408, %v3271, 0.0
    %3293 = vadd.xlane.f32.xlu0 %v3292
    %v3294 = vpop.xlane.xlu0 %3293
    %v3295 = vsel %vm408, %v3273, 0.0
    %3296 = vadd.xlane.f32.xlu0 %v3295
    %v3297 = vpop.xlane.xlu0 %3296
    %v3298 = vrcp.pop %v3276
    %v3299 = vrcp.pop %v3279
    %v3300 = vrcp.pop %v3282
    %v3301 = vrcp.pop %v3285
    %v3302 = vrcp.pop %v3288
    %v3303 = vrcp.pop %v3291
    %v3304 = vrcp.pop %v3294
    %v3305 = vrcp.pop %v3297
    %v3306 = vmul.f32 %v3259, %v3298
    %v3307 = vmul.f32 %v3261, %v3299
    %v3308 = vmul.f32 %v3263, %v3300
    %v3309 = vmul.f32 %v3265, %v3301
    %v3310 = vmul.f32 %v3267, %v3302
    %v3311 = vmul.f32 %v3269, %v3303
    %v3312 = vmul.f32 %v3271, %v3304
    %v3313 = vmul.f32 %v3273, %v3305
    %v3314 = vpack.c.bf16 %v3307, %v3306
    %v3315 = vpack.c.bf16 %v3309, %v3308
    %v3316 = vpack.c.bf16 %v3311, %v3310
    %v3317 = vpack.c.bf16 %v3313, %v3312
    %3318 = vrot.lane.b32.xlu0 %v2939, 48
    %v3319 = vpop.permute.xlu0 %3318
    %3320 = vrot.lane.b32.xlu0 %v2940, 48
    %v3321 = vpop.permute.xlu0 %3320
    %3322 = vrot.lane.b32.xlu0 %v2941, 48
    %v3323 = vpop.permute.xlu0 %3322
    %3324 = vrot.lane.b32.xlu0 %v2942, 48
    %v3325 = vpop.permute.xlu0 %3324
    %v3331 = vsel %vm408, %v3314, 0
    %v3334 = vsel %vm408, %v3315, 0
    %v3337 = vsel %vm408, %v3316, 0
    %v3340 = vsel %vm408, %v3317, 0
    %3342 = vmatpush.bf16.msra.mxu0 0
    %3343 = vmatpush.bf16.msra.mxu0 0
    %3344 = vmatpush.bf16.msra.mxu0 0
    %3345 = vmatpush.bf16.msra.mxu0 0
    %3346 = vmatpush.bf16.msra.mxu0 %v3325
    %3347 = vmatpush.bf16.msra.mxu0 %v3323
    %3348 = vmatpush.bf16.msra.mxu0 %v3321
    %3349 = vmatpush.bf16.msra.mxu0 %v3319
    %3350 = vmatmul.bf16.gmra.mxu0 %v3331
    %v3351 = vpop.f32.mrf.mxu0
    %v3352 = vadd.f32 0.0, %v3351
    %v3353 = vpop.f32.mrf.mxu0
    %v3354 = vadd.f32 0.0, %v3353
    %3355 = vmatmul.bf16.gmra.mxu0 %v3334
    %v3356 = vpop.f32.mrf.mxu0
    %v3357 = vadd.f32 0.0, %v3356
    %v3358 = vpop.f32.mrf.mxu0
    %v3359 = vadd.f32 0.0, %v3358
    %3360 = vmatmul.bf16.gmra.mxu0 %v3337
    %v3361 = vpop.f32.mrf.mxu0
    %v3362 = vadd.f32 0.0, %v3361
    %v3363 = vpop.f32.mrf.mxu0
    %v3364 = vadd.f32 0.0, %v3363
    %3365 = vmatmul.bf16.gmra.mxu0 %v3340
    %v3366 = vpop.f32.mrf.mxu0
    %v3367 = vadd.f32 0.0, %v3366
    %v3368 = vpop.f32.mrf.mxu0
    %v3369 = vadd.f32 0.0, %v3368
    %3370 = vdwg.mxu0
    %v3371 = vpack.c.bf16 %v3354, %v3352
    %v3372 = vpack.c.bf16 %v3359, %v3357
    %v3373 = vpack.c.bf16 %v3364, %v3362
    %v3374 = vpack.c.bf16 %v3369, %v3367
    %v3377 = vunpack.c.l.b16 %v2861
    %v3378 = vunpack.c.l.b16 %v2862
    %v3379 = vpack.c.b16 %v3378, %v3377
    %v3382 = vsel %vm354, %v3371, 0
    %v3385 = vsel %vm354, %v3372, 0
    %v3388 = vsel %vm354, %v3373, 0
    %v3391 = vsel %vm354, %v3374, 0
    %3393 = vmatpush.bf16.msra.mxu0 0
    %3394 = vmatpush.bf16.msra.mxu0 0
    %3395 = vmatpush.bf16.msra.mxu0 0
    %3396 = vmatpush.bf16.msra.mxu0 0
    %3397 = vmatpush.bf16.msra.mxu0 0
    %3398 = vmatpush.bf16.msra.mxu0 0
    %3399 = vmatpush.bf16.msra.mxu0 0
    %3400 = vmatpush.bf16.msra.mxu0 %v3379
    %3401 = vmatmul.bf16.gmra.mxu0 %v3382
    %v3402 = vpop.f32.mrf.mxu0
    %v3403 = vadd.f32 0.0, %v3402
    %v3404 = vpop.f32.mrf.mxu0
    %v3405 = vadd.f32 0.0, %v3404
    %3406 = vmatmul.bf16.gmra.mxu0 %v3385
    %v3407 = vpop.f32.mrf.mxu0
    %v3408 = vadd.f32 0.0, %v3407
    %v3409 = vpop.f32.mrf.mxu0
    %v3410 = vadd.f32 0.0, %v3409
    %3411 = vmatmul.bf16.gmra.mxu0 %v3388
    %v3412 = vpop.f32.mrf.mxu0
    %v3413 = vadd.f32 0.0, %v3412
    %v3414 = vpop.f32.mrf.mxu0
    %v3415 = vadd.f32 0.0, %v3414
    %3416 = vmatmul.bf16.gmra.mxu0 %v3391
    %v3417 = vpop.f32.mrf.mxu0
    %v3418 = vadd.f32 0.0, %v3417
    %v3419 = vpop.f32.mrf.mxu0
    %v3420 = vadd.f32 0.0, %v3419
    %3421 = vdwg.mxu0
    %v3424 = vunpack.c.l.b16 %v2859
    %v3425 = vunpack.c.l.b16 %v2860
    %v3426 = vpack.c.b16 %v3425, %v3424
    %v3429 = vsel %vm354, %v3153, 0
    %v3432 = vsel %vm354, %v3154, 0
    %v3435 = vsel %vm354, %v3155, 0
    %v3438 = vsel %vm354, %v3156, 0
    %3440 = vmatpush.bf16.msra.mxu0 0
    %3441 = vmatpush.bf16.msra.mxu0 0
    %3442 = vmatpush.bf16.msra.mxu0 0
    %3443 = vmatpush.bf16.msra.mxu0 0
    %3444 = vmatpush.bf16.msra.mxu0 0
    %3445 = vmatpush.bf16.msra.mxu0 0
    %3446 = vmatpush.bf16.msra.mxu0 0
    %3447 = vmatpush.bf16.msra.mxu0 %v3426
    %3448 = vmatmul.bf16.gmra.mxu0 %v3429
    %v3449 = vpop.f32.mrf.mxu0
    %v3450 = vadd.f32 %v3403, %v3449
    %v3451 = vpop.f32.mrf.mxu0
    %v3452 = vadd.f32 %v3405, %v3451
    %3453 = vmatmul.bf16.gmra.mxu0 %v3432
    %v3454 = vpop.f32.mrf.mxu0
    %v3455 = vadd.f32 %v3408, %v3454
    %v3456 = vpop.f32.mrf.mxu0
    %v3457 = vadd.f32 %v3410, %v3456
    %3458 = vmatmul.bf16.gmra.mxu0 %v3435
    %v3459 = vpop.f32.mrf.mxu0
    %v3460 = vadd.f32 %v3413, %v3459
    %v3461 = vpop.f32.mrf.mxu0
    %v3462 = vadd.f32 %v3415, %v3461
    %3463 = vmatmul.bf16.gmra.mxu0 %v3438
    %v3464 = vpop.f32.mrf.mxu0
    %v3465 = vadd.f32 %v3418, %v3464
    %v3466 = vpop.f32.mrf.mxu0
    %v3467 = vadd.f32 %v3420, %v3466
    %3468 = vdwg.mxu0
    %v3470 = vperm.slane %v2864, 0
    %v3472 = vadd.f32 %v3450, %v3470
    %v3473 = vadd.f32 %v3452, %v3470
    %v3474 = vadd.f32 %v3455, %v3470
    %v3475 = vadd.f32 %v3457, %v3470
    %v3476 = vadd.f32 %v3460, %v3470
    %v3477 = vadd.f32 %v3462, %v3470
    %v3478 = vadd.f32 %v3465, %v3470
    %v3479 = vadd.f32 %v3467, %v3470
    %v3480 = vadd.f32 %v2830, %v3472
    %v3481 = vadd.f32 %v2832, %v3473
    %v3482 = vadd.f32 %v2835, %v3474
    %v3483 = vadd.f32 %v2837, %v3475
    %v3484 = vadd.f32 %v2840, %v3476
    %v3485 = vadd.f32 %v2842, %v3477
    %v3486 = vadd.f32 %v2845, %v3478
    %v3487 = vadd.f32 %v2847, %v3479
    %v3488 = vsel %vm296, %v3480, 0.0
    %3489 = vadd.xlane.f32.xlu0 %v3488
    %v3490 = vpop.xlane.xlu0 %3489
    %v3491 = vsel %vm296, %v3481, 0.0
    %3492 = vadd.xlane.f32.xlu0 %v3491
    %v3493 = vpop.xlane.xlu0 %3492
    %v3494 = vsel %vm296, %v3482, 0.0
    %3495 = vadd.xlane.f32.xlu0 %v3494
    %v3496 = vpop.xlane.xlu0 %3495
    %v3497 = vsel %vm296, %v3483, 0.0
    %3498 = vadd.xlane.f32.xlu0 %v3497
    %v3499 = vpop.xlane.xlu0 %3498
    %v3500 = vsel %vm296, %v3484, 0.0
    %3501 = vadd.xlane.f32.xlu0 %v3500
    %v3502 = vpop.xlane.xlu0 %3501
    %v3503 = vsel %vm296, %v3485, 0.0
    %3504 = vadd.xlane.f32.xlu0 %v3503
    %v3505 = vpop.xlane.xlu0 %3504
    %v3506 = vsel %vm296, %v3486, 0.0
    %3507 = vadd.xlane.f32.xlu0 %v3506
    %v3508 = vpop.xlane.xlu0 %3507
    %v3509 = vsel %vm296, %v3487, 0.0
    %3510 = vadd.xlane.f32.xlu0 %v3509
    %v3511 = vpop.xlane.xlu0 %3510
    %v3512 = vmul.f32 %v3490, %v919
    %v3513 = vmul.f32 %v3493, %v919
    %v3514 = vmul.f32 %v3496, %v919
    %v3515 = vmul.f32 %v3499, %v919
    %v3516 = vmul.f32 %v3502, %v919
    %v3517 = vmul.f32 %v3505, %v919
    %v3518 = vmul.f32 %v3508, %v919
    %v3519 = vmul.f32 %v3511, %v919
    %v3520 = vsub.f32 %v3480, %v3512
    %v3521 = vsub.f32 %v3481, %v3513
    %v3522 = vsub.f32 %v3482, %v3514
    %v3523 = vsub.f32 %v3483, %v3515
    %v3524 = vsub.f32 %v3484, %v3516
    %v3525 = vsub.f32 %v3485, %v3517
    %v3526 = vsub.f32 %v3486, %v3518
    %v3527 = vsub.f32 %v3487, %v3519
    %v3528 = vmul.f32 %v3520, %v3520
    %v3529 = vmul.f32 %v3521, %v3521
    %v3530 = vmul.f32 %v3522, %v3522
    %v3531 = vmul.f32 %v3523, %v3523
    %v3532 = vmul.f32 %v3524, %v3524
    %v3533 = vmul.f32 %v3525, %v3525
    %v3534 = vmul.f32 %v3526, %v3526
    %v3535 = vmul.f32 %v3527, %v3527
    %v3536 = vsel %vm296, %v3528, 0.0
    %3537 = vadd.xlane.f32.xlu0 %v3536
    %v3538 = vpop.xlane.xlu0 %3537
    %v3539 = vsel %vm296, %v3529, 0.0
    %3540 = vadd.xlane.f32.xlu0 %v3539
    %v3541 = vpop.xlane.xlu0 %3540
    %v3542 = vsel %vm296, %v3530, 0.0
    %3543 = vadd.xlane.f32.xlu0 %v3542
    %v3544 = vpop.xlane.xlu0 %3543
    %v3545 = vsel %vm296, %v3531, 0.0
    %3546 = vadd.xlane.f32.xlu0 %v3545
    %v3547 = vpop.xlane.xlu0 %3546
    %v3548 = vsel %vm296, %v3532, 0.0
    %3549 = vadd.xlane.f32.xlu0 %v3548
    %v3550 = vpop.xlane.xlu0 %3549
    %v3551 = vsel %vm296, %v3533, 0.0
    %3552 = vadd.xlane.f32.xlu0 %v3551
    %v3553 = vpop.xlane.xlu0 %3552
    %v3554 = vsel %vm296, %v3534, 0.0
    %3555 = vadd.xlane.f32.xlu0 %v3554
    %v3556 = vpop.xlane.xlu0 %3555
    %v3557 = vsel %vm296, %v3535, 0.0
    %3558 = vadd.xlane.f32.xlu0 %v3557
    %v3559 = vpop.xlane.xlu0 %3558
    %v3560 = vmul.f32 %v3538, %v919
    %v3561 = vmul.f32 %v3541, %v919
    %v3562 = vmul.f32 %v3544, %v919
    %v3563 = vmul.f32 %v3547, %v919
    %v3564 = vmul.f32 %v3550, %v919
    %v3565 = vmul.f32 %v3553, %v919
    %v3566 = vmul.f32 %v3556, %v919
    %v3567 = vmul.f32 %v3559, %v919
    %v3568 = vadd.f32 %v3560, 1e-05
    %v3569 = vadd.f32 %v3561, 1e-05
    %v3570 = vadd.f32 %v3562, 1e-05
    %v3571 = vadd.f32 %v3563, 1e-05
    %v3572 = vadd.f32 %v3564, 1e-05
    %v3573 = vadd.f32 %v3565, 1e-05
    %v3574 = vadd.f32 %v3566, 1e-05
    %v3575 = vadd.f32 %v3567, 1e-05
    %v3576 = vrsqrt.pop %v3568
    %v3577 = vmul.f32 %v3576, %v3568
    %v3578 = vmul.f32 %v3577, %v3576
    %v3579 = vmul.f32 0.5, %v3578
    %v3580 = vsub.f32 1.5, %v3579
    %v3581 = vmul.f32 %v3576, %v3580
    %vm3582 = vweird.f32 %v3568
    %vm3583 = vweird.f32 %v3576
    %vm3584 = vmor %vm3582, %vm3583
    %v3585 = vsel %vm3584, %v3576, %v3581
    %v3586 = vrsqrt.pop %v3569
    %v3587 = vmul.f32 %v3586, %v3569
    %v3588 = vmul.f32 %v3587, %v3586
    %v3589 = vmul.f32 0.5, %v3588
    %v3590 = vsub.f32 1.5, %v3589
    %v3591 = vmul.f32 %v3586, %v3590
    %vm3592 = vweird.f32 %v3569
    %vm3593 = vweird.f32 %v3586
    %vm3594 = vmor %vm3592, %vm3593
    %v3595 = vsel %vm3594, %v3586, %v3591
    %v3596 = vrsqrt.pop %v3570
    %v3597 = vmul.f32 %v3596, %v3570
    %v3598 = vmul.f32 %v3597, %v3596
    %v3599 = vmul.f32 0.5, %v3598
    %v3600 = vsub.f32 1.5, %v3599
    %v3601 = vmul.f32 %v3596, %v3600
    %vm3602 = vweird.f32 %v3570
    %vm3603 = vweird.f32 %v3596
    %vm3604 = vmor %vm3602, %vm3603
    %v3605 = vsel %vm3604, %v3596, %v3601
    %v3606 = vrsqrt.pop %v3571
    %v3607 = vmul.f32 %v3606, %v3571
    %v3608 = vmul.f32 %v3607, %v3606
    %v3609 = vmul.f32 0.5, %v3608
    %v3610 = vsub.f32 1.5, %v3609
    %v3611 = vmul.f32 %v3606, %v3610
    %vm3612 = vweird.f32 %v3571
    %vm3613 = vweird.f32 %v3606
    %vm3614 = vmor %vm3612, %vm3613
    %v3615 = vsel %vm3614, %v3606, %v3611
    %v3616 = vrsqrt.pop %v3572
    %v3617 = vmul.f32 %v3616, %v3572
    %v3618 = vmul.f32 %v3617, %v3616
    %v3619 = vmul.f32 0.5, %v3618
    %v3620 = vsub.f32 1.5, %v3619
    %v3621 = vmul.f32 %v3616, %v3620
    %vm3622 = vweird.f32 %v3572
    %vm3623 = vweird.f32 %v3616
    %vm3624 = vmor %vm3622, %vm3623
    %v3625 = vsel %vm3624, %v3616, %v3621
    %v3626 = vrsqrt.pop %v3573
    %v3627 = vmul.f32 %v3626, %v3573
    %v3628 = vmul.f32 %v3627, %v3626
    %v3629 = vmul.f32 0.5, %v3628
    %v3630 = vsub.f32 1.5, %v3629
    %v3631 = vmul.f32 %v3626, %v3630
    %vm3632 = vweird.f32 %v3573
    %vm3633 = vweird.f32 %v3626
    %vm3634 = vmor %vm3632, %vm3633
    %v3635 = vsel %vm3634, %v3626, %v3631
    %v3636 = vrsqrt.pop %v3574
    %v3637 = vmul.f32 %v3636, %v3574
    %v3638 = vmul.f32 %v3637, %v3636
    %v3639 = vmul.f32 0.5, %v3638
    %v3640 = vsub.f32 1.5, %v3639
    %v3641 = vmul.f32 %v3636, %v3640
    %vm3642 = vweird.f32 %v3574
    %vm3643 = vweird.f32 %v3636
    %vm3644 = vmor %vm3642, %vm3643
    %v3645 = vsel %vm3644, %v3636, %v3641
    %v3646 = vrsqrt.pop %v3575
    %v3647 = vmul.f32 %v3646, %v3575
    %v3648 = vmul.f32 %v3647, %v3646
    %v3649 = vmul.f32 0.5, %v3648
    %v3650 = vsub.f32 1.5, %v3649
    %v3651 = vmul.f32 %v3646, %v3650
    %vm3652 = vweird.f32 %v3575
    %vm3653 = vweird.f32 %v3646
    %vm3654 = vmor %vm3652, %vm3653
    %v3655 = vsel %vm3654, %v3646, %v3651
    %v3656 = vmul.f32 %v3520, %v3585
    %v3657 = vmul.f32 %v3521, %v3595
    %v3658 = vmul.f32 %v3522, %v3605
    %v3659 = vmul.f32 %v3523, %v3615
    %v3660 = vmul.f32 %v3524, %v3625
    %v3661 = vmul.f32 %v3525, %v3635
    %v3662 = vmul.f32 %v3526, %v3645
    %v3663 = vmul.f32 %v3527, %v3655
    %v3664 = vperm.slane %v2850, 0
    %v3665 = vmul.f32 %v3656, %v3664
    %v3666 = vmul.f32 %v3657, %v3664
    %v3667 = vmul.f32 %v3658, %v3664
    %v3668 = vmul.f32 %v3659, %v3664
    %v3669 = vmul.f32 %v3660, %v3664
    %v3670 = vmul.f32 %v3661, %v3664
    %v3671 = vmul.f32 %v3662, %v3664
    %v3672 = vmul.f32 %v3663, %v3664
    %v3673 = vperm.slane %v2850, 1
    %v3674 = vadd.f32 %v3665, %v3673
    %v3675 = vadd.f32 %v3666, %v3673
    %v3676 = vadd.f32 %v3667, %v3673
    %v3677 = vadd.f32 %v3668, %v3673
    %v3678 = vadd.f32 %v3669, %v3673
    %v3679 = vadd.f32 %v3670, %v3673
    %v3680 = vadd.f32 %v3671, %v3673
    %v3681 = vadd.f32 %v3672, %v3673
    %v3682 = vpack.c.bf16 %v3675, %v3674
    %v3683 = vpack.c.bf16 %v3677, %v3676
    %v3684 = vpack.c.bf16 %v3679, %v3678
    %v3685 = vpack.c.bf16 %v3681, %v3680
    %v3687 = vperm.slane %v2871, 0
    %v3693 = vunpack.c.l.b16 %v2866
    %v3694 = vunpack.c.l.b16 %v2867
    %v3695 = vunpack.c.l.b16 %v2868
    %v3696 = vunpack.c.l.b16 %v2869
    %v3697 = vpack.c.b16 %v3694, %v3693
    %v3698 = vpack.c.b16 %v3696, %v3695
    %v3702 = vsel %vm296, %v3682, 0
    %v3705 = vsel %vm296, %v3683, 0
    %v3708 = vsel %vm296, %v3684, 0
    %v3711 = vsel %vm296, %v3685, 0
    %3713 = vmatpush.bf16.msra.mxu0 0
    %3714 = vmatpush.bf16.msra.mxu0 0
    %3715 = vmatpush.bf16.msra.mxu0 0
    %3716 = vmatpush.bf16.msra.mxu0 0
    %3717 = vmatpush.bf16.msra.mxu0 0
    %3718 = vmatpush.bf16.msra.mxu0 0
    %3719 = vmatpush.bf16.msra.mxu0 %v3698
    %3720 = vmatpush.bf16.msra.mxu0 %v3697
    %3721 = vmatmul.bf16.gmra.mxu0 %v3702
    %v3722 = vpop.f32.mrf.mxu0
    %v3723 = vadd.f32 %v3687, %v3722
    %v3724 = vpop.f32.mrf.mxu0
    %v3725 = vadd.f32 %v3687, %v3724
    %3726 = vmatmul.bf16.gmra.mxu0 %v3705
    %v3727 = vpop.f32.mrf.mxu0
    %v3728 = vadd.f32 %v3687, %v3727
    %v3729 = vpop.f32.mrf.mxu0
    %v3730 = vadd.f32 %v3687, %v3729
    %3731 = vmatmul.bf16.gmra.mxu0 %v3708
    %v3732 = vpop.f32.mrf.mxu0
    %v3733 = vadd.f32 %v3687, %v3732
    %v3734 = vpop.f32.mrf.mxu0
    %v3735 = vadd.f32 %v3687, %v3734
    %3736 = vmatmul.bf16.gmra.mxu0 %v3711
    %v3737 = vpop.f32.mrf.mxu0
    %v3738 = vadd.f32 %v3687, %v3737
    %v3739 = vpop.f32.mrf.mxu0
    %v3740 = vadd.f32 %v3687, %v3739
    %3741 = vdwg.mxu0
    %v3742 = vmax.f32 %v3723, 0.0
    %v3743 = vmax.f32 %v3725, 0.0
    %v3744 = vmax.f32 %v3728, 0.0
    %v3745 = vmax.f32 %v3730, 0.0
    %v3746 = vmax.f32 %v3733, 0.0
    %v3747 = vmax.f32 %v3735, 0.0
    %v3748 = vmax.f32 %v3738, 0.0
    %v3749 = vmax.f32 %v3740, 0.0
    %v3750 = vpack.c.bf16 %v3743, %v3742
    %v3751 = vpack.c.bf16 %v3745, %v3744
    %v3752 = vpack.c.bf16 %v3747, %v3746
    %v3753 = vpack.c.bf16 %v3749, %v3748
    %v3755 = vperm.slane %v2878, 0
    %v3761 = vunpack.c.l.b16 %v2873
    %v3762 = vunpack.c.l.b16 %v2874
    %v3763 = vunpack.c.l.b16 %v2875
    %v3764 = vunpack.c.l.b16 %v2876
    %v3765 = vpack.c.b16 %v3762, %v3761
    %v3766 = vpack.c.b16 %v3764, %v3763
    %v3770 = vsel %vm296, %v3750, 0
    %v3773 = vsel %vm296, %v3751, 0
    %v3776 = vsel %vm296, %v3752, 0
    %v3779 = vsel %vm296, %v3753, 0
    %3781 = vmatpush.bf16.msra.mxu0 0
    %3782 = vmatpush.bf16.msra.mxu0 0
    %3783 = vmatpush.bf16.msra.mxu0 0
    %3784 = vmatpush.bf16.msra.mxu0 0
    %3785 = vmatpush.bf16.msra.mxu0 0
    %3786 = vmatpush.bf16.msra.mxu0 0
    %3787 = vmatpush.bf16.msra.mxu0 %v3766
    %3788 = vmatpush.bf16.msra.mxu0 %v3765
    %3789 = vmatmul.bf16.gmra.mxu0 %v3770
    %v3790 = vpop.f32.mrf.mxu0
    %v3791 = vadd.f32 %v3755, %v3790
    %v3792 = vpop.f32.mrf.mxu0
    %v3793 = vadd.f32 %v3755, %v3792
    %3794 = vmatmul.bf16.gmra.mxu0 %v3773
    %v3795 = vpop.f32.mrf.mxu0
    %v3796 = vadd.f32 %v3755, %v3795
    %v3797 = vpop.f32.mrf.mxu0
    %v3798 = vadd.f32 %v3755, %v3797
    %3799 = vmatmul.bf16.gmra.mxu0 %v3776
    %v3800 = vpop.f32.mrf.mxu0
    %v3801 = vadd.f32 %v3755, %v3800
    %v3802 = vpop.f32.mrf.mxu0
    %v3803 = vadd.f32 %v3755, %v3802
    %3804 = vmatmul.bf16.gmra.mxu0 %v3779
    %v3805 = vpop.f32.mrf.mxu0
    %v3806 = vadd.f32 %v3755, %v3805
    %v3807 = vpop.f32.mrf.mxu0
    %v3808 = vadd.f32 %v3755, %v3807
    %3809 = vdwg.mxu0
    %v3810 = vadd.f32 %v3674, %v3791
    %v3811 = vadd.f32 %v3675, %v3793
    %v3812 = vadd.f32 %v3676, %v3796
    %v3813 = vadd.f32 %v3677, %v3798
    %v3814 = vadd.f32 %v3678, %v3801
    %v3815 = vadd.f32 %v3679, %v3803
    %v3816 = vadd.f32 %v3680, %v3806
    %v3817 = vadd.f32 %v3681, %v3808
    %v3818 = vsel %vm296, %v3810, 0.0
    %3819 = vadd.xlane.f32.xlu0 %v3818
    %v3820 = vpop.xlane.xlu0 %3819
    %v3821 = vsel %vm296, %v3811, 0.0
    %3822 = vadd.xlane.f32.xlu0 %v3821
    %v3823 = vpop.xlane.xlu0 %3822
    %v3824 = vsel %vm296, %v3812, 0.0
    %3825 = vadd.xlane.f32.xlu0 %v3824
    %v3826 = vpop.xlane.xlu0 %3825
    %v3827 = vsel %vm296, %v3813, 0.0
    %3828 = vadd.xlane.f32.xlu0 %v3827
    %v3829 = vpop.xlane.xlu0 %3828
    %v3830 = vsel %vm296, %v3814, 0.0
    %3831 = vadd.xlane.f32.xlu0 %v3830
    %v3832 = vpop.xlane.xlu0 %3831
    %v3833 = vsel %vm296, %v3815, 0.0
    %3834 = vadd.xlane.f32.xlu0 %v3833
    %v3835 = vpop.xlane.xlu0 %3834
    %v3836 = vsel %vm296, %v3816, 0.0
    %3837 = vadd.xlane.f32.xlu0 %v3836
    %v3838 = vpop.xlane.xlu0 %3837
    %v3839 = vsel %vm296, %v3817, 0.0
    %3840 = vadd.xlane.f32.xlu0 %v3839
    %v3841 = vpop.xlane.xlu0 %3840
    %v3842 = vmul.f32 %v3820, %v919
    %v3843 = vmul.f32 %v3823, %v919
    %v3844 = vmul.f32 %v3826, %v919
    %v3845 = vmul.f32 %v3829, %v919
    %v3846 = vmul.f32 %v3832, %v919
    %v3847 = vmul.f32 %v3835, %v919
    %v3848 = vmul.f32 %v3838, %v919
    %v3849 = vmul.f32 %v3841, %v919
    %v3850 = vsub.f32 %v3810, %v3842
    %v3851 = vsub.f32 %v3811, %v3843
    %v3852 = vsub.f32 %v3812, %v3844
    %v3853 = vsub.f32 %v3813, %v3845
    %v3854 = vsub.f32 %v3814, %v3846
    %v3855 = vsub.f32 %v3815, %v3847
    %v3856 = vsub.f32 %v3816, %v3848
    %v3857 = vsub.f32 %v3817, %v3849
    %v3858 = vmul.f32 %v3850, %v3850
    %v3859 = vmul.f32 %v3851, %v3851
    %v3860 = vmul.f32 %v3852, %v3852
    %v3861 = vmul.f32 %v3853, %v3853
    %v3862 = vmul.f32 %v3854, %v3854
    %v3863 = vmul.f32 %v3855, %v3855
    %v3864 = vmul.f32 %v3856, %v3856
    %v3865 = vmul.f32 %v3857, %v3857
    %v3866 = vsel %vm296, %v3858, 0.0
    %3867 = vadd.xlane.f32.xlu0 %v3866
    %v3868 = vpop.xlane.xlu0 %3867
    %v3869 = vsel %vm296, %v3859, 0.0
    %3870 = vadd.xlane.f32.xlu0 %v3869
    %v3871 = vpop.xlane.xlu0 %3870
    %v3872 = vsel %vm296, %v3860, 0.0
    %3873 = vadd.xlane.f32.xlu0 %v3872
    %v3874 = vpop.xlane.xlu0 %3873
    %v3875 = vsel %vm296, %v3861, 0.0
    %3876 = vadd.xlane.f32.xlu0 %v3875
    %v3877 = vpop.xlane.xlu0 %3876
    %v3878 = vsel %vm296, %v3862, 0.0
    %3879 = vadd.xlane.f32.xlu0 %v3878
    %v3880 = vpop.xlane.xlu0 %3879
    %v3881 = vsel %vm296, %v3863, 0.0
    %3882 = vadd.xlane.f32.xlu0 %v3881
    %v3883 = vpop.xlane.xlu0 %3882
    %v3884 = vsel %vm296, %v3864, 0.0
    %3885 = vadd.xlane.f32.xlu0 %v3884
    %v3886 = vpop.xlane.xlu0 %3885
    %v3887 = vsel %vm296, %v3865, 0.0
    %3888 = vadd.xlane.f32.xlu0 %v3887
    %v3889 = vpop.xlane.xlu0 %3888
    %v3890 = vmul.f32 %v3868, %v919
    %v3891 = vmul.f32 %v3871, %v919
    %v3892 = vmul.f32 %v3874, %v919
    %v3893 = vmul.f32 %v3877, %v919
    %v3894 = vmul.f32 %v3880, %v919
    %v3895 = vmul.f32 %v3883, %v919
    %v3896 = vmul.f32 %v3886, %v919
    %v3897 = vmul.f32 %v3889, %v919
    %v3898 = vadd.f32 %v3890, 1e-05
    %v3899 = vadd.f32 %v3891, 1e-05
    %v3900 = vadd.f32 %v3892, 1e-05
    %v3901 = vadd.f32 %v3893, 1e-05
    %v3902 = vadd.f32 %v3894, 1e-05
    %v3903 = vadd.f32 %v3895, 1e-05
    %v3904 = vadd.f32 %v3896, 1e-05
    %v3905 = vadd.f32 %v3897, 1e-05
    %v3906 = vrsqrt.pop %v3898
    %v3907 = vmul.f32 %v3906, %v3898
    %v3908 = vmul.f32 %v3907, %v3906
    %v3909 = vmul.f32 0.5, %v3908
    %v3910 = vsub.f32 1.5, %v3909
    %v3911 = vmul.f32 %v3906, %v3910
    %vm3912 = vweird.f32 %v3898
    %vm3913 = vweird.f32 %v3906
    %vm3914 = vmor %vm3912, %vm3913
    %v3915 = vsel %vm3914, %v3906, %v3911
    %v3916 = vrsqrt.pop %v3899
    %v3917 = vmul.f32 %v3916, %v3899
    %v3918 = vmul.f32 %v3917, %v3916
    %v3919 = vmul.f32 0.5, %v3918
    %v3920 = vsub.f32 1.5, %v3919
    %v3921 = vmul.f32 %v3916, %v3920
    %vm3922 = vweird.f32 %v3899
    %vm3923 = vweird.f32 %v3916
    %vm3924 = vmor %vm3922, %vm3923
    %v3925 = vsel %vm3924, %v3916, %v3921
    %v3926 = vrsqrt.pop %v3900
    %v3927 = vmul.f32 %v3926, %v3900
    %v3928 = vmul.f32 %v3927, %v3926
    %v3929 = vmul.f32 0.5, %v3928
    %v3930 = vsub.f32 1.5, %v3929
    %v3931 = vmul.f32 %v3926, %v3930
    %vm3932 = vweird.f32 %v3900
    %vm3933 = vweird.f32 %v3926
    %vm3934 = vmor %vm3932, %vm3933
    %v3935 = vsel %vm3934, %v3926, %v3931
    %v3936 = vrsqrt.pop %v3901
    %v3937 = vmul.f32 %v3936, %v3901
    %v3938 = vmul.f32 %v3937, %v3936
    %v3939 = vmul.f32 0.5, %v3938
    %v3940 = vsub.f32 1.5, %v3939
    %v3941 = vmul.f32 %v3936, %v3940
    %vm3942 = vweird.f32 %v3901
    %vm3943 = vweird.f32 %v3936
    %vm3944 = vmor %vm3942, %vm3943
    %v3945 = vsel %vm3944, %v3936, %v3941
    %v3946 = vrsqrt.pop %v3902
    %v3947 = vmul.f32 %v3946, %v3902
    %v3948 = vmul.f32 %v3947, %v3946
    %v3949 = vmul.f32 0.5, %v3948
    %v3950 = vsub.f32 1.5, %v3949
    %v3951 = vmul.f32 %v3946, %v3950
    %vm3952 = vweird.f32 %v3902
    %vm3953 = vweird.f32 %v3946
    %vm3954 = vmor %vm3952, %vm3953
    %v3955 = vsel %vm3954, %v3946, %v3951
    %v3956 = vrsqrt.pop %v3903
    %v3957 = vmul.f32 %v3956, %v3903
    %v3958 = vmul.f32 %v3957, %v3956
    %v3959 = vmul.f32 0.5, %v3958
    %v3960 = vsub.f32 1.5, %v3959
    %v3961 = vmul.f32 %v3956, %v3960
    %vm3962 = vweird.f32 %v3903
    %vm3963 = vweird.f32 %v3956
    %vm3964 = vmor %vm3962, %vm3963
    %v3965 = vsel %vm3964, %v3956, %v3961
    %v3966 = vrsqrt.pop %v3904
    %v3967 = vmul.f32 %v3966, %v3904
    %v3968 = vmul.f32 %v3967, %v3966
    %v3969 = vmul.f32 0.5, %v3968
    %v3970 = vsub.f32 1.5, %v3969
    %v3971 = vmul.f32 %v3966, %v3970
    %vm3972 = vweird.f32 %v3904
    %vm3973 = vweird.f32 %v3966
    %vm3974 = vmor %vm3972, %vm3973
    %v3975 = vsel %vm3974, %v3966, %v3971
    %v3976 = vrsqrt.pop %v3905
    %v3977 = vmul.f32 %v3976, %v3905
    %v3978 = vmul.f32 %v3977, %v3976
    %v3979 = vmul.f32 0.5, %v3978
    %v3980 = vsub.f32 1.5, %v3979
    %v3981 = vmul.f32 %v3976, %v3980
    %vm3982 = vweird.f32 %v3905
    %vm3983 = vweird.f32 %v3976
    %vm3984 = vmor %vm3982, %vm3983
    %v3985 = vsel %vm3984, %v3976, %v3981
    %v3986 = vmul.f32 %v3850, %v3915
    %v3987 = vmul.f32 %v3851, %v3925
    %v3988 = vmul.f32 %v3852, %v3935
    %v3989 = vmul.f32 %v3853, %v3945
    %v3990 = vmul.f32 %v3854, %v3955
    %v3991 = vmul.f32 %v3855, %v3965
    %v3992 = vmul.f32 %v3856, %v3975
    %v3993 = vmul.f32 %v3857, %v3985
    %v3994 = vperm.slane %v2850, 2
    %v3995 = vmul.f32 %v3986, %v3994
    %v3996 = vmul.f32 %v3987, %v3994
    %v3997 = vmul.f32 %v3988, %v3994
    %v3998 = vmul.f32 %v3989, %v3994
    %v3999 = vmul.f32 %v3990, %v3994
    %v4000 = vmul.f32 %v3991, %v3994
    %v4001 = vmul.f32 %v3992, %v3994
    %v4002 = vmul.f32 %v3993, %v3994
    %v4003 = vperm.slane %v2850, 3
    %v4004 = vadd.f32 %v3995, %v4003
    %v4005 = vadd.f32 %v3996, %v4003
    %v4006 = vadd.f32 %v3997, %v4003
    %v4007 = vadd.f32 %v3998, %v4003
    %v4008 = vadd.f32 %v3999, %v4003
    %v4009 = vadd.f32 %v4000, %v4003
    %v4010 = vadd.f32 %v4001, %v4003
    %v4011 = vadd.f32 %v4002, %v4003
    %s4012 = scalar_lea.vmem [#allocation10], 12
    %v4013 = vld [vmem:[%s4012] sm:$0xf]
    %s4014 = scalar_lea.vmem [#allocation7], 48
    %v4015 = vld [vmem:[%s4014] sm:$0xf]
    %v4016 = vld [vmem:[%s4014 + $0x4] sm:$0xf]
    %v4017 = vld [vmem:[%s4014 + $0x8] sm:$0xf]
    %v4018 = vld [vmem:[%s4014 + $0xc] sm:$0xf]
    %s4019 = scalar_lea.vmem %s4, 3
    %v4020 = vld [vmem:[%s4019] sm:$0x1]
    %s4021 = scalar_lea.vmem [#allocation8], 48
    %v4022 = vld [vmem:[%s4021] sm:$0xf]
    %v4023 = vld [vmem:[%s4021 + $0x4] sm:$0xf]
    %v4024 = vld [vmem:[%s4021 + $0x8] sm:$0xf]
    %v4025 = vld [vmem:[%s4021 + $0xc] sm:$0xf]
    %s4026 = scalar_lea.vmem %s6, 3
    %v4027 = vld [vmem:[%s4026] sm:$0x1]
    %s4028 = scalar_lea.vmem [#allocation11], 48
    %v4029 = vld [vmem:[%s4028] sm:$0xf]
    %v4030 = vld [vmem:[%s4028 + $0x4] sm:$0xf]
    %v4031 = vld [vmem:[%s4028 + $0x8] sm:$0xf]
    %v4032 = vld [vmem:[%s4028 + $0xc] sm:$0xf]
    %s4033 = scalar_lea.vmem [#allocation13], 3
    %v4034 = vld [vmem:[%s4033] sm:$0x1]
    %s4035 = scalar_lea.vmem [#allocation14], 48
    %v4036 = vld [vmem:[%s4035] sm:$0xf]
    %v4037 = vld [vmem:[%s4035 + $0x4] sm:$0xf]
    %v4038 = vld [vmem:[%s4035 + $0x8] sm:$0xf]
    %v4039 = vld [vmem:[%s4035 + $0xc] sm:$0xf]
    %s4040 = scalar_lea.vmem [#allocation16], 3
    %v4041 = vld [vmem:[%s4040] sm:$0x1]
    %v4043 = vperm.slane %v4020, 0
    %v4049 = vunpack.c.l.b16 %v4015
    %v4050 = vunpack.c.l.b16 %v4016
    %v4051 = vunpack.c.l.b16 %v4017
    %v4052 = vunpack.c.l.b16 %v4018
    %v4053 = vpack.c.b16 %v4050, %v4049
    %v4054 = vpack.c.b16 %v4052, %v4051
    %4057 = vmatpush.bf16.msra.mxu0 0
    %4058 = vmatpush.bf16.msra.mxu0 0
    %4059 = vmatpush.bf16.msra.mxu0 0
    %4060 = vmatpush.bf16.msra.mxu0 0
    %4061 = vmatpush.bf16.msra.mxu0 0
    %4062 = vmatpush.bf16.msra.mxu0 0
    %4063 = vmatpush.bf16.msra.mxu0 %v4054
    %4064 = vmatpush.bf16.msra.mxu0 %v4053
    %4065 = vmatmul.bf16.gmra.mxu0 %v2899
    %v4066 = vpop.f32.mrf.mxu0
    %v4067 = vadd.f32 %v4043, %v4066
    %v4068 = vpop.f32.mrf.mxu0
    %v4069 = vadd.f32 %v4043, %v4068
    %4070 = vmatmul.bf16.gmra.mxu0 %v2902
    %v4071 = vpop.f32.mrf.mxu0
    %v4072 = vadd.f32 %v4043, %v4071
    %v4073 = vpop.f32.mrf.mxu0
    %v4074 = vadd.f32 %v4043, %v4073
    %4075 = vmatmul.bf16.gmra.mxu0 %v2905
    %v4076 = vpop.f32.mrf.mxu0
    %v4077 = vadd.f32 %v4043, %v4076
    %v4078 = vpop.f32.mrf.mxu0
    %v4079 = vadd.f32 %v4043, %v4078
    %4080 = vmatmul.bf16.gmra.mxu0 %v2908
    %v4081 = vpop.f32.mrf.mxu0
    %v4082 = vadd.f32 %v4043, %v4081
    %v4083 = vpop.f32.mrf.mxu0
    %v4084 = vadd.f32 %v4043, %v4083
    %4085 = vdwg.mxu0
    %v4086 = vpack.c.bf16 %v4069, %v4067
    %v4087 = vpack.c.bf16 %v4074, %v4072
    %v4088 = vpack.c.bf16 %v4079, %v4077
    %v4089 = vpack.c.bf16 %v4084, %v4082
    %4094 = vrot.lane.b32.xlu0 %v4086, 96
    %v4095 = vpop.permute.xlu0 %4094
    %4096 = vrot.lane.b32.xlu0 %v4087, 96
    %v4097 = vpop.permute.xlu0 %4096
    %4098 = vrot.lane.b32.xlu0 %v4088, 96
    %v4099 = vpop.permute.xlu0 %4098
    %4100 = vrot.lane.b32.xlu0 %v4089, 96
    %v4101 = vpop.permute.xlu0 %4100
    %v4103 = vsel %vm354, %v4086, 0
    %v4106 = vsel %vm354, %v4087, 0
    %v4109 = vsel %vm354, %v4088, 0
    %v4112 = vsel %vm354, %v4089, 0
    %v4115 = vsel %vm354, %v4095, 0
    %v4118 = vsel %vm354, %v4097, 0
    %v4121 = vsel %vm354, %v4099, 0
    %v4124 = vsel %vm354, %v4101, 0
    %4126 = vmatpush.bf16.xpose.msra.mxu0 0
    %4127 = vmatpush.bf16.xpose.msra.mxu0 0
    %4128 = vmatpush.bf16.xpose.msra.mxu0 0
    %4129 = vmatpush.bf16.xpose.msra.mxu0 0
    %4130 = vmatpush.bf16.xpose.msra.mxu0 %v4124
    %4131 = vmatpush.bf16.xpose.msra.mxu0 %v4121
    %4132 = vmatpush.bf16.xpose.msra.mxu0 %v4118
    %4133 = vmatpush.bf16.xpose.msra.mxu0 %v4115
    %4134 = vmatmul.bf16.gmra.mxu0 %v4103
    %v4135 = vpop.f32.mrf.mxu0
    %v4136 = vadd.f32 %v248, %v4135
    %v4137 = vpop.f32.mrf.mxu0
    %v4138 = vadd.f32 %v249, %v4137
    %4139 = vmatmul.bf16.gmra.mxu0 %v4106
    %v4140 = vpop.f32.mrf.mxu0
    %v4141 = vadd.f32 %v250, %v4140
    %v4142 = vpop.f32.mrf.mxu0
    %v4143 = vadd.f32 %v251, %v4142
    %4144 = vmatmul.bf16.gmra.mxu0 %v4109
    %v4145 = vpop.f32.mrf.mxu0
    %v4146 = vadd.f32 %v252, %v4145
    %v4147 = vpop.f32.mrf.mxu0
    %v4148 = vadd.f32 %v253, %v4147
    %4149 = vmatmul.bf16.gmra.mxu0 %v4112
    %v4150 = vpop.f32.mrf.mxu0
    %v4151 = vadd.f32 %v254, %v4150
    %v4152 = vpop.f32.mrf.mxu0
    %v4153 = vadd.f32 %v255, %v4152
    %4154 = vdwg.mxu0
    %v4155 = vsel %vm408, %v4136, -inf
    %4156 = vmax.xlane.f32.xlu0 %v4155
    %v4157 = vpop.xlane.xlu0 %4156
    %v4158 = vsel %vm408, %v4138, -inf
    %4159 = vmax.xlane.f32.xlu0 %v4158
    %v4160 = vpop.xlane.xlu0 %4159
    %v4161 = vsel %vm408, %v4141, -inf
    %4162 = vmax.xlane.f32.xlu0 %v4161
    %v4163 = vpop.xlane.xlu0 %4162
    %v4164 = vsel %vm408, %v4143, -inf
    %4165 = vmax.xlane.f32.xlu0 %v4164
    %v4166 = vpop.xlane.xlu0 %4165
    %v4167 = vsel %vm408, %v4146, -inf
    %4168 = vmax.xlane.f32.xlu0 %v4167
    %v4169 = vpop.xlane.xlu0 %4168
    %v4170 = vsel %vm408, %v4148, -inf
    %4171 = vmax.xlane.f32.xlu0 %v4170
    %v4172 = vpop.xlane.xlu0 %4171
    %v4173 = vsel %vm408, %v4151, -inf
    %4174 = vmax.xlane.f32.xlu0 %v4173
    %v4175 = vpop.xlane.xlu0 %4174
    %v4176 = vsel %vm408, %v4153, -inf
    %4177 = vmax.xlane.f32.xlu0 %v4176
    %v4178 = vpop.xlane.xlu0 %4177
    %v4179 = vsub.f32 %v4136, %v4157
    %v4180 = vsub.f32 %v4138, %v4160
    %v4181 = vsub.f32 %v4141, %v4163
    %v4182 = vsub.f32 %v4143, %v4166
    %v4183 = vsub.f32 %v4146, %v4169
    %v4184 = vsub.f32 %v4148, %v4172
    %v4185 = vsub.f32 %v4151, %v4175
    %v4186 = vsub.f32 %v4153, %v4178
    %v4187 = vmul.f32 %v4179, 1.442695
    %v4188 = vpow.pop %v4187
    %v4189 = vmul.f32 %v4180, 1.442695
    %v4190 = vpow.pop %v4189
    %v4191 = vmul.f32 %v4181, 1.442695
    %v4192 = vpow.pop %v4191
    %v4193 = vmul.f32 %v4182, 1.442695
    %v4194 = vpow.pop %v4193
    %v4195 = vmul.f32 %v4183, 1.442695
    %v4196 = vpow.pop %v4195
    %v4197 = vmul.f32 %v4184, 1.442695
    %v4198 = vpow.pop %v4197
    %v4199 = vmul.f32 %v4185, 1.442695
    %v4200 = vpow.pop %v4199
    %v4201 = vmul.f32 %v4186, 1.442695
    %v4202 = vpow.pop %v4201
    %v4203 = vsel %vm408, %v4188, 0.0
    %4204 = vadd.xlane.f32.xlu0 %v4203
    %v4205 = vpop.xlane.xlu0 %4204
    %v4206 = vsel %vm408, %v4190, 0.0
    %4207 = vadd.xlane.f32.xlu0 %v4206
    %v4208 = vpop.xlane.xlu0 %4207
    %v4209 = vsel %vm408, %v4192, 0.0
    %4210 = vadd.xlane.f32.xlu0 %v4209
    %v4211 = vpop.xlane.xlu0 %4210
    %v4212 = vsel %vm408, %v4194, 0.0
    %4213 = vadd.xlane.f32.xlu0 %v4212
    %v4214 = vpop.xlane.xlu0 %4213
    %v4215 = vsel %vm408, %v4196, 0.0
    %4216 = vadd.xlane.f32.xlu0 %v4215
    %v4217 = vpop.xlane.xlu0 %4216
    %v4218 = vsel %vm408, %v4198, 0.0
    %4219 = vadd.xlane.f32.xlu0 %v4218
    %v4220 = vpop.xlane.xlu0 %4219
    %v4221 = vsel %vm408, %v4200, 0.0
    %4222 = vadd.xlane.f32.xlu0 %v4221
    %v4223 = vpop.xlane.xlu0 %4222
    %v4224 = vsel %vm408, %v4202, 0.0
    %4225 = vadd.xlane.f32.xlu0 %v4224
    %v4226 = vpop.xlane.xlu0 %4225
    %v4227 = vrcp.pop %v4205
    %v4228 = vrcp.pop %v4208
    %v4229 = vrcp.pop %v4211
    %v4230 = vrcp.pop %v4214
    %v4231 = vrcp.pop %v4217
    %v4232 = vrcp.pop %v4220
    %v4233 = vrcp.pop %v4223
    %v4234 = vrcp.pop %v4226
    %v4235 = vmul.f32 %v4188, %v4227
    %v4236 = vmul.f32 %v4190, %v4228
    %v4237 = vmul.f32 %v4192, %v4229
    %v4238 = vmul.f32 %v4194, %v4230
    %v4239 = vmul.f32 %v4196, %v4231
    %v4240 = vmul.f32 %v4198, %v4232
    %v4241 = vmul.f32 %v4200, %v4233
    %v4242 = vmul.f32 %v4202, %v4234
    %v4243 = vpack.c.bf16 %v4236, %v4235
    %v4244 = vpack.c.bf16 %v4238, %v4237
    %v4245 = vpack.c.bf16 %v4240, %v4239
    %v4246 = vpack.c.bf16 %v4242, %v4241
    %4247 = vrot.lane.b32.xlu0 %v4086, 64
    %v4248 = vpop.permute.xlu0 %4247
    %4249 = vrot.lane.b32.xlu0 %v4087, 64
    %v4250 = vpop.permute.xlu0 %4249
    %4251 = vrot.lane.b32.xlu0 %v4088, 64
    %v4252 = vpop.permute.xlu0 %4251
    %4253 = vrot.lane.b32.xlu0 %v4089, 64
    %v4254 = vpop.permute.xlu0 %4253
    %v4260 = vsel %vm408, %v4243, 0
    %v4263 = vsel %vm408, %v4244, 0
    %v4266 = vsel %vm408, %v4245, 0
    %v4269 = vsel %vm408, %v4246, 0
    %4271 = vmatpush.bf16.msra.mxu0 0
    %4272 = vmatpush.bf16.msra.mxu0 0
    %4273 = vmatpush.bf16.msra.mxu0 0
    %4274 = vmatpush.bf16.msra.mxu0 0
    %4275 = vmatpush.bf16.msra.mxu0 %v4254
    %4276 = vmatpush.bf16.msra.mxu0 %v4252
    %4277 = vmatpush.bf16.msra.mxu0 %v4250
    %4278 = vmatpush.bf16.msra.mxu0 %v4248
    %4279 = vmatmul.bf16.gmra.mxu0 %v4260
    %v4280 = vpop.f32.mrf.mxu0
    %v4281 = vadd.f32 0.0, %v4280
    %v4282 = vpop.f32.mrf.mxu0
    %v4283 = vadd.f32 0.0, %v4282
    %4284 = vmatmul.bf16.gmra.mxu0 %v4263
    %v4285 = vpop.f32.mrf.mxu0
    %v4286 = vadd.f32 0.0, %v4285
    %v4287 = vpop.f32.mrf.mxu0
    %v4288 = vadd.f32 0.0, %v4287
    %4289 = vmatmul.bf16.gmra.mxu0 %v4266
    %v4290 = vpop.f32.mrf.mxu0
    %v4291 = vadd.f32 0.0, %v4290
    %v4292 = vpop.f32.mrf.mxu0
    %v4293 = vadd.f32 0.0, %v4292
    %4294 = vmatmul.bf16.gmra.mxu0 %v4269
    %v4295 = vpop.f32.mrf.mxu0
    %v4296 = vadd.f32 0.0, %v4295
    %v4297 = vpop.f32.mrf.mxu0
    %v4298 = vadd.f32 0.0, %v4297
    %4299 = vdwg.mxu0
    %v4300 = vpack.c.bf16 %v4283, %v4281
    %v4301 = vpack.c.bf16 %v4288, %v4286
    %v4302 = vpack.c.bf16 %v4293, %v4291
    %v4303 = vpack.c.bf16 %v4298, %v4296
    %4304 = vrot.lane.b32.xlu0 %v4086, 112
    %v4305 = vpop.permute.xlu0 %4304
    %4306 = vrot.lane.b32.xlu0 %v4087, 112
    %v4307 = vpop.permute.xlu0 %4306
    %4308 = vrot.lane.b32.xlu0 %v4088, 112
    %v4309 = vpop.permute.xlu0 %4308
    %4310 = vrot.lane.b32.xlu0 %v4089, 112
    %v4311 = vpop.permute.xlu0 %4310
    %4312 = vrot.lane.b32.xlu0 %v4086, 80
    %v4313 = vpop.permute.xlu0 %4312
    %4314 = vrot.lane.b32.xlu0 %v4087, 80
    %v4315 = vpop.permute.xlu0 %4314
    %4316 = vrot.lane.b32.xlu0 %v4088, 80
    %v4317 = vpop.permute.xlu0 %4316
    %4318 = vrot.lane.b32.xlu0 %v4089, 80
    %v4319 = vpop.permute.xlu0 %4318
    %v4321 = vsel %vm354, %v4305, 0
    %v4324 = vsel %vm354, %v4307, 0
    %v4327 = vsel %vm354, %v4309, 0
    %v4330 = vsel %vm354, %v4311, 0
    %v4333 = vsel %vm354, %v4313, 0
    %v4336 = vsel %vm354, %v4315, 0
    %v4339 = vsel %vm354, %v4317, 0
    %v4342 = vsel %vm354, %v4319, 0
    %4344 = vmatpush.bf16.xpose.msra.mxu0 0
    %4345 = vmatpush.bf16.xpose.msra.mxu0 0
    %4346 = vmatpush.bf16.xpose.msra.mxu0 0
    %4347 = vmatpush.bf16.xpose.msra.mxu0 0
    %4348 = vmatpush.bf16.xpose.msra.mxu0 %v4342
    %4349 = vmatpush.bf16.xpose.msra.mxu0 %v4339
    %4350 = vmatpush.bf16.xpose.msra.mxu0 %v4336
    %4351 = vmatpush.bf16.xpose.msra.mxu0 %v4333
    %4352 = vmatmul.bf16.gmra.mxu0 %v4321
    %v4353 = vpop.f32.mrf.mxu0
    %v4354 = vadd.f32 %v248, %v4353
    %v4355 = vpop.f32.mrf.mxu0
    %v4356 = vadd.f32 %v249, %v4355
    %4357 = vmatmul.bf16.gmra.mxu0 %v4324
    %v4358 = vpop.f32.mrf.mxu0
    %v4359 = vadd.f32 %v250, %v4358
    %v4360 = vpop.f32.mrf.mxu0
    %v4361 = vadd.f32 %v251, %v4360
    %4362 = vmatmul.bf16.gmra.mxu0 %v4327
    %v4363 = vpop.f32.mrf.mxu0
    %v4364 = vadd.f32 %v252, %v4363
    %v4365 = vpop.f32.mrf.mxu0
    %v4366 = vadd.f32 %v253, %v4365
    %4367 = vmatmul.bf16.gmra.mxu0 %v4330
    %v4368 = vpop.f32.mrf.mxu0
    %v4369 = vadd.f32 %v254, %v4368
    %v4370 = vpop.f32.mrf.mxu0
    %v4371 = vadd.f32 %v255, %v4370
    %4372 = vdwg.mxu0
    %v4373 = vsel %vm408, %v4354, -inf
    %4374 = vmax.xlane.f32.xlu0 %v4373
    %v4375 = vpop.xlane.xlu0 %4374
    %v4376 = vsel %vm408, %v4356, -inf
    %4377 = vmax.xlane.f32.xlu0 %v4376
    %v4378 = vpop.xlane.xlu0 %4377
    %v4379 = vsel %vm408, %v4359, -inf
    %4380 = vmax.xlane.f32.xlu0 %v4379
    %v4381 = vpop.xlane.xlu0 %4380
    %v4382 = vsel %vm408, %v4361, -inf
    %4383 = vmax.xlane.f32.xlu0 %v4382
    %v4384 = vpop.xlane.xlu0 %4383
    %v4385 = vsel %vm408, %v4364, -inf
    %4386 = vmax.xlane.f32.xlu0 %v4385
    %v4387 = vpop.xlane.xlu0 %4386
    %v4388 = vsel %vm408, %v4366, -inf
    %4389 = vmax.xlane.f32.xlu0 %v4388
    %v4390 = vpop.xlane.xlu0 %4389
    %v4391 = vsel %vm408, %v4369, -inf
    %4392 = vmax.xlane.f32.xlu0 %v4391
    %v4393 = vpop.xlane.xlu0 %4392
    %v4394 = vsel %vm408, %v4371, -inf
    %4395 = vmax.xlane.f32.xlu0 %v4394
    %v4396 = vpop.xlane.xlu0 %4395
    %v4397 = vsub.f32 %v4354, %v4375
    %v4398 = vsub.f32 %v4356, %v4378
    %v4399 = vsub.f32 %v4359, %v4381
    %v4400 = vsub.f32 %v4361, %v4384
    %v4401 = vsub.f32 %v4364, %v4387
    %v4402 = vsub.f32 %v4366, %v4390
    %v4403 = vsub.f32 %v4369, %v4393
    %v4404 = vsub.f32 %v4371, %v4396
    %v4405 = vmul.f32 %v4397, 1.442695
    %v4406 = vpow.pop %v4405
    %v4407 = vmul.f32 %v4398, 1.442695
    %v4408 = vpow.pop %v4407
    %v4409 = vmul.f32 %v4399, 1.442695
    %v4410 = vpow.pop %v4409
    %v4411 = vmul.f32 %v4400, 1.442695
    %v4412 = vpow.pop %v4411
    %v4413 = vmul.f32 %v4401, 1.442695
    %v4414 = vpow.pop %v4413
    %v4415 = vmul.f32 %v4402, 1.442695
    %v4416 = vpow.pop %v4415
    %v4417 = vmul.f32 %v4403, 1.442695
    %v4418 = vpow.pop %v4417
    %v4419 = vmul.f32 %v4404, 1.442695
    %v4420 = vpow.pop %v4419
    %v4421 = vsel %vm408, %v4406, 0.0
    %4422 = vadd.xlane.f32.xlu0 %v4421
    %v4423 = vpop.xlane.xlu0 %4422
    %v4424 = vsel %vm408, %v4408, 0.0
    %4425 = vadd.xlane.f32.xlu0 %v4424
    %v4426 = vpop.xlane.xlu0 %4425
    %v4427 = vsel %vm408, %v4410, 0.0
    %4428 = vadd.xlane.f32.xlu0 %v4427
    %v4429 = vpop.xlane.xlu0 %4428
    %v4430 = vsel %vm408, %v4412, 0.0
    %4431 = vadd.xlane.f32.xlu0 %v4430
    %v4432 = vpop.xlane.xlu0 %4431
    %v4433 = vsel %vm408, %v4414, 0.0
    %4434 = vadd.xlane.f32.xlu0 %v4433
    %v4435 = vpop.xlane.xlu0 %4434
    %v4436 = vsel %vm408, %v4416, 0.0
    %4437 = vadd.xlane.f32.xlu0 %v4436
    %v4438 = vpop.xlane.xlu0 %4437
    %v4439 = vsel %vm408, %v4418, 0.0
    %4440 = vadd.xlane.f32.xlu0 %v4439
    %v4441 = vpop.xlane.xlu0 %4440
    %v4442 = vsel %vm408, %v4420, 0.0
    %4443 = vadd.xlane.f32.xlu0 %v4442
    %v4444 = vpop.xlane.xlu0 %4443
    %v4445 = vrcp.pop %v4423
    %v4446 = vrcp.pop %v4426
    %v4447 = vrcp.pop %v4429
    %v4448 = vrcp.pop %v4432
    %v4449 = vrcp.pop %v4435
    %v4450 = vrcp.pop %v4438
    %v4451 = vrcp.pop %v4441
    %v4452 = vrcp.pop %v4444
    %v4453 = vmul.f32 %v4406, %v4445
    %v4454 = vmul.f32 %v4408, %v4446
    %v4455 = vmul.f32 %v4410, %v4447
    %v4456 = vmul.f32 %v4412, %v4448
    %v4457 = vmul.f32 %v4414, %v4449
    %v4458 = vmul.f32 %v4416, %v4450
    %v4459 = vmul.f32 %v4418, %v4451
    %v4460 = vmul.f32 %v4420, %v4452
    %v4461 = vpack.c.bf16 %v4454, %v4453
    %v4462 = vpack.c.bf16 %v4456, %v4455
    %v4463 = vpack.c.bf16 %v4458, %v4457
    %v4464 = vpack.c.bf16 %v4460, %v4459
    %4465 = vrot.lane.b32.xlu0 %v4086, 48
    %v4466 = vpop.permute.xlu0 %4465
    %4467 = vrot.lane.b32.xlu0 %v4087, 48
    %v4468 = vpop.permute.xlu0 %4467
    %4469 = vrot.lane.b32.xlu0 %v4088, 48
    %v4470 = vpop.permute.xlu0 %4469
    %4471 = vrot.lane.b32.xlu0 %v4089, 48
    %v4472 = vpop.permute.xlu0 %4471
    %v4478 = vsel %vm408, %v4461, 0
    %v4481 = vsel %vm408, %v4462, 0
    %v4484 = vsel %vm408, %v4463, 0
    %v4487 = vsel %vm408, %v4464, 0
    %4489 = vmatpush.bf16.msra.mxu0 0
    %4490 = vmatpush.bf16.msra.mxu0 0
    %4491 = vmatpush.bf16.msra.mxu0 0
    %4492 = vmatpush.bf16.msra.mxu0 0
    %4493 = vmatpush.bf16.msra.mxu0 %v4472
    %4494 = vmatpush.bf16.msra.mxu0 %v4470
    %4495 = vmatpush.bf16.msra.mxu0 %v4468
    %4496 = vmatpush.bf16.msra.mxu0 %v4466
    %4497 = vmatmul.bf16.gmra.mxu0 %v4478
    %v4498 = vpop.f32.mrf.mxu0
    %v4499 = vadd.f32 0.0, %v4498
    %v4500 = vpop.f32.mrf.mxu0
    %v4501 = vadd.f32 0.0, %v4500
    %4502 = vmatmul.bf16.gmra.mxu0 %v4481
    %v4503 = vpop.f32.mrf.mxu0
    %v4504 = vadd.f32 0.0, %v4503
    %v4505 = vpop.f32.mrf.mxu0
    %v4506 = vadd.f32 0.0, %v4505
    %4507 = vmatmul.bf16.gmra.mxu0 %v4484
    %v4508 = vpop.f32.mrf.mxu0
    %v4509 = vadd.f32 0.0, %v4508
    %v4510 = vpop.f32.mrf.mxu0
    %v4511 = vadd.f32 0.0, %v4510
    %4512 = vmatmul.bf16.gmra.mxu0 %v4487
    %v4513 = vpop.f32.mrf.mxu0
    %v4514 = vadd.f32 0.0, %v4513
    %v4515 = vpop.f32.mrf.mxu0
    %v4516 = vadd.f32 0.0, %v4515
    %4517 = vdwg.mxu0
    %v4518 = vpack.c.bf16 %v4501, %v4499
    %v4519 = vpack.c.bf16 %v4506, %v4504
    %v4520 = vpack.c.bf16 %v4511, %v4509
    %v4521 = vpack.c.bf16 %v4516, %v4514
    %v4524 = vunpack.c.l.b16 %v4024
    %v4525 = vunpack.c.l.b16 %v4025
    %v4526 = vpack.c.b16 %v4525, %v4524
    %v4529 = vsel %vm354, %v4518, 0
    %v4532 = vsel %vm354, %v4519, 0
    %v4535 = vsel %vm354, %v4520, 0
    %v4538 = vsel %vm354, %v4521, 0
    %4540 = vmatpush.bf16.msra.mxu0 0
    %4541 = vmatpush.bf16.msra.mxu0 0
    %4542 = vmatpush.bf16.msra.mxu0 0
    %4543 = vmatpush.bf16.msra.mxu0 0
    %4544 = vmatpush.bf16.msra.mxu0 0
    %4545 = vmatpush.bf16.msra.mxu0 0
    %4546 = vmatpush.bf16.msra.mxu0 0
    %4547 = vmatpush.bf16.msra.mxu0 %v4526
    %4548 = vmatmul.bf16.gmra.mxu0 %v4529
    %v4549 = vpop.f32.mrf.mxu0
    %v4550 = vadd.f32 0.0, %v4549
    %v4551 = vpop.f32.mrf.mxu0
    %v4552 = vadd.f32 0.0, %v4551
    %4553 = vmatmul.bf16.gmra.mxu0 %v4532
    %v4554 = vpop.f32.mrf.mxu0
    %v4555 = vadd.f32 0.0, %v4554
    %v4556 = vpop.f32.mrf.mxu0
    %v4557 = vadd.f32 0.0, %v4556
    %4558 = vmatmul.bf16.gmra.mxu0 %v4535
    %v4559 = vpop.f32.mrf.mxu0
    %v4560 = vadd.f32 0.0, %v4559
    %v4561 = vpop.f32.mrf.mxu0
    %v4562 = vadd.f32 0.0, %v4561
    %4563 = vmatmul.bf16.gmra.mxu0 %v4538
    %v4564 = vpop.f32.mrf.mxu0
    %v4565 = vadd.f32 0.0, %v4564
    %v4566 = vpop.f32.mrf.mxu0
    %v4567 = vadd.f32 0.0, %v4566
    %4568 = vdwg.mxu0
    %v4571 = vunpack.c.l.b16 %v4022
    %v4572 = vunpack.c.l.b16 %v4023
    %v4573 = vpack.c.b16 %v4572, %v4571
    %v4576 = vsel %vm354, %v4300, 0
    %v4579 = vsel %vm354, %v4301, 0
    %v4582 = vsel %vm354, %v4302, 0
    %v4585 = vsel %vm354, %v4303, 0
    %4587 = vmatpush.bf16.msra.mxu0 0
    %4588 = vmatpush.bf16.msra.mxu0 0
    %4589 = vmatpush.bf16.msra.mxu0 0
    %4590 = vmatpush.bf16.msra.mxu0 0
    %4591 = vmatpush.bf16.msra.mxu0 0
    %4592 = vmatpush.bf16.msra.mxu0 0
    %4593 = vmatpush.bf16.msra.mxu0 0
    %4594 = vmatpush.bf16.msra.mxu0 %v4573
    %4595 = vmatmul.bf16.gmra.mxu0 %v4576
    %v4596 = vpop.f32.mrf.mxu0
    %v4597 = vadd.f32 %v4550, %v4596
    %v4598 = vpop.f32.mrf.mxu0
    %v4599 = vadd.f32 %v4552, %v4598
    %4600 = vmatmul.bf16.gmra.mxu0 %v4579
    %v4601 = vpop.f32.mrf.mxu0
    %v4602 = vadd.f32 %v4555, %v4601
    %v4603 = vpop.f32.mrf.mxu0
    %v4604 = vadd.f32 %v4557, %v4603
    %4605 = vmatmul.bf16.gmra.mxu0 %v4582
    %v4606 = vpop.f32.mrf.mxu0
    %v4607 = vadd.f32 %v4560, %v4606
    %v4608 = vpop.f32.mrf.mxu0
    %v4609 = vadd.f32 %v4562, %v4608
    %4610 = vmatmul.bf16.gmra.mxu0 %v4585
    %v4611 = vpop.f32.mrf.mxu0
    %v4612 = vadd.f32 %v4565, %v4611
    %v4613 = vpop.f32.mrf.mxu0
    %v4614 = vadd.f32 %v4567, %v4613
    %4615 = vdwg.mxu0
    %v4617 = vperm.slane %v4027, 0
    %v4619 = vadd.f32 %v4597, %v4617
    %v4620 = vadd.f32 %v4599, %v4617
    %v4621 = vadd.f32 %v4602, %v4617
    %v4622 = vadd.f32 %v4604, %v4617
    %v4623 = vadd.f32 %v4607, %v4617
    %v4624 = vadd.f32 %v4609, %v4617
    %v4625 = vadd.f32 %v4612, %v4617
    %v4626 = vadd.f32 %v4614, %v4617
    %v4627 = vadd.f32 %v2830, %v4619
    %v4628 = vadd.f32 %v2832, %v4620
    %v4629 = vadd.f32 %v2835, %v4621
    %v4630 = vadd.f32 %v2837, %v4622
    %v4631 = vadd.f32 %v2840, %v4623
    %v4632 = vadd.f32 %v2842, %v4624
    %v4633 = vadd.f32 %v2845, %v4625
    %v4634 = vadd.f32 %v2847, %v4626
    %v4635 = vsel %vm296, %v4627, 0.0
    %4636 = vadd.xlane.f32.xlu0 %v4635
    %v4637 = vpop.xlane.xlu0 %4636
    %v4638 = vsel %vm296, %v4628, 0.0
    %4639 = vadd.xlane.f32.xlu0 %v4638
    %v4640 = vpop.xlane.xlu0 %4639
    %v4641 = vsel %vm296, %v4629, 0.0
    %4642 = vadd.xlane.f32.xlu0 %v4641
    %v4643 = vpop.xlane.xlu0 %4642
    %v4644 = vsel %vm296, %v4630, 0.0
    %4645 = vadd.xlane.f32.xlu0 %v4644
    %v4646 = vpop.xlane.xlu0 %4645
    %v4647 = vsel %vm296, %v4631, 0.0
    %4648 = vadd.xlane.f32.xlu0 %v4647
    %v4649 = vpop.xlane.xlu0 %4648
    %v4650 = vsel %vm296, %v4632, 0.0
    %4651 = vadd.xlane.f32.xlu0 %v4650
    %v4652 = vpop.xlane.xlu0 %4651
    %v4653 = vsel %vm296, %v4633, 0.0
    %4654 = vadd.xlane.f32.xlu0 %v4653
    %v4655 = vpop.xlane.xlu0 %4654
    %v4656 = vsel %vm296, %v4634, 0.0
    %4657 = vadd.xlane.f32.xlu0 %v4656
    %v4658 = vpop.xlane.xlu0 %4657
    %v4659 = vmul.f32 %v4637, %v919
    %v4660 = vmul.f32 %v4640, %v919
    %v4661 = vmul.f32 %v4643, %v919
    %v4662 = vmul.f32 %v4646, %v919
    %v4663 = vmul.f32 %v4649, %v919
    %v4664 = vmul.f32 %v4652, %v919
    %v4665 = vmul.f32 %v4655, %v919
    %v4666 = vmul.f32 %v4658, %v919
    %v4667 = vsub.f32 %v4627, %v4659
    %v4668 = vsub.f32 %v4628, %v4660
    %v4669 = vsub.f32 %v4629, %v4661
    %v4670 = vsub.f32 %v4630, %v4662
    %v4671 = vsub.f32 %v4631, %v4663
    %v4672 = vsub.f32 %v4632, %v4664
    %v4673 = vsub.f32 %v4633, %v4665
    %v4674 = vsub.f32 %v4634, %v4666
    %v4675 = vmul.f32 %v4667, %v4667
    %v4676 = vmul.f32 %v4668, %v4668
    %v4677 = vmul.f32 %v4669, %v4669
    %v4678 = vmul.f32 %v4670, %v4670
    %v4679 = vmul.f32 %v4671, %v4671
    %v4680 = vmul.f32 %v4672, %v4672
    %v4681 = vmul.f32 %v4673, %v4673
    %v4682 = vmul.f32 %v4674, %v4674
    %v4683 = vsel %vm296, %v4675, 0.0
    %4684 = vadd.xlane.f32.xlu0 %v4683
    %v4685 = vpop.xlane.xlu0 %4684
    %v4686 = vsel %vm296, %v4676, 0.0
    %4687 = vadd.xlane.f32.xlu0 %v4686
    %v4688 = vpop.xlane.xlu0 %4687
    %v4689 = vsel %vm296, %v4677, 0.0
    %4690 = vadd.xlane.f32.xlu0 %v4689
    %v4691 = vpop.xlane.xlu0 %4690
    %v4692 = vsel %vm296, %v4678, 0.0
    %4693 = vadd.xlane.f32.xlu0 %v4692
    %v4694 = vpop.xlane.xlu0 %4693
    %v4695 = vsel %vm296, %v4679, 0.0
    %4696 = vadd.xlane.f32.xlu0 %v4695
    %v4697 = vpop.xlane.xlu0 %4696
    %v4698 = vsel %vm296, %v4680, 0.0
    %4699 = vadd.xlane.f32.xlu0 %v4698
    %v4700 = vpop.xlane.xlu0 %4699
    %v4701 = vsel %vm296, %v4681, 0.0
    %4702 = vadd.xlane.f32.xlu0 %v4701
    %v4703 = vpop.xlane.xlu0 %4702
    %v4704 = vsel %vm296, %v4682, 0.0
    %4705 = vadd.xlane.f32.xlu0 %v4704
    %v4706 = vpop.xlane.xlu0 %4705
    %v4707 = vmul.f32 %v4685, %v919
    %v4708 = vmul.f32 %v4688, %v919
    %v4709 = vmul.f32 %v4691, %v919
    %v4710 = vmul.f32 %v4694, %v919
    %v4711 = vmul.f32 %v4697, %v919
    %v4712 = vmul.f32 %v4700, %v919
    %v4713 = vmul.f32 %v4703, %v919
    %v4714 = vmul.f32 %v4706, %v919
    %v4715 = vadd.f32 %v4707, 1e-05
    %v4716 = vadd.f32 %v4708, 1e-05
    %v4717 = vadd.f32 %v4709, 1e-05
    %v4718 = vadd.f32 %v4710, 1e-05
    %v4719 = vadd.f32 %v4711, 1e-05
    %v4720 = vadd.f32 %v4712, 1e-05
    %v4721 = vadd.f32 %v4713, 1e-05
    %v4722 = vadd.f32 %v4714, 1e-05
    %v4723 = vrsqrt.pop %v4715
    %v4724 = vmul.f32 %v4723, %v4715
    %v4725 = vmul.f32 %v4724, %v4723
    %v4726 = vmul.f32 0.5, %v4725
    %v4727 = vsub.f32 1.5, %v4726
    %v4728 = vmul.f32 %v4723, %v4727
    %vm4729 = vweird.f32 %v4715
    %vm4730 = vweird.f32 %v4723
    %vm4731 = vmor %vm4729, %vm4730
    %v4732 = vsel %vm4731, %v4723, %v4728
    %v4733 = vrsqrt.pop %v4716
    %v4734 = vmul.f32 %v4733, %v4716
    %v4735 = vmul.f32 %v4734, %v4733
    %v4736 = vmul.f32 0.5, %v4735
    %v4737 = vsub.f32 1.5, %v4736
    %v4738 = vmul.f32 %v4733, %v4737
    %vm4739 = vweird.f32 %v4716
    %vm4740 = vweird.f32 %v4733
    %vm4741 = vmor %vm4739, %vm4740
    %v4742 = vsel %vm4741, %v4733, %v4738
    %v4743 = vrsqrt.pop %v4717
    %v4744 = vmul.f32 %v4743, %v4717
    %v4745 = vmul.f32 %v4744, %v4743
    %v4746 = vmul.f32 0.5, %v4745
    %v4747 = vsub.f32 1.5, %v4746
    %v4748 = vmul.f32 %v4743, %v4747
    %vm4749 = vweird.f32 %v4717
    %vm4750 = vweird.f32 %v4743
    %vm4751 = vmor %vm4749, %vm4750
    %v4752 = vsel %vm4751, %v4743, %v4748
    %v4753 = vrsqrt.pop %v4718
    %v4754 = vmul.f32 %v4753, %v4718
    %v4755 = vmul.f32 %v4754, %v4753
    %v4756 = vmul.f32 0.5, %v4755
    %v4757 = vsub.f32 1.5, %v4756
    %v4758 = vmul.f32 %v4753, %v4757
    %vm4759 = vweird.f32 %v4718
    %vm4760 = vweird.f32 %v4753
    %vm4761 = vmor %vm4759, %vm4760
    %v4762 = vsel %vm4761, %v4753, %v4758
    %v4763 = vrsqrt.pop %v4719
    %v4764 = vmul.f32 %v4763, %v4719
    %v4765 = vmul.f32 %v4764, %v4763
    %v4766 = vmul.f32 0.5, %v4765
    %v4767 = vsub.f32 1.5, %v4766
    %v4768 = vmul.f32 %v4763, %v4767
    %vm4769 = vweird.f32 %v4719
    %vm4770 = vweird.f32 %v4763
    %vm4771 = vmor %vm4769, %vm4770
    %v4772 = vsel %vm4771, %v4763, %v4768
    %v4773 = vrsqrt.pop %v4720
    %v4774 = vmul.f32 %v4773, %v4720
    %v4775 = vmul.f32 %v4774, %v4773
    %v4776 = vmul.f32 0.5, %v4775
    %v4777 = vsub.f32 1.5, %v4776
    %v4778 = vmul.f32 %v4773, %v4777
    %vm4779 = vweird.f32 %v4720
    %vm4780 = vweird.f32 %v4773
    %vm4781 = vmor %vm4779, %vm4780
    %v4782 = vsel %vm4781, %v4773, %v4778
    %v4783 = vrsqrt.pop %v4721
    %v4784 = vmul.f32 %v4783, %v4721
    %v4785 = vmul.f32 %v4784, %v4783
    %v4786 = vmul.f32 0.5, %v4785
    %v4787 = vsub.f32 1.5, %v4786
    %v4788 = vmul.f32 %v4783, %v4787
    %vm4789 = vweird.f32 %v4721
    %vm4790 = vweird.f32 %v4783
    %vm4791 = vmor %vm4789, %vm4790
    %v4792 = vsel %vm4791, %v4783, %v4788
    %v4793 = vrsqrt.pop %v4722
    %v4794 = vmul.f32 %v4793, %v4722
    %v4795 = vmul.f32 %v4794, %v4793
    %v4796 = vmul.f32 0.5, %v4795
    %v4797 = vsub.f32 1.5, %v4796
    %v4798 = vmul.f32 %v4793, %v4797
    %vm4799 = vweird.f32 %v4722
    %vm4800 = vweird.f32 %v4793
    %vm4801 = vmor %vm4799, %vm4800
    %v4802 = vsel %vm4801, %v4793, %v4798
    %v4803 = vmul.f32 %v4667, %v4732
    %v4804 = vmul.f32 %v4668, %v4742
    %v4805 = vmul.f32 %v4669, %v4752
    %v4806 = vmul.f32 %v4670, %v4762
    %v4807 = vmul.f32 %v4671, %v4772
    %v4808 = vmul.f32 %v4672, %v4782
    %v4809 = vmul.f32 %v4673, %v4792
    %v4810 = vmul.f32 %v4674, %v4802
    %v4811 = vperm.slane %v4013, 0
    %v4812 = vmul.f32 %v4803, %v4811
    %v4813 = vmul.f32 %v4804, %v4811
    %v4814 = vmul.f32 %v4805, %v4811
    %v4815 = vmul.f32 %v4806, %v4811
    %v4816 = vmul.f32 %v4807, %v4811
    %v4817 = vmul.f32 %v4808, %v4811
    %v4818 = vmul.f32 %v4809, %v4811
    %v4819 = vmul.f32 %v4810, %v4811
    %v4820 = vperm.slane %v4013, 1
    %v4821 = vadd.f32 %v4812, %v4820
    %v4822 = vadd.f32 %v4813, %v4820
    %v4823 = vadd.f32 %v4814, %v4820
    %v4824 = vadd.f32 %v4815, %v4820
    %v4825 = vadd.f32 %v4816, %v4820
    %v4826 = vadd.f32 %v4817, %v4820
    %v4827 = vadd.f32 %v4818, %v4820
    %v4828 = vadd.f32 %v4819, %v4820
    %v4829 = vpack.c.bf16 %v4822, %v4821
    %v4830 = vpack.c.bf16 %v4824, %v4823
    %v4831 = vpack.c.bf16 %v4826, %v4825
    %v4832 = vpack.c.bf16 %v4828, %v4827
    %v4834 = vperm.slane %v4034, 0
    %v4840 = vunpack.c.l.b16 %v4029
    %v4841 = vunpack.c.l.b16 %v4030
    %v4842 = vunpack.c.l.b16 %v4031
    %v4843 = vunpack.c.l.b16 %v4032
    %v4844 = vpack.c.b16 %v4841, %v4840
    %v4845 = vpack.c.b16 %v4843, %v4842
    %v4849 = vsel %vm296, %v4829, 0
    %v4852 = vsel %vm296, %v4830, 0
    %v4855 = vsel %vm296, %v4831, 0
    %v4858 = vsel %vm296, %v4832, 0
    %4860 = vmatpush.bf16.msra.mxu0 0
    %4861 = vmatpush.bf16.msra.mxu0 0
    %4862 = vmatpush.bf16.msra.mxu0 0
    %4863 = vmatpush.bf16.msra.mxu0 0
    %4864 = vmatpush.bf16.msra.mxu0 0
    %4865 = vmatpush.bf16.msra.mxu0 0
    %4866 = vmatpush.bf16.msra.mxu0 %v4845
    %4867 = vmatpush.bf16.msra.mxu0 %v4844
    %4868 = vmatmul.bf16.gmra.mxu0 %v4849
    %v4869 = vpop.f32.mrf.mxu0
    %v4870 = vadd.f32 %v4834, %v4869
    %v4871 = vpop.f32.mrf.mxu0
    %v4872 = vadd.f32 %v4834, %v4871
    %4873 = vmatmul.bf16.gmra.mxu0 %v4852
    %v4874 = vpop.f32.mrf.mxu0
    %v4875 = vadd.f32 %v4834, %v4874
    %v4876 = vpop.f32.mrf.mxu0
    %v4877 = vadd.f32 %v4834, %v4876
    %4878 = vmatmul.bf16.gmra.mxu0 %v4855
    %v4879 = vpop.f32.mrf.mxu0
    %v4880 = vadd.f32 %v4834, %v4879
    %v4881 = vpop.f32.mrf.mxu0
    %v4882 = vadd.f32 %v4834, %v4881
    %4883 = vmatmul.bf16.gmra.mxu0 %v4858
    %v4884 = vpop.f32.mrf.mxu0
    %v4885 = vadd.f32 %v4834, %v4884
    %v4886 = vpop.f32.mrf.mxu0
    %v4887 = vadd.f32 %v4834, %v4886
    %4888 = vdwg.mxu0
    %v4889 = vmax.f32 %v4870, 0.0
    %v4890 = vmax.f32 %v4872, 0.0
    %v4891 = vmax.f32 %v4875, 0.0
    %v4892 = vmax.f32 %v4877, 0.0
    %v4893 = vmax.f32 %v4880, 0.0
    %v4894 = vmax.f32 %v4882, 0.0
    %v4895 = vmax.f32 %v4885, 0.0
    %v4896 = vmax.f32 %v4887, 0.0
    %v4897 = vpack.c.bf16 %v4890, %v4889
    %v4898 = vpack.c.bf16 %v4892, %v4891
    %v4899 = vpack.c.bf16 %v4894, %v4893
    %v4900 = vpack.c.bf16 %v4896, %v4895
    %v4902 = vperm.slane %v4041, 0
    %v4908 = vunpack.c.l.b16 %v4036
    %v4909 = vunpack.c.l.b16 %v4037
    %v4910 = vunpack.c.l.b16 %v4038
    %v4911 = vunpack.c.l.b16 %v4039
    %v4912 = vpack.c.b16 %v4909, %v4908
    %v4913 = vpack.c.b16 %v4911, %v4910
    %v4917 = vsel %vm296, %v4897, 0
    %v4920 = vsel %vm296, %v4898, 0
    %v4923 = vsel %vm296, %v4899, 0
    %v4926 = vsel %vm296, %v4900, 0
    %4928 = vmatpush.bf16.msra.mxu0 0
    %4929 = vmatpush.bf16.msra.mxu0 0
    %4930 = vmatpush.bf16.msra.mxu0 0
    %4931 = vmatpush.bf16.msra.mxu0 0
    %4932 = vmatpush.bf16.msra.mxu0 0
    %4933 = vmatpush.bf16.msra.mxu0 0
    %4934 = vmatpush.bf16.msra.mxu0 %v4913
    %4935 = vmatpush.bf16.msra.mxu0 %v4912
    %4936 = vmatmul.bf16.gmra.mxu0 %v4917
    %v4937 = vpop.f32.mrf.mxu0
    %v4938 = vadd.f32 %v4902, %v4937
    %v4939 = vpop.f32.mrf.mxu0
    %v4940 = vadd.f32 %v4902, %v4939
    %4941 = vmatmul.bf16.gmra.mxu0 %v4920
    %v4942 = vpop.f32.mrf.mxu0
    %v4943 = vadd.f32 %v4902, %v4942
    %v4944 = vpop.f32.mrf.mxu0
    %v4945 = vadd.f32 %v4902, %v4944
    %4946 = vmatmul.bf16.gmra.mxu0 %v4923
    %v4947 = vpop.f32.mrf.mxu0
    %v4948 = vadd.f32 %v4902, %v4947
    %v4949 = vpop.f32.mrf.mxu0
    %v4950 = vadd.f32 %v4902, %v4949
    %4951 = vmatmul.bf16.gmra.mxu0 %v4926
    %v4952 = vpop.f32.mrf.mxu0
    %v4953 = vadd.f32 %v4902, %v4952
    %v4954 = vpop.f32.mrf.mxu0
    %v4955 = vadd.f32 %v4902, %v4954
    %4956 = vdwg.mxu0
    %v4957 = vadd.f32 %v4821, %v4938
    %v4958 = vadd.f32 %v4822, %v4940
    %v4959 = vadd.f32 %v4823, %v4943
    %v4960 = vadd.f32 %v4824, %v4945
    %v4961 = vadd.f32 %v4825, %v4948
    %v4962 = vadd.f32 %v4826, %v4950
    %v4963 = vadd.f32 %v4827, %v4953
    %v4964 = vadd.f32 %v4828, %v4955
    %v4965 = vsel %vm296, %v4957, 0.0
    %4966 = vadd.xlane.f32.xlu0 %v4965
    %v4967 = vpop.xlane.xlu0 %4966
    %v4968 = vsel %vm296, %v4958, 0.0
    %4969 = vadd.xlane.f32.xlu0 %v4968
    %v4970 = vpop.xlane.xlu0 %4969
    %v4971 = vsel %vm296, %v4959, 0.0
    %4972 = vadd.xlane.f32.xlu0 %v4971
    %v4973 = vpop.xlane.xlu0 %4972
    %v4974 = vsel %vm296, %v4960, 0.0
    %4975 = vadd.xlane.f32.xlu0 %v4974
    %v4976 = vpop.xlane.xlu0 %4975
    %v4977 = vsel %vm296, %v4961, 0.0
    %4978 = vadd.xlane.f32.xlu0 %v4977
    %v4979 = vpop.xlane.xlu0 %4978
    %v4980 = vsel %vm296, %v4962, 0.0
    %4981 = vadd.xlane.f32.xlu0 %v4980
    %v4982 = vpop.xlane.xlu0 %4981
    %v4983 = vsel %vm296, %v4963, 0.0
    %4984 = vadd.xlane.f32.xlu0 %v4983
    %v4985 = vpop.xlane.xlu0 %4984
    %v4986 = vsel %vm296, %v4964, 0.0
    %4987 = vadd.xlane.f32.xlu0 %v4986
    %v4988 = vpop.xlane.xlu0 %4987
    %v4989 = vmul.f32 %v4967, %v919
    %v4990 = vmul.f32 %v4970, %v919
    %v4991 = vmul.f32 %v4973, %v919
    %v4992 = vmul.f32 %v4976, %v919
    %v4993 = vmul.f32 %v4979, %v919
    %v4994 = vmul.f32 %v4982, %v919
    %v4995 = vmul.f32 %v4985, %v919
    %v4996 = vmul.f32 %v4988, %v919
    %v4997 = vsub.f32 %v4957, %v4989
    %v4998 = vsub.f32 %v4958, %v4990
    %v4999 = vsub.f32 %v4959, %v4991
    %v5000 = vsub.f32 %v4960, %v4992
    %v5001 = vsub.f32 %v4961, %v4993
    %v5002 = vsub.f32 %v4962, %v4994
    %v5003 = vsub.f32 %v4963, %v4995
    %v5004 = vsub.f32 %v4964, %v4996
    %v5005 = vmul.f32 %v4997, %v4997
    %v5006 = vmul.f32 %v4998, %v4998
    %v5007 = vmul.f32 %v4999, %v4999
    %v5008 = vmul.f32 %v5000, %v5000
    %v5009 = vmul.f32 %v5001, %v5001
    %v5010 = vmul.f32 %v5002, %v5002
    %v5011 = vmul.f32 %v5003, %v5003
    %v5012 = vmul.f32 %v5004, %v5004
    %v5013 = vsel %vm296, %v5005, 0.0
    %5014 = vadd.xlane.f32.xlu0 %v5013
    %v5015 = vpop.xlane.xlu0 %5014
    %v5016 = vsel %vm296, %v5006, 0.0
    %5017 = vadd.xlane.f32.xlu0 %v5016
    %v5018 = vpop.xlane.xlu0 %5017
    %v5019 = vsel %vm296, %v5007, 0.0
    %5020 = vadd.xlane.f32.xlu0 %v5019
    %v5021 = vpop.xlane.xlu0 %5020
    %v5022 = vsel %vm296, %v5008, 0.0
    %5023 = vadd.xlane.f32.xlu0 %v5022
    %v5024 = vpop.xlane.xlu0 %5023
    %v5025 = vsel %vm296, %v5009, 0.0
    %5026 = vadd.xlane.f32.xlu0 %v5025
    %v5027 = vpop.xlane.xlu0 %5026
    %v5028 = vsel %vm296, %v5010, 0.0
    %5029 = vadd.xlane.f32.xlu0 %v5028
    %v5030 = vpop.xlane.xlu0 %5029
    %v5031 = vsel %vm296, %v5011, 0.0
    %5032 = vadd.xlane.f32.xlu0 %v5031
    %v5033 = vpop.xlane.xlu0 %5032
    %v5034 = vsel %vm296, %v5012, 0.0
    %5035 = vadd.xlane.f32.xlu0 %v5034
    %v5036 = vpop.xlane.xlu0 %5035
    %v5037 = vmul.f32 %v5015, %v919
    %v5038 = vmul.f32 %v5018, %v919
    %v5039 = vmul.f32 %v5021, %v919
    %v5040 = vmul.f32 %v5024, %v919
    %v5041 = vmul.f32 %v5027, %v919
    %v5042 = vmul.f32 %v5030, %v919
    %v5043 = vmul.f32 %v5033, %v919
    %v5044 = vmul.f32 %v5036, %v919
    %v5045 = vadd.f32 %v5037, 1e-05
    %v5046 = vadd.f32 %v5038, 1e-05
    %v5047 = vadd.f32 %v5039, 1e-05
    %v5048 = vadd.f32 %v5040, 1e-05
    %v5049 = vadd.f32 %v5041, 1e-05
    %v5050 = vadd.f32 %v5042, 1e-05
    %v5051 = vadd.f32 %v5043, 1e-05
    %v5052 = vadd.f32 %v5044, 1e-05
    %v5053 = vrsqrt.pop %v5045
    %v5054 = vmul.f32 %v5053, %v5045
    %v5055 = vmul.f32 %v5054, %v5053
    %v5056 = vmul.f32 0.5, %v5055
    %v5057 = vsub.f32 1.5, %v5056
    %v5058 = vmul.f32 %v5053, %v5057
    %vm5059 = vweird.f32 %v5045
    %vm5060 = vweird.f32 %v5053
    %vm5061 = vmor %vm5059, %vm5060
    %v5062 = vsel %vm5061, %v5053, %v5058
    %v5063 = vrsqrt.pop %v5046
    %v5064 = vmul.f32 %v5063, %v5046
    %v5065 = vmul.f32 %v5064, %v5063
    %v5066 = vmul.f32 0.5, %v5065
    %v5067 = vsub.f32 1.5, %v5066
    %v5068 = vmul.f32 %v5063, %v5067
    %vm5069 = vweird.f32 %v5046
    %vm5070 = vweird.f32 %v5063
    %vm5071 = vmor %vm5069, %vm5070
    %v5072 = vsel %vm5071, %v5063, %v5068
    %v5073 = vrsqrt.pop %v5047
    %v5074 = vmul.f32 %v5073, %v5047
    %v5075 = vmul.f32 %v5074, %v5073
    %v5076 = vmul.f32 0.5, %v5075
    %v5077 = vsub.f32 1.5, %v5076
    %v5078 = vmul.f32 %v5073, %v5077
    %vm5079 = vweird.f32 %v5047
    %vm5080 = vweird.f32 %v5073
    %vm5081 = vmor %vm5079, %vm5080
    %v5082 = vsel %vm5081, %v5073, %v5078
    %v5083 = vrsqrt.pop %v5048
    %v5084 = vmul.f32 %v5083, %v5048
    %v5085 = vmul.f32 %v5084, %v5083
    %v5086 = vmul.f32 0.5, %v5085
    %v5087 = vsub.f32 1.5, %v5086
    %v5088 = vmul.f32 %v5083, %v5087
    %vm5089 = vweird.f32 %v5048
    %vm5090 = vweird.f32 %v5083
    %vm5091 = vmor %vm5089, %vm5090
    %v5092 = vsel %vm5091, %v5083, %v5088
    %v5093 = vrsqrt.pop %v5049
    %v5094 = vmul.f32 %v5093, %v5049
    %v5095 = vmul.f32 %v5094, %v5093
    %v5096 = vmul.f32 0.5, %v5095
    %v5097 = vsub.f32 1.5, %v5096
    %v5098 = vmul.f32 %v5093, %v5097
    %vm5099 = vweird.f32 %v5049
    %vm5100 = vweird.f32 %v5093
    %vm5101 = vmor %vm5099, %vm5100
    %v5102 = vsel %vm5101, %v5093, %v5098
    %v5103 = vrsqrt.pop %v5050
    %v5104 = vmul.f32 %v5103, %v5050
    %v5105 = vmul.f32 %v5104, %v5103
    %v5106 = vmul.f32 0.5, %v5105
    %v5107 = vsub.f32 1.5, %v5106
    %v5108 = vmul.f32 %v5103, %v5107
    %vm5109 = vweird.f32 %v5050
    %vm5110 = vweird.f32 %v5103
    %vm5111 = vmor %vm5109, %vm5110
    %v5112 = vsel %vm5111, %v5103, %v5108
    %v5113 = vrsqrt.pop %v5051
    %v5114 = vmul.f32 %v5113, %v5051
    %v5115 = vmul.f32 %v5114, %v5113
    %v5116 = vmul.f32 0.5, %v5115
    %v5117 = vsub.f32 1.5, %v5116
    %v5118 = vmul.f32 %v5113, %v5117
    %vm5119 = vweird.f32 %v5051
    %vm5120 = vweird.f32 %v5113
    %vm5121 = vmor %vm5119, %vm5120
    %v5122 = vsel %vm5121, %v5113, %v5118
    %v5123 = vrsqrt.pop %v5052
    %v5124 = vmul.f32 %v5123, %v5052
    %v5125 = vmul.f32 %v5124, %v5123
    %v5126 = vmul.f32 0.5, %v5125
    %v5127 = vsub.f32 1.5, %v5126
    %v5128 = vmul.f32 %v5123, %v5127
    %vm5129 = vweird.f32 %v5052
    %vm5130 = vweird.f32 %v5123
    %vm5131 = vmor %vm5129, %vm5130
    %v5132 = vsel %vm5131, %v5123, %v5128
    %v5133 = vmul.f32 %v4997, %v5062
    %v5134 = vmul.f32 %v4998, %v5072
    %v5135 = vmul.f32 %v4999, %v5082
    %v5136 = vmul.f32 %v5000, %v5092
    %v5137 = vmul.f32 %v5001, %v5102
    %v5138 = vmul.f32 %v5002, %v5112
    %v5139 = vmul.f32 %v5003, %v5122
    %v5140 = vmul.f32 %v5004, %v5132
    %v5141 = vperm.slane %v4013, 2
    %v5142 = vmul.f32 %v5133, %v5141
    %v5143 = vmul.f32 %v5134, %v5141
    %v5144 = vmul.f32 %v5135, %v5141
    %v5145 = vmul.f32 %v5136, %v5141
    %v5146 = vmul.f32 %v5137, %v5141
    %v5147 = vmul.f32 %v5138, %v5141
    %v5148 = vmul.f32 %v5139, %v5141
    %v5149 = vmul.f32 %v5140, %v5141
    %v5150 = vperm.slane %v4013, 3
    %v5151 = vadd.f32 %v5142, %v5150
    %v5152 = vadd.f32 %v5143, %v5150
    %v5153 = vadd.f32 %v5144, %v5150
    %v5154 = vadd.f32 %v5145, %v5150
    %v5155 = vadd.f32 %v5146, %v5150
    %v5156 = vadd.f32 %v5147, %v5150
    %v5157 = vadd.f32 %v5148, %v5150
    %v5158 = vadd.f32 %v5149, %v5150
    %s5159 = scalar_lea.vmem %s12, 48
    %v5160 = vld [vmem:[%s5159] sm:$0xf]
    %v5161 = vld [vmem:[%s5159 + $0x4] sm:$0xf]
    %v5162 = vld [vmem:[%s5159 + $0x8] sm:$0xf]
    %v5163 = vld [vmem:[%s5159 + $0xc] sm:$0xf]
    %s5164 = scalar_lea.vmem %s12, 64
    %v5165 = vld [vmem:[%s5164] sm:$0xf]
    %v5166 = vld [vmem:[%s5164 + $0x4] sm:$0xf]
    %v5167 = vld [vmem:[%s5164 + $0x8] sm:$0xf]
    %v5168 = vld [vmem:[%s5164 + $0xc] sm:$0xf]
    %s5169 = scalar_lea.vmem %s12, 80
    %v5170 = vld [vmem:[%s5169] sm:$0xf]
    %v5171 = vld [vmem:[%s5169 + $0x4] sm:$0xf]
    %v5172 = vld [vmem:[%s5169 + $0x8] sm:$0xf]
    %v5173 = vld [vmem:[%s5169 + $0xc] sm:$0xf]
    %s5174 = scalar_lea.vmem %s13, 1
    %v5175 = vld [vmem:[%s5174] sm:$0x1]
    %v5176 = vsel %vm296, %v2830, 0.0
    %v5177 = vsel %vm296, %v2832, 0.0
    %v5178 = vadd.f32 %v5176, %v5177
    %v5179 = vsel %vm296, %v2835, 0.0
    %v5180 = vadd.f32 %v5178, %v5179
    %v5181 = vsel %vm296, %v2837, 0.0
    %v5182 = vadd.f32 %v5180, %v5181
    %v5183 = vrot.slane %v5182, 4
    %v5184 = vadd.f32 %v5182, %v5183
    %v5185 = vrot.slane %v5184, 2
    %v5186 = vadd.f32 %v5184, %v5185
    %v5187 = vrot.slane %v5186, 1
    %v5188 = vadd.f32 %v5186, %v5187
    %v5189 = vmul.f32 %v5188, %v919
    %v5190 = vsel %vm296, %v2840, 0.0
    %v5191 = vsel %vm296, %v2842, 0.0
    %v5192 = vadd.f32 %v5190, %v5191
    %v5193 = vsel %vm296, %v2845, 0.0
    %v5194 = vadd.f32 %v5192, %v5193
    %v5195 = vsel %vm296, %v2847, 0.0
    %v5196 = vadd.f32 %v5194, %v5195
    %v5197 = vrot.slane %v5196, 4
    %v5198 = vadd.f32 %v5196, %v5197
    %v5199 = vrot.slane %v5198, 2
    %v5200 = vadd.f32 %v5198, %v5199
    %v5201 = vrot.slane %v5200, 1
    %v5202 = vadd.f32 %v5200, %v5201
    %v5203 = vmul.f32 %v5202, %v919
    %v5204 = vsel %vm2610, %v5189, %v5203
    %v5205 = vpack.c.bf16 %v5204, %v5204
    %v5210 = vunpack.c.l.b16 %v5170
    %v5211 = vunpack.c.l.b16 %v5171
    %v5212 = vunpack.c.l.b16 %v5172
    %v5213 = vunpack.c.l.b16 %v5173
    %v5214 = vpack.c.b16 %v5211, %v5210
    %v5215 = vpack.c.b16 %v5213, %v5212
    %v5219 = vsel %vm296, %v5205, 0
    %5221 = vmatpush.bf16.msra.mxu0 0
    %5222 = vmatpush.bf16.msra.mxu0 0
    %5223 = vmatpush.bf16.msra.mxu0 0
    %5224 = vmatpush.bf16.msra.mxu0 0
    %5225 = vmatpush.bf16.msra.mxu0 0
    %5226 = vmatpush.bf16.msra.mxu0 0
    %5227 = vmatpush.bf16.msra.mxu0 %v5215
    %5228 = vmatpush.bf16.msra.mxu0 %v5214
    %5229 = vmatmul.bf16.gmra.mxu0 %v5219
    %v5230 = vpop.f32.mrf.mxu0
    %v5231 = vadd.f32 0.0, %v5230
    %v5232 = vpop.f32.mrf.mxu0
    %5233 = vdwg.mxu0
    %v5234 = vperm.slane %v5231, 0
    %v5235 = vperm.slane %v5231, 1
    %v5236 = vpack.c.bf16 %v4005, %v4004
    %v5237 = vpack.c.bf16 %v4007, %v4006
    %v5238 = vpack.c.bf16 %v4009, %v4008
    %v5239 = vpack.c.bf16 %v4011, %v4010
    %v5240 = vpack.c.bf16 %v5152, %v5151
    %v5241 = vpack.c.bf16 %v5154, %v5153
    %v5242 = vpack.c.bf16 %v5156, %v5155
    %v5243 = vpack.c.bf16 %v5158, %v5157
    %v5248 = vunpack.c.l.b16 %v5165
    %v5249 = vunpack.c.l.b16 %v5166
    %v5250 = vunpack.c.l.b16 %v5167
    %v5251 = vunpack.c.l.b16 %v5168
    %v5252 = vpack.c.b16 %v5249, %v5248
    %v5253 = vpack.c.b16 %v5251, %v5250
    %v5257 = vsel %vm296, %v5240, 0
    %v5260 = vsel %vm296, %v5241, 0
    %v5263 = vsel %vm296, %v5242, 0
    %v5266 = vsel %vm296, %v5243, 0
    %5268 = vmatpush.bf16.msra.mxu0 0
    %5269 = vmatpush.bf16.msra.mxu0 0
    %5270 = vmatpush.bf16.msra.mxu0 0
    %5271 = vmatpush.bf16.msra.mxu0 0
    %5272 = vmatpush.bf16.msra.mxu0 0
    %5273 = vmatpush.bf16.msra.mxu0 0
    %5274 = vmatpush.bf16.msra.mxu0 %v5253
    %5275 = vmatpush.bf16.msra.mxu0 %v5252
    %5276 = vmatmul.bf16.gmra.mxu0 %v5257
    %v5277 = vpop.f32.mrf.mxu0
    %v5278 = vadd.f32 0.0, %v5277
    %v5279 = vpop.f32.mrf.mxu0
    %v5280 = vadd.f32 0.0, %v5279
    %5281 = vmatmul.bf16.gmra.mxu0 %v5260
    %v5282 = vpop.f32.mrf.mxu0
    %v5283 = vadd.f32 0.0, %v5282
    %v5284 = vpop.f32.mrf.mxu0
    %v5285 = vadd.f32 0.0, %v5284
    %5286 = vmatmul.bf16.gmra.mxu0 %v5263
    %v5287 = vpop.f32.mrf.mxu0
    %v5288 = vadd.f32 0.0, %v5287
    %v5289 = vpop.f32.mrf.mxu0
    %v5290 = vadd.f32 0.0, %v5289
    %5291 = vmatmul.bf16.gmra.mxu0 %v5266
    %v5292 = vpop.f32.mrf.mxu0
    %v5293 = vadd.f32 0.0, %v5292
    %v5294 = vpop.f32.mrf.mxu0
    %v5295 = vadd.f32 0.0, %v5294
    %5296 = vdwg.mxu0
    %v5301 = vunpack.c.l.b16 %v5160
    %v5302 = vunpack.c.l.b16 %v5161
    %v5303 = vunpack.c.l.b16 %v5162
    %v5304 = vunpack.c.l.b16 %v5163
    %v5305 = vpack.c.b16 %v5302, %v5301
    %v5306 = vpack.c.b16 %v5304, %v5303
    %v5310 = vsel %vm296, %v5236, 0
    %v5313 = vsel %vm296, %v5237, 0
    %v5316 = vsel %vm296, %v5238, 0
    %v5319 = vsel %vm296, %v5239, 0
    %5321 = vmatpush.bf16.msra.mxu0 0
    %5322 = vmatpush.bf16.msra.mxu0 0
    %5323 = vmatpush.bf16.msra.mxu0 0
    %5324 = vmatpush.bf16.msra.mxu0 0
    %5325 = vmatpush.bf16.msra.mxu0 0
    %5326 = vmatpush.bf16.msra.mxu0 0
    %5327 = vmatpush.bf16.msra.mxu0 %v5306
    %5328 = vmatpush.bf16.msra.mxu0 %v5305
    %5329 = vmatmul.bf16.gmra.mxu0 %v5310
    %v5330 = vpop.f32.mrf.mxu0
    %v5331 = vadd.f32 %v5278, %v5330
    %v5332 = vpop.f32.mrf.mxu0
    %v5333 = vadd.f32 %v5280, %v5332
    %5334 = vmatmul.bf16.gmra.mxu0 %v5313
    %v5335 = vpop.f32.mrf.mxu0
    %v5336 = vadd.f32 %v5283, %v5335
    %v5337 = vpop.f32.mrf.mxu0
    %v5338 = vadd.f32 %v5285, %v5337
    %5339 = vmatmul.bf16.gmra.mxu0 %v5316
    %v5340 = vpop.f32.mrf.mxu0
    %v5341 = vadd.f32 %v5288, %v5340
    %v5342 = vpop.f32.mrf.mxu0
    %v5343 = vadd.f32 %v5290, %v5342
    %5344 = vmatmul.bf16.gmra.mxu0 %v5319
    %v5345 = vpop.f32.mrf.mxu0
    %v5346 = vadd.f32 %v5293, %v5345
    %v5347 = vpop.f32.mrf.mxu0
    %v5348 = vadd.f32 %v5295, %v5347
    %5349 = vdwg.mxu0
    %v5350 = vadd.f32 %v5331, %v5234
    %v5351 = vadd.f32 %v5333, %v5234
    %v5352 = vadd.f32 %v5336, %v5234
    %v5353 = vadd.f32 %v5338, %v5234
    %v5354 = vadd.f32 %v5341, %v5235
    %v5355 = vadd.f32 %v5343, %v5235
    %v5356 = vadd.f32 %v5346, %v5235
    %v5357 = vadd.f32 %v5348, %v5235
    %v5359 = vperm.slane %v5175, 0
    %v5361 = vadd.f32 %v5350, %v5359
    %v5362 = vadd.f32 %v5351, %v5359
    %v5363 = vadd.f32 %v5352, %v5359
    %v5364 = vadd.f32 %v5353, %v5359
    %v5365 = vadd.f32 %v5354, %v5359
    %v5366 = vadd.f32 %v5355, %v5359
    %v5367 = vadd.f32 %v5356, %v5359
    %v5368 = vadd.f32 %v5357, %v5359
    %v5369 = vmax.f32 %v5361, 0.0
    %v5370 = vmax.f32 %v5362, 0.0
    %v5371 = vmax.f32 %v5363, 0.0
    %v5372 = vmax.f32 %v5364, 0.0
    %v5373 = vmax.f32 %v5365, 0.0
    %v5374 = vmax.f32 %v5366, 0.0
    %v5375 = vmax.f32 %v5367, 0.0
    %v5376 = vmax.f32 %v5368, 0.0
    %v5377 = vpack.c.bf16 %v5370, %v5369
    %v5378 = vpack.c.bf16 %v5372, %v5371
    %v5379 = vpack.c.bf16 %v5374, %v5373
    %v5380 = vpack.c.bf16 %v5376, %v5375
    %v5381 = vld [vmem:[#allocation19] sm:$0xf]
    %v5382 = vld [vmem:[#allocation19 + $0x4] sm:$0xf]
    %v5383 = vld [vmem:[#allocation19 + $0x8] sm:$0xf]
    %v5384 = vld [vmem:[#allocation19 + $0xc] sm:$0xf]
    %v5385 = vld [vmem:[%s17] sm:$0x1]
    %v5387 = vperm.slane %v5385, 0
    %v5393 = vunpack.c.l.b16 %v5381
    %v5394 = vunpack.c.l.b16 %v5382
    %v5395 = vunpack.c.l.b16 %v5383
    %v5396 = vunpack.c.l.b16 %v5384
    %v5397 = vpack.c.b16 %v5394, %v5393
    %v5398 = vpack.c.b16 %v5396, %v5395
    %v5402 = vsel %vm296, %v5377, 0
    %v5405 = vsel %vm296, %v5378, 0
    %v5408 = vsel %vm296, %v5379, 0
    %v5411 = vsel %vm296, %v5380, 0
    %5413 = vmatpush.bf16.msra.mxu0 0
    %5414 = vmatpush.bf16.msra.mxu0 0
    %5415 = vmatpush.bf16.msra.mxu0 0
    %5416 = vmatpush.bf16.msra.mxu0 0
    %5417 = vmatpush.bf16.msra.mxu0 0
    %5418 = vmatpush.bf16.msra.mxu0 0
    %5419 = vmatpush.bf16.msra.mxu0 %v5398
    %5420 = vmatpush.bf16.msra.mxu0 %v5397
    %5421 = vmatmul.bf16.gmra.mxu0 %v5402
    %v5422 = vpop.f32.mrf.mxu0
    %v5423 = vadd.f32 %v5387, %v5422
    %v5424 = vpop.f32.mrf.mxu0
    %v5425 = vadd.f32 %v5387, %v5424
    %5426 = vmatmul.bf16.gmra.mxu0 %v5405
    %v5427 = vpop.f32.mrf.mxu0
    %v5428 = vadd.f32 %v5387, %v5427
    %v5429 = vpop.f32.mrf.mxu0
    %v5430 = vadd.f32 %v5387, %v5429
    %5431 = vmatmul.bf16.gmra.mxu0 %v5408
    %v5432 = vpop.f32.mrf.mxu0
    %v5433 = vadd.f32 %v5387, %v5432
    %v5434 = vpop.f32.mrf.mxu0
    %v5435 = vadd.f32 %v5387, %v5434
    %5436 = vmatmul.bf16.gmra.mxu0 %v5411
    %v5437 = vpop.f32.mrf.mxu0
    %v5438 = vadd.f32 %v5387, %v5437
    %v5439 = vpop.f32.mrf.mxu0
    %v5440 = vadd.f32 %v5387, %v5439
    %5441 = vdwg.mxu0
    %5442 = vst [vmem:[#allocation20] sm:$0xff] %v5423
    %5443 = vst [vmem:[#allocation20 + $0x8] sm:$0xff] %v5425
    %5444 = vst [vmem:[#allocation20 + $0x10] sm:$0xff] %v5428
    %5445 = vst [vmem:[#allocation20 + $0x18] sm:$0xff] %v5430
    %5446 = vst [vmem:[#allocation20 + $0x20] sm:$0xff] %v5433
    %5447 = vst [vmem:[#allocation20 + $0x28] sm:$0xff] %v5435
    %5448 = vst [vmem:[#allocation20 + $0x30] sm:$0xff] %v5438
    %5449 = vst [vmem:[#allocation20 + $0x38] sm:$0xff] %v5440
    // Predicated region
    $region118: #{tpu_custom_call.1} parent=1 // pred_check
      _
    $region119: #{tpu_custom_call.1} parent=1 // pred_check_branch
      %5451 = sbr.rel (0) target = $region121
    $region120: #{tpu_custom_call.1} parent=1 // pred_region
      %5453 = vsyncadd [#allocation4], 0
      %s5454 = sshll.u32 [#allocation20], 4
      %s5455 = int_to_ptr.vmem [resolvable:$true] %s5454
      %s5456 = sshll.u32 %s18, 4
      %s5457 = int_to_ptr.hbm [resolvable:$true] %s5456
      %5462 = dma.vmem_to_hbm [thread:$0]  %s5455, 1024, %s5457, [#allocation4], 128, 128, 8
    $region121: #{tpu_custom_call.1} parent=1 // pred_fallthru
      _
    // Predicated region
    $region122: #{tpu_custom_call.1} parent=1 // pred_check
      _
    $region123: #{tpu_custom_call.1} parent=1 // pred_check_branch
      %5464 = sbr.rel (0) target = $region125
    $region124: #{tpu_custom_call.1} parent=1 // pred_region
      %5466 = dma.done [#allocation4], 1024
    $region125: #{tpu_custom_call.1} parent=1 // pred_fallthru
      _
    %5467 = vsyncpa [#allocation3], 1
    %5468 = vsyncpa [#allocation6], 1
    %5469 = vsyncpa [#allocation9], 1
    %5470 = vsyncpa [#allocation12], 1
    %5471 = vsyncpa [#allocation15], 1
    %5472 = vsyncpa [#allocation18], 1
    %5473 = vsyncpa [#allocation4], 1

</llo_original>
